<compile_context>
chip_gen: v5e
topology: v5e:2x2
jax: 0.10.0
libtpu: 0.0.40
codegen_flags: <defaults>
</compile_context>

<pallas_src>
import functools

import jax
import jax.numpy as jnp
import numpy as np
from jax.experimental import pallas as pl
from jax.experimental.pallas import tpu as pltpu


LANE = 128                      # channel padding target (lane-dense stores)
TM = 512                        # M row tile (multiple of 8, ~85% HBM roofline)
# 32 MiB is safe on every generation (v7x has 64 MiB physical VMEM); our tiles
# are small so the limit is not binding.
_CP_KW = dict(vmem_limit_bytes=32 * 1024 * 1024)


# ----------------------------- Pallas kernels ------------------------------

def _conv1x1_stats_kernel(x_ref, w_ref, y_ref, stats_ref):
    """y = x @ w (bf16 operands, f32 accumulation); bf16 store + BN partials."""
    y = jnp.dot(x_ref[...], w_ref[...], preferred_element_type=jnp.float32)
    y_ref[...] = y.astype(y_ref.dtype)
    stats_ref[0:1, :] = jnp.sum(y, axis=0, keepdims=True)
    stats_ref[1:2, :] = jnp.sum(y * y, axis=0, keepdims=True)


def _conv3x3_stats_kernel(y1_ref, scale_ref, shift_ref, mask_ref, w_ref,
                          y_ref, stats_ref, *, hs, ws):
    """BN1+ReLU applied once to conv1's (flat) per-image output, then a 3x3 conv
    (padding=1) as 9 roll-shifted matmuls accumulated in f32.  Boundary handling
    uses precomputed per-tap validity masks, so no halo padding and no unaligned
    window slices.  Also emits BN2 per-image partial statistics."""
    pix = hs * ws
    coutp = w_ref.shape[2]

    # BN1 + ReLU computed once per image (f32), on the bf16 conv1 output.
    z = jnp.maximum(
        y1_ref[...].astype(jnp.float32) * scale_ref[...] + shift_ref[...], 0.0)
    masks = mask_ref[...]                               # (pix, 9) f32, resident

    acc = jnp.zeros((pix, coutp), jnp.float32)
    for t in range(9):                                  # static 9-tap unrolled loop
        sy, sx = t // 3 - 1, t % 3 - 1                  # tap offsets in {-1,0,1}
        shift = (-(sy * ws + sx)) % pix                 # flat roll amount
        rolled = pltpu.roll(z, shift=shift, axis=0) if shift else z
        tap = (rolled * masks[:, t:t + 1]).astype(jnp.bfloat16)
        acc = acc + jnp.dot(tap, w_ref[t], preferred_element_type=jnp.float32)

    y_ref[...] = acc.astype(y_ref.dtype)
    stats_ref[0:1, :] = jnp.sum(acc, axis=0, keepdims=True)
    stats_ref[1:2, :] = jnp.sum(acc * acc, axis=0, keepdims=True)


def _bn_relu_conv_stats_kernel(y_ref, scale_ref, shift_ref, w_ref, o_ref,
                               stats_ref, *, tm, m_real):
    """z = relu(BN2(y)) fused on the input side, then z @ w3 + BN3 partials.
    Rows >= m_real (M padding / unwritten tail) are masked out."""
    i = pl.program_id(0)
    z = jnp.maximum(
        y_ref[...].astype(jnp.float32) * scale_ref[...] + shift_ref[...], 0.0)
    row = i * tm + jax.lax.broadcasted_iota(jnp.int32, (tm, 1), 0)
    z = jnp.where(row < m_real, z, 0.0)

    y = jnp.dot(z.astype(jnp.bfloat16), w_ref[...],
                preferred_element_type=jnp.float32)
    o_ref[...] = y.astype(o_ref.dtype)
    stats_ref[0:1, :] = jnp.sum(y, axis=0, keepdims=True)
    stats_ref[1:2, :] = jnp.sum(y * y, axis=0, keepdims=True)


def _final_branch_kernel(y3_ref, scale_ref, shift_ref, x_ref, wb_ref, bb_ref, o_ref):
    """out = relu(BN3(y3) + (x @ w_branch1 + b_branch1)) — shortcut conv fused."""
    s = jnp.dot(x_ref[...], wb_ref[...], preferred_element_type=jnp.float32) + bb_ref[...]
    o_ref[...] = jnp.maximum(
        y3_ref[...].astype(jnp.float32) * scale_ref[...] + shift_ref[...] + s, 0.0)


def _final_identity_kernel(y3_ref, scale_ref, shift_ref, x_ref, o_ref):
    o_ref[...] = jnp.maximum(
        y3_ref[...].astype(jnp.float32) * scale_ref[...] + shift_ref[...]
        + x_ref[...].astype(jnp.float32), 0.0)


# --------------------------- pallas_call wrappers ---------------------------

def _conv1x1_stats(x, w, tm):
    mp, kp = x.shape
    cp = w.shape[1]
    return pl.pallas_call(
        _conv1x1_stats_kernel,
        grid=(mp // tm,),
        in_specs=[pl.BlockSpec((tm, kp), lambda i: (i, 0)),
                  pl.BlockSpec((kp, cp), lambda i: (0, 0))],        # weight resident
        out_specs=[pl.BlockSpec((tm, cp), lambda i: (i, 0)),
                   pl.BlockSpec((None, 2, cp), lambda i: (i, 0, 0))],  # per-tile stats
        out_shape=[jax.ShapeDtypeStruct((mp, cp), jnp.bfloat16),
                   jax.ShapeDtypeStruct((mp // tm, 2, cp), jnp.float32)],
        compiler_params=pltpu.CompilerParams(
            dimension_semantics=("parallel",), **_CP_KW),
    )(x, w)


def _conv3x3_stats(y1_flat, scale, shift, masks, w_taps, n, hs, ws):
    mp, cinp = y1_flat.shape
    coutp = w_taps.shape[2]
    pix = hs * ws
    kern = functools.partial(_conv3x3_stats_kernel, hs=hs, ws=ws)
    # TODO(synk): pix (= hs*ws) must be a multiple of 8 when n > 1; strip-tile the
    # image rows (and per-strip stats) for large spatial sizes / odd shapes.
    return pl.pallas_call(
        kern,
        grid=(n,),
        in_specs=[pl.BlockSpec((pix, cinp), lambda i: (i, 0)),      # one image / step
                  pl.BlockSpec((1, cinp), lambda i: (0, 0)),
                  pl.BlockSpec((1, cinp), lambda i: (0, 0)),
                  pl.BlockSpec((pix, 9), lambda i: (0, 0)),         # tap masks, resident
                  pl.BlockSpec((9, cinp, coutp), lambda i: (0, 0, 0))],  # weights resident
        out_specs=[pl.BlockSpec((pix, coutp), lambda i: (i, 0)),
                   pl.BlockSpec((None, 2, coutp), lambda i: (i, 0, 0))],
        out_shape=[jax.ShapeDtypeStruct((mp, coutp), jnp.bfloat16),
                   jax.ShapeDtypeStruct((n, 2, coutp), jnp.float32)],
        compiler_params=pltpu.CompilerParams(
            dimension_semantics=("parallel",), **_CP_KW),
    )(y1_flat, scale, shift, masks, w_taps)


def _bn_relu_conv_stats(y, scale, shift, w, tm, m_real):
    mp, cinp = y.shape
    coutp = w.shape[1]
    kern = functools.partial(_bn_relu_conv_stats_kernel, tm=tm, m_real=m_real)
    return pl.pallas_call(
        kern,
        grid=(mp // tm,),
        in_specs=[pl.BlockSpec((tm, cinp), lambda i: (i, 0)),
                  pl.BlockSpec((1, cinp), lambda i: (0, 0)),
                  pl.BlockSpec((1, cinp), lambda i: (0, 0)),
                  pl.BlockSpec((cinp, coutp), lambda i: (0, 0))],
        out_specs=[pl.BlockSpec((tm, coutp), lambda i: (i, 0)),
                   pl.BlockSpec((None, 2, coutp), lambda i: (i, 0, 0))],
        out_shape=[jax.ShapeDtypeStruct((mp, coutp), jnp.bfloat16),
                   jax.ShapeDtypeStruct((mp // tm, 2, coutp), jnp.float32)],
        compiler_params=pltpu.CompilerParams(
            dimension_semantics=("parallel",), **_CP_KW),
    )(y, scale, shift, w)


def _final_fused(y3, scale, shift, x, wb, bb, tm):
    mp, coutp = y3.shape
    if wb is not None:
        kinp = x.shape[1]
        return pl.pallas_call(
            _final_branch_kernel,
            grid=(mp // tm,),
            in_specs=[pl.BlockSpec((tm, coutp), lambda i: (i, 0)),
                      pl.BlockSpec((1, coutp), lambda i: (0, 0)),
                      pl.BlockSpec((1, coutp), lambda i: (0, 0)),
                      pl.BlockSpec((tm, kinp), lambda i: (i, 0)),
                      pl.BlockSpec((kinp, coutp), lambda i: (0, 0)),
                      pl.BlockSpec((1, coutp), lambda i: (0, 0))],
            out_specs=pl.BlockSpec((tm, coutp), lambda i: (i, 0)),
            out_shape=jax.ShapeDtypeStruct((mp, coutp), jnp.float32),
            compiler_params=pltpu.CompilerParams(
                dimension_semantics=("parallel",), **_CP_KW),
        )(y3, scale, shift, x, wb, bb)
    return pl.pallas_call(
        _final_identity_kernel,
        grid=(mp // tm,),
        in_specs=[pl.BlockSpec((tm, coutp), lambda i: (i, 0)),
                  pl.BlockSpec((1, coutp), lambda i: (0, 0)),
                  pl.BlockSpec((1, coutp), lambda i: (0, 0)),
                  pl.BlockSpec((tm, coutp), lambda i: (i, 0))],
        out_specs=pl.BlockSpec((tm, coutp), lambda i: (i, 0)),
        out_shape=jax.ShapeDtypeStruct((mp, coutp), jnp.float32),
        compiler_params=pltpu.CompilerParams(
            dimension_semantics=("parallel",), **_CP_KW),
    )(y3, scale, shift, x)


# ------------------------------- JAX glue -----------------------------------

def _round_up(v, m):
    return (v + m - 1) // m * m


def _pad2(a, r, c):
    return jnp.pad(a, ((0, r - a.shape[0]), (0, c - a.shape[1])))


def _w1x1(w_oihw, rp, cp):
    # (Cout, Cin, 1, 1) -> channel-padded (Cin_p, Cout_p) bf16
    return _pad2(w_oihw[:, :, 0, 0].T, rp, cp).astype(jnp.bfloat16)


def _w3x3_taps(w_oihw, cp):
    # (Cout, Cin, 3, 3) -> (9, Cin_p, Cout_p) bf16, tap index t = 3*kh + kw
    co, ci, kh, kw = w_oihw.shape
    t = jnp.transpose(w_oihw, (2, 3, 1, 0)).reshape(kh * kw, ci, co)
    return jnp.pad(t, ((0, 0), (0, cp - ci), (0, cp - co))).astype(jnp.bfloat16)


def _tap_masks(hs, ws):
    # mask[r, t] = 1 iff output pixel r = y*ws + x has a valid (in-bounds)
    # neighbour at (y + t//3 - 1, x + t%3 - 1); zero-pads the 3x3 conv halo.
    y = jnp.arange(hs, dtype=jnp.int32)[:, None]
    x = jnp.arange(ws, dtype=jnp.int32)[None, :]
    cols = []
    for t in range(9):
        sy, sx = t // 3 - 1, t % 3 - 1
        valid = (y + sy >= 0) & (y + sy < hs) & (x + sx >= 0) & (x + sx < ws)
        cols.append(valid.reshape(hs * ws))
    return jnp.stack(cols, axis=1).astype(jnp.float32)          # (hs*ws, 9)


def _bn_scale_shift(stats, gamma_p, beta_p, count, eps=1e-5):
    # stats row 0 = sum, row 1 = sum-of-squares (f32 accumulation in-kernel).
    # TODO(synk): E[x^2]-E[x]^2 loses precision for very large M; use Welford then.
    mean = stats[0] / count
    var = jnp.maximum(stats[1] / count - mean * mean, 0.0)
    scale = gamma_p * jax.lax.rsqrt(var + eps)
    shift = beta_p - mean * scale
    cp = gamma_p.shape[0]
    return scale.reshape(1, cp), shift.reshape(1, cp)


def residual_block_forward(x_nchw, params, *, strides=1, use_branch=True, eps=1e-5):
    n, cin, h, w = x_nchw.shape
    cout, cmid = params["b2_w3"].shape[0], params["b2_w1"].shape[0]
    if not use_branch:
        assert cin == cout and strides == 1, \
            "identity shortcut requires in_channel == output_channel and strides == 1"

    cin_p = _round_up(cin, LANE)
    cmid_p = _round_up(cmid, LANE)
    cout_p = _round_up(cout, LANE)

    # NHWC; a 1x1 conv with stride s == spatial subsample then 1x1 conv.
    xs = jnp.transpose(x_nchw, (0, 2, 3, 1))[:, ::strides, ::strides, :]
    hs, ws = xs.shape[1], xs.shape[2]
    m = n * hs * ws
    tm = TM if m >= TM else _round_up(m, 8)
    mp = _round_up(m, tm)

    xs_flat = jnp.pad(xs.reshape(m, cin), ((0, mp - m), (0, cin_p - cin)))
    xs_flat = xs_flat.astype(jnp.bfloat16)              # matmul operand only

    # Channel-padded weights / BN params (conv biases preceding a BN dropped).
    w1 = _w1x1(params["b2_w1"], cin_p, cmid_p)
    w2 = _w3x3_taps(params["b2_w2"], cmid_p)
    w3 = _w1x1(params["b2_w3"], cmid_p, cout_p)
    g1 = jnp.pad(params["bn1_g"], (0, cmid_p - cmid))
    b1 = jnp.pad(params["bn1_b"], (0, cmid_p - cmid))
    g2 = jnp.pad(params["bn2_g"], (0, cmid_p - cmid))
    b2 = jnp.pad(params["bn2_b"], (0, cmid_p - cmid))
    g3 = jnp.pad(params["bn3_g"], (0, cout_p - cout))
    b3 = jnp.pad(params["bn3_b"], (0, cout_p - cout))

    # --- conv1 (1x1, stride) + BN1 batch statistics (per-tile partials) -----
    y1, st1 = _conv1x1_stats(xs_flat, w1, tm)            # y1: (mp, cmid_p) bf16
    sc1, sh1 = _bn_scale_shift(st1.sum(axis=0), g1, b1, m, eps)

    # --- BN1+ReLU fused into an in-kernel 3x3 conv + BN2 statistics ---------
    # K2 reads y1's flat rows directly (one image per block) — no halo pad, no
    # reshape/copy in HBM — and writes an (mp, cmid_p) output K3 consumes as-is.
    masks = _tap_masks(hs, ws)
    y2, st2 = _conv3x3_stats(y1, sc1, sh1, masks, w2, n, hs, ws)
    sc2, sh2 = _bn_scale_shift(st2.sum(axis=0), g2, b2, m, eps)

    # --- BN2+ReLU fused into conv3 (1x1) + BN3 statistics -------------------
    y3, st3 = _bn_relu_conv_stats(y2, sc2, sh2, w3, tm, m)
    sc3, sh3 = _bn_scale_shift(st3.sum(axis=0), g3, b3, m, eps)

    # --- BN3 + shortcut conv + residual add + ReLU, all fused ---------------
    if use_branch:
        wb = _w1x1(params["b1_w"], cin_p, cout_p)
        bb = jnp.pad(params["b1_b"], (0, cout_p - cout)).reshape(1, cout_p)
        out = _final_fused(y3, sc3, sh3, xs_flat, wb, bb, tm)
    else:
        out = _final_fused(y3, sc3, sh3, xs_flat, None, None, tm)

    out = out[:m, :cout].reshape(n, hs, ws, cout)
    return jnp.transpose(out, (0, 3, 1, 2))             # back to NCHW


# ------------------------ pure-JAX reference (NCHW) --------------------------

def _conv_ref(x, w, b, stride, pad):
    y = jax.lax.conv_general_dilated(
        x, w, window_strides=(stride, stride), padding=((pad, pad), (pad, pad)),
        dimension_numbers=("NCHW", "OIHW", "NCHW"))
    return y + b[None, :, None, None]


def _bn_ref(x, g, b, eps=1e-5):
    mean = x.mean(axis=(0, 2, 3), keepdims=True)
    var = ((x - mean) ** 2).mean(axis=(0, 2, 3), keepdims=True)
    return (x - mean) * jax.lax.rsqrt(var + eps) * g[None, :, None, None] \
        + b[None, :, None, None]


def residual_block_ref(x, p, *, strides=1, use_branch=True):
    y = _conv_ref(x, p["b2_w1"], p["b2_b1"], strides, 0)
    y = jnp.maximum(_bn_ref(y, p["bn1_g"], p["bn1_b"]), 0.0)
    y = _conv_ref(y, p["b2_w2"], p["b2_b2"], 1, 1)
    y = jnp.maximum(_bn_ref(y, p["bn2_g"], p["bn2_b"]), 0.0)
    y = _conv_ref(y, p["b2_w3"], p["b2_b3"], 1, 0)
    y = _bn_ref(y, p["bn3_g"], p["bn3_b"])
    s = _conv_ref(x, p["b1_w"], p["b1_b"], strides, 0) if use_branch else x
    return jnp.maximum(y + s, 0.0)


# --------------------------------- main --------------------------------------

def make_params(key, in_channel, out_channel):
    cmid = out_channel // 4
    ks = jax.random.split(key, 14)
    f32 = jnp.float32

    def w(k, shape):
        return 0.1 * jax.random.normal(k, shape, f32)

    return {
        "b1_w": w(ks[0], (out_channel, in_channel, 1, 1)),
        "b1_b": w(ks[1], (out_channel,)),
        "b2_w1": w(ks[2], (cmid, in_channel, 1, 1)),
        "b2_b1": w(ks[3], (cmid,)),
        "bn1_g": 1.0 + 0.1 * jax.random.normal(ks[4], (cmid,), f32),
        "bn1_b": 0.1 * jax.random.normal(ks[5], (cmid,), f32),
        "b2_w2": w(ks[6], (cmid, cmid, 3, 3)),
        "b2_b2": w(ks[7], (cmid,)),
        "bn2_g": 1.0 + 0.1 * jax.random.normal(ks[8], (cmid,), f32),
        "bn2_b": 0.1 * jax.random.normal(ks[9], (cmid,), f32),
        "b2_w3": w(ks[10], (out_channel, cmid, 1, 1)),
        "b2_b3": w(ks[11], (out_channel,)),
        "bn3_g": 1.0 + 0.1 * jax.random.normal(ks[12], (out_channel,), f32),
        "bn3_b": 0.1 * jax.random.normal(ks[13], (out_channel,), f32),
    }


if __name__ == "__main__":
    key = jax.random.PRNGKey(0)
    k_x, k_p = jax.random.split(key)

    N, CIN, COUT, H, W = 2, 4, 8, 16, 16
    STRIDES, USE_BRANCH = 1, True

    x = jax.random.normal(k_x, (N, CIN, H, W), jnp.float32)
    params = make_params(k_p, CIN, COUT)

    fwd = jax.jit(functools.partial(residual_block_forward,
                                    strides=STRIDES, use_branch=USE_BRANCH))
    out = jax.block_until_ready(fwd(x, params))
    ref = jax.block_until_ready(
        residual_block_ref(x, params, strides=STRIDES, use_branch=USE_BRANCH))

    assert out.shape == ref.shape == (N, COUT, H // STRIDES, W // STRIDES)
    out_np, ref_np = np.asarray(out), np.asarray(ref)
    assert np.all(np.isfinite(out_np))
    # bf16 MXU operands + bf16 intermediates with f32 accumulation.
    np.testing.assert_allclose(out_np, ref_np, rtol=3e-2, atol=3e-2)

    print("KERNEL_OK")
</pallas_src>

<mosaic_0001>
module attributes {stable_mosaic.version = 11 : i64} {
  func.func @_conv3x3_stats_kernel(%arg0: i32, %arg1: memref<256x128xbf16, #tpu.memory_space<vmem>>, %arg2: memref<1x128xf32, #tpu.memory_space<vmem>>, %arg3: memref<1x128xf32, #tpu.memory_space<vmem>>, %arg4: memref<256x9xf32, #tpu.memory_space<vmem>>, %arg5: memref<9x128x128xbf16, #tpu.memory_space<vmem>>, %arg6: memref<256x128xbf16, #tpu.memory_space<vmem>>, %arg7: memref<1x2x128xf32, #tpu.memory_space<vmem>>) attributes {dimension_semantics = [#tpu.dimension_semantics<parallel>], iteration_bounds = array<i64: 2>, scalar_prefetch = 0 : i64, scratch_operands = 0 : i64, tpu.core_type = #tpu.core_type<tc>, window_params = [{transform_indices = @transform_0, window_bounds = array<i64: 256, 128>}, {pipeline_mode = #tpu.pipeline_mode<synchronous>, transform_indices = @transform_1, window_bounds = array<i64: 1, 128>}, {pipeline_mode = #tpu.pipeline_mode<synchronous>, transform_indices = @transform_2, window_bounds = array<i64: 1, 128>}, {pipeline_mode = #tpu.pipeline_mode<synchronous>, transform_indices = @transform_3, window_bounds = array<i64: 256, 9>}, {pipeline_mode = #tpu.pipeline_mode<synchronous>, transform_indices = @transform_4, window_bounds = array<i64: 9, 128, 128>}, {transform_indices = @transform_5, window_bounds = array<i64: 256, 128>}, {transform_indices = @transform_6, window_bounds = array<i64: 1, 2, 128>}]} {
    %c0 = arith.constant 0 : index
    %c0_0 = arith.constant 0 : index
    %0 = vector.load %arg1[%c0, %c0_0] : memref<256x128xbf16, #tpu.memory_space<vmem>>, vector<256x128xbf16>
    %1 = arith.extf %0 : vector<256x128xbf16> to vector<256x128xf32>
    %c0_1 = arith.constant 0 : index
    %c0_2 = arith.constant 0 : index
    %2 = vector.load %arg2[%c0_1, %c0_2] : memref<1x128xf32, #tpu.memory_space<vmem>>, vector<1x128xf32>
    %3 = vector.broadcast %2 : vector<1x128xf32> to vector<256x128xf32>
    %4 = arith.mulf %1, %3 : vector<256x128xf32>
    %c0_3 = arith.constant 0 : index
    %c0_4 = arith.constant 0 : index
    %5 = vector.load %arg3[%c0_3, %c0_4] : memref<1x128xf32, #tpu.memory_space<vmem>>, vector<1x128xf32>
    %6 = vector.broadcast %5 : vector<1x128xf32> to vector<256x128xf32>
    %7 = arith.addf %4, %6 : vector<256x128xf32>
    %cst = arith.constant 0.000000e+00 : f32
    %8 = vector.broadcast %cst : f32 to vector<256x128xf32>
    %9 = arith.maximumf %7, %8 : vector<256x128xf32>
    %c0_5 = arith.constant 0 : index
    %c0_6 = arith.constant 0 : index
    %10 = vector.load %arg4[%c0_5, %c0_6] : memref<256x9xf32, #tpu.memory_space<vmem>>, vector<256x9xf32>
    %cst_7 = arith.constant 0.000000e+00 : f32
    %11 = vector.broadcast %cst_7 : f32 to vector<256x128xf32>
    %c17_i32 = arith.constant 17 : i32
    %12 = tpu.dynamic_rotate %9 by %c17_i32 dim 0 : vector<256x128xf32>, i32 -> vector<256x128xf32>
    %13 = vector.extract_strided_slice %10 {offsets = [0, 0], sizes = [256, 1], strides = [1, 1]} : vector<256x9xf32> to vector<256x1xf32>
    %14 = vector.broadcast %13 : vector<256x1xf32> to vector<256x128xf32>
    %15 = arith.mulf %12, %14 : vector<256x128xf32>
    %16 = arith.truncf %15 : vector<256x128xf32> to vector<256x128xbf16>
    %c0_8 = arith.constant 0 : index
    %c0_9 = arith.constant 0 : index
    %c0_10 = arith.constant 0 : index
    %17 = vector.load %arg5[%c0_8, %c0_9, %c0_10] : memref<9x128x128xbf16, #tpu.memory_space<vmem>>, vector<1x128x128xbf16>
    %18 = vector.shape_cast %17 : vector<1x128x128xbf16> to vector<128x128xbf16>
    %cst_11 = arith.constant dense<0.000000e+00> : vector<256x128xf32>
    %19 = tpu.matmul %16, %18, %cst_11 {dimension_numbers = #tpu.dot_dimension_numbers<[1], [0], [0], [1], [0, 0, 1, 1], [], []>} : vector<256x128xbf16>, vector<128x128xbf16>, vector<256x128xf32> -> vector<256x128xf32>
    %20 = arith.addf %11, %19 : vector<256x128xf32>
    %c16_i32 = arith.constant 16 : i32
    %21 = tpu.dynamic_rotate %9 by %c16_i32 dim 0 : vector<256x128xf32>, i32 -> vector<256x128xf32>
    %22 = vector.extract_strided_slice %10 {offsets = [0, 1], sizes = [256, 1], strides = [1, 1]} : vector<256x9xf32> to vector<256x1xf32>
    %23 = vector.broadcast %22 : vector<256x1xf32> to vector<256x128xf32>
    %24 = arith.mulf %21, %23 : vector<256x128xf32>
    %25 = arith.truncf %24 : vector<256x128xf32> to vector<256x128xbf16>
    %c1 = arith.constant 1 : index
    %c0_12 = arith.constant 0 : index
    %c0_13 = arith.constant 0 : index
    %26 = vector.load %arg5[%c1, %c0_12, %c0_13] : memref<9x128x128xbf16, #tpu.memory_space<vmem>>, vector<1x128x128xbf16>
    %27 = vector.shape_cast %26 : vector<1x128x128xbf16> to vector<128x128xbf16>
    %cst_14 = arith.constant dense<0.000000e+00> : vector<256x128xf32>
    %28 = tpu.matmul %25, %27, %cst_14 {dimension_numbers = #tpu.dot_dimension_numbers<[1], [0], [0], [1], [0, 0, 1, 1], [], []>} : vector<256x128xbf16>, vector<128x128xbf16>, vector<256x128xf32> -> vector<256x128xf32>
    %29 = arith.addf %20, %28 : vector<256x128xf32>
    %c15_i32 = arith.constant 15 : i32
    %30 = tpu.dynamic_rotate %9 by %c15_i32 dim 0 : vector<256x128xf32>, i32 -> vector<256x128xf32>
    %31 = vector.extract_strided_slice %10 {offsets = [0, 2], sizes = [256, 1], strides = [1, 1]} : vector<256x9xf32> to vector<256x1xf32>
    %32 = vector.broadcast %31 : vector<256x1xf32> to vector<256x128xf32>
    %33 = arith.mulf %30, %32 : vector<256x128xf32>
    %34 = arith.truncf %33 : vector<256x128xf32> to vector<256x128xbf16>
    %c2 = arith.constant 2 : index
    %c0_15 = arith.constant 0 : index
    %c0_16 = arith.constant 0 : index
    %35 = vector.load %arg5[%c2, %c0_15, %c0_16] : memref<9x128x128xbf16, #tpu.memory_space<vmem>>, vector<1x128x128xbf16>
    %36 = vector.shape_cast %35 : vector<1x128x128xbf16> to vector<128x128xbf16>
    %cst_17 = arith.constant dense<0.000000e+00> : vector<256x128xf32>
    %37 = tpu.matmul %34, %36, %cst_17 {dimension_numbers = #tpu.dot_dimension_numbers<[1], [0], [0], [1], [0, 0, 1, 1], [], []>} : vector<256x128xbf16>, vector<128x128xbf16>, vector<256x128xf32> -> vector<256x128xf32>
    %38 = arith.addf %29, %37 : vector<256x128xf32>
    %c1_i32 = arith.constant 1 : i32
    %39 = tpu.dynamic_rotate %9 by %c1_i32 dim 0 : vector<256x128xf32>, i32 -> vector<256x128xf32>
    %40 = vector.extract_strided_slice %10 {offsets = [0, 3], sizes = [256, 1], strides = [1, 1]} : vector<256x9xf32> to vector<256x1xf32>
    %41 = vector.broadcast %40 : vector<256x1xf32> to vector<256x128xf32>
    %42 = arith.mulf %39, %41 : vector<256x128xf32>
    %43 = arith.truncf %42 : vector<256x128xf32> to vector<256x128xbf16>
    %c3 = arith.constant 3 : index
    %c0_18 = arith.constant 0 : index
    %c0_19 = arith.constant 0 : index
    %44 = vector.load %arg5[%c3, %c0_18, %c0_19] : memref<9x128x128xbf16, #tpu.memory_space<vmem>>, vector<1x128x128xbf16>
    %45 = vector.shape_cast %44 : vector<1x128x128xbf16> to vector<128x128xbf16>
    %cst_20 = arith.constant dense<0.000000e+00> : vector<256x128xf32>
    %46 = tpu.matmul %43, %45, %cst_20 {dimension_numbers = #tpu.dot_dimension_numbers<[1], [0], [0], [1], [0, 0, 1, 1], [], []>} : vector<256x128xbf16>, vector<128x128xbf16>, vector<256x128xf32> -> vector<256x128xf32>
    %47 = arith.addf %38, %46 : vector<256x128xf32>
    %48 = vector.extract_strided_slice %10 {offsets = [0, 4], sizes = [256, 1], strides = [1, 1]} : vector<256x9xf32> to vector<256x1xf32>
    %49 = vector.broadcast %48 : vector<256x1xf32> to vector<256x128xf32>
    %50 = arith.mulf %9, %49 : vector<256x128xf32>
    %51 = arith.truncf %50 : vector<256x128xf32> to vector<256x128xbf16>
    %c4 = arith.constant 4 : index
    %c0_21 = arith.constant 0 : index
    %c0_22 = arith.constant 0 : index
    %52 = vector.load %arg5[%c4, %c0_21, %c0_22] : memref<9x128x128xbf16, #tpu.memory_space<vmem>>, vector<1x128x128xbf16>
    %53 = vector.shape_cast %52 : vector<1x128x128xbf16> to vector<128x128xbf16>
    %cst_23 = arith.constant dense<0.000000e+00> : vector<256x128xf32>
    %54 = tpu.matmul %51, %53, %cst_23 {dimension_numbers = #tpu.dot_dimension_numbers<[1], [0], [0], [1], [0, 0, 1, 1], [], []>} : vector<256x128xbf16>, vector<128x128xbf16>, vector<256x128xf32> -> vector<256x128xf32>
    %55 = arith.addf %47, %54 : vector<256x128xf32>
    %c255_i32 = arith.constant 255 : i32
    %56 = tpu.dynamic_rotate %9 by %c255_i32 dim 0 : vector<256x128xf32>, i32 -> vector<256x128xf32>
    %57 = vector.extract_strided_slice %10 {offsets = [0, 5], sizes = [256, 1], strides = [1, 1]} : vector<256x9xf32> to vector<256x1xf32>
    %58 = vector.broadcast %57 : vector<256x1xf32> to vector<256x128xf32>
    %59 = arith.mulf %56, %58 : vector<256x128xf32>
    %60 = arith.truncf %59 : vector<256x128xf32> to vector<256x128xbf16>
    %c5 = arith.constant 5 : index
    %c0_24 = arith.constant 0 : index
    %c0_25 = arith.constant 0 : index
    %61 = vector.load %arg5[%c5, %c0_24, %c0_25] : memref<9x128x128xbf16, #tpu.memory_space<vmem>>, vector<1x128x128xbf16>
    %62 = vector.shape_cast %61 : vector<1x128x128xbf16> to vector<128x128xbf16>
    %cst_26 = arith.constant dense<0.000000e+00> : vector<256x128xf32>
    %63 = tpu.matmul %60, %62, %cst_26 {dimension_numbers = #tpu.dot_dimension_numbers<[1], [0], [0], [1], [0, 0, 1, 1], [], []>} : vector<256x128xbf16>, vector<128x128xbf16>, vector<256x128xf32> -> vector<256x128xf32>
    %64 = arith.addf %55, %63 : vector<256x128xf32>
    %c241_i32 = arith.constant 241 : i32
    %65 = tpu.dynamic_rotate %9 by %c241_i32 dim 0 : vector<256x128xf32>, i32 -> vector<256x128xf32>
    %66 = vector.extract_strided_slice %10 {offsets = [0, 6], sizes = [256, 1], strides = [1, 1]} : vector<256x9xf32> to vector<256x1xf32>
    %67 = vector.broadcast %66 : vector<256x1xf32> to vector<256x128xf32>
    %68 = arith.mulf %65, %67 : vector<256x128xf32>
    %69 = arith.truncf %68 : vector<256x128xf32> to vector<256x128xbf16>
    %c6 = arith.constant 6 : index
    %c0_27 = arith.constant 0 : index
    %c0_28 = arith.constant 0 : index
    %70 = vector.load %arg5[%c6, %c0_27, %c0_28] : memref<9x128x128xbf16, #tpu.memory_space<vmem>>, vector<1x128x128xbf16>
    %71 = vector.shape_cast %70 : vector<1x128x128xbf16> to vector<128x128xbf16>
    %cst_29 = arith.constant dense<0.000000e+00> : vector<256x128xf32>
    %72 = tpu.matmul %69, %71, %cst_29 {dimension_numbers = #tpu.dot_dimension_numbers<[1], [0], [0], [1], [0, 0, 1, 1], [], []>} : vector<256x128xbf16>, vector<128x128xbf16>, vector<256x128xf32> -> vector<256x128xf32>
    %73 = arith.addf %64, %72 : vector<256x128xf32>
    %c240_i32 = arith.constant 240 : i32
    %74 = tpu.dynamic_rotate %9 by %c240_i32 dim 0 : vector<256x128xf32>, i32 -> vector<256x128xf32>
    %75 = vector.extract_strided_slice %10 {offsets = [0, 7], sizes = [256, 1], strides = [1, 1]} : vector<256x9xf32> to vector<256x1xf32>
    %76 = vector.broadcast %75 : vector<256x1xf32> to vector<256x128xf32>
    %77 = arith.mulf %74, %76 : vector<256x128xf32>
    %78 = arith.truncf %77 : vector<256x128xf32> to vector<256x128xbf16>
    %c7 = arith.constant 7 : index
    %c0_30 = arith.constant 0 : index
    %c0_31 = arith.constant 0 : index
    %79 = vector.load %arg5[%c7, %c0_30, %c0_31] : memref<9x128x128xbf16, #tpu.memory_space<vmem>>, vector<1x128x128xbf16>
    %80 = vector.shape_cast %79 : vector<1x128x128xbf16> to vector<128x128xbf16>
    %cst_32 = arith.constant dense<0.000000e+00> : vector<256x128xf32>
    %81 = tpu.matmul %78, %80, %cst_32 {dimension_numbers = #tpu.dot_dimension_numbers<[1], [0], [0], [1], [0, 0, 1, 1], [], []>} : vector<256x128xbf16>, vector<128x128xbf16>, vector<256x128xf32> -> vector<256x128xf32>
    %82 = arith.addf %73, %81 : vector<256x128xf32>
    %c239_i32 = arith.constant 239 : i32
    %83 = tpu.dynamic_rotate %9 by %c239_i32 dim 0 : vector<256x128xf32>, i32 -> vector<256x128xf32>
    %84 = vector.extract_strided_slice %10 {offsets = [0, 8], sizes = [256, 1], strides = [1, 1]} : vector<256x9xf32> to vector<256x1xf32>
    %85 = vector.broadcast %84 : vector<256x1xf32> to vector<256x128xf32>
    %86 = arith.mulf %83, %85 : vector<256x128xf32>
    %87 = arith.truncf %86 : vector<256x128xf32> to vector<256x128xbf16>
    %c8 = arith.constant 8 : index
    %c0_33 = arith.constant 0 : index
    %c0_34 = arith.constant 0 : index
    %88 = vector.load %arg5[%c8, %c0_33, %c0_34] : memref<9x128x128xbf16, #tpu.memory_space<vmem>>, vector<1x128x128xbf16>
    %89 = vector.shape_cast %88 : vector<1x128x128xbf16> to vector<128x128xbf16>
    %cst_35 = arith.constant dense<0.000000e+00> : vector<256x128xf32>
    %90 = tpu.matmul %87, %89, %cst_35 {dimension_numbers = #tpu.dot_dimension_numbers<[1], [0], [0], [1], [0, 0, 1, 1], [], []>} : vector<256x128xbf16>, vector<128x128xbf16>, vector<256x128xf32> -> vector<256x128xf32>
    %91 = arith.addf %82, %90 : vector<256x128xf32>
    %92 = arith.truncf %91 : vector<256x128xf32> to vector<256x128xbf16>
    %c0_36 = arith.constant 0 : index
    %c0_37 = arith.constant 0 : index
    %93 = vector.load %arg6[%c0_36, %c0_37] : memref<256x128xbf16, #tpu.memory_space<vmem>>, vector<256x128xbf16>
    tpu.vector_store %arg6[%c0_36, %c0_37], %92 {strides = array<i32>} : memref<256x128xbf16, #tpu.memory_space<vmem>>, vector<256x128xbf16>,
    %cst_38 = arith.constant dense<0.000000e+00> : vector<128xf32>
    %94 = vector.multi_reduction <add>, %91, %cst_38 [0] : vector<256x128xf32> to vector<128xf32>
    %95 = vector.shape_cast %94 : vector<128xf32> to vector<1x128xf32>
    %c0_39 = arith.constant 0 : index
    %c0_40 = arith.constant 0 : index
    %c0_41 = arith.constant 0 : index
    %96 = vector.load %arg7[%c0_39, %c0_40, %c0_41] : memref<1x2x128xf32, #tpu.memory_space<vmem>>, vector<1x1x128xf32>
    %97 = vector.shape_cast %96 : vector<1x1x128xf32> to vector<1x128xf32>
    %98 = vector.shape_cast %95 : vector<1x128xf32> to vector<1x1x128xf32>
    tpu.vector_store %arg7[%c0_39, %c0_40, %c0_41], %98 {strides = array<i32>} : memref<1x2x128xf32, #tpu.memory_space<vmem>>, vector<1x1x128xf32>,
    %99 = arith.mulf %91, %91 : vector<256x128xf32>
    %cst_42 = arith.constant dense<0.000000e+00> : vector<128xf32>
    %100 = vector.multi_reduction <add>, %99, %cst_42 [0] : vector<256x128xf32> to vector<128xf32>
    %101 = vector.shape_cast %100 : vector<128xf32> to vector<1x128xf32>
    %c0_43 = arith.constant 0 : index
    %c1_44 = arith.constant 1 : index
    %c0_45 = arith.constant 0 : index
    %102 = vector.load %arg7[%c0_43, %c1_44, %c0_45] : memref<1x2x128xf32, #tpu.memory_space<vmem>>, vector<1x1x128xf32>
    %103 = vector.shape_cast %102 : vector<1x1x128xf32> to vector<1x128xf32>
    %104 = vector.shape_cast %101 : vector<1x128xf32> to vector<1x1x128xf32>
    tpu.vector_store %arg7[%c0_43, %c1_44, %c0_45], %104 {strides = array<i32>} : memref<1x2x128xf32, #tpu.memory_space<vmem>>, vector<1x1x128xf32>,
    return
  }
  func.func @transform_0(%arg0: i32) -> (i32, i32) {
    %c0_i32 = arith.constant 0 : i32
    %c0_i32_0 = arith.constant 0 : i32
    return %arg0, %c0_i32 : i32, i32
  }
  func.func @transform_1(%arg0: i32) -> (i32, i32) {
    %c0_i32 = arith.constant 0 : i32
    %c0_i32_0 = arith.constant 0 : i32
    %c0_i32_1 = arith.constant 0 : i32
    return %c0_i32, %c0_i32_0 : i32, i32
  }
  func.func @transform_2(%arg0: i32) -> (i32, i32) {
    %c0_i32 = arith.constant 0 : i32
    %c0_i32_0 = arith.constant 0 : i32
    %c0_i32_1 = arith.constant 0 : i32
    return %c0_i32, %c0_i32_0 : i32, i32
  }
  func.func @transform_3(%arg0: i32) -> (i32, i32) {
    %c0_i32 = arith.constant 0 : i32
    %c0_i32_0 = arith.constant 0 : i32
    %c0_i32_1 = arith.constant 0 : i32
    return %c0_i32, %c0_i32_0 : i32, i32
  }
  func.func @transform_4(%arg0: i32) -> (i32, i32, i32) {
    %c0_i32 = arith.constant 0 : i32
    %c0_i32_0 = arith.constant 0 : i32
    %c0_i32_1 = arith.constant 0 : i32
    %c0_i32_2 = arith.constant 0 : i32
    return %c0_i32, %c0_i32_0, %c0_i32_1 : i32, i32, i32
  }
  func.func @transform_5(%arg0: i32) -> (i32, i32) {
    %c0_i32 = arith.constant 0 : i32
    %c0_i32_0 = arith.constant 0 : i32
    return %arg0, %c0_i32 : i32, i32
  }
  func.func @transform_6(%arg0: i32) -> (i32, i32, i32) {
    %c0_i32 = arith.constant 0 : i32
    %c0_i32_0 = arith.constant 0 : i32
    %c0_i32_1 = arith.constant 0 : i32
    return %arg0, %c0_i32, %c0_i32_0 : i32, i32, i32
  }
}

module attributes {stable_mosaic.version = 11 : i64} {
  func.func @_conv1x1_stats_kernel(%arg0: i32, %arg1: memref<512x128xbf16, #tpu.memory_space<vmem>>, %arg2: memref<128x128xbf16, #tpu.memory_space<vmem>>, %arg3: memref<512x128xbf16, #tpu.memory_space<vmem>>, %arg4: memref<1x2x128xf32, #tpu.memory_space<vmem>>) attributes {dimension_semantics = [#tpu.dimension_semantics<parallel>], iteration_bounds = array<i64: 1>, scalar_prefetch = 0 : i64, scratch_operands = 0 : i64, tpu.core_type = #tpu.core_type<tc>, window_params = [{transform_indices = @transform_0, window_bounds = array<i64: 512, 128>}, {pipeline_mode = #tpu.pipeline_mode<synchronous>, transform_indices = @transform_1, window_bounds = array<i64: 128, 128>}, {transform_indices = @transform_2, window_bounds = array<i64: 512, 128>}, {transform_indices = @transform_3, window_bounds = array<i64: 1, 2, 128>}]} {
    %c0 = arith.constant 0 : index
    %c0_0 = arith.constant 0 : index
    %0 = vector.load %arg1[%c0, %c0_0] : memref<512x128xbf16, #tpu.memory_space<vmem>>, vector<512x128xbf16>
    %c0_1 = arith.constant 0 : index
    %c0_2 = arith.constant 0 : index
    %1 = vector.load %arg2[%c0_1, %c0_2] : memref<128x128xbf16, #tpu.memory_space<vmem>>, vector<128x128xbf16>
    %cst = arith.constant dense<0.000000e+00> : vector<512x128xf32>
    %2 = tpu.matmul %0, %1, %cst {dimension_numbers = #tpu.dot_dimension_numbers<[1], [0], [0], [1], [0, 0, 1, 1], [], []>} : vector<512x128xbf16>, vector<128x128xbf16>, vector<512x128xf32> -> vector<512x128xf32>
    %3 = arith.truncf %2 : vector<512x128xf32> to vector<512x128xbf16>
    %c0_3 = arith.constant 0 : index
    %c0_4 = arith.constant 0 : index
    %4 = vector.load %arg3[%c0_3, %c0_4] : memref<512x128xbf16, #tpu.memory_space<vmem>>, vector<512x128xbf16>
    tpu.vector_store %arg3[%c0_3, %c0_4], %3 {strides = array<i32>} : memref<512x128xbf16, #tpu.memory_space<vmem>>, vector<512x128xbf16>,
    %cst_5 = arith.constant dense<0.000000e+00> : vector<128xf32>
    %5 = vector.multi_reduction <add>, %2, %cst_5 [0] : vector<512x128xf32> to vector<128xf32>
    %6 = vector.shape_cast %5 : vector<128xf32> to vector<1x128xf32>
    %c0_6 = arith.constant 0 : index
    %c0_7 = arith.constant 0 : index
    %c0_8 = arith.constant 0 : index
    %7 = vector.load %arg4[%c0_6, %c0_7, %c0_8] : memref<1x2x128xf32, #tpu.memory_space<vmem>>, vector<1x1x128xf32>
    %8 = vector.shape_cast %7 : vector<1x1x128xf32> to vector<1x128xf32>
    %9 = vector.shape_cast %6 : vector<1x128xf32> to vector<1x1x128xf32>
    tpu.vector_store %arg4[%c0_6, %c0_7, %c0_8], %9 {strides = array<i32>} : memref<1x2x128xf32, #tpu.memory_space<vmem>>, vector<1x1x128xf32>,
    %10 = arith.mulf %2, %2 : vector<512x128xf32>
    %cst_9 = arith.constant dense<0.000000e+00> : vector<128xf32>
    %11 = vector.multi_reduction <add>, %10, %cst_9 [0] : vector<512x128xf32> to vector<128xf32>
    %12 = vector.shape_cast %11 : vector<128xf32> to vector<1x128xf32>
    %c0_10 = arith.constant 0 : index
    %c1 = arith.constant 1 : index
    %c0_11 = arith.constant 0 : index
    %13 = vector.load %arg4[%c0_10, %c1, %c0_11] : memref<1x2x128xf32, #tpu.memory_space<vmem>>, vector<1x1x128xf32>
    %14 = vector.shape_cast %13 : vector<1x1x128xf32> to vector<1x128xf32>
    %15 = vector.shape_cast %12 : vector<1x128xf32> to vector<1x1x128xf32>
    tpu.vector_store %arg4[%c0_10, %c1, %c0_11], %15 {strides = array<i32>} : memref<1x2x128xf32, #tpu.memory_space<vmem>>, vector<1x1x128xf32>,
    return
  }
  func.func @transform_0(%arg0: i32) -> (i32, i32) {
    %c0_i32 = arith.constant 0 : i32
    %c0_i32_0 = arith.constant 0 : i32
    return %arg0, %c0_i32 : i32, i32
  }
  func.func @transform_1(%arg0: i32) -> (i32, i32) {
    %c0_i32 = arith.constant 0 : i32
    %c0_i32_0 = arith.constant 0 : i32
    %c0_i32_1 = arith.constant 0 : i32
    return %c0_i32, %c0_i32_0 : i32, i32
  }
  func.func @transform_2(%arg0: i32) -> (i32, i32) {
    %c0_i32 = arith.constant 0 : i32
    %c0_i32_0 = arith.constant 0 : i32
    return %arg0, %c0_i32 : i32, i32
  }
  func.func @transform_3(%arg0: i32) -> (i32, i32, i32) {
    %c0_i32 = arith.constant 0 : i32
    %c0_i32_0 = arith.constant 0 : i32
    %c0_i32_1 = arith.constant 0 : i32
    return %arg0, %c0_i32, %c0_i32_0 : i32, i32, i32
  }
}

module attributes {stable_mosaic.version = 11 : i64} {
  func.func @_bn_relu_conv_stats_kernel(%arg0: i32, %arg1: memref<512x128xbf16, #tpu.memory_space<vmem>>, %arg2: memref<1x128xf32, #tpu.memory_space<vmem>>, %arg3: memref<1x128xf32, #tpu.memory_space<vmem>>, %arg4: memref<128x128xbf16, #tpu.memory_space<vmem>>, %arg5: memref<512x128xbf16, #tpu.memory_space<vmem>>, %arg6: memref<1x2x128xf32, #tpu.memory_space<vmem>>) attributes {dimension_semantics = [#tpu.dimension_semantics<parallel>], iteration_bounds = array<i64: 1>, scalar_prefetch = 0 : i64, scratch_operands = 0 : i64, tpu.core_type = #tpu.core_type<tc>, window_params = [{transform_indices = @transform_0, window_bounds = array<i64: 512, 128>}, {pipeline_mode = #tpu.pipeline_mode<synchronous>, transform_indices = @transform_1, window_bounds = array<i64: 1, 128>}, {pipeline_mode = #tpu.pipeline_mode<synchronous>, transform_indices = @transform_2, window_bounds = array<i64: 1, 128>}, {pipeline_mode = #tpu.pipeline_mode<synchronous>, transform_indices = @transform_3, window_bounds = array<i64: 128, 128>}, {transform_indices = @transform_4, window_bounds = array<i64: 512, 128>}, {transform_indices = @transform_5, window_bounds = array<i64: 1, 2, 128>}]} {
    %c0 = arith.constant 0 : index
    %c0_0 = arith.constant 0 : index
    %0 = vector.load %arg1[%c0, %c0_0] : memref<512x128xbf16, #tpu.memory_space<vmem>>, vector<512x128xbf16>
    %1 = arith.extf %0 : vector<512x128xbf16> to vector<512x128xf32>
    %c0_1 = arith.constant 0 : index
    %c0_2 = arith.constant 0 : index
    %2 = vector.load %arg2[%c0_1, %c0_2] : memref<1x128xf32, #tpu.memory_space<vmem>>, vector<1x128xf32>
    %3 = vector.broadcast %2 : vector<1x128xf32> to vector<512x128xf32>
    %4 = arith.mulf %1, %3 : vector<512x128xf32>
    %c0_3 = arith.constant 0 : index
    %c0_4 = arith.constant 0 : index
    %5 = vector.load %arg3[%c0_3, %c0_4] : memref<1x128xf32, #tpu.memory_space<vmem>>, vector<1x128xf32>
    %6 = vector.broadcast %5 : vector<1x128xf32> to vector<512x128xf32>
    %7 = arith.addf %4, %6 : vector<512x128xf32>
    %cst = arith.constant 0.000000e+00 : f32
    %8 = vector.broadcast %cst : f32 to vector<512x128xf32>
    %9 = arith.maximumf %7, %8 : vector<512x128xf32>
    %c512_i32 = arith.constant 512 : i32
    %10 = arith.muli %arg0, %c512_i32 : i32
    %11 = tpu.iota {dimensions = array<i32: 0>} : vector<512x1xi32>
    %12 = vector.broadcast %10 : i32 to vector<512x1xi32>
    %13 = arith.addi %12, %11 : vector<512x1xi32>
    %c512_i32_5 = arith.constant 512 : i32
    %14 = vector.broadcast %c512_i32_5 : i32 to vector<512x1xi32>
    %15 = arith.cmpi slt, %13, %14 : vector<512x1xi32>
    %cst_6 = arith.constant 0.000000e+00 : f32
    %16 = vector.shape_cast %15 : vector<512x1xi1> to vector<512x1xi1>
    %17 = vector.broadcast %16 : vector<512x1xi1> to vector<512x128xi1>
    %18 = vector.broadcast %cst_6 : f32 to vector<512x128xf32>
    %19 = arith.select %17, %9, %18 : vector<512x128xi1>, vector<512x128xf32>
    %20 = arith.truncf %19 : vector<512x128xf32> to vector<512x128xbf16>
    %c0_7 = arith.constant 0 : index
    %c0_8 = arith.constant 0 : index
    %21 = vector.load %arg4[%c0_7, %c0_8] : memref<128x128xbf16, #tpu.memory_space<vmem>>, vector<128x128xbf16>
    %cst_9 = arith.constant dense<0.000000e+00> : vector<512x128xf32>
    %22 = tpu.matmul %20, %21, %cst_9 {dimension_numbers = #tpu.dot_dimension_numbers<[1], [0], [0], [1], [0, 0, 1, 1], [], []>} : vector<512x128xbf16>, vector<128x128xbf16>, vector<512x128xf32> -> vector<512x128xf32>
    %23 = arith.truncf %22 : vector<512x128xf32> to vector<512x128xbf16>
    %c0_10 = arith.constant 0 : index
    %c0_11 = arith.constant 0 : index
    %24 = vector.load %arg5[%c0_10, %c0_11] : memref<512x128xbf16, #tpu.memory_space<vmem>>, vector<512x128xbf16>
    tpu.vector_store %arg5[%c0_10, %c0_11], %23 {strides = array<i32>} : memref<512x128xbf16, #tpu.memory_space<vmem>>, vector<512x128xbf16>,
    %cst_12 = arith.constant dense<0.000000e+00> : vector<128xf32>
    %25 = vector.multi_reduction <add>, %22, %cst_12 [0] : vector<512x128xf32> to vector<128xf32>
    %26 = vector.shape_cast %25 : vector<128xf32> to vector<1x128xf32>
    %c0_13 = arith.constant 0 : index
    %c0_14 = arith.constant 0 : index
    %c0_15 = arith.constant 0 : index
    %27 = vector.load %arg6[%c0_13, %c0_14, %c0_15] : memref<1x2x128xf32, #tpu.memory_space<vmem>>, vector<1x1x128xf32>
    %28 = vector.shape_cast %27 : vector<1x1x128xf32> to vector<1x128xf32>
    %29 = vector.shape_cast %26 : vector<1x128xf32> to vector<1x1x128xf32>
    tpu.vector_store %arg6[%c0_13, %c0_14, %c0_15], %29 {strides = array<i32>} : memref<1x2x128xf32, #tpu.memory_space<vmem>>, vector<1x1x128xf32>,
    %30 = arith.mulf %22, %22 : vector<512x128xf32>
    %cst_16 = arith.constant dense<0.000000e+00> : vector<128xf32>
    %31 = vector.multi_reduction <add>, %30, %cst_16 [0] : vector<512x128xf32> to vector<128xf32>
    %32 = vector.shape_cast %31 : vector<128xf32> to vector<1x128xf32>
    %c0_17 = arith.constant 0 : index
    %c1 = arith.constant 1 : index
    %c0_18 = arith.constant 0 : index
    %33 = vector.load %arg6[%c0_17, %c1, %c0_18] : memref<1x2x128xf32, #tpu.memory_space<vmem>>, vector<1x1x128xf32>
    %34 = vector.shape_cast %33 : vector<1x1x128xf32> to vector<1x128xf32>
    %35 = vector.shape_cast %32 : vector<1x128xf32> to vector<1x1x128xf32>
    tpu.vector_store %arg6[%c0_17, %c1, %c0_18], %35 {strides = array<i32>} : memref<1x2x128xf32, #tpu.memory_space<vmem>>, vector<1x1x128xf32>,
    return
  }
  func.func @transform_0(%arg0: i32) -> (i32, i32) {
    %c0_i32 = arith.constant 0 : i32
    %c0_i32_0 = arith.constant 0 : i32
    return %arg0, %c0_i32 : i32, i32
  }
  func.func @transform_1(%arg0: i32) -> (i32, i32) {
    %c0_i32 = arith.constant 0 : i32
    %c0_i32_0 = arith.constant 0 : i32
    %c0_i32_1 = arith.constant 0 : i32
    return %c0_i32, %c0_i32_0 : i32, i32
  }
  func.func @transform_2(%arg0: i32) -> (i32, i32) {
    %c0_i32 = arith.constant 0 : i32
    %c0_i32_0 = arith.constant 0 : i32
    %c0_i32_1 = arith.constant 0 : i32
    return %c0_i32, %c0_i32_0 : i32, i32
  }
  func.func @transform_3(%arg0: i32) -> (i32, i32) {
    %c0_i32 = arith.constant 0 : i32
    %c0_i32_0 = arith.constant 0 : i32
    %c0_i32_1 = arith.constant 0 : i32
    return %c0_i32, %c0_i32_0 : i32, i32
  }
  func.func @transform_4(%arg0: i32) -> (i32, i32) {
    %c0_i32 = arith.constant 0 : i32
    %c0_i32_0 = arith.constant 0 : i32
    return %arg0, %c0_i32 : i32, i32
  }
  func.func @transform_5(%arg0: i32) -> (i32, i32, i32) {
    %c0_i32 = arith.constant 0 : i32
    %c0_i32_0 = arith.constant 0 : i32
    %c0_i32_1 = arith.constant 0 : i32
    return %arg0, %c0_i32, %c0_i32_0 : i32, i32, i32
  }
}

module attributes {stable_mosaic.version = 11 : i64} {
  func.func @_final_branch_kernel(%arg0: i32, %arg1: memref<512x128xbf16, #tpu.memory_space<vmem>>, %arg2: memref<1x128xf32, #tpu.memory_space<vmem>>, %arg3: memref<1x128xf32, #tpu.memory_space<vmem>>, %arg4: memref<512x128xbf16, #tpu.memory_space<vmem>>, %arg5: memref<128x128xbf16, #tpu.memory_space<vmem>>, %arg6: memref<1x128xf32, #tpu.memory_space<vmem>>, %arg7: memref<512x128xf32, #tpu.memory_space<vmem>>) attributes {dimension_semantics = [#tpu.dimension_semantics<parallel>], iteration_bounds = array<i64: 1>, scalar_prefetch = 0 : i64, scratch_operands = 0 : i64, tpu.core_type = #tpu.core_type<tc>, window_params = [{transform_indices = @transform_0, window_bounds = array<i64: 512, 128>}, {pipeline_mode = #tpu.pipeline_mode<synchronous>, transform_indices = @transform_1, window_bounds = array<i64: 1, 128>}, {pipeline_mode = #tpu.pipeline_mode<synchronous>, transform_indices = @transform_2, window_bounds = array<i64: 1, 128>}, {transform_indices = @transform_3, window_bounds = array<i64: 512, 128>}, {pipeline_mode = #tpu.pipeline_mode<synchronous>, transform_indices = @transform_4, window_bounds = array<i64: 128, 128>}, {pipeline_mode = #tpu.pipeline_mode<synchronous>, transform_indices = @transform_5, window_bounds = array<i64: 1, 128>}, {transform_indices = @transform_6, window_bounds = array<i64: 512, 128>}]} {
    %c0 = arith.constant 0 : index
    %c0_0 = arith.constant 0 : index
    %0 = vector.load %arg4[%c0, %c0_0] : memref<512x128xbf16, #tpu.memory_space<vmem>>, vector<512x128xbf16>
    %c0_1 = arith.constant 0 : index
    %c0_2 = arith.constant 0 : index
    %1 = vector.load %arg5[%c0_1, %c0_2] : memref<128x128xbf16, #tpu.memory_space<vmem>>, vector<128x128xbf16>
    %cst = arith.constant dense<0.000000e+00> : vector<512x128xf32>
    %2 = tpu.matmul %0, %1, %cst {dimension_numbers = #tpu.dot_dimension_numbers<[1], [0], [0], [1], [0, 0, 1, 1], [], []>} : vector<512x128xbf16>, vector<128x128xbf16>, vector<512x128xf32> -> vector<512x128xf32>
    %c0_3 = arith.constant 0 : index
    %c0_4 = arith.constant 0 : index
    %3 = vector.load %arg6[%c0_3, %c0_4] : memref<1x128xf32, #tpu.memory_space<vmem>>, vector<1x128xf32>
    %4 = vector.broadcast %3 : vector<1x128xf32> to vector<512x128xf32>
    %5 = arith.addf %2, %4 : vector<512x128xf32>
    %c0_5 = arith.constant 0 : index
    %c0_6 = arith.constant 0 : index
    %6 = vector.load %arg1[%c0_5, %c0_6] : memref<512x128xbf16, #tpu.memory_space<vmem>>, vector<512x128xbf16>
    %7 = arith.extf %6 : vector<512x128xbf16> to vector<512x128xf32>
    %c0_7 = arith.constant 0 : index
    %c0_8 = arith.constant 0 : index
    %8 = vector.load %arg2[%c0_7, %c0_8] : memref<1x128xf32, #tpu.memory_space<vmem>>, vector<1x128xf32>
    %9 = vector.broadcast %8 : vector<1x128xf32> to vector<512x128xf32>
    %10 = arith.mulf %7, %9 : vector<512x128xf32>
    %c0_9 = arith.constant 0 : index
    %c0_10 = arith.constant 0 : index
    %11 = vector.load %arg3[%c0_9, %c0_10] : memref<1x128xf32, #tpu.memory_space<vmem>>, vector<1x128xf32>
    %12 = vector.broadcast %11 : vector<1x128xf32> to vector<512x128xf32>
    %13 = arith.addf %10, %12 : vector<512x128xf32>
    %14 = arith.addf %13, %5 : vector<512x128xf32>
    %cst_11 = arith.constant 0.000000e+00 : f32
    %15 = vector.broadcast %cst_11 : f32 to vector<512x128xf32>
    %16 = arith.maximumf %14, %15 : vector<512x128xf32>
    %c0_12 = arith.constant 0 : index
    %c0_13 = arith.constant 0 : index
    %17 = vector.load %arg7[%c0_12, %c0_13] : memref<512x128xf32, #tpu.memory_space<vmem>>, vector<512x128xf32>
    tpu.vector_store %arg7[%c0_12, %c0_13], %16 {strides = array<i32>} : memref<512x128xf32, #tpu.memory_space<vmem>>, vector<512x128xf32>,
    return
  }
  func.func @transform_0(%arg0: i32) -> (i32, i32) {
    %c0_i32 = arith.constant 0 : i32
    %c0_i32_0 = arith.constant 0 : i32
    return %arg0, %c0_i32 : i32, i32
  }
  func.func @transform_1(%arg0: i32) -> (i32, i32) {
    %c0_i32 = arith.constant 0 : i32
    %c0_i32_0 = arith.constant 0 : i32
    %c0_i32_1 = arith.constant 0 : i32
    return %c0_i32, %c0_i32_0 : i32, i32
  }
  func.func @transform_2(%arg0: i32) -> (i32, i32) {
    %c0_i32 = arith.constant 0 : i32
    %c0_i32_0 = arith.constant 0 : i32
    %c0_i32_1 = arith.constant 0 : i32
    return %c0_i32, %c0_i32_0 : i32, i32
  }
  func.func @transform_3(%arg0: i32) -> (i32, i32) {
    %c0_i32 = arith.constant 0 : i32
    %c0_i32_0 = arith.constant 0 : i32
    return %arg0, %c0_i32 : i32, i32
  }
  func.func @transform_4(%arg0: i32) -> (i32, i32) {
    %c0_i32 = arith.constant 0 : i32
    %c0_i32_0 = arith.constant 0 : i32
    %c0_i32_1 = arith.constant 0 : i32
    return %c0_i32, %c0_i32_0 : i32, i32
  }
  func.func @transform_5(%arg0: i32) -> (i32, i32) {
    %c0_i32 = arith.constant 0 : i32
    %c0_i32_0 = arith.constant 0 : i32
    %c0_i32_1 = arith.constant 0 : i32
    return %c0_i32, %c0_i32_0 : i32, i32
  }
  func.func @transform_6(%arg0: i32) -> (i32, i32) {
    %c0_i32 = arith.constant 0 : i32
    %c0_i32_0 = arith.constant 0 : i32
    return %arg0, %c0_i32 : i32, i32
  }
}

</mosaic_0001>

<llo_original>
// kernel: residual_block_forward.4
$region0: #{residual_block_forward.4}
  #allocation0 [shape = 'u32[]', space=smem, size = 0x4, offset = 0x4, fixed_abs, tag = 'smem constant byte address 0x4 - core index']
  #allocation1 [shape = 'u32[72,128]{1,0:T(1,128)}', space=vmem, size = 0x9000, scoped, tag = 'internal scratch']
  %s0 = inlined_call_operand.vmem [shape: bf16[512,128], index: 0, kind: input, shape index: {}]
  %s1 = inlined_call_operand.vmem [shape: bf16[128,128], index: 1, kind: input, shape index: {}]
  %s2 = inlined_call_operand.vmem [shape: bf16[512,128], index: 2, kind: output, shape index: {0}]
  %s3 = inlined_call_operand.vmem [shape: f32[1,2,128], index: 3, kind: output, shape index: {1}]
  %4 = xla_tuple %s2, %s3
  %s5 = sld [smem:[#allocation0]]
  $region26: #{residual_block_forward.4} parent=0
    _
  %s7 = ssub.s32 1, %s5
  %s8 = scalar_select 0, %s7, %s5
  // Predicated region
  $region2: #{residual_block_forward.4} parent=0 // pred_check
    _
  $region3: #{residual_block_forward.4} parent=0 // pred_check_branch
    %10 = sbr.rel (0) target = $region5
  $region4: #{residual_block_forward.4} parent=0 // pred_region
    _
  $region5: #{residual_block_forward.4} parent=0 // pred_fallthru
    _
  // Predicated region
  $region6: #{residual_block_forward.4} parent=0 // pred_check
    _
  $region7: #{residual_block_forward.4} parent=0 // pred_check_branch
    %12 = sbr.rel (0) target = $region9
  $region8: #{residual_block_forward.4} parent=0 // pred_region
    _
  $region9: #{residual_block_forward.4} parent=0 // pred_fallthru
    _
  %v13 = vld [vmem:[%s0] sm:$0xf]
  %v14 = vld [vmem:[%s0 + $0x4] sm:$0xf]
  %v15 = vld [vmem:[%s0 + $0x8] sm:$0xf]
  %v16 = vld [vmem:[%s0 + $0xc] sm:$0xf]
  %v17 = vld [vmem:[%s0 + $0x10] sm:$0xf]
  %v18 = vld [vmem:[%s0 + $0x14] sm:$0xf]
  %v19 = vld [vmem:[%s0 + $0x18] sm:$0xf]
  %v20 = vld [vmem:[%s0 + $0x1c] sm:$0xf]
  %v21 = vld [vmem:[%s0 + $0x20] sm:$0xf]
  %v22 = vld [vmem:[%s0 + $0x24] sm:$0xf]
  %v23 = vld [vmem:[%s0 + $0x28] sm:$0xf]
  %v24 = vld [vmem:[%s0 + $0x2c] sm:$0xf]
  %v25 = vld [vmem:[%s0 + $0x30] sm:$0xf]
  %v26 = vld [vmem:[%s0 + $0x34] sm:$0xf]
  %v27 = vld [vmem:[%s0 + $0x38] sm:$0xf]
  %v28 = vld [vmem:[%s0 + $0x3c] sm:$0xf]
  %v29 = vld [vmem:[%s0 + $0x40] sm:$0xf]
  %v30 = vld [vmem:[%s0 + $0x44] sm:$0xf]
  %v31 = vld [vmem:[%s0 + $0x48] sm:$0xf]
  %v32 = vld [vmem:[%s0 + $0x4c] sm:$0xf]
  %v33 = vld [vmem:[%s0 + $0x50] sm:$0xf]
  %v34 = vld [vmem:[%s0 + $0x54] sm:$0xf]
  %v35 = vld [vmem:[%s0 + $0x58] sm:$0xf]
  %v36 = vld [vmem:[%s0 + $0x5c] sm:$0xf]
  %v37 = vld [vmem:[%s0 + $0x60] sm:$0xf]
  %v38 = vld [vmem:[%s0 + $0x64] sm:$0xf]
  %v39 = vld [vmem:[%s0 + $0x68] sm:$0xf]
  %v40 = vld [vmem:[%s0 + $0x6c] sm:$0xf]
  %v41 = vld [vmem:[%s0 + $0x70] sm:$0xf]
  %v42 = vld [vmem:[%s0 + $0x74] sm:$0xf]
  %v43 = vld [vmem:[%s0 + $0x78] sm:$0xf]
  %v44 = vld [vmem:[%s0 + $0x7c] sm:$0xf]
  %v45 = vld [vmem:[%s0 + $0x80] sm:$0xf]
  %v46 = vld [vmem:[%s0 + $0x84] sm:$0xf]
  %v47 = vld [vmem:[%s0 + $0x88] sm:$0xf]
  %v48 = vld [vmem:[%s0 + $0x8c] sm:$0xf]
  %v49 = vld [vmem:[%s0 + $0x90] sm:$0xf]
  %v50 = vld [vmem:[%s0 + $0x94] sm:$0xf]
  %v51 = vld [vmem:[%s0 + $0x98] sm:$0xf]
  %v52 = vld [vmem:[%s0 + $0x9c] sm:$0xf]
  %v53 = vld [vmem:[%s0 + $0xa0] sm:$0xf]
  %v54 = vld [vmem:[%s0 + $0xa4] sm:$0xf]
  %v55 = vld [vmem:[%s0 + $0xa8] sm:$0xf]
  %v56 = vld [vmem:[%s0 + $0xac] sm:$0xf]
  %v57 = vld [vmem:[%s0 + $0xb0] sm:$0xf]
  %v58 = vld [vmem:[%s0 + $0xb4] sm:$0xf]
  %v59 = vld [vmem:[%s0 + $0xb8] sm:$0xf]
  %v60 = vld [vmem:[%s0 + $0xbc] sm:$0xf]
  %v61 = vld [vmem:[%s0 + $0xc0] sm:$0xf]
  %v62 = vld [vmem:[%s0 + $0xc4] sm:$0xf]
  %v63 = vld [vmem:[%s0 + $0xc8] sm:$0xf]
  %v64 = vld [vmem:[%s0 + $0xcc] sm:$0xf]
  %v65 = vld [vmem:[%s0 + $0xd0] sm:$0xf]
  %v66 = vld [vmem:[%s0 + $0xd4] sm:$0xf]
  %v67 = vld [vmem:[%s0 + $0xd8] sm:$0xf]
  %v68 = vld [vmem:[%s0 + $0xdc] sm:$0xf]
  %v69 = vld [vmem:[%s0 + $0xe0] sm:$0xf]
  %v70 = vld [vmem:[%s0 + $0xe4] sm:$0xf]
  %v71 = vld [vmem:[%s0 + $0xe8] sm:$0xf]
  %v72 = vld [vmem:[%s0 + $0xec] sm:$0xf]
  %v73 = vld [vmem:[%s0 + $0xf0] sm:$0xf]
  %v74 = vld [vmem:[%s0 + $0xf4] sm:$0xf]
  %v75 = vld [vmem:[%s0 + $0xf8] sm:$0xf]
  %v76 = vld [vmem:[%s0 + $0xfc] sm:$0xf]
  %v77 = vld [vmem:[%s1] sm:$0xf]
  %v78 = vld [vmem:[%s1 + $0x4] sm:$0xf]
  %v79 = vld [vmem:[%s1 + $0x8] sm:$0xf]
  %v80 = vld [vmem:[%s1 + $0xc] sm:$0xf]
  %v81 = vld [vmem:[%s1 + $0x10] sm:$0xf]
  %v82 = vld [vmem:[%s1 + $0x14] sm:$0xf]
  %v83 = vld [vmem:[%s1 + $0x18] sm:$0xf]
  %v84 = vld [vmem:[%s1 + $0x1c] sm:$0xf]
  %v85 = vld [vmem:[%s1 + $0x20] sm:$0xf]
  %v86 = vld [vmem:[%s1 + $0x24] sm:$0xf]
  %v87 = vld [vmem:[%s1 + $0x28] sm:$0xf]
  %v88 = vld [vmem:[%s1 + $0x2c] sm:$0xf]
  %v89 = vld [vmem:[%s1 + $0x30] sm:$0xf]
  %v90 = vld [vmem:[%s1 + $0x34] sm:$0xf]
  %v91 = vld [vmem:[%s1 + $0x38] sm:$0xf]
  %v92 = vld [vmem:[%s1 + $0x3c] sm:$0xf]
  %v157 = vunpack.c.l.b16 %v13
  %v158 = vunpack.c.l.b16 %v14
  %v159 = vunpack.c.l.b16 %v15
  %v160 = vunpack.c.l.b16 %v16
  %v161 = vunpack.c.l.b16 %v17
  %v162 = vunpack.c.l.b16 %v18
  %v163 = vunpack.c.l.b16 %v19
  %v164 = vunpack.c.l.b16 %v20
  %v165 = vunpack.c.l.b16 %v21
  %v166 = vunpack.c.l.b16 %v22
  %v167 = vunpack.c.l.b16 %v23
  %v168 = vunpack.c.l.b16 %v24
  %v169 = vunpack.c.l.b16 %v25
  %v170 = vunpack.c.l.b16 %v26
  %v171 = vunpack.c.l.b16 %v27
  %v172 = vunpack.c.l.b16 %v28
  %v173 = vunpack.c.l.b16 %v29
  %v174 = vunpack.c.l.b16 %v30
  %v175 = vunpack.c.l.b16 %v31
  %v176 = vunpack.c.l.b16 %v32
  %v177 = vunpack.c.l.b16 %v33
  %v178 = vunpack.c.l.b16 %v34
  %v179 = vunpack.c.l.b16 %v35
  %v180 = vunpack.c.l.b16 %v36
  %v181 = vunpack.c.l.b16 %v37
  %v182 = vunpack.c.l.b16 %v38
  %v183 = vunpack.c.l.b16 %v39
  %v184 = vunpack.c.l.b16 %v40
  %v185 = vunpack.c.l.b16 %v41
  %v186 = vunpack.c.l.b16 %v42
  %v187 = vunpack.c.l.b16 %v43
  %v188 = vunpack.c.l.b16 %v44
  %v189 = vunpack.c.l.b16 %v45
  %v190 = vunpack.c.l.b16 %v46
  %v191 = vunpack.c.l.b16 %v47
  %v192 = vunpack.c.l.b16 %v48
  %v193 = vunpack.c.l.b16 %v49
  %v194 = vunpack.c.l.b16 %v50
  %v195 = vunpack.c.l.b16 %v51
  %v196 = vunpack.c.l.b16 %v52
  %v197 = vunpack.c.l.b16 %v53
  %v198 = vunpack.c.l.b16 %v54
  %v199 = vunpack.c.l.b16 %v55
  %v200 = vunpack.c.l.b16 %v56
  %v201 = vunpack.c.l.b16 %v57
  %v202 = vunpack.c.l.b16 %v58
  %v203 = vunpack.c.l.b16 %v59
  %v204 = vunpack.c.l.b16 %v60
  %v205 = vunpack.c.l.b16 %v61
  %v206 = vunpack.c.l.b16 %v62
  %v207 = vunpack.c.l.b16 %v63
  %v208 = vunpack.c.l.b16 %v64
  %v209 = vunpack.c.l.b16 %v65
  %v210 = vunpack.c.l.b16 %v66
  %v211 = vunpack.c.l.b16 %v67
  %v212 = vunpack.c.l.b16 %v68
  %v213 = vunpack.c.l.b16 %v69
  %v214 = vunpack.c.l.b16 %v70
  %v215 = vunpack.c.l.b16 %v71
  %v216 = vunpack.c.l.b16 %v72
  %v217 = vunpack.c.l.b16 %v73
  %v218 = vunpack.c.l.b16 %v74
  %v219 = vunpack.c.l.b16 %v75
  %v220 = vunpack.c.l.b16 %v76
  %v221 = vpack.c.b16 %v158, %v157
  %v222 = vpack.c.b16 %v160, %v159
  %v223 = vpack.c.b16 %v162, %v161
  %v224 = vpack.c.b16 %v164, %v163
  %v225 = vpack.c.b16 %v166, %v165
  %v226 = vpack.c.b16 %v168, %v167
  %v227 = vpack.c.b16 %v170, %v169
  %v228 = vpack.c.b16 %v172, %v171
  %v229 = vpack.c.b16 %v174, %v173
  %v230 = vpack.c.b16 %v176, %v175
  %v231 = vpack.c.b16 %v178, %v177
  %v232 = vpack.c.b16 %v180, %v179
  %v233 = vpack.c.b16 %v182, %v181
  %v234 = vpack.c.b16 %v184, %v183
  %v235 = vpack.c.b16 %v186, %v185
  %v236 = vpack.c.b16 %v188, %v187
  %v237 = vpack.c.b16 %v190, %v189
  %v238 = vpack.c.b16 %v192, %v191
  %v239 = vpack.c.b16 %v194, %v193
  %v240 = vpack.c.b16 %v196, %v195
  %v241 = vpack.c.b16 %v198, %v197
  %v242 = vpack.c.b16 %v200, %v199
  %v243 = vpack.c.b16 %v202, %v201
  %v244 = vpack.c.b16 %v204, %v203
  %v245 = vpack.c.b16 %v206, %v205
  %v246 = vpack.c.b16 %v208, %v207
  %v247 = vpack.c.b16 %v210, %v209
  %v248 = vpack.c.b16 %v212, %v211
  %v249 = vpack.c.b16 %v214, %v213
  %v250 = vpack.c.b16 %v216, %v215
  %v251 = vpack.c.b16 %v218, %v217
  %v252 = vpack.c.b16 %v220, %v219
  %v301 = vunpack.c.l.b16 %v77
  %v302 = vunpack.c.l.b16 %v78
  %v303 = vunpack.c.l.b16 %v79
  %v304 = vunpack.c.l.b16 %v80
  %v305 = vunpack.c.l.b16 %v81
  %v306 = vunpack.c.l.b16 %v82
  %v307 = vunpack.c.l.b16 %v83
  %v308 = vunpack.c.l.b16 %v84
  %v309 = vunpack.c.l.b16 %v85
  %v310 = vunpack.c.l.b16 %v86
  %v311 = vunpack.c.l.b16 %v87
  %v312 = vunpack.c.l.b16 %v88
  %v313 = vunpack.c.l.b16 %v89
  %v314 = vunpack.c.l.b16 %v90
  %v315 = vunpack.c.l.b16 %v91
  %v316 = vunpack.c.l.b16 %v92
  %v317 = vpack.c.b16 %v302, %v301
  %v318 = vpack.c.b16 %v304, %v303
  %v319 = vpack.c.b16 %v306, %v305
  %v320 = vpack.c.b16 %v308, %v307
  %v321 = vpack.c.b16 %v310, %v309
  %v322 = vpack.c.b16 %v312, %v311
  %v323 = vpack.c.b16 %v314, %v313
  %v324 = vpack.c.b16 %v316, %v315
  %333 = vmatpush.bf16.msra.mxu0 %v324
  %334 = vmatpush.bf16.msra.mxu0 %v323
  %335 = vmatpush.bf16.msra.mxu0 %v322
  %336 = vmatpush.bf16.msra.mxu0 %v321
  %337 = vmatpush.bf16.msra.mxu0 %v320
  %338 = vmatpush.bf16.msra.mxu0 %v319
  %339 = vmatpush.bf16.msra.mxu0 %v318
  %340 = vmatpush.bf16.msra.mxu0 %v317
  %341 = vmatmul.bf16.gmra.mxu0 %v221
  %v342 = vpop.f32.mrf.mxu0
  %v343 = vadd.f32 0.0, %v342
  %v344 = vpop.f32.mrf.mxu0
  %v345 = vadd.f32 0.0, %v344
  %346 = vmatmul.bf16.gmra.mxu0 %v222
  %v347 = vpop.f32.mrf.mxu0
  %v348 = vadd.f32 0.0, %v347
  %v349 = vpop.f32.mrf.mxu0
  %v350 = vadd.f32 0.0, %v349
  %351 = vmatmul.bf16.gmra.mxu0 %v223
  %v352 = vpop.f32.mrf.mxu0
  %v353 = vadd.f32 0.0, %v352
  %v354 = vpop.f32.mrf.mxu0
  %v355 = vadd.f32 0.0, %v354
  %356 = vmatmul.bf16.gmra.mxu0 %v224
  %v357 = vpop.f32.mrf.mxu0
  %v358 = vadd.f32 0.0, %v357
  %v359 = vpop.f32.mrf.mxu0
  %v360 = vadd.f32 0.0, %v359
  %361 = vmatmul.bf16.gmra.mxu0 %v225
  %v362 = vpop.f32.mrf.mxu0
  %v363 = vadd.f32 0.0, %v362
  %v364 = vpop.f32.mrf.mxu0
  %v365 = vadd.f32 0.0, %v364
  %366 = vmatmul.bf16.gmra.mxu0 %v226
  %v367 = vpop.f32.mrf.mxu0
  %v368 = vadd.f32 0.0, %v367
  %v369 = vpop.f32.mrf.mxu0
  %v370 = vadd.f32 0.0, %v369
  %371 = vmatmul.bf16.gmra.mxu0 %v227
  %v372 = vpop.f32.mrf.mxu0
  %v373 = vadd.f32 0.0, %v372
  %v374 = vpop.f32.mrf.mxu0
  %v375 = vadd.f32 0.0, %v374
  %376 = vmatmul.bf16.gmra.mxu0 %v228
  %v377 = vpop.f32.mrf.mxu0
  %v378 = vadd.f32 0.0, %v377
  %v379 = vpop.f32.mrf.mxu0
  %v380 = vadd.f32 0.0, %v379
  %381 = vmatmul.bf16.gmra.mxu0 %v229
  %v382 = vpop.f32.mrf.mxu0
  %v383 = vadd.f32 0.0, %v382
  %v384 = vpop.f32.mrf.mxu0
  %v385 = vadd.f32 0.0, %v384
  %386 = vmatmul.bf16.gmra.mxu0 %v230
  %v387 = vpop.f32.mrf.mxu0
  %v388 = vadd.f32 0.0, %v387
  %v389 = vpop.f32.mrf.mxu0
  %v390 = vadd.f32 0.0, %v389
  %391 = vmatmul.bf16.gmra.mxu0 %v231
  %v392 = vpop.f32.mrf.mxu0
  %v393 = vadd.f32 0.0, %v392
  %v394 = vpop.f32.mrf.mxu0
  %v395 = vadd.f32 0.0, %v394
  %396 = vmatmul.bf16.gmra.mxu0 %v232
  %v397 = vpop.f32.mrf.mxu0
  %v398 = vadd.f32 0.0, %v397
  %v399 = vpop.f32.mrf.mxu0
  %v400 = vadd.f32 0.0, %v399
  %401 = vmatmul.bf16.gmra.mxu0 %v233
  %v402 = vpop.f32.mrf.mxu0
  %v403 = vadd.f32 0.0, %v402
  %v404 = vpop.f32.mrf.mxu0
  %v405 = vadd.f32 0.0, %v404
  %406 = vmatmul.bf16.gmra.mxu0 %v234
  %v407 = vpop.f32.mrf.mxu0
  %v408 = vadd.f32 0.0, %v407
  %v409 = vpop.f32.mrf.mxu0
  %v410 = vadd.f32 0.0, %v409
  %411 = vmatmul.bf16.gmra.mxu0 %v235
  %v412 = vpop.f32.mrf.mxu0
  %v413 = vadd.f32 0.0, %v412
  %v414 = vpop.f32.mrf.mxu0
  %v415 = vadd.f32 0.0, %v414
  %416 = vmatmul.bf16.gmra.mxu0 %v236
  %v417 = vpop.f32.mrf.mxu0
  %v418 = vadd.f32 0.0, %v417
  %v419 = vpop.f32.mrf.mxu0
  %v420 = vadd.f32 0.0, %v419
  %421 = vmatmul.bf16.gmra.mxu0 %v237
  %v422 = vpop.f32.mrf.mxu0
  %v423 = vadd.f32 0.0, %v422
  %v424 = vpop.f32.mrf.mxu0
  %v425 = vadd.f32 0.0, %v424
  %426 = vmatmul.bf16.gmra.mxu0 %v238
  %v427 = vpop.f32.mrf.mxu0
  %v428 = vadd.f32 0.0, %v427
  %v429 = vpop.f32.mrf.mxu0
  %v430 = vadd.f32 0.0, %v429
  %431 = vmatmul.bf16.gmra.mxu0 %v239
  %v432 = vpop.f32.mrf.mxu0
  %v433 = vadd.f32 0.0, %v432
  %v434 = vpop.f32.mrf.mxu0
  %v435 = vadd.f32 0.0, %v434
  %436 = vmatmul.bf16.gmra.mxu0 %v240
  %v437 = vpop.f32.mrf.mxu0
  %v438 = vadd.f32 0.0, %v437
  %v439 = vpop.f32.mrf.mxu0
  %v440 = vadd.f32 0.0, %v439
  %441 = vmatmul.bf16.gmra.mxu0 %v241
  %v442 = vpop.f32.mrf.mxu0
  %v443 = vadd.f32 0.0, %v442
  %v444 = vpop.f32.mrf.mxu0
  %v445 = vadd.f32 0.0, %v444
  %446 = vmatmul.bf16.gmra.mxu0 %v242
  %v447 = vpop.f32.mrf.mxu0
  %v448 = vadd.f32 0.0, %v447
  %v449 = vpop.f32.mrf.mxu0
  %v450 = vadd.f32 0.0, %v449
  %451 = vmatmul.bf16.gmra.mxu0 %v243
  %v452 = vpop.f32.mrf.mxu0
  %v453 = vadd.f32 0.0, %v452
  %v454 = vpop.f32.mrf.mxu0
  %v455 = vadd.f32 0.0, %v454
  %456 = vmatmul.bf16.gmra.mxu0 %v244
  %v457 = vpop.f32.mrf.mxu0
  %v458 = vadd.f32 0.0, %v457
  %v459 = vpop.f32.mrf.mxu0
  %v460 = vadd.f32 0.0, %v459
  %461 = vmatmul.bf16.gmra.mxu0 %v245
  %v462 = vpop.f32.mrf.mxu0
  %v463 = vadd.f32 0.0, %v462
  %v464 = vpop.f32.mrf.mxu0
  %v465 = vadd.f32 0.0, %v464
  %466 = vmatmul.bf16.gmra.mxu0 %v246
  %v467 = vpop.f32.mrf.mxu0
  %v468 = vadd.f32 0.0, %v467
  %v469 = vpop.f32.mrf.mxu0
  %v470 = vadd.f32 0.0, %v469
  %471 = vmatmul.bf16.gmra.mxu0 %v247
  %v472 = vpop.f32.mrf.mxu0
  %v473 = vadd.f32 0.0, %v472
  %v474 = vpop.f32.mrf.mxu0
  %v475 = vadd.f32 0.0, %v474
  %476 = vmatmul.bf16.gmra.mxu0 %v248
  %v477 = vpop.f32.mrf.mxu0
  %v478 = vadd.f32 0.0, %v477
  %v479 = vpop.f32.mrf.mxu0
  %v480 = vadd.f32 0.0, %v479
  %481 = vmatmul.bf16.gmra.mxu0 %v249
  %v482 = vpop.f32.mrf.mxu0
  %v483 = vadd.f32 0.0, %v482
  %v484 = vpop.f32.mrf.mxu0
  %v485 = vadd.f32 0.0, %v484
  %486 = vmatmul.bf16.gmra.mxu0 %v250
  %v487 = vpop.f32.mrf.mxu0
  %v488 = vadd.f32 0.0, %v487
  %v489 = vpop.f32.mrf.mxu0
  %v490 = vadd.f32 0.0, %v489
  %491 = vmatmul.bf16.gmra.mxu0 %v251
  %v492 = vpop.f32.mrf.mxu0
  %v493 = vadd.f32 0.0, %v492
  %v494 = vpop.f32.mrf.mxu0
  %v495 = vadd.f32 0.0, %v494
  %496 = vmatmul.bf16.gmra.mxu0 %v252
  %v497 = vpop.f32.mrf.mxu0
  %v498 = vadd.f32 0.0, %v497
  %v499 = vpop.f32.mrf.mxu0
  %v500 = vadd.f32 0.0, %v499
  %501 = vdwg.mxu0
  %v502 = vpack.c.bf16 %v343, %v343
  %v503 = vpack.c.bf16 %v345, %v345
  %v504 = vpack.c.bf16 %v348, %v348
  %v505 = vpack.c.bf16 %v350, %v350
  %v506 = vpack.c.bf16 %v353, %v353
  %v507 = vpack.c.bf16 %v355, %v355
  %v508 = vpack.c.bf16 %v358, %v358
  %v509 = vpack.c.bf16 %v360, %v360
  %v510 = vpack.c.bf16 %v363, %v363
  %v511 = vpack.c.bf16 %v365, %v365
  %v512 = vpack.c.bf16 %v368, %v368
  %v513 = vpack.c.bf16 %v370, %v370
  %v514 = vpack.c.bf16 %v373, %v373
  %v515 = vpack.c.bf16 %v375, %v375
  %v516 = vpack.c.bf16 %v378, %v378
  %v517 = vpack.c.bf16 %v380, %v380
  %v518 = vpack.c.bf16 %v383, %v383
  %v519 = vpack.c.bf16 %v385, %v385
  %v520 = vpack.c.bf16 %v388, %v388
  %v521 = vpack.c.bf16 %v390, %v390
  %v522 = vpack.c.bf16 %v393, %v393
  %v523 = vpack.c.bf16 %v395, %v395
  %v524 = vpack.c.bf16 %v398, %v398
  %v525 = vpack.c.bf16 %v400, %v400
  %v526 = vpack.c.bf16 %v403, %v403
  %v527 = vpack.c.bf16 %v405, %v405
  %v528 = vpack.c.bf16 %v408, %v408
  %v529 = vpack.c.bf16 %v410, %v410
  %v530 = vpack.c.bf16 %v413, %v413
  %v531 = vpack.c.bf16 %v415, %v415
  %v532 = vpack.c.bf16 %v418, %v418
  %v533 = vpack.c.bf16 %v420, %v420
  %v534 = vpack.c.bf16 %v423, %v423
  %v535 = vpack.c.bf16 %v425, %v425
  %v536 = vpack.c.bf16 %v428, %v428
  %v537 = vpack.c.bf16 %v430, %v430
  %v538 = vpack.c.bf16 %v433, %v433
  %v539 = vpack.c.bf16 %v435, %v435
  %v540 = vpack.c.bf16 %v438, %v438
  %v541 = vpack.c.bf16 %v440, %v440
  %v542 = vpack.c.bf16 %v443, %v443
  %v543 = vpack.c.bf16 %v445, %v445
  %v544 = vpack.c.bf16 %v448, %v448
  %v545 = vpack.c.bf16 %v450, %v450
  %v546 = vpack.c.bf16 %v453, %v453
  %v547 = vpack.c.bf16 %v455, %v455
  %v548 = vpack.c.bf16 %v458, %v458
  %v549 = vpack.c.bf16 %v460, %v460
  %v550 = vpack.c.bf16 %v463, %v463
  %v551 = vpack.c.bf16 %v465, %v465
  %v552 = vpack.c.bf16 %v468, %v468
  %v553 = vpack.c.bf16 %v470, %v470
  %v554 = vpack.c.bf16 %v473, %v473
  %v555 = vpack.c.bf16 %v475, %v475
  %v556 = vpack.c.bf16 %v478, %v478
  %v557 = vpack.c.bf16 %v480, %v480
  %v558 = vpack.c.bf16 %v483, %v483
  %v559 = vpack.c.bf16 %v485, %v485
  %v560 = vpack.c.bf16 %v488, %v488
  %v561 = vpack.c.bf16 %v490, %v490
  %v562 = vpack.c.bf16 %v493, %v493
  %v563 = vpack.c.bf16 %v495, %v495
  %v564 = vpack.c.bf16 %v498, %v498
  %v565 = vpack.c.bf16 %v500, %v500
  %566 = vst [vmem:[%s2] sm:$0xf] %v502
  %567 = vst [vmem:[%s2 + $0x4] sm:$0xf] %v503
  %568 = vst [vmem:[%s2 + $0x8] sm:$0xf] %v504
  %569 = vst [vmem:[%s2 + $0xc] sm:$0xf] %v505
  %570 = vst [vmem:[%s2 + $0x10] sm:$0xf] %v506
  %571 = vst [vmem:[%s2 + $0x14] sm:$0xf] %v507
  %572 = vst [vmem:[%s2 + $0x18] sm:$0xf] %v508
  %573 = vst [vmem:[%s2 + $0x1c] sm:$0xf] %v509
  %574 = vst [vmem:[%s2 + $0x20] sm:$0xf] %v510
  %575 = vst [vmem:[%s2 + $0x24] sm:$0xf] %v511
  %576 = vst [vmem:[%s2 + $0x28] sm:$0xf] %v512
  %577 = vst [vmem:[%s2 + $0x2c] sm:$0xf] %v513
  %578 = vst [vmem:[%s2 + $0x30] sm:$0xf] %v514
  %579 = vst [vmem:[%s2 + $0x34] sm:$0xf] %v515
  %580 = vst [vmem:[%s2 + $0x38] sm:$0xf] %v516
  %581 = vst [vmem:[%s2 + $0x3c] sm:$0xf] %v517
  %582 = vst [vmem:[%s2 + $0x40] sm:$0xf] %v518
  %583 = vst [vmem:[%s2 + $0x44] sm:$0xf] %v519
  %584 = vst [vmem:[%s2 + $0x48] sm:$0xf] %v520
  %585 = vst [vmem:[%s2 + $0x4c] sm:$0xf] %v521
  %586 = vst [vmem:[%s2 + $0x50] sm:$0xf] %v522
  %587 = vst [vmem:[%s2 + $0x54] sm:$0xf] %v523
  %588 = vst [vmem:[%s2 + $0x58] sm:$0xf] %v524
  %589 = vst [vmem:[%s2 + $0x5c] sm:$0xf] %v525
  %590 = vst [vmem:[%s2 + $0x60] sm:$0xf] %v526
  %591 = vst [vmem:[%s2 + $0x64] sm:$0xf] %v527
  %592 = vst [vmem:[%s2 + $0x68] sm:$0xf] %v528
  %593 = vst [vmem:[%s2 + $0x6c] sm:$0xf] %v529
  %594 = vst [vmem:[%s2 + $0x70] sm:$0xf] %v530
  %595 = vst [vmem:[%s2 + $0x74] sm:$0xf] %v531
  %596 = vst [vmem:[%s2 + $0x78] sm:$0xf] %v532
  %597 = vst [vmem:[%s2 + $0x7c] sm:$0xf] %v533
  %598 = vst [vmem:[%s2 + $0x80] sm:$0xf] %v534
  %599 = vst [vmem:[%s2 + $0x84] sm:$0xf] %v535
  %600 = vst [vmem:[%s2 + $0x88] sm:$0xf] %v536
  %601 = vst [vmem:[%s2 + $0x8c] sm:$0xf] %v537
  %602 = vst [vmem:[%s2 + $0x90] sm:$0xf] %v538
  %603 = vst [vmem:[%s2 + $0x94] sm:$0xf] %v539
  %604 = vst [vmem:[%s2 + $0x98] sm:$0xf] %v540
  %605 = vst [vmem:[%s2 + $0x9c] sm:$0xf] %v541
  %606 = vst [vmem:[%s2 + $0xa0] sm:$0xf] %v542
  %607 = vst [vmem:[%s2 + $0xa4] sm:$0xf] %v543
  %608 = vst [vmem:[%s2 + $0xa8] sm:$0xf] %v544
  %609 = vst [vmem:[%s2 + $0xac] sm:$0xf] %v545
  %610 = vst [vmem:[%s2 + $0xb0] sm:$0xf] %v546
  %611 = vst [vmem:[%s2 + $0xb4] sm:$0xf] %v547
  %612 = vst [vmem:[%s2 + $0xb8] sm:$0xf] %v548
  %613 = vst [vmem:[%s2 + $0xbc] sm:$0xf] %v549
  %614 = vst [vmem:[%s2 + $0xc0] sm:$0xf] %v550
  %615 = vst [vmem:[%s2 + $0xc4] sm:$0xf] %v551
  %616 = vst [vmem:[%s2 + $0xc8] sm:$0xf] %v552
  %617 = vst [vmem:[%s2 + $0xcc] sm:$0xf] %v553
  %618 = vst [vmem:[%s2 + $0xd0] sm:$0xf] %v554
  %619 = vst [vmem:[%s2 + $0xd4] sm:$0xf] %v555
  %620 = vst [vmem:[%s2 + $0xd8] sm:$0xf] %v556
  %621 = vst [vmem:[%s2 + $0xdc] sm:$0xf] %v557
  %622 = vst [vmem:[%s2 + $0xe0] sm:$0xf] %v558
  %623 = vst [vmem:[%s2 + $0xe4] sm:$0xf] %v559
  %624 = vst [vmem:[%s2 + $0xe8] sm:$0xf] %v560
  %625 = vst [vmem:[%s2 + $0xec] sm:$0xf] %v561
  %626 = vst [vmem:[%s2 + $0xf0] sm:$0xf] %v562
  %627 = vst [vmem:[%s2 + $0xf4] sm:$0xf] %v563
  %628 = vst [vmem:[%s2 + $0xf8] sm:$0xf] %v564
  %629 = vst [vmem:[%s2 + $0xfc] sm:$0xf] %v565
  %v630 = vadd.f32 %v343, %v345
  %v631 = vadd.f32 %v630, %v348
  %v632 = vadd.f32 %v631, %v350
  %v633 = vadd.f32 %v632, %v353
  %v634 = vadd.f32 %v633, %v355
  %v635 = vadd.f32 %v634, %v358
  %v636 = vadd.f32 %v635, %v360
  %v637 = vadd.f32 %v636, %v363
  %v638 = vadd.f32 %v637, %v365
  %v639 = vadd.f32 %v638, %v368
  %v640 = vadd.f32 %v639, %v370
  %v641 = vadd.f32 %v640, %v373
  %v642 = vadd.f32 %v641, %v375
  %v643 = vadd.f32 %v642, %v378
  %v644 = vadd.f32 %v643, %v380
  %v645 = vadd.f32 %v644, %v383
  %v646 = vadd.f32 %v645, %v385
  %v647 = vadd.f32 %v646, %v388
  %v648 = vadd.f32 %v647, %v390
  %v649 = vadd.f32 %v648, %v393
  %v650 = vadd.f32 %v649, %v395
  %v651 = vadd.f32 %v650, %v398
  %v652 = vadd.f32 %v651, %v400
  %v653 = vadd.f32 %v652, %v403
  %v654 = vadd.f32 %v653, %v405
  %v655 = vadd.f32 %v654, %v408
  %v656 = vadd.f32 %v655, %v410
  %v657 = vadd.f32 %v656, %v413
  %v658 = vadd.f32 %v657, %v415
  %v659 = vadd.f32 %v658, %v418
  %v660 = vadd.f32 %v659, %v420
  %v661 = vadd.f32 %v660, %v423
  %v662 = vadd.f32 %v661, %v425
  %v663 = vadd.f32 %v662, %v428
  %v664 = vadd.f32 %v663, %v430
  %v665 = vadd.f32 %v664, %v433
  %v666 = vadd.f32 %v665, %v435
  %v667 = vadd.f32 %v666, %v438
  %v668 = vadd.f32 %v667, %v440
  %v669 = vadd.f32 %v668, %v443
  %v670 = vadd.f32 %v669, %v445
  %v671 = vadd.f32 %v670, %v448
  %v672 = vadd.f32 %v671, %v450
  %v673 = vadd.f32 %v672, %v453
  %v674 = vadd.f32 %v673, %v455
  %v675 = vadd.f32 %v674, %v458
  %v676 = vadd.f32 %v675, %v460
  %v677 = vadd.f32 %v676, %v463
  %v678 = vadd.f32 %v677, %v465
  %v679 = vadd.f32 %v678, %v468
  %v680 = vadd.f32 %v679, %v470
  %v681 = vadd.f32 %v680, %v473
  %v682 = vadd.f32 %v681, %v475
  %v683 = vadd.f32 %v682, %v478
  %v684 = vadd.f32 %v683, %v480
  %v685 = vadd.f32 %v684, %v483
  %v686 = vadd.f32 %v685, %v485
  %v687 = vadd.f32 %v686, %v488
  %v688 = vadd.f32 %v687, %v490
  %v689 = vadd.f32 %v688, %v493
  %v690 = vadd.f32 %v689, %v495
  %v691 = vadd.f32 %v690, %v498
  %v692 = vadd.f32 %v691, %v500
  %v693 = vrot.slane %v692, 4
  %v694 = vadd.f32 %v692, %v693
  %v695 = vrot.slane %v694, 2
  %v696 = vadd.f32 %v694, %v695
  %v697 = vrot.slane %v696, 1
  %v698 = vadd.f32 %v696, %v697
  %699 = vst [vmem:[%s3] sm:$0x1] %v698
  %v700 = vmul.f32 %v343, %v343
  %v701 = vmul.f32 %v345, %v345
  %v702 = vmul.f32 %v348, %v348
  %v703 = vmul.f32 %v350, %v350
  %v704 = vmul.f32 %v353, %v353
  %v705 = vmul.f32 %v355, %v355
  %v706 = vmul.f32 %v358, %v358
  %v707 = vmul.f32 %v360, %v360
  %v708 = vmul.f32 %v363, %v363
  %v709 = vmul.f32 %v365, %v365
  %v710 = vmul.f32 %v368, %v368
  %v711 = vmul.f32 %v370, %v370
  %v712 = vmul.f32 %v373, %v373
  %v713 = vmul.f32 %v375, %v375
  %v714 = vmul.f32 %v378, %v378
  %v715 = vmul.f32 %v380, %v380
  %v716 = vmul.f32 %v383, %v383
  %v717 = vmul.f32 %v385, %v385
  %v718 = vmul.f32 %v388, %v388
  %v719 = vmul.f32 %v390, %v390
  %v720 = vmul.f32 %v393, %v393
  %v721 = vmul.f32 %v395, %v395
  %v722 = vmul.f32 %v398, %v398
  %v723 = vmul.f32 %v400, %v400
  %v724 = vmul.f32 %v403, %v403
  %v725 = vmul.f32 %v405, %v405
  %v726 = vmul.f32 %v408, %v408
  %v727 = vmul.f32 %v410, %v410
  %v728 = vmul.f32 %v413, %v413
  %v729 = vmul.f32 %v415, %v415
  %v730 = vmul.f32 %v418, %v418
  %v731 = vmul.f32 %v420, %v420
  %v732 = vmul.f32 %v423, %v423
  %v733 = vmul.f32 %v425, %v425
  %v734 = vmul.f32 %v428, %v428
  %v735 = vmul.f32 %v430, %v430
  %v736 = vmul.f32 %v433, %v433
  %v737 = vmul.f32 %v435, %v435
  %v738 = vmul.f32 %v438, %v438
  %v739 = vmul.f32 %v440, %v440
  %v740 = vmul.f32 %v443, %v443
  %v741 = vmul.f32 %v445, %v445
  %v742 = vmul.f32 %v448, %v448
  %v743 = vmul.f32 %v450, %v450
  %v744 = vmul.f32 %v453, %v453
  %v745 = vmul.f32 %v455, %v455
  %v746 = vmul.f32 %v458, %v458
  %v747 = vmul.f32 %v460, %v460
  %v748 = vmul.f32 %v463, %v463
  %v749 = vmul.f32 %v465, %v465
  %v750 = vmul.f32 %v468, %v468
  %v751 = vmul.f32 %v470, %v470
  %v752 = vmul.f32 %v473, %v473
  %v753 = vmul.f32 %v475, %v475
  %v754 = vmul.f32 %v478, %v478
  %v755 = vmul.f32 %v480, %v480
  %v756 = vmul.f32 %v483, %v483
  %v757 = vmul.f32 %v485, %v485
  %v758 = vmul.f32 %v488, %v488
  %v759 = vmul.f32 %v490, %v490
  %v760 = vmul.f32 %v493, %v493
  %v761 = vmul.f32 %v495, %v495
  %v762 = vmul.f32 %v498, %v498
  %v763 = vmul.f32 %v500, %v500
  %v764 = vadd.f32 %v700, %v701
  %v765 = vadd.f32 %v764, %v702
  %v766 = vadd.f32 %v765, %v703
  %v767 = vadd.f32 %v766, %v704
  %v768 = vadd.f32 %v767, %v705
  %v769 = vadd.f32 %v768, %v706
  %v770 = vadd.f32 %v769, %v707
  %v771 = vadd.f32 %v770, %v708
  %v772 = vadd.f32 %v771, %v709
  %v773 = vadd.f32 %v772, %v710
  %v774 = vadd.f32 %v773, %v711
  %v775 = vadd.f32 %v774, %v712
  %v776 = vadd.f32 %v775, %v713
  %v777 = vadd.f32 %v776, %v714
  %v778 = vadd.f32 %v777, %v715
  %v779 = vadd.f32 %v778, %v716
  %v780 = vadd.f32 %v779, %v717
  %v781 = vadd.f32 %v780, %v718
  %v782 = vadd.f32 %v781, %v719
  %v783 = vadd.f32 %v782, %v720
  %v784 = vadd.f32 %v783, %v721
  %v785 = vadd.f32 %v784, %v722
  %v786 = vadd.f32 %v785, %v723
  %v787 = vadd.f32 %v786, %v724
  %v788 = vadd.f32 %v787, %v725
  %v789 = vadd.f32 %v788, %v726
  %v790 = vadd.f32 %v789, %v727
  %v791 = vadd.f32 %v790, %v728
  %v792 = vadd.f32 %v791, %v729
  %v793 = vadd.f32 %v792, %v730
  %v794 = vadd.f32 %v793, %v731
  %v795 = vadd.f32 %v794, %v732
  %v796 = vadd.f32 %v795, %v733
  %v797 = vadd.f32 %v796, %v734
  %v798 = vadd.f32 %v797, %v735
  %v799 = vadd.f32 %v798, %v736
  %v800 = vadd.f32 %v799, %v737
  %v801 = vadd.f32 %v800, %v738
  %v802 = vadd.f32 %v801, %v739
  %v803 = vadd.f32 %v802, %v740
  %v804 = vadd.f32 %v803, %v741
  %v805 = vadd.f32 %v804, %v742
  %v806 = vadd.f32 %v805, %v743
  %v807 = vadd.f32 %v806, %v744
  %v808 = vadd.f32 %v807, %v745
  %v809 = vadd.f32 %v808, %v746
  %v810 = vadd.f32 %v809, %v747
  %v811 = vadd.f32 %v810, %v748
  %v812 = vadd.f32 %v811, %v749
  %v813 = vadd.f32 %v812, %v750
  %v814 = vadd.f32 %v813, %v751
  %v815 = vadd.f32 %v814, %v752
  %v816 = vadd.f32 %v815, %v753
  %v817 = vadd.f32 %v816, %v754
  %v818 = vadd.f32 %v817, %v755
  %v819 = vadd.f32 %v818, %v756
  %v820 = vadd.f32 %v819, %v757
  %v821 = vadd.f32 %v820, %v758
  %v822 = vadd.f32 %v821, %v759
  %v823 = vadd.f32 %v822, %v760
  %v824 = vadd.f32 %v823, %v761
  %v825 = vadd.f32 %v824, %v762
  %v826 = vadd.f32 %v825, %v763
  %v827 = vrot.slane %v826, 4
  %v828 = vadd.f32 %v826, %v827
  %v829 = vrot.slane %v828, 2
  %v830 = vadd.f32 %v828, %v829
  %v831 = vrot.slane %v830, 1
  %v832 = vadd.f32 %v830, %v831
  %833 = vst [vmem:[%s3 + $0x1] sm:$0x1] %v832
  // Predicated region
  $region10: #{residual_block_forward.4} parent=0 // pred_check
    _
  $region11: #{residual_block_forward.4} parent=0 // pred_check_branch
    %835 = sbr.rel (0) target = $region13
  $region12: #{residual_block_forward.4} parent=0 // pred_region
    _
  $region13: #{residual_block_forward.4} parent=0 // pred_fallthru
    _
  // Predicated region
  $region14: #{residual_block_forward.4} parent=0 // pred_check
    _
  $region15: #{residual_block_forward.4} parent=0 // pred_check_branch
    %837 = sbr.rel (0) target = $region17
  $region16: #{residual_block_forward.4} parent=0 // pred_region
    _
  $region17: #{residual_block_forward.4} parent=0 // pred_fallthru
    _
  // Predicated region
  $region18: #{residual_block_forward.4} parent=0 // pred_check
    _
  $region19: #{residual_block_forward.4} parent=0 // pred_check_branch
    %839 = sbr.rel (0) target = $region21
  $region20: #{residual_block_forward.4} parent=0 // pred_region
    _
  $region21: #{residual_block_forward.4} parent=0 // pred_fallthru
    _
  // Predicated region
  $region22: #{residual_block_forward.4} parent=0 // pred_check
    _
  $region23: #{residual_block_forward.4} parent=0 // pred_check_branch
    %841 = sbr.rel (0) target = $region25
  $region24: #{residual_block_forward.4} parent=0 // pred_region
    _
  $region25: #{residual_block_forward.4} parent=0 // pred_fallthru
    _

// kernel: residual_block_forward.6
$region0: #{residual_block_forward.6}
  #allocation0 [shape = 'u32[]', space=smem, size = 0x4, offset = 0x4, fixed_abs, tag = 'smem constant byte address 0x4 - core index']
  #allocation1 [shape = 'u32[72,128]{1,0:T(1,128)}', space=vmem, size = 0x9000, scoped, tag = 'internal scratch']
  %s0 = inlined_call_operand.vmem [shape: bf16[512,128], index: 0, kind: input, shape index: {}]
  %s1 = inlined_call_operand.vmem [shape: f32[1,128], index: 1, kind: input, shape index: {}]
  %s2 = inlined_call_operand.vmem [shape: f32[1,128], index: 2, kind: input, shape index: {}]
  %s3 = inlined_call_operand.vmem [shape: bf16[128,128], index: 3, kind: input, shape index: {}]
  %s4 = inlined_call_operand.vmem [shape: bf16[512,128], index: 4, kind: output, shape index: {0}]
  %s5 = inlined_call_operand.vmem [shape: f32[1,2,128], index: 5, kind: output, shape index: {1}]
  %6 = xla_tuple %s4, %s5
  %s7 = sld [smem:[#allocation0]]
  $region34: #{residual_block_forward.6} parent=0
    _
  %s9 = ssub.s32 1, %s7
  %s10 = scalar_select 0, %s9, %s7
  // Predicated region
  $region2: #{residual_block_forward.6} parent=0 // pred_check
    _
  $region3: #{residual_block_forward.6} parent=0 // pred_check_branch
    %12 = sbr.rel (0) target = $region5
  $region4: #{residual_block_forward.6} parent=0 // pred_region
    _
  $region5: #{residual_block_forward.6} parent=0 // pred_fallthru
    _
  // Predicated region
  $region6: #{residual_block_forward.6} parent=0 // pred_check
    _
  $region7: #{residual_block_forward.6} parent=0 // pred_check_branch
    %14 = sbr.rel (0) target = $region9
  $region8: #{residual_block_forward.6} parent=0 // pred_region
    _
  $region9: #{residual_block_forward.6} parent=0 // pred_fallthru
    _
  // Predicated region
  $region10: #{residual_block_forward.6} parent=0 // pred_check
    _
  $region11: #{residual_block_forward.6} parent=0 // pred_check_branch
    %16 = sbr.rel (0) target = $region13
  $region12: #{residual_block_forward.6} parent=0 // pred_region
    _
  $region13: #{residual_block_forward.6} parent=0 // pred_fallthru
    _
  // Predicated region
  $region14: #{residual_block_forward.6} parent=0 // pred_check
    _
  $region15: #{residual_block_forward.6} parent=0 // pred_check_branch
    %18 = sbr.rel (0) target = $region17
  $region16: #{residual_block_forward.6} parent=0 // pred_region
    _
  $region17: #{residual_block_forward.6} parent=0 // pred_fallthru
    _
  %v19 = vld [vmem:[%s0] sm:$0xf]
  %v20 = vld [vmem:[%s0 + $0x4] sm:$0xf]
  %v21 = vld [vmem:[%s0 + $0x8] sm:$0xf]
  %v22 = vld [vmem:[%s0 + $0xc] sm:$0xf]
  %v23 = vld [vmem:[%s0 + $0x10] sm:$0xf]
  %v24 = vld [vmem:[%s0 + $0x14] sm:$0xf]
  %v25 = vld [vmem:[%s0 + $0x18] sm:$0xf]
  %v26 = vld [vmem:[%s0 + $0x1c] sm:$0xf]
  %v27 = vld [vmem:[%s0 + $0x20] sm:$0xf]
  %v28 = vld [vmem:[%s0 + $0x24] sm:$0xf]
  %v29 = vld [vmem:[%s0 + $0x28] sm:$0xf]
  %v30 = vld [vmem:[%s0 + $0x2c] sm:$0xf]
  %v31 = vld [vmem:[%s0 + $0x30] sm:$0xf]
  %v32 = vld [vmem:[%s0 + $0x34] sm:$0xf]
  %v33 = vld [vmem:[%s0 + $0x38] sm:$0xf]
  %v34 = vld [vmem:[%s0 + $0x3c] sm:$0xf]
  %v35 = vld [vmem:[%s0 + $0x40] sm:$0xf]
  %v36 = vld [vmem:[%s0 + $0x44] sm:$0xf]
  %v37 = vld [vmem:[%s0 + $0x48] sm:$0xf]
  %v38 = vld [vmem:[%s0 + $0x4c] sm:$0xf]
  %v39 = vld [vmem:[%s0 + $0x50] sm:$0xf]
  %v40 = vld [vmem:[%s0 + $0x54] sm:$0xf]
  %v41 = vld [vmem:[%s0 + $0x58] sm:$0xf]
  %v42 = vld [vmem:[%s0 + $0x5c] sm:$0xf]
  %v43 = vld [vmem:[%s0 + $0x60] sm:$0xf]
  %v44 = vld [vmem:[%s0 + $0x64] sm:$0xf]
  %v45 = vld [vmem:[%s0 + $0x68] sm:$0xf]
  %v46 = vld [vmem:[%s0 + $0x6c] sm:$0xf]
  %v47 = vld [vmem:[%s0 + $0x70] sm:$0xf]
  %v48 = vld [vmem:[%s0 + $0x74] sm:$0xf]
  %v49 = vld [vmem:[%s0 + $0x78] sm:$0xf]
  %v50 = vld [vmem:[%s0 + $0x7c] sm:$0xf]
  %v51 = vld [vmem:[%s0 + $0x80] sm:$0xf]
  %v52 = vld [vmem:[%s0 + $0x84] sm:$0xf]
  %v53 = vld [vmem:[%s0 + $0x88] sm:$0xf]
  %v54 = vld [vmem:[%s0 + $0x8c] sm:$0xf]
  %v55 = vld [vmem:[%s0 + $0x90] sm:$0xf]
  %v56 = vld [vmem:[%s0 + $0x94] sm:$0xf]
  %v57 = vld [vmem:[%s0 + $0x98] sm:$0xf]
  %v58 = vld [vmem:[%s0 + $0x9c] sm:$0xf]
  %v59 = vld [vmem:[%s0 + $0xa0] sm:$0xf]
  %v60 = vld [vmem:[%s0 + $0xa4] sm:$0xf]
  %v61 = vld [vmem:[%s0 + $0xa8] sm:$0xf]
  %v62 = vld [vmem:[%s0 + $0xac] sm:$0xf]
  %v63 = vld [vmem:[%s0 + $0xb0] sm:$0xf]
  %v64 = vld [vmem:[%s0 + $0xb4] sm:$0xf]
  %v65 = vld [vmem:[%s0 + $0xb8] sm:$0xf]
  %v66 = vld [vmem:[%s0 + $0xbc] sm:$0xf]
  %v67 = vld [vmem:[%s0 + $0xc0] sm:$0xf]
  %v68 = vld [vmem:[%s0 + $0xc4] sm:$0xf]
  %v69 = vld [vmem:[%s0 + $0xc8] sm:$0xf]
  %v70 = vld [vmem:[%s0 + $0xcc] sm:$0xf]
  %v71 = vld [vmem:[%s0 + $0xd0] sm:$0xf]
  %v72 = vld [vmem:[%s0 + $0xd4] sm:$0xf]
  %v73 = vld [vmem:[%s0 + $0xd8] sm:$0xf]
  %v74 = vld [vmem:[%s0 + $0xdc] sm:$0xf]
  %v75 = vld [vmem:[%s0 + $0xe0] sm:$0xf]
  %v76 = vld [vmem:[%s0 + $0xe4] sm:$0xf]
  %v77 = vld [vmem:[%s0 + $0xe8] sm:$0xf]
  %v78 = vld [vmem:[%s0 + $0xec] sm:$0xf]
  %v79 = vld [vmem:[%s0 + $0xf0] sm:$0xf]
  %v80 = vld [vmem:[%s0 + $0xf4] sm:$0xf]
  %v81 = vld [vmem:[%s0 + $0xf8] sm:$0xf]
  %v82 = vld [vmem:[%s0 + $0xfc] sm:$0xf]
  %v83 = vunpack.c.l.bf16 %v19
  %v84 = vunpack.c.l.bf16 %v20
  %v85 = vunpack.c.l.bf16 %v21
  %v86 = vunpack.c.l.bf16 %v22
  %v87 = vunpack.c.l.bf16 %v23
  %v88 = vunpack.c.l.bf16 %v24
  %v89 = vunpack.c.l.bf16 %v25
  %v90 = vunpack.c.l.bf16 %v26
  %v91 = vunpack.c.l.bf16 %v27
  %v92 = vunpack.c.l.bf16 %v28
  %v93 = vunpack.c.l.bf16 %v29
  %v94 = vunpack.c.l.bf16 %v30
  %v95 = vunpack.c.l.bf16 %v31
  %v96 = vunpack.c.l.bf16 %v32
  %v97 = vunpack.c.l.bf16 %v33
  %v98 = vunpack.c.l.bf16 %v34
  %v99 = vunpack.c.l.bf16 %v35
  %v100 = vunpack.c.l.bf16 %v36
  %v101 = vunpack.c.l.bf16 %v37
  %v102 = vunpack.c.l.bf16 %v38
  %v103 = vunpack.c.l.bf16 %v39
  %v104 = vunpack.c.l.bf16 %v40
  %v105 = vunpack.c.l.bf16 %v41
  %v106 = vunpack.c.l.bf16 %v42
  %v107 = vunpack.c.l.bf16 %v43
  %v108 = vunpack.c.l.bf16 %v44
  %v109 = vunpack.c.l.bf16 %v45
  %v110 = vunpack.c.l.bf16 %v46
  %v111 = vunpack.c.l.bf16 %v47
  %v112 = vunpack.c.l.bf16 %v48
  %v113 = vunpack.c.l.bf16 %v49
  %v114 = vunpack.c.l.bf16 %v50
  %v115 = vunpack.c.l.bf16 %v51
  %v116 = vunpack.c.l.bf16 %v52
  %v117 = vunpack.c.l.bf16 %v53
  %v118 = vunpack.c.l.bf16 %v54
  %v119 = vunpack.c.l.bf16 %v55
  %v120 = vunpack.c.l.bf16 %v56
  %v121 = vunpack.c.l.bf16 %v57
  %v122 = vunpack.c.l.bf16 %v58
  %v123 = vunpack.c.l.bf16 %v59
  %v124 = vunpack.c.l.bf16 %v60
  %v125 = vunpack.c.l.bf16 %v61
  %v126 = vunpack.c.l.bf16 %v62
  %v127 = vunpack.c.l.bf16 %v63
  %v128 = vunpack.c.l.bf16 %v64
  %v129 = vunpack.c.l.bf16 %v65
  %v130 = vunpack.c.l.bf16 %v66
  %v131 = vunpack.c.l.bf16 %v67
  %v132 = vunpack.c.l.bf16 %v68
  %v133 = vunpack.c.l.bf16 %v69
  %v134 = vunpack.c.l.bf16 %v70
  %v135 = vunpack.c.l.bf16 %v71
  %v136 = vunpack.c.l.bf16 %v72
  %v137 = vunpack.c.l.bf16 %v73
  %v138 = vunpack.c.l.bf16 %v74
  %v139 = vunpack.c.l.bf16 %v75
  %v140 = vunpack.c.l.bf16 %v76
  %v141 = vunpack.c.l.bf16 %v77
  %v142 = vunpack.c.l.bf16 %v78
  %v143 = vunpack.c.l.bf16 %v79
  %v144 = vunpack.c.l.bf16 %v80
  %v145 = vunpack.c.l.bf16 %v81
  %v146 = vunpack.c.l.bf16 %v82
  %v147 = vld [vmem:[%s1] sm:$0x1]
  %v149 = vperm.slane %v147, 0
  %v151 = vmul.f32 %v83, %v149
  %v152 = vmul.f32 %v84, %v149
  %v153 = vmul.f32 %v85, %v149
  %v154 = vmul.f32 %v86, %v149
  %v155 = vmul.f32 %v87, %v149
  %v156 = vmul.f32 %v88, %v149
  %v157 = vmul.f32 %v89, %v149
  %v158 = vmul.f32 %v90, %v149
  %v159 = vmul.f32 %v91, %v149
  %v160 = vmul.f32 %v92, %v149
  %v161 = vmul.f32 %v93, %v149
  %v162 = vmul.f32 %v94, %v149
  %v163 = vmul.f32 %v95, %v149
  %v164 = vmul.f32 %v96, %v149
  %v165 = vmul.f32 %v97, %v149
  %v166 = vmul.f32 %v98, %v149
  %v167 = vmul.f32 %v99, %v149
  %v168 = vmul.f32 %v100, %v149
  %v169 = vmul.f32 %v101, %v149
  %v170 = vmul.f32 %v102, %v149
  %v171 = vmul.f32 %v103, %v149
  %v172 = vmul.f32 %v104, %v149
  %v173 = vmul.f32 %v105, %v149
  %v174 = vmul.f32 %v106, %v149
  %v175 = vmul.f32 %v107, %v149
  %v176 = vmul.f32 %v108, %v149
  %v177 = vmul.f32 %v109, %v149
  %v178 = vmul.f32 %v110, %v149
  %v179 = vmul.f32 %v111, %v149
  %v180 = vmul.f32 %v112, %v149
  %v181 = vmul.f32 %v113, %v149
  %v182 = vmul.f32 %v114, %v149
  %v183 = vmul.f32 %v115, %v149
  %v184 = vmul.f32 %v116, %v149
  %v185 = vmul.f32 %v117, %v149
  %v186 = vmul.f32 %v118, %v149
  %v187 = vmul.f32 %v119, %v149
  %v188 = vmul.f32 %v120, %v149
  %v189 = vmul.f32 %v121, %v149
  %v190 = vmul.f32 %v122, %v149
  %v191 = vmul.f32 %v123, %v149
  %v192 = vmul.f32 %v124, %v149
  %v193 = vmul.f32 %v125, %v149
  %v194 = vmul.f32 %v126, %v149
  %v195 = vmul.f32 %v127, %v149
  %v196 = vmul.f32 %v128, %v149
  %v197 = vmul.f32 %v129, %v149
  %v198 = vmul.f32 %v130, %v149
  %v199 = vmul.f32 %v131, %v149
  %v200 = vmul.f32 %v132, %v149
  %v201 = vmul.f32 %v133, %v149
  %v202 = vmul.f32 %v134, %v149
  %v203 = vmul.f32 %v135, %v149
  %v204 = vmul.f32 %v136, %v149
  %v205 = vmul.f32 %v137, %v149
  %v206 = vmul.f32 %v138, %v149
  %v207 = vmul.f32 %v139, %v149
  %v208 = vmul.f32 %v140, %v149
  %v209 = vmul.f32 %v141, %v149
  %v210 = vmul.f32 %v142, %v149
  %v211 = vmul.f32 %v143, %v149
  %v212 = vmul.f32 %v144, %v149
  %v213 = vmul.f32 %v145, %v149
  %v214 = vmul.f32 %v146, %v149
  %v215 = vld [vmem:[%s2] sm:$0x1]
  %v217 = vperm.slane %v215, 0
  %v219 = vadd.f32 %v151, %v217
  %v220 = vadd.f32 %v152, %v217
  %v221 = vadd.f32 %v153, %v217
  %v222 = vadd.f32 %v154, %v217
  %v223 = vadd.f32 %v155, %v217
  %v224 = vadd.f32 %v156, %v217
  %v225 = vadd.f32 %v157, %v217
  %v226 = vadd.f32 %v158, %v217
  %v227 = vadd.f32 %v159, %v217
  %v228 = vadd.f32 %v160, %v217
  %v229 = vadd.f32 %v161, %v217
  %v230 = vadd.f32 %v162, %v217
  %v231 = vadd.f32 %v163, %v217
  %v232 = vadd.f32 %v164, %v217
  %v233 = vadd.f32 %v165, %v217
  %v234 = vadd.f32 %v166, %v217
  %v235 = vadd.f32 %v167, %v217
  %v236 = vadd.f32 %v168, %v217
  %v237 = vadd.f32 %v169, %v217
  %v238 = vadd.f32 %v170, %v217
  %v239 = vadd.f32 %v171, %v217
  %v240 = vadd.f32 %v172, %v217
  %v241 = vadd.f32 %v173, %v217
  %v242 = vadd.f32 %v174, %v217
  %v243 = vadd.f32 %v175, %v217
  %v244 = vadd.f32 %v176, %v217
  %v245 = vadd.f32 %v177, %v217
  %v246 = vadd.f32 %v178, %v217
  %v247 = vadd.f32 %v179, %v217
  %v248 = vadd.f32 %v180, %v217
  %v249 = vadd.f32 %v181, %v217
  %v250 = vadd.f32 %v182, %v217
  %v251 = vadd.f32 %v183, %v217
  %v252 = vadd.f32 %v184, %v217
  %v253 = vadd.f32 %v185, %v217
  %v254 = vadd.f32 %v186, %v217
  %v255 = vadd.f32 %v187, %v217
  %v256 = vadd.f32 %v188, %v217
  %v257 = vadd.f32 %v189, %v217
  %v258 = vadd.f32 %v190, %v217
  %v259 = vadd.f32 %v191, %v217
  %v260 = vadd.f32 %v192, %v217
  %v261 = vadd.f32 %v193, %v217
  %v262 = vadd.f32 %v194, %v217
  %v263 = vadd.f32 %v195, %v217
  %v264 = vadd.f32 %v196, %v217
  %v265 = vadd.f32 %v197, %v217
  %v266 = vadd.f32 %v198, %v217
  %v267 = vadd.f32 %v199, %v217
  %v268 = vadd.f32 %v200, %v217
  %v269 = vadd.f32 %v201, %v217
  %v270 = vadd.f32 %v202, %v217
  %v271 = vadd.f32 %v203, %v217
  %v272 = vadd.f32 %v204, %v217
  %v273 = vadd.f32 %v205, %v217
  %v274 = vadd.f32 %v206, %v217
  %v275 = vadd.f32 %v207, %v217
  %v276 = vadd.f32 %v208, %v217
  %v277 = vadd.f32 %v209, %v217
  %v278 = vadd.f32 %v210, %v217
  %v279 = vadd.f32 %v211, %v217
  %v280 = vadd.f32 %v212, %v217
  %v281 = vadd.f32 %v213, %v217
  %v282 = vadd.f32 %v214, %v217
  %v283 = vmax.f32 %v219, 0.0
  %v284 = vmax.f32 %v220, 0.0
  %v285 = vmax.f32 %v221, 0.0
  %v286 = vmax.f32 %v222, 0.0
  %v287 = vmax.f32 %v223, 0.0
  %v288 = vmax.f32 %v224, 0.0
  %v289 = vmax.f32 %v225, 0.0
  %v290 = vmax.f32 %v226, 0.0
  %v291 = vmax.f32 %v227, 0.0
  %v292 = vmax.f32 %v228, 0.0
  %v293 = vmax.f32 %v229, 0.0
  %v294 = vmax.f32 %v230, 0.0
  %v295 = vmax.f32 %v231, 0.0
  %v296 = vmax.f32 %v232, 0.0
  %v297 = vmax.f32 %v233, 0.0
  %v298 = vmax.f32 %v234, 0.0
  %v299 = vmax.f32 %v235, 0.0
  %v300 = vmax.f32 %v236, 0.0
  %v301 = vmax.f32 %v237, 0.0
  %v302 = vmax.f32 %v238, 0.0
  %v303 = vmax.f32 %v239, 0.0
  %v304 = vmax.f32 %v240, 0.0
  %v305 = vmax.f32 %v241, 0.0
  %v306 = vmax.f32 %v242, 0.0
  %v307 = vmax.f32 %v243, 0.0
  %v308 = vmax.f32 %v244, 0.0
  %v309 = vmax.f32 %v245, 0.0
  %v310 = vmax.f32 %v246, 0.0
  %v311 = vmax.f32 %v247, 0.0
  %v312 = vmax.f32 %v248, 0.0
  %v313 = vmax.f32 %v249, 0.0
  %v314 = vmax.f32 %v250, 0.0
  %v315 = vmax.f32 %v251, 0.0
  %v316 = vmax.f32 %v252, 0.0
  %v317 = vmax.f32 %v253, 0.0
  %v318 = vmax.f32 %v254, 0.0
  %v319 = vmax.f32 %v255, 0.0
  %v320 = vmax.f32 %v256, 0.0
  %v321 = vmax.f32 %v257, 0.0
  %v322 = vmax.f32 %v258, 0.0
  %v323 = vmax.f32 %v259, 0.0
  %v324 = vmax.f32 %v260, 0.0
  %v325 = vmax.f32 %v261, 0.0
  %v326 = vmax.f32 %v262, 0.0
  %v327 = vmax.f32 %v263, 0.0
  %v328 = vmax.f32 %v264, 0.0
  %v329 = vmax.f32 %v265, 0.0
  %v330 = vmax.f32 %v266, 0.0
  %v331 = vmax.f32 %v267, 0.0
  %v332 = vmax.f32 %v268, 0.0
  %v333 = vmax.f32 %v269, 0.0
  %v334 = vmax.f32 %v270, 0.0
  %v335 = vmax.f32 %v271, 0.0
  %v336 = vmax.f32 %v272, 0.0
  %v337 = vmax.f32 %v273, 0.0
  %v338 = vmax.f32 %v274, 0.0
  %v339 = vmax.f32 %v275, 0.0
  %v340 = vmax.f32 %v276, 0.0
  %v341 = vmax.f32 %v277, 0.0
  %v342 = vmax.f32 %v278, 0.0
  %v343 = vmax.f32 %v279, 0.0
  %v344 = vmax.f32 %v280, 0.0
  %v345 = vmax.f32 %v281, 0.0
  %v346 = vmax.f32 %v282, 0.0
  %s347 = smul.u32 0, 512
  %v348 = vlaneseq
  %v349 = vshrl.u32 %v348, 7
  %v350 = vadd.s32 %v349, 8
  %v351 = vadd.s32 %v349, 16
  %v352 = vadd.s32 %v349, 24
  %v353 = vadd.s32 %v349, 32
  %v354 = vadd.s32 %v349, 40
  %v355 = vadd.s32 %v349, 48
  %v356 = vadd.s32 %v349, 56
  %v357 = vadd.s32 %v349, 64
  %v358 = vadd.s32 %v349, 72
  %v359 = vadd.s32 %v349, 80
  %v360 = vadd.s32 %v349, 88
  %v361 = vadd.s32 %v349, 96
  %v362 = vadd.s32 %v349, 104
  %v363 = vadd.s32 %v349, 112
  %v364 = vadd.s32 %v349, 120
  %v365 = vadd.s32 %v349, 128
  %v366 = vadd.s32 %v349, 136
  %v367 = vadd.s32 %v349, 144
  %v368 = vadd.s32 %v349, 152
  %v369 = vadd.s32 %v349, 160
  %v370 = vadd.s32 %v349, 168
  %v371 = vadd.s32 %v349, 176
  %v372 = vadd.s32 %v349, 184
  %v373 = vadd.s32 %v349, 192
  %v374 = vadd.s32 %v349, 200
  %v375 = vadd.s32 %v349, 208
  %v376 = vadd.s32 %v349, 216
  %v377 = vadd.s32 %v349, 224
  %v378 = vadd.s32 %v349, 232
  %v379 = vadd.s32 %v349, 240
  %v380 = vadd.s32 %v349, 248
  %v381 = vadd.s32 %v349, 256
  %v382 = vadd.s32 %v349, 264
  %v383 = vadd.s32 %v349, 272
  %v384 = vadd.s32 %v349, 280
  %v385 = vadd.s32 %v349, 288
  %v386 = vadd.s32 %v349, 296
  %v387 = vadd.s32 %v349, 304
  %v388 = vadd.s32 %v349, 312
  %v389 = vadd.s32 %v349, 320
  %v390 = vadd.s32 %v349, 328
  %v391 = vadd.s32 %v349, 336
  %v392 = vadd.s32 %v349, 344
  %v393 = vadd.s32 %v349, 352
  %v394 = vadd.s32 %v349, 360
  %v395 = vadd.s32 %v349, 368
  %v396 = vadd.s32 %v349, 376
  %v397 = vadd.s32 %v349, 384
  %v398 = vadd.s32 %v349, 392
  %v399 = vadd.s32 %v349, 400
  %v400 = vadd.s32 %v349, 408
  %v401 = vadd.s32 %v349, 416
  %v402 = vadd.s32 %v349, 424
  %v403 = vadd.s32 %v349, 432
  %v404 = vadd.s32 %v349, 440
  %v405 = vadd.s32 %v349, 448
  %v406 = vadd.s32 %v349, 456
  %v407 = vadd.s32 %v349, 464
  %v408 = vadd.s32 %v349, 472
  %v409 = vadd.s32 %v349, 480
  %v410 = vadd.s32 %v349, 488
  %v411 = vadd.s32 %v349, 496
  %v412 = vadd.s32 %v349, 504
  %v413 = vstv %s347
  %v414 = vadd.s32 %v413, %v349
  %v415 = vadd.s32 %v413, %v350
  %v416 = vadd.s32 %v413, %v351
  %v417 = vadd.s32 %v413, %v352
  %v418 = vadd.s32 %v413, %v353
  %v419 = vadd.s32 %v413, %v354
  %v420 = vadd.s32 %v413, %v355
  %v421 = vadd.s32 %v413, %v356
  %v422 = vadd.s32 %v413, %v357
  %v423 = vadd.s32 %v413, %v358
  %v424 = vadd.s32 %v413, %v359
  %v425 = vadd.s32 %v413, %v360
  %v426 = vadd.s32 %v413, %v361
  %v427 = vadd.s32 %v413, %v362
  %v428 = vadd.s32 %v413, %v363
  %v429 = vadd.s32 %v413, %v364
  %v430 = vadd.s32 %v413, %v365
  %v431 = vadd.s32 %v413, %v366
  %v432 = vadd.s32 %v413, %v367
  %v433 = vadd.s32 %v413, %v368
  %v434 = vadd.s32 %v413, %v369
  %v435 = vadd.s32 %v413, %v370
  %v436 = vadd.s32 %v413, %v371
  %v437 = vadd.s32 %v413, %v372
  %v438 = vadd.s32 %v413, %v373
  %v439 = vadd.s32 %v413, %v374
  %v440 = vadd.s32 %v413, %v375
  %v441 = vadd.s32 %v413, %v376
  %v442 = vadd.s32 %v413, %v377
  %v443 = vadd.s32 %v413, %v378
  %v444 = vadd.s32 %v413, %v379
  %v445 = vadd.s32 %v413, %v380
  %v446 = vadd.s32 %v413, %v381
  %v447 = vadd.s32 %v413, %v382
  %v448 = vadd.s32 %v413, %v383
  %v449 = vadd.s32 %v413, %v384
  %v450 = vadd.s32 %v413, %v385
  %v451 = vadd.s32 %v413, %v386
  %v452 = vadd.s32 %v413, %v387
  %v453 = vadd.s32 %v413, %v388
  %v454 = vadd.s32 %v413, %v389
  %v455 = vadd.s32 %v413, %v390
  %v456 = vadd.s32 %v413, %v391
  %v457 = vadd.s32 %v413, %v392
  %v458 = vadd.s32 %v413, %v393
  %v459 = vadd.s32 %v413, %v394
  %v460 = vadd.s32 %v413, %v395
  %v461 = vadd.s32 %v413, %v396
  %v462 = vadd.s32 %v413, %v397
  %v463 = vadd.s32 %v413, %v398
  %v464 = vadd.s32 %v413, %v399
  %v465 = vadd.s32 %v413, %v400
  %v466 = vadd.s32 %v413, %v401
  %v467 = vadd.s32 %v413, %v402
  %v468 = vadd.s32 %v413, %v403
  %v469 = vadd.s32 %v413, %v404
  %v470 = vadd.s32 %v413, %v405
  %v471 = vadd.s32 %v413, %v406
  %v472 = vadd.s32 %v413, %v407
  %v473 = vadd.s32 %v413, %v408
  %v474 = vadd.s32 %v413, %v409
  %v475 = vadd.s32 %v413, %v410
  %v476 = vadd.s32 %v413, %v411
  %v477 = vadd.s32 %v413, %v412
  %vm478 = vcmp.lt.s32.totalorder %v414, 512
  %vm479 = vcmp.lt.s32.totalorder %v415, 512
  %vm480 = vcmp.lt.s32.totalorder %v416, 512
  %vm481 = vcmp.lt.s32.totalorder %v417, 512
  %vm482 = vcmp.lt.s32.totalorder %v418, 512
  %vm483 = vcmp.lt.s32.totalorder %v419, 512
  %vm484 = vcmp.lt.s32.totalorder %v420, 512
  %vm485 = vcmp.lt.s32.totalorder %v421, 512
  %vm486 = vcmp.lt.s32.totalorder %v422, 512
  %vm487 = vcmp.lt.s32.totalorder %v423, 512
  %vm488 = vcmp.lt.s32.totalorder %v424, 512
  %vm489 = vcmp.lt.s32.totalorder %v425, 512
  %vm490 = vcmp.lt.s32.totalorder %v426, 512
  %vm491 = vcmp.lt.s32.totalorder %v427, 512
  %vm492 = vcmp.lt.s32.totalorder %v428, 512
  %vm493 = vcmp.lt.s32.totalorder %v429, 512
  %vm494 = vcmp.lt.s32.totalorder %v430, 512
  %vm495 = vcmp.lt.s32.totalorder %v431, 512
  %vm496 = vcmp.lt.s32.totalorder %v432, 512
  %vm497 = vcmp.lt.s32.totalorder %v433, 512
  %vm498 = vcmp.lt.s32.totalorder %v434, 512
  %vm499 = vcmp.lt.s32.totalorder %v435, 512
  %vm500 = vcmp.lt.s32.totalorder %v436, 512
  %vm501 = vcmp.lt.s32.totalorder %v437, 512
  %vm502 = vcmp.lt.s32.totalorder %v438, 512
  %vm503 = vcmp.lt.s32.totalorder %v439, 512
  %vm504 = vcmp.lt.s32.totalorder %v440, 512
  %vm505 = vcmp.lt.s32.totalorder %v441, 512
  %vm506 = vcmp.lt.s32.totalorder %v442, 512
  %vm507 = vcmp.lt.s32.totalorder %v443, 512
  %vm508 = vcmp.lt.s32.totalorder %v444, 512
  %vm509 = vcmp.lt.s32.totalorder %v445, 512
  %vm510 = vcmp.lt.s32.totalorder %v446, 512
  %vm511 = vcmp.lt.s32.totalorder %v447, 512
  %vm512 = vcmp.lt.s32.totalorder %v448, 512
  %vm513 = vcmp.lt.s32.totalorder %v449, 512
  %vm514 = vcmp.lt.s32.totalorder %v450, 512
  %vm515 = vcmp.lt.s32.totalorder %v451, 512
  %vm516 = vcmp.lt.s32.totalorder %v452, 512
  %vm517 = vcmp.lt.s32.totalorder %v453, 512
  %vm518 = vcmp.lt.s32.totalorder %v454, 512
  %vm519 = vcmp.lt.s32.totalorder %v455, 512
  %vm520 = vcmp.lt.s32.totalorder %v456, 512
  %vm521 = vcmp.lt.s32.totalorder %v457, 512
  %vm522 = vcmp.lt.s32.totalorder %v458, 512
  %vm523 = vcmp.lt.s32.totalorder %v459, 512
  %vm524 = vcmp.lt.s32.totalorder %v460, 512
  %vm525 = vcmp.lt.s32.totalorder %v461, 512
  %vm526 = vcmp.lt.s32.totalorder %v462, 512
  %vm527 = vcmp.lt.s32.totalorder %v463, 512
  %vm528 = vcmp.lt.s32.totalorder %v464, 512
  %vm529 = vcmp.lt.s32.totalorder %v465, 512
  %vm530 = vcmp.lt.s32.totalorder %v466, 512
  %vm531 = vcmp.lt.s32.totalorder %v467, 512
  %vm532 = vcmp.lt.s32.totalorder %v468, 512
  %vm533 = vcmp.lt.s32.totalorder %v469, 512
  %vm534 = vcmp.lt.s32.totalorder %v470, 512
  %vm535 = vcmp.lt.s32.totalorder %v471, 512
  %vm536 = vcmp.lt.s32.totalorder %v472, 512
  %vm537 = vcmp.lt.s32.totalorder %v473, 512
  %vm538 = vcmp.lt.s32.totalorder %v474, 512
  %vm539 = vcmp.lt.s32.totalorder %v475, 512
  %vm540 = vcmp.lt.s32.totalorder %v476, 512
  %vm541 = vcmp.lt.s32.totalorder %v477, 512
  %v542 = vsel %vm478, 1, 0
  %v543 = vsel %vm479, 1, 0
  %v544 = vsel %vm480, 1, 0
  %v545 = vsel %vm481, 1, 0
  %v546 = vsel %vm482, 1, 0
  %v547 = vsel %vm483, 1, 0
  %v548 = vsel %vm484, 1, 0
  %v549 = vsel %vm485, 1, 0
  %v550 = vsel %vm486, 1, 0
  %v551 = vsel %vm487, 1, 0
  %v552 = vsel %vm488, 1, 0
  %v553 = vsel %vm489, 1, 0
  %v554 = vsel %vm490, 1, 0
  %v555 = vsel %vm491, 1, 0
  %v556 = vsel %vm492, 1, 0
  %v557 = vsel %vm493, 1, 0
  %v558 = vsel %vm494, 1, 0
  %v559 = vsel %vm495, 1, 0
  %v560 = vsel %vm496, 1, 0
  %v561 = vsel %vm497, 1, 0
  %v562 = vsel %vm498, 1, 0
  %v563 = vsel %vm499, 1, 0
  %v564 = vsel %vm500, 1, 0
  %v565 = vsel %vm501, 1, 0
  %v566 = vsel %vm502, 1, 0
  %v567 = vsel %vm503, 1, 0
  %v568 = vsel %vm504, 1, 0
  %v569 = vsel %vm505, 1, 0
  %v570 = vsel %vm506, 1, 0
  %v571 = vsel %vm507, 1, 0
  %v572 = vsel %vm508, 1, 0
  %v573 = vsel %vm509, 1, 0
  %v574 = vsel %vm510, 1, 0
  %v575 = vsel %vm511, 1, 0
  %v576 = vsel %vm512, 1, 0
  %v577 = vsel %vm513, 1, 0
  %v578 = vsel %vm514, 1, 0
  %v579 = vsel %vm515, 1, 0
  %v580 = vsel %vm516, 1, 0
  %v581 = vsel %vm517, 1, 0
  %v582 = vsel %vm518, 1, 0
  %v583 = vsel %vm519, 1, 0
  %v584 = vsel %vm520, 1, 0
  %v585 = vsel %vm521, 1, 0
  %v586 = vsel %vm522, 1, 0
  %v587 = vsel %vm523, 1, 0
  %v588 = vsel %vm524, 1, 0
  %v589 = vsel %vm525, 1, 0
  %v590 = vsel %vm526, 1, 0
  %v591 = vsel %vm527, 1, 0
  %v592 = vsel %vm528, 1, 0
  %v593 = vsel %vm529, 1, 0
  %v594 = vsel %vm530, 1, 0
  %v595 = vsel %vm531, 1, 0
  %v596 = vsel %vm532, 1, 0
  %v597 = vsel %vm533, 1, 0
  %v598 = vsel %vm534, 1, 0
  %v599 = vsel %vm535, 1, 0
  %v600 = vsel %vm536, 1, 0
  %v601 = vsel %vm537, 1, 0
  %v602 = vsel %vm538, 1, 0
  %v603 = vsel %vm539, 1, 0
  %v604 = vsel %vm540, 1, 0
  %v605 = vsel %vm541, 1, 0
  %vm606 = vcmp.eq.s32.totalorder %v542, 1
  %vm607 = vcmp.eq.s32.totalorder %v543, 1
  %vm608 = vcmp.eq.s32.totalorder %v544, 1
  %vm609 = vcmp.eq.s32.totalorder %v545, 1
  %vm610 = vcmp.eq.s32.totalorder %v546, 1
  %vm611 = vcmp.eq.s32.totalorder %v547, 1
  %vm612 = vcmp.eq.s32.totalorder %v548, 1
  %vm613 = vcmp.eq.s32.totalorder %v549, 1
  %vm614 = vcmp.eq.s32.totalorder %v550, 1
  %vm615 = vcmp.eq.s32.totalorder %v551, 1
  %vm616 = vcmp.eq.s32.totalorder %v552, 1
  %vm617 = vcmp.eq.s32.totalorder %v553, 1
  %vm618 = vcmp.eq.s32.totalorder %v554, 1
  %vm619 = vcmp.eq.s32.totalorder %v555, 1
  %vm620 = vcmp.eq.s32.totalorder %v556, 1
  %vm621 = vcmp.eq.s32.totalorder %v557, 1
  %vm622 = vcmp.eq.s32.totalorder %v558, 1
  %vm623 = vcmp.eq.s32.totalorder %v559, 1
  %vm624 = vcmp.eq.s32.totalorder %v560, 1
  %vm625 = vcmp.eq.s32.totalorder %v561, 1
  %vm626 = vcmp.eq.s32.totalorder %v562, 1
  %vm627 = vcmp.eq.s32.totalorder %v563, 1
  %vm628 = vcmp.eq.s32.totalorder %v564, 1
  %vm629 = vcmp.eq.s32.totalorder %v565, 1
  %vm630 = vcmp.eq.s32.totalorder %v566, 1
  %vm631 = vcmp.eq.s32.totalorder %v567, 1
  %vm632 = vcmp.eq.s32.totalorder %v568, 1
  %vm633 = vcmp.eq.s32.totalorder %v569, 1
  %vm634 = vcmp.eq.s32.totalorder %v570, 1
  %vm635 = vcmp.eq.s32.totalorder %v571, 1
  %vm636 = vcmp.eq.s32.totalorder %v572, 1
  %vm637 = vcmp.eq.s32.totalorder %v573, 1
  %vm638 = vcmp.eq.s32.totalorder %v574, 1
  %vm639 = vcmp.eq.s32.totalorder %v575, 1
  %vm640 = vcmp.eq.s32.totalorder %v576, 1
  %vm641 = vcmp.eq.s32.totalorder %v577, 1
  %vm642 = vcmp.eq.s32.totalorder %v578, 1
  %vm643 = vcmp.eq.s32.totalorder %v579, 1
  %vm644 = vcmp.eq.s32.totalorder %v580, 1
  %vm645 = vcmp.eq.s32.totalorder %v581, 1
  %vm646 = vcmp.eq.s32.totalorder %v582, 1
  %vm647 = vcmp.eq.s32.totalorder %v583, 1
  %vm648 = vcmp.eq.s32.totalorder %v584, 1
  %vm649 = vcmp.eq.s32.totalorder %v585, 1
  %vm650 = vcmp.eq.s32.totalorder %v586, 1
  %vm651 = vcmp.eq.s32.totalorder %v587, 1
  %vm652 = vcmp.eq.s32.totalorder %v588, 1
  %vm653 = vcmp.eq.s32.totalorder %v589, 1
  %vm654 = vcmp.eq.s32.totalorder %v590, 1
  %vm655 = vcmp.eq.s32.totalorder %v591, 1
  %vm656 = vcmp.eq.s32.totalorder %v592, 1
  %vm657 = vcmp.eq.s32.totalorder %v593, 1
  %vm658 = vcmp.eq.s32.totalorder %v594, 1
  %vm659 = vcmp.eq.s32.totalorder %v595, 1
  %vm660 = vcmp.eq.s32.totalorder %v596, 1
  %vm661 = vcmp.eq.s32.totalorder %v597, 1
  %vm662 = vcmp.eq.s32.totalorder %v598, 1
  %vm663 = vcmp.eq.s32.totalorder %v599, 1
  %vm664 = vcmp.eq.s32.totalorder %v600, 1
  %vm665 = vcmp.eq.s32.totalorder %v601, 1
  %vm666 = vcmp.eq.s32.totalorder %v602, 1
  %vm667 = vcmp.eq.s32.totalorder %v603, 1
  %vm668 = vcmp.eq.s32.totalorder %v604, 1
  %vm669 = vcmp.eq.s32.totalorder %v605, 1
  %v670 = vsel %vm606, %v283, 0.0
  %v671 = vsel %vm607, %v284, 0.0
  %v672 = vsel %vm608, %v285, 0.0
  %v673 = vsel %vm609, %v286, 0.0
  %v674 = vsel %vm610, %v287, 0.0
  %v675 = vsel %vm611, %v288, 0.0
  %v676 = vsel %vm612, %v289, 0.0
  %v677 = vsel %vm613, %v290, 0.0
  %v678 = vsel %vm614, %v291, 0.0
  %v679 = vsel %vm615, %v292, 0.0
  %v680 = vsel %vm616, %v293, 0.0
  %v681 = vsel %vm617, %v294, 0.0
  %v682 = vsel %vm618, %v295, 0.0
  %v683 = vsel %vm619, %v296, 0.0
  %v684 = vsel %vm620, %v297, 0.0
  %v685 = vsel %vm621, %v298, 0.0
  %v686 = vsel %vm622, %v299, 0.0
  %v687 = vsel %vm623, %v300, 0.0
  %v688 = vsel %vm624, %v301, 0.0
  %v689 = vsel %vm625, %v302, 0.0
  %v690 = vsel %vm626, %v303, 0.0
  %v691 = vsel %vm627, %v304, 0.0
  %v692 = vsel %vm628, %v305, 0.0
  %v693 = vsel %vm629, %v306, 0.0
  %v694 = vsel %vm630, %v307, 0.0
  %v695 = vsel %vm631, %v308, 0.0
  %v696 = vsel %vm632, %v309, 0.0
  %v697 = vsel %vm633, %v310, 0.0
  %v698 = vsel %vm634, %v311, 0.0
  %v699 = vsel %vm635, %v312, 0.0
  %v700 = vsel %vm636, %v313, 0.0
  %v701 = vsel %vm637, %v314, 0.0
  %v702 = vsel %vm638, %v315, 0.0
  %v703 = vsel %vm639, %v316, 0.0
  %v704 = vsel %vm640, %v317, 0.0
  %v705 = vsel %vm641, %v318, 0.0
  %v706 = vsel %vm642, %v319, 0.0
  %v707 = vsel %vm643, %v320, 0.0
  %v708 = vsel %vm644, %v321, 0.0
  %v709 = vsel %vm645, %v322, 0.0
  %v710 = vsel %vm646, %v323, 0.0
  %v711 = vsel %vm647, %v324, 0.0
  %v712 = vsel %vm648, %v325, 0.0
  %v713 = vsel %vm649, %v326, 0.0
  %v714 = vsel %vm650, %v327, 0.0
  %v715 = vsel %vm651, %v328, 0.0
  %v716 = vsel %vm652, %v329, 0.0
  %v717 = vsel %vm653, %v330, 0.0
  %v718 = vsel %vm654, %v331, 0.0
  %v719 = vsel %vm655, %v332, 0.0
  %v720 = vsel %vm656, %v333, 0.0
  %v721 = vsel %vm657, %v334, 0.0
  %v722 = vsel %vm658, %v335, 0.0
  %v723 = vsel %vm659, %v336, 0.0
  %v724 = vsel %vm660, %v337, 0.0
  %v725 = vsel %vm661, %v338, 0.0
  %v726 = vsel %vm662, %v339, 0.0
  %v727 = vsel %vm663, %v340, 0.0
  %v728 = vsel %vm664, %v341, 0.0
  %v729 = vsel %vm665, %v342, 0.0
  %v730 = vsel %vm666, %v343, 0.0
  %v731 = vsel %vm667, %v344, 0.0
  %v732 = vsel %vm668, %v345, 0.0
  %v733 = vsel %vm669, %v346, 0.0
  %v734 = vpack.c.bf16 %v671, %v670
  %v735 = vpack.c.bf16 %v673, %v672
  %v736 = vpack.c.bf16 %v675, %v674
  %v737 = vpack.c.bf16 %v677, %v676
  %v738 = vpack.c.bf16 %v679, %v678
  %v739 = vpack.c.bf16 %v681, %v680
  %v740 = vpack.c.bf16 %v683, %v682
  %v741 = vpack.c.bf16 %v685, %v684
  %v742 = vpack.c.bf16 %v687, %v686
  %v743 = vpack.c.bf16 %v689, %v688
  %v744 = vpack.c.bf16 %v691, %v690
  %v745 = vpack.c.bf16 %v693, %v692
  %v746 = vpack.c.bf16 %v695, %v694
  %v747 = vpack.c.bf16 %v697, %v696
  %v748 = vpack.c.bf16 %v699, %v698
  %v749 = vpack.c.bf16 %v701, %v700
  %v750 = vpack.c.bf16 %v703, %v702
  %v751 = vpack.c.bf16 %v705, %v704
  %v752 = vpack.c.bf16 %v707, %v706
  %v753 = vpack.c.bf16 %v709, %v708
  %v754 = vpack.c.bf16 %v711, %v710
  %v755 = vpack.c.bf16 %v713, %v712
  %v756 = vpack.c.bf16 %v715, %v714
  %v757 = vpack.c.bf16 %v717, %v716
  %v758 = vpack.c.bf16 %v719, %v718
  %v759 = vpack.c.bf16 %v721, %v720
  %v760 = vpack.c.bf16 %v723, %v722
  %v761 = vpack.c.bf16 %v725, %v724
  %v762 = vpack.c.bf16 %v727, %v726
  %v763 = vpack.c.bf16 %v729, %v728
  %v764 = vpack.c.bf16 %v731, %v730
  %v765 = vpack.c.bf16 %v733, %v732
  %v766 = vld [vmem:[%s3] sm:$0xf]
  %v767 = vld [vmem:[%s3 + $0x4] sm:$0xf]
  %v768 = vld [vmem:[%s3 + $0x8] sm:$0xf]
  %v769 = vld [vmem:[%s3 + $0xc] sm:$0xf]
  %v770 = vld [vmem:[%s3 + $0x10] sm:$0xf]
  %v771 = vld [vmem:[%s3 + $0x14] sm:$0xf]
  %v772 = vld [vmem:[%s3 + $0x18] sm:$0xf]
  %v773 = vld [vmem:[%s3 + $0x1c] sm:$0xf]
  %v774 = vld [vmem:[%s3 + $0x20] sm:$0xf]
  %v775 = vld [vmem:[%s3 + $0x24] sm:$0xf]
  %v776 = vld [vmem:[%s3 + $0x28] sm:$0xf]
  %v777 = vld [vmem:[%s3 + $0x2c] sm:$0xf]
  %v778 = vld [vmem:[%s3 + $0x30] sm:$0xf]
  %v779 = vld [vmem:[%s3 + $0x34] sm:$0xf]
  %v780 = vld [vmem:[%s3 + $0x38] sm:$0xf]
  %v781 = vld [vmem:[%s3 + $0x3c] sm:$0xf]
  %v798 = vunpack.c.l.b16 %v766
  %v799 = vunpack.c.l.b16 %v767
  %v800 = vunpack.c.l.b16 %v768
  %v801 = vunpack.c.l.b16 %v769
  %v802 = vunpack.c.l.b16 %v770
  %v803 = vunpack.c.l.b16 %v771
  %v804 = vunpack.c.l.b16 %v772
  %v805 = vunpack.c.l.b16 %v773
  %v806 = vunpack.c.l.b16 %v774
  %v807 = vunpack.c.l.b16 %v775
  %v808 = vunpack.c.l.b16 %v776
  %v809 = vunpack.c.l.b16 %v777
  %v810 = vunpack.c.l.b16 %v778
  %v811 = vunpack.c.l.b16 %v779
  %v812 = vunpack.c.l.b16 %v780
  %v813 = vunpack.c.l.b16 %v781
  %v814 = vpack.c.b16 %v799, %v798
  %v815 = vpack.c.b16 %v801, %v800
  %v816 = vpack.c.b16 %v803, %v802
  %v817 = vpack.c.b16 %v805, %v804
  %v818 = vpack.c.b16 %v807, %v806
  %v819 = vpack.c.b16 %v809, %v808
  %v820 = vpack.c.b16 %v811, %v810
  %v821 = vpack.c.b16 %v813, %v812
  %830 = vmatpush.bf16.msra.mxu0 %v821
  %831 = vmatpush.bf16.msra.mxu0 %v820
  %832 = vmatpush.bf16.msra.mxu0 %v819
  %833 = vmatpush.bf16.msra.mxu0 %v818
  %834 = vmatpush.bf16.msra.mxu0 %v817
  %835 = vmatpush.bf16.msra.mxu0 %v816
  %836 = vmatpush.bf16.msra.mxu0 %v815
  %837 = vmatpush.bf16.msra.mxu0 %v814
  %838 = vmatmul.bf16.gmra.mxu0 %v734
  %v839 = vpop.f32.mrf.mxu0
  %v840 = vadd.f32 0.0, %v839
  %v841 = vpop.f32.mrf.mxu0
  %v842 = vadd.f32 0.0, %v841
  %843 = vmatmul.bf16.gmra.mxu0 %v735
  %v844 = vpop.f32.mrf.mxu0
  %v845 = vadd.f32 0.0, %v844
  %v846 = vpop.f32.mrf.mxu0
  %v847 = vadd.f32 0.0, %v846
  %848 = vmatmul.bf16.gmra.mxu0 %v736
  %v849 = vpop.f32.mrf.mxu0
  %v850 = vadd.f32 0.0, %v849
  %v851 = vpop.f32.mrf.mxu0
  %v852 = vadd.f32 0.0, %v851
  %853 = vmatmul.bf16.gmra.mxu0 %v737
  %v854 = vpop.f32.mrf.mxu0
  %v855 = vadd.f32 0.0, %v854
  %v856 = vpop.f32.mrf.mxu0
  %v857 = vadd.f32 0.0, %v856
  %858 = vmatmul.bf16.gmra.mxu0 %v738
  %v859 = vpop.f32.mrf.mxu0
  %v860 = vadd.f32 0.0, %v859
  %v861 = vpop.f32.mrf.mxu0
  %v862 = vadd.f32 0.0, %v861
  %863 = vmatmul.bf16.gmra.mxu0 %v739
  %v864 = vpop.f32.mrf.mxu0
  %v865 = vadd.f32 0.0, %v864
  %v866 = vpop.f32.mrf.mxu0
  %v867 = vadd.f32 0.0, %v866
  %868 = vmatmul.bf16.gmra.mxu0 %v740
  %v869 = vpop.f32.mrf.mxu0
  %v870 = vadd.f32 0.0, %v869
  %v871 = vpop.f32.mrf.mxu0
  %v872 = vadd.f32 0.0, %v871
  %873 = vmatmul.bf16.gmra.mxu0 %v741
  %v874 = vpop.f32.mrf.mxu0
  %v875 = vadd.f32 0.0, %v874
  %v876 = vpop.f32.mrf.mxu0
  %v877 = vadd.f32 0.0, %v876
  %878 = vmatmul.bf16.gmra.mxu0 %v742
  %v879 = vpop.f32.mrf.mxu0
  %v880 = vadd.f32 0.0, %v879
  %v881 = vpop.f32.mrf.mxu0
  %v882 = vadd.f32 0.0, %v881
  %883 = vmatmul.bf16.gmra.mxu0 %v743
  %v884 = vpop.f32.mrf.mxu0
  %v885 = vadd.f32 0.0, %v884
  %v886 = vpop.f32.mrf.mxu0
  %v887 = vadd.f32 0.0, %v886
  %888 = vmatmul.bf16.gmra.mxu0 %v744
  %v889 = vpop.f32.mrf.mxu0
  %v890 = vadd.f32 0.0, %v889
  %v891 = vpop.f32.mrf.mxu0
  %v892 = vadd.f32 0.0, %v891
  %893 = vmatmul.bf16.gmra.mxu0 %v745
  %v894 = vpop.f32.mrf.mxu0
  %v895 = vadd.f32 0.0, %v894
  %v896 = vpop.f32.mrf.mxu0
  %v897 = vadd.f32 0.0, %v896
  %898 = vmatmul.bf16.gmra.mxu0 %v746
  %v899 = vpop.f32.mrf.mxu0
  %v900 = vadd.f32 0.0, %v899
  %v901 = vpop.f32.mrf.mxu0
  %v902 = vadd.f32 0.0, %v901
  %903 = vmatmul.bf16.gmra.mxu0 %v747
  %v904 = vpop.f32.mrf.mxu0
  %v905 = vadd.f32 0.0, %v904
  %v906 = vpop.f32.mrf.mxu0
  %v907 = vadd.f32 0.0, %v906
  %908 = vmatmul.bf16.gmra.mxu0 %v748
  %v909 = vpop.f32.mrf.mxu0
  %v910 = vadd.f32 0.0, %v909
  %v911 = vpop.f32.mrf.mxu0
  %v912 = vadd.f32 0.0, %v911
  %913 = vmatmul.bf16.gmra.mxu0 %v749
  %v914 = vpop.f32.mrf.mxu0
  %v915 = vadd.f32 0.0, %v914
  %v916 = vpop.f32.mrf.mxu0
  %v917 = vadd.f32 0.0, %v916
  %918 = vmatmul.bf16.gmra.mxu0 %v750
  %v919 = vpop.f32.mrf.mxu0
  %v920 = vadd.f32 0.0, %v919
  %v921 = vpop.f32.mrf.mxu0
  %v922 = vadd.f32 0.0, %v921
  %923 = vmatmul.bf16.gmra.mxu0 %v751
  %v924 = vpop.f32.mrf.mxu0
  %v925 = vadd.f32 0.0, %v924
  %v926 = vpop.f32.mrf.mxu0
  %v927 = vadd.f32 0.0, %v926
  %928 = vmatmul.bf16.gmra.mxu0 %v752
  %v929 = vpop.f32.mrf.mxu0
  %v930 = vadd.f32 0.0, %v929
  %v931 = vpop.f32.mrf.mxu0
  %v932 = vadd.f32 0.0, %v931
  %933 = vmatmul.bf16.gmra.mxu0 %v753
  %v934 = vpop.f32.mrf.mxu0
  %v935 = vadd.f32 0.0, %v934
  %v936 = vpop.f32.mrf.mxu0
  %v937 = vadd.f32 0.0, %v936
  %938 = vmatmul.bf16.gmra.mxu0 %v754
  %v939 = vpop.f32.mrf.mxu0
  %v940 = vadd.f32 0.0, %v939
  %v941 = vpop.f32.mrf.mxu0
  %v942 = vadd.f32 0.0, %v941
  %943 = vmatmul.bf16.gmra.mxu0 %v755
  %v944 = vpop.f32.mrf.mxu0
  %v945 = vadd.f32 0.0, %v944
  %v946 = vpop.f32.mrf.mxu0
  %v947 = vadd.f32 0.0, %v946
  %948 = vmatmul.bf16.gmra.mxu0 %v756
  %v949 = vpop.f32.mrf.mxu0
  %v950 = vadd.f32 0.0, %v949
  %v951 = vpop.f32.mrf.mxu0
  %v952 = vadd.f32 0.0, %v951
  %953 = vmatmul.bf16.gmra.mxu0 %v757
  %v954 = vpop.f32.mrf.mxu0
  %v955 = vadd.f32 0.0, %v954
  %v956 = vpop.f32.mrf.mxu0
  %v957 = vadd.f32 0.0, %v956
  %958 = vmatmul.bf16.gmra.mxu0 %v758
  %v959 = vpop.f32.mrf.mxu0
  %v960 = vadd.f32 0.0, %v959
  %v961 = vpop.f32.mrf.mxu0
  %v962 = vadd.f32 0.0, %v961
  %963 = vmatmul.bf16.gmra.mxu0 %v759
  %v964 = vpop.f32.mrf.mxu0
  %v965 = vadd.f32 0.0, %v964
  %v966 = vpop.f32.mrf.mxu0
  %v967 = vadd.f32 0.0, %v966
  %968 = vmatmul.bf16.gmra.mxu0 %v760
  %v969 = vpop.f32.mrf.mxu0
  %v970 = vadd.f32 0.0, %v969
  %v971 = vpop.f32.mrf.mxu0
  %v972 = vadd.f32 0.0, %v971
  %973 = vmatmul.bf16.gmra.mxu0 %v761
  %v974 = vpop.f32.mrf.mxu0
  %v975 = vadd.f32 0.0, %v974
  %v976 = vpop.f32.mrf.mxu0
  %v977 = vadd.f32 0.0, %v976
  %978 = vmatmul.bf16.gmra.mxu0 %v762
  %v979 = vpop.f32.mrf.mxu0
  %v980 = vadd.f32 0.0, %v979
  %v981 = vpop.f32.mrf.mxu0
  %v982 = vadd.f32 0.0, %v981
  %983 = vmatmul.bf16.gmra.mxu0 %v763
  %v984 = vpop.f32.mrf.mxu0
  %v985 = vadd.f32 0.0, %v984
  %v986 = vpop.f32.mrf.mxu0
  %v987 = vadd.f32 0.0, %v986
  %988 = vmatmul.bf16.gmra.mxu0 %v764
  %v989 = vpop.f32.mrf.mxu0
  %v990 = vadd.f32 0.0, %v989
  %v991 = vpop.f32.mrf.mxu0
  %v992 = vadd.f32 0.0, %v991
  %993 = vmatmul.bf16.gmra.mxu0 %v765
  %v994 = vpop.f32.mrf.mxu0
  %v995 = vadd.f32 0.0, %v994
  %v996 = vpop.f32.mrf.mxu0
  %v997 = vadd.f32 0.0, %v996
  %998 = vdwg.mxu0
  %v999 = vpack.c.bf16 %v840, %v840
  %v1000 = vpack.c.bf16 %v842, %v842
  %v1001 = vpack.c.bf16 %v845, %v845
  %v1002 = vpack.c.bf16 %v847, %v847
  %v1003 = vpack.c.bf16 %v850, %v850
  %v1004 = vpack.c.bf16 %v852, %v852
  %v1005 = vpack.c.bf16 %v855, %v855
  %v1006 = vpack.c.bf16 %v857, %v857
  %v1007 = vpack.c.bf16 %v860, %v860
  %v1008 = vpack.c.bf16 %v862, %v862
  %v1009 = vpack.c.bf16 %v865, %v865
  %v1010 = vpack.c.bf16 %v867, %v867
  %v1011 = vpack.c.bf16 %v870, %v870
  %v1012 = vpack.c.bf16 %v872, %v872
  %v1013 = vpack.c.bf16 %v875, %v875
  %v1014 = vpack.c.bf16 %v877, %v877
  %v1015 = vpack.c.bf16 %v880, %v880
  %v1016 = vpack.c.bf16 %v882, %v882
  %v1017 = vpack.c.bf16 %v885, %v885
  %v1018 = vpack.c.bf16 %v887, %v887
  %v1019 = vpack.c.bf16 %v890, %v890
  %v1020 = vpack.c.bf16 %v892, %v892
  %v1021 = vpack.c.bf16 %v895, %v895
  %v1022 = vpack.c.bf16 %v897, %v897
  %v1023 = vpack.c.bf16 %v900, %v900
  %v1024 = vpack.c.bf16 %v902, %v902
  %v1025 = vpack.c.bf16 %v905, %v905
  %v1026 = vpack.c.bf16 %v907, %v907
  %v1027 = vpack.c.bf16 %v910, %v910
  %v1028 = vpack.c.bf16 %v912, %v912
  %v1029 = vpack.c.bf16 %v915, %v915
  %v1030 = vpack.c.bf16 %v917, %v917
  %v1031 = vpack.c.bf16 %v920, %v920
  %v1032 = vpack.c.bf16 %v922, %v922
  %v1033 = vpack.c.bf16 %v925, %v925
  %v1034 = vpack.c.bf16 %v927, %v927
  %v1035 = vpack.c.bf16 %v930, %v930
  %v1036 = vpack.c.bf16 %v932, %v932
  %v1037 = vpack.c.bf16 %v935, %v935
  %v1038 = vpack.c.bf16 %v937, %v937
  %v1039 = vpack.c.bf16 %v940, %v940
  %v1040 = vpack.c.bf16 %v942, %v942
  %v1041 = vpack.c.bf16 %v945, %v945
  %v1042 = vpack.c.bf16 %v947, %v947
  %v1043 = vpack.c.bf16 %v950, %v950
  %v1044 = vpack.c.bf16 %v952, %v952
  %v1045 = vpack.c.bf16 %v955, %v955
  %v1046 = vpack.c.bf16 %v957, %v957
  %v1047 = vpack.c.bf16 %v960, %v960
  %v1048 = vpack.c.bf16 %v962, %v962
  %v1049 = vpack.c.bf16 %v965, %v965
  %v1050 = vpack.c.bf16 %v967, %v967
  %v1051 = vpack.c.bf16 %v970, %v970
  %v1052 = vpack.c.bf16 %v972, %v972
  %v1053 = vpack.c.bf16 %v975, %v975
  %v1054 = vpack.c.bf16 %v977, %v977
  %v1055 = vpack.c.bf16 %v980, %v980
  %v1056 = vpack.c.bf16 %v982, %v982
  %v1057 = vpack.c.bf16 %v985, %v985
  %v1058 = vpack.c.bf16 %v987, %v987
  %v1059 = vpack.c.bf16 %v990, %v990
  %v1060 = vpack.c.bf16 %v992, %v992
  %v1061 = vpack.c.bf16 %v995, %v995
  %v1062 = vpack.c.bf16 %v997, %v997
  %1063 = vst [vmem:[%s4] sm:$0xf] %v999
  %1064 = vst [vmem:[%s4 + $0x4] sm:$0xf] %v1000
  %1065 = vst [vmem:[%s4 + $0x8] sm:$0xf] %v1001
  %1066 = vst [vmem:[%s4 + $0xc] sm:$0xf] %v1002
  %1067 = vst [vmem:[%s4 + $0x10] sm:$0xf] %v1003
  %1068 = vst [vmem:[%s4 + $0x14] sm:$0xf] %v1004
  %1069 = vst [vmem:[%s4 + $0x18] sm:$0xf] %v1005
  %1070 = vst [vmem:[%s4 + $0x1c] sm:$0xf] %v1006
  %1071 = vst [vmem:[%s4 + $0x20] sm:$0xf] %v1007
  %1072 = vst [vmem:[%s4 + $0x24] sm:$0xf] %v1008
  %1073 = vst [vmem:[%s4 + $0x28] sm:$0xf] %v1009
  %1074 = vst [vmem:[%s4 + $0x2c] sm:$0xf] %v1010
  %1075 = vst [vmem:[%s4 + $0x30] sm:$0xf] %v1011
  %1076 = vst [vmem:[%s4 + $0x34] sm:$0xf] %v1012
  %1077 = vst [vmem:[%s4 + $0x38] sm:$0xf] %v1013
  %1078 = vst [vmem:[%s4 + $0x3c] sm:$0xf] %v1014
  %1079 = vst [vmem:[%s4 + $0x40] sm:$0xf] %v1015
  %1080 = vst [vmem:[%s4 + $0x44] sm:$0xf] %v1016
  %1081 = vst [vmem:[%s4 + $0x48] sm:$0xf] %v1017
  %1082 = vst [vmem:[%s4 + $0x4c] sm:$0xf] %v1018
  %1083 = vst [vmem:[%s4 + $0x50] sm:$0xf] %v1019
  %1084 = vst [vmem:[%s4 + $0x54] sm:$0xf] %v1020
  %1085 = vst [vmem:[%s4 + $0x58] sm:$0xf] %v1021
  %1086 = vst [vmem:[%s4 + $0x5c] sm:$0xf] %v1022
  %1087 = vst [vmem:[%s4 + $0x60] sm:$0xf] %v1023
  %1088 = vst [vmem:[%s4 + $0x64] sm:$0xf] %v1024
  %1089 = vst [vmem:[%s4 + $0x68] sm:$0xf] %v1025
  %1090 = vst [vmem:[%s4 + $0x6c] sm:$0xf] %v1026
  %1091 = vst [vmem:[%s4 + $0x70] sm:$0xf] %v1027
  %1092 = vst [vmem:[%s4 + $0x74] sm:$0xf] %v1028
  %1093 = vst [vmem:[%s4 + $0x78] sm:$0xf] %v1029
  %1094 = vst [vmem:[%s4 + $0x7c] sm:$0xf] %v1030
  %1095 = vst [vmem:[%s4 + $0x80] sm:$0xf] %v1031
  %1096 = vst [vmem:[%s4 + $0x84] sm:$0xf] %v1032
  %1097 = vst [vmem:[%s4 + $0x88] sm:$0xf] %v1033
  %1098 = vst [vmem:[%s4 + $0x8c] sm:$0xf] %v1034
  %1099 = vst [vmem:[%s4 + $0x90] sm:$0xf] %v1035
  %1100 = vst [vmem:[%s4 + $0x94] sm:$0xf] %v1036
  %1101 = vst [vmem:[%s4 + $0x98] sm:$0xf] %v1037
  %1102 = vst [vmem:[%s4 + $0x9c] sm:$0xf] %v1038
  %1103 = vst [vmem:[%s4 + $0xa0] sm:$0xf] %v1039
  %1104 = vst [vmem:[%s4 + $0xa4] sm:$0xf] %v1040
  %1105 = vst [vmem:[%s4 + $0xa8] sm:$0xf] %v1041
  %1106 = vst [vmem:[%s4 + $0xac] sm:$0xf] %v1042
  %1107 = vst [vmem:[%s4 + $0xb0] sm:$0xf] %v1043
  %1108 = vst [vmem:[%s4 + $0xb4] sm:$0xf] %v1044
  %1109 = vst [vmem:[%s4 + $0xb8] sm:$0xf] %v1045
  %1110 = vst [vmem:[%s4 + $0xbc] sm:$0xf] %v1046
  %1111 = vst [vmem:[%s4 + $0xc0] sm:$0xf] %v1047
  %1112 = vst [vmem:[%s4 + $0xc4] sm:$0xf] %v1048
  %1113 = vst [vmem:[%s4 + $0xc8] sm:$0xf] %v1049
  %1114 = vst [vmem:[%s4 + $0xcc] sm:$0xf] %v1050
  %1115 = vst [vmem:[%s4 + $0xd0] sm:$0xf] %v1051
  %1116 = vst [vmem:[%s4 + $0xd4] sm:$0xf] %v1052
  %1117 = vst [vmem:[%s4 + $0xd8] sm:$0xf] %v1053
  %1118 = vst [vmem:[%s4 + $0xdc] sm:$0xf] %v1054
  %1119 = vst [vmem:[%s4 + $0xe0] sm:$0xf] %v1055
  %1120 = vst [vmem:[%s4 + $0xe4] sm:$0xf] %v1056
  %1121 = vst [vmem:[%s4 + $0xe8] sm:$0xf] %v1057
  %1122 = vst [vmem:[%s4 + $0xec] sm:$0xf] %v1058
  %1123 = vst [vmem:[%s4 + $0xf0] sm:$0xf] %v1059
  %1124 = vst [vmem:[%s4 + $0xf4] sm:$0xf] %v1060
  %1125 = vst [vmem:[%s4 + $0xf8] sm:$0xf] %v1061
  %1126 = vst [vmem:[%s4 + $0xfc] sm:$0xf] %v1062
  %v1127 = vadd.f32 %v840, %v842
  %v1128 = vadd.f32 %v1127, %v845
  %v1129 = vadd.f32 %v1128, %v847
  %v1130 = vadd.f32 %v1129, %v850
  %v1131 = vadd.f32 %v1130, %v852
  %v1132 = vadd.f32 %v1131, %v855
  %v1133 = vadd.f32 %v1132, %v857
  %v1134 = vadd.f32 %v1133, %v860
  %v1135 = vadd.f32 %v1134, %v862
  %v1136 = vadd.f32 %v1135, %v865
  %v1137 = vadd.f32 %v1136, %v867
  %v1138 = vadd.f32 %v1137, %v870
  %v1139 = vadd.f32 %v1138, %v872
  %v1140 = vadd.f32 %v1139, %v875
  %v1141 = vadd.f32 %v1140, %v877
  %v1142 = vadd.f32 %v1141, %v880
  %v1143 = vadd.f32 %v1142, %v882
  %v1144 = vadd.f32 %v1143, %v885
  %v1145 = vadd.f32 %v1144, %v887
  %v1146 = vadd.f32 %v1145, %v890
  %v1147 = vadd.f32 %v1146, %v892
  %v1148 = vadd.f32 %v1147, %v895
  %v1149 = vadd.f32 %v1148, %v897
  %v1150 = vadd.f32 %v1149, %v900
  %v1151 = vadd.f32 %v1150, %v902
  %v1152 = vadd.f32 %v1151, %v905
  %v1153 = vadd.f32 %v1152, %v907
  %v1154 = vadd.f32 %v1153, %v910
  %v1155 = vadd.f32 %v1154, %v912
  %v1156 = vadd.f32 %v1155, %v915
  %v1157 = vadd.f32 %v1156, %v917
  %v1158 = vadd.f32 %v1157, %v920
  %v1159 = vadd.f32 %v1158, %v922
  %v1160 = vadd.f32 %v1159, %v925
  %v1161 = vadd.f32 %v1160, %v927
  %v1162 = vadd.f32 %v1161, %v930
  %v1163 = vadd.f32 %v1162, %v932
  %v1164 = vadd.f32 %v1163, %v935
  %v1165 = vadd.f32 %v1164, %v937
  %v1166 = vadd.f32 %v1165, %v940
  %v1167 = vadd.f32 %v1166, %v942
  %v1168 = vadd.f32 %v1167, %v945
  %v1169 = vadd.f32 %v1168, %v947
  %v1170 = vadd.f32 %v1169, %v950
  %v1171 = vadd.f32 %v1170, %v952
  %v1172 = vadd.f32 %v1171, %v955
  %v1173 = vadd.f32 %v1172, %v957
  %v1174 = vadd.f32 %v1173, %v960
  %v1175 = vadd.f32 %v1174, %v962
  %v1176 = vadd.f32 %v1175, %v965
  %v1177 = vadd.f32 %v1176, %v967
  %v1178 = vadd.f32 %v1177, %v970
  %v1179 = vadd.f32 %v1178, %v972
  %v1180 = vadd.f32 %v1179, %v975
  %v1181 = vadd.f32 %v1180, %v977
  %v1182 = vadd.f32 %v1181, %v980
  %v1183 = vadd.f32 %v1182, %v982
  %v1184 = vadd.f32 %v1183, %v985
  %v1185 = vadd.f32 %v1184, %v987
  %v1186 = vadd.f32 %v1185, %v990
  %v1187 = vadd.f32 %v1186, %v992
  %v1188 = vadd.f32 %v1187, %v995
  %v1189 = vadd.f32 %v1188, %v997
  %v1190 = vrot.slane %v1189, 4
  %v1191 = vadd.f32 %v1189, %v1190
  %v1192 = vrot.slane %v1191, 2
  %v1193 = vadd.f32 %v1191, %v1192
  %v1194 = vrot.slane %v1193, 1
  %v1195 = vadd.f32 %v1193, %v1194
  %1196 = vst [vmem:[%s5] sm:$0x1] %v1195
  %v1197 = vmul.f32 %v840, %v840
  %v1198 = vmul.f32 %v842, %v842
  %v1199 = vmul.f32 %v845, %v845
  %v1200 = vmul.f32 %v847, %v847
  %v1201 = vmul.f32 %v850, %v850
  %v1202 = vmul.f32 %v852, %v852
  %v1203 = vmul.f32 %v855, %v855
  %v1204 = vmul.f32 %v857, %v857
  %v1205 = vmul.f32 %v860, %v860
  %v1206 = vmul.f32 %v862, %v862
  %v1207 = vmul.f32 %v865, %v865
  %v1208 = vmul.f32 %v867, %v867
  %v1209 = vmul.f32 %v870, %v870
  %v1210 = vmul.f32 %v872, %v872
  %v1211 = vmul.f32 %v875, %v875
  %v1212 = vmul.f32 %v877, %v877
  %v1213 = vmul.f32 %v880, %v880
  %v1214 = vmul.f32 %v882, %v882
  %v1215 = vmul.f32 %v885, %v885
  %v1216 = vmul.f32 %v887, %v887
  %v1217 = vmul.f32 %v890, %v890
  %v1218 = vmul.f32 %v892, %v892
  %v1219 = vmul.f32 %v895, %v895
  %v1220 = vmul.f32 %v897, %v897
  %v1221 = vmul.f32 %v900, %v900
  %v1222 = vmul.f32 %v902, %v902
  %v1223 = vmul.f32 %v905, %v905
  %v1224 = vmul.f32 %v907, %v907
  %v1225 = vmul.f32 %v910, %v910
  %v1226 = vmul.f32 %v912, %v912
  %v1227 = vmul.f32 %v915, %v915
  %v1228 = vmul.f32 %v917, %v917
  %v1229 = vmul.f32 %v920, %v920
  %v1230 = vmul.f32 %v922, %v922
  %v1231 = vmul.f32 %v925, %v925
  %v1232 = vmul.f32 %v927, %v927
  %v1233 = vmul.f32 %v930, %v930
  %v1234 = vmul.f32 %v932, %v932
  %v1235 = vmul.f32 %v935, %v935
  %v1236 = vmul.f32 %v937, %v937
  %v1237 = vmul.f32 %v940, %v940
  %v1238 = vmul.f32 %v942, %v942
  %v1239 = vmul.f32 %v945, %v945
  %v1240 = vmul.f32 %v947, %v947
  %v1241 = vmul.f32 %v950, %v950
  %v1242 = vmul.f32 %v952, %v952
  %v1243 = vmul.f32 %v955, %v955
  %v1244 = vmul.f32 %v957, %v957
  %v1245 = vmul.f32 %v960, %v960
  %v1246 = vmul.f32 %v962, %v962
  %v1247 = vmul.f32 %v965, %v965
  %v1248 = vmul.f32 %v967, %v967
  %v1249 = vmul.f32 %v970, %v970
  %v1250 = vmul.f32 %v972, %v972
  %v1251 = vmul.f32 %v975, %v975
  %v1252 = vmul.f32 %v977, %v977
  %v1253 = vmul.f32 %v980, %v980
  %v1254 = vmul.f32 %v982, %v982
  %v1255 = vmul.f32 %v985, %v985
  %v1256 = vmul.f32 %v987, %v987
  %v1257 = vmul.f32 %v990, %v990
  %v1258 = vmul.f32 %v992, %v992
  %v1259 = vmul.f32 %v995, %v995
  %v1260 = vmul.f32 %v997, %v997
  %v1261 = vadd.f32 %v1197, %v1198
  %v1262 = vadd.f32 %v1261, %v1199
  %v1263 = vadd.f32 %v1262, %v1200
  %v1264 = vadd.f32 %v1263, %v1201
  %v1265 = vadd.f32 %v1264, %v1202
  %v1266 = vadd.f32 %v1265, %v1203
  %v1267 = vadd.f32 %v1266, %v1204
  %v1268 = vadd.f32 %v1267, %v1205
  %v1269 = vadd.f32 %v1268, %v1206
  %v1270 = vadd.f32 %v1269, %v1207
  %v1271 = vadd.f32 %v1270, %v1208
  %v1272 = vadd.f32 %v1271, %v1209
  %v1273 = vadd.f32 %v1272, %v1210
  %v1274 = vadd.f32 %v1273, %v1211
  %v1275 = vadd.f32 %v1274, %v1212
  %v1276 = vadd.f32 %v1275, %v1213
  %v1277 = vadd.f32 %v1276, %v1214
  %v1278 = vadd.f32 %v1277, %v1215
  %v1279 = vadd.f32 %v1278, %v1216
  %v1280 = vadd.f32 %v1279, %v1217
  %v1281 = vadd.f32 %v1280, %v1218
  %v1282 = vadd.f32 %v1281, %v1219
  %v1283 = vadd.f32 %v1282, %v1220
  %v1284 = vadd.f32 %v1283, %v1221
  %v1285 = vadd.f32 %v1284, %v1222
  %v1286 = vadd.f32 %v1285, %v1223
  %v1287 = vadd.f32 %v1286, %v1224
  %v1288 = vadd.f32 %v1287, %v1225
  %v1289 = vadd.f32 %v1288, %v1226
  %v1290 = vadd.f32 %v1289, %v1227
  %v1291 = vadd.f32 %v1290, %v1228
  %v1292 = vadd.f32 %v1291, %v1229
  %v1293 = vadd.f32 %v1292, %v1230
  %v1294 = vadd.f32 %v1293, %v1231
  %v1295 = vadd.f32 %v1294, %v1232
  %v1296 = vadd.f32 %v1295, %v1233
  %v1297 = vadd.f32 %v1296, %v1234
  %v1298 = vadd.f32 %v1297, %v1235
  %v1299 = vadd.f32 %v1298, %v1236
  %v1300 = vadd.f32 %v1299, %v1237
  %v1301 = vadd.f32 %v1300, %v1238
  %v1302 = vadd.f32 %v1301, %v1239
  %v1303 = vadd.f32 %v1302, %v1240
  %v1304 = vadd.f32 %v1303, %v1241
  %v1305 = vadd.f32 %v1304, %v1242
  %v1306 = vadd.f32 %v1305, %v1243
  %v1307 = vadd.f32 %v1306, %v1244
  %v1308 = vadd.f32 %v1307, %v1245
  %v1309 = vadd.f32 %v1308, %v1246
  %v1310 = vadd.f32 %v1309, %v1247
  %v1311 = vadd.f32 %v1310, %v1248
  %v1312 = vadd.f32 %v1311, %v1249
  %v1313 = vadd.f32 %v1312, %v1250
  %v1314 = vadd.f32 %v1313, %v1251
  %v1315 = vadd.f32 %v1314, %v1252
  %v1316 = vadd.f32 %v1315, %v1253
  %v1317 = vadd.f32 %v1316, %v1254
  %v1318 = vadd.f32 %v1317, %v1255
  %v1319 = vadd.f32 %v1318, %v1256
  %v1320 = vadd.f32 %v1319, %v1257
  %v1321 = vadd.f32 %v1320, %v1258
  %v1322 = vadd.f32 %v1321, %v1259
  %v1323 = vadd.f32 %v1322, %v1260
  %v1324 = vrot.slane %v1323, 4
  %v1325 = vadd.f32 %v1323, %v1324
  %v1326 = vrot.slane %v1325, 2
  %v1327 = vadd.f32 %v1325, %v1326
  %v1328 = vrot.slane %v1327, 1
  %v1329 = vadd.f32 %v1327, %v1328
  %1330 = vst [vmem:[%s5 + $0x1] sm:$0x1] %v1329
  // Predicated region
  $region18: #{residual_block_forward.6} parent=0 // pred_check
    _
  $region19: #{residual_block_forward.6} parent=0 // pred_check_branch
    %1332 = sbr.rel (0) target = $region21
  $region20: #{residual_block_forward.6} parent=0 // pred_region
    _
  $region21: #{residual_block_forward.6} parent=0 // pred_fallthru
    _
  // Predicated region
  $region22: #{residual_block_forward.6} parent=0 // pred_check
    _
  $region23: #{residual_block_forward.6} parent=0 // pred_check_branch
    %1334 = sbr.rel (0) target = $region25
  $region24: #{residual_block_forward.6} parent=0 // pred_region
    _
  $region25: #{residual_block_forward.6} parent=0 // pred_fallthru
    _
  // Predicated region
  $region26: #{residual_block_forward.6} parent=0 // pred_check
    _
  $region27: #{residual_block_forward.6} parent=0 // pred_check_branch
    %1336 = sbr.rel (0) target = $region29
  $region28: #{residual_block_forward.6} parent=0 // pred_region
    _
  $region29: #{residual_block_forward.6} parent=0 // pred_fallthru
    _
  // Predicated region
  $region30: #{residual_block_forward.6} parent=0 // pred_check
    _
  $region31: #{residual_block_forward.6} parent=0 // pred_check_branch
    %1338 = sbr.rel (0) target = $region33
  $region32: #{residual_block_forward.6} parent=0 // pred_region
    _
  $region33: #{residual_block_forward.6} parent=0 // pred_fallthru
    _

// kernel: residual_block_forward.7
$region0: #{residual_block_forward.7}
  #allocation0 [shape = 'u32[]', space=smem, size = 0x4, offset = 0x4, fixed_abs, tag = 'smem constant byte address 0x4 - core index']
  #allocation1 [shape = 'u32[72,128]{1,0:T(1,128)}', space=vmem, size = 0x9000, scoped, tag = 'internal scratch']
  %s0 = inlined_call_operand.vmem [shape: bf16[512,128], index: 0, kind: input, shape index: {}]
  %s1 = inlined_call_operand.vmem [shape: f32[1,128], index: 1, kind: input, shape index: {}]
  %s2 = inlined_call_operand.vmem [shape: f32[1,128], index: 2, kind: input, shape index: {}]
  %s3 = inlined_call_operand.vmem [shape: bf16[512,128], index: 3, kind: input, shape index: {}]
  %s4 = inlined_call_operand.vmem [shape: bf16[128,128], index: 4, kind: input, shape index: {}]
  %s5 = inlined_call_operand.vmem [shape: f32[1,128], index: 5, kind: input, shape index: {}]
  %s6 = inlined_call_operand.vmem [shape: f32[512,128], index: 6, kind: output, shape index: {}]
  %s7 = sld [smem:[#allocation0]]
  $region34: #{residual_block_forward.7} parent=0
    _
  %s9 = ssub.s32 1, %s7
  %s10 = scalar_select 0, %s9, %s7
  // Predicated region
  $region2: #{residual_block_forward.7} parent=0 // pred_check
    _
  $region3: #{residual_block_forward.7} parent=0 // pred_check_branch
    %12 = sbr.rel (0) target = $region5
  $region4: #{residual_block_forward.7} parent=0 // pred_region
    _
  $region5: #{residual_block_forward.7} parent=0 // pred_fallthru
    _
  // Predicated region
  $region6: #{residual_block_forward.7} parent=0 // pred_check
    _
  $region7: #{residual_block_forward.7} parent=0 // pred_check_branch
    %14 = sbr.rel (0) target = $region9
  $region8: #{residual_block_forward.7} parent=0 // pred_region
    _
  $region9: #{residual_block_forward.7} parent=0 // pred_fallthru
    _
  // Predicated region
  $region10: #{residual_block_forward.7} parent=0 // pred_check
    _
  $region11: #{residual_block_forward.7} parent=0 // pred_check_branch
    %16 = sbr.rel (0) target = $region13
  $region12: #{residual_block_forward.7} parent=0 // pred_region
    _
  $region13: #{residual_block_forward.7} parent=0 // pred_fallthru
    _
  // Predicated region
  $region14: #{residual_block_forward.7} parent=0 // pred_check
    _
  $region15: #{residual_block_forward.7} parent=0 // pred_check_branch
    %18 = sbr.rel (0) target = $region17
  $region16: #{residual_block_forward.7} parent=0 // pred_region
    _
  $region17: #{residual_block_forward.7} parent=0 // pred_fallthru
    _
  // Predicated region
  $region18: #{residual_block_forward.7} parent=0 // pred_check
    _
  $region19: #{residual_block_forward.7} parent=0 // pred_check_branch
    %20 = sbr.rel (0) target = $region21
  $region20: #{residual_block_forward.7} parent=0 // pred_region
    _
  $region21: #{residual_block_forward.7} parent=0 // pred_fallthru
    _
  // Predicated region
  $region22: #{residual_block_forward.7} parent=0 // pred_check
    _
  $region23: #{residual_block_forward.7} parent=0 // pred_check_branch
    %22 = sbr.rel (0) target = $region25
  $region24: #{residual_block_forward.7} parent=0 // pred_region
    _
  $region25: #{residual_block_forward.7} parent=0 // pred_fallthru
    _
  %v23 = vld [vmem:[%s3] sm:$0xf]
  %v24 = vld [vmem:[%s3 + $0x4] sm:$0xf]
  %v25 = vld [vmem:[%s3 + $0x8] sm:$0xf]
  %v26 = vld [vmem:[%s3 + $0xc] sm:$0xf]
  %v27 = vld [vmem:[%s3 + $0x10] sm:$0xf]
  %v28 = vld [vmem:[%s3 + $0x14] sm:$0xf]
  %v29 = vld [vmem:[%s3 + $0x18] sm:$0xf]
  %v30 = vld [vmem:[%s3 + $0x1c] sm:$0xf]
  %v31 = vld [vmem:[%s3 + $0x20] sm:$0xf]
  %v32 = vld [vmem:[%s3 + $0x24] sm:$0xf]
  %v33 = vld [vmem:[%s3 + $0x28] sm:$0xf]
  %v34 = vld [vmem:[%s3 + $0x2c] sm:$0xf]
  %v35 = vld [vmem:[%s3 + $0x30] sm:$0xf]
  %v36 = vld [vmem:[%s3 + $0x34] sm:$0xf]
  %v37 = vld [vmem:[%s3 + $0x38] sm:$0xf]
  %v38 = vld [vmem:[%s3 + $0x3c] sm:$0xf]
  %v39 = vld [vmem:[%s3 + $0x40] sm:$0xf]
  %v40 = vld [vmem:[%s3 + $0x44] sm:$0xf]
  %v41 = vld [vmem:[%s3 + $0x48] sm:$0xf]
  %v42 = vld [vmem:[%s3 + $0x4c] sm:$0xf]
  %v43 = vld [vmem:[%s3 + $0x50] sm:$0xf]
  %v44 = vld [vmem:[%s3 + $0x54] sm:$0xf]
  %v45 = vld [vmem:[%s3 + $0x58] sm:$0xf]
  %v46 = vld [vmem:[%s3 + $0x5c] sm:$0xf]
  %v47 = vld [vmem:[%s3 + $0x60] sm:$0xf]
  %v48 = vld [vmem:[%s3 + $0x64] sm:$0xf]
  %v49 = vld [vmem:[%s3 + $0x68] sm:$0xf]
  %v50 = vld [vmem:[%s3 + $0x6c] sm:$0xf]
  %v51 = vld [vmem:[%s3 + $0x70] sm:$0xf]
  %v52 = vld [vmem:[%s3 + $0x74] sm:$0xf]
  %v53 = vld [vmem:[%s3 + $0x78] sm:$0xf]
  %v54 = vld [vmem:[%s3 + $0x7c] sm:$0xf]
  %v55 = vld [vmem:[%s3 + $0x80] sm:$0xf]
  %v56 = vld [vmem:[%s3 + $0x84] sm:$0xf]
  %v57 = vld [vmem:[%s3 + $0x88] sm:$0xf]
  %v58 = vld [vmem:[%s3 + $0x8c] sm:$0xf]
  %v59 = vld [vmem:[%s3 + $0x90] sm:$0xf]
  %v60 = vld [vmem:[%s3 + $0x94] sm:$0xf]
  %v61 = vld [vmem:[%s3 + $0x98] sm:$0xf]
  %v62 = vld [vmem:[%s3 + $0x9c] sm:$0xf]
  %v63 = vld [vmem:[%s3 + $0xa0] sm:$0xf]
  %v64 = vld [vmem:[%s3 + $0xa4] sm:$0xf]
  %v65 = vld [vmem:[%s3 + $0xa8] sm:$0xf]
  %v66 = vld [vmem:[%s3 + $0xac] sm:$0xf]
  %v67 = vld [vmem:[%s3 + $0xb0] sm:$0xf]
  %v68 = vld [vmem:[%s3 + $0xb4] sm:$0xf]
  %v69 = vld [vmem:[%s3 + $0xb8] sm:$0xf]
  %v70 = vld [vmem:[%s3 + $0xbc] sm:$0xf]
  %v71 = vld [vmem:[%s3 + $0xc0] sm:$0xf]
  %v72 = vld [vmem:[%s3 + $0xc4] sm:$0xf]
  %v73 = vld [vmem:[%s3 + $0xc8] sm:$0xf]
  %v74 = vld [vmem:[%s3 + $0xcc] sm:$0xf]
  %v75 = vld [vmem:[%s3 + $0xd0] sm:$0xf]
  %v76 = vld [vmem:[%s3 + $0xd4] sm:$0xf]
  %v77 = vld [vmem:[%s3 + $0xd8] sm:$0xf]
  %v78 = vld [vmem:[%s3 + $0xdc] sm:$0xf]
  %v79 = vld [vmem:[%s3 + $0xe0] sm:$0xf]
  %v80 = vld [vmem:[%s3 + $0xe4] sm:$0xf]
  %v81 = vld [vmem:[%s3 + $0xe8] sm:$0xf]
  %v82 = vld [vmem:[%s3 + $0xec] sm:$0xf]
  %v83 = vld [vmem:[%s3 + $0xf0] sm:$0xf]
  %v84 = vld [vmem:[%s3 + $0xf4] sm:$0xf]
  %v85 = vld [vmem:[%s3 + $0xf8] sm:$0xf]
  %v86 = vld [vmem:[%s3 + $0xfc] sm:$0xf]
  %v87 = vld [vmem:[%s4] sm:$0xf]
  %v88 = vld [vmem:[%s4 + $0x4] sm:$0xf]
  %v89 = vld [vmem:[%s4 + $0x8] sm:$0xf]
  %v90 = vld [vmem:[%s4 + $0xc] sm:$0xf]
  %v91 = vld [vmem:[%s4 + $0x10] sm:$0xf]
  %v92 = vld [vmem:[%s4 + $0x14] sm:$0xf]
  %v93 = vld [vmem:[%s4 + $0x18] sm:$0xf]
  %v94 = vld [vmem:[%s4 + $0x1c] sm:$0xf]
  %v95 = vld [vmem:[%s4 + $0x20] sm:$0xf]
  %v96 = vld [vmem:[%s4 + $0x24] sm:$0xf]
  %v97 = vld [vmem:[%s4 + $0x28] sm:$0xf]
  %v98 = vld [vmem:[%s4 + $0x2c] sm:$0xf]
  %v99 = vld [vmem:[%s4 + $0x30] sm:$0xf]
  %v100 = vld [vmem:[%s4 + $0x34] sm:$0xf]
  %v101 = vld [vmem:[%s4 + $0x38] sm:$0xf]
  %v102 = vld [vmem:[%s4 + $0x3c] sm:$0xf]
  %v103 = vld [vmem:[%s5] sm:$0x1]
  %v105 = vperm.slane %v103, 0
  %v171 = vunpack.c.l.b16 %v23
  %v172 = vunpack.c.l.b16 %v24
  %v173 = vunpack.c.l.b16 %v25
  %v174 = vunpack.c.l.b16 %v26
  %v175 = vunpack.c.l.b16 %v27
  %v176 = vunpack.c.l.b16 %v28
  %v177 = vunpack.c.l.b16 %v29
  %v178 = vunpack.c.l.b16 %v30
  %v179 = vunpack.c.l.b16 %v31
  %v180 = vunpack.c.l.b16 %v32
  %v181 = vunpack.c.l.b16 %v33
  %v182 = vunpack.c.l.b16 %v34
  %v183 = vunpack.c.l.b16 %v35
  %v184 = vunpack.c.l.b16 %v36
  %v185 = vunpack.c.l.b16 %v37
  %v186 = vunpack.c.l.b16 %v38
  %v187 = vunpack.c.l.b16 %v39
  %v188 = vunpack.c.l.b16 %v40
  %v189 = vunpack.c.l.b16 %v41
  %v190 = vunpack.c.l.b16 %v42
  %v191 = vunpack.c.l.b16 %v43
  %v192 = vunpack.c.l.b16 %v44
  %v193 = vunpack.c.l.b16 %v45
  %v194 = vunpack.c.l.b16 %v46
  %v195 = vunpack.c.l.b16 %v47
  %v196 = vunpack.c.l.b16 %v48
  %v197 = vunpack.c.l.b16 %v49
  %v198 = vunpack.c.l.b16 %v50
  %v199 = vunpack.c.l.b16 %v51
  %v200 = vunpack.c.l.b16 %v52
  %v201 = vunpack.c.l.b16 %v53
  %v202 = vunpack.c.l.b16 %v54
  %v203 = vunpack.c.l.b16 %v55
  %v204 = vunpack.c.l.b16 %v56
  %v205 = vunpack.c.l.b16 %v57
  %v206 = vunpack.c.l.b16 %v58
  %v207 = vunpack.c.l.b16 %v59
  %v208 = vunpack.c.l.b16 %v60
  %v209 = vunpack.c.l.b16 %v61
  %v210 = vunpack.c.l.b16 %v62
  %v211 = vunpack.c.l.b16 %v63
  %v212 = vunpack.c.l.b16 %v64
  %v213 = vunpack.c.l.b16 %v65
  %v214 = vunpack.c.l.b16 %v66
  %v215 = vunpack.c.l.b16 %v67
  %v216 = vunpack.c.l.b16 %v68
  %v217 = vunpack.c.l.b16 %v69
  %v218 = vunpack.c.l.b16 %v70
  %v219 = vunpack.c.l.b16 %v71
  %v220 = vunpack.c.l.b16 %v72
  %v221 = vunpack.c.l.b16 %v73
  %v222 = vunpack.c.l.b16 %v74
  %v223 = vunpack.c.l.b16 %v75
  %v224 = vunpack.c.l.b16 %v76
  %v225 = vunpack.c.l.b16 %v77
  %v226 = vunpack.c.l.b16 %v78
  %v227 = vunpack.c.l.b16 %v79
  %v228 = vunpack.c.l.b16 %v80
  %v229 = vunpack.c.l.b16 %v81
  %v230 = vunpack.c.l.b16 %v82
  %v231 = vunpack.c.l.b16 %v83
  %v232 = vunpack.c.l.b16 %v84
  %v233 = vunpack.c.l.b16 %v85
  %v234 = vunpack.c.l.b16 %v86
  %v235 = vpack.c.b16 %v172, %v171
  %v236 = vpack.c.b16 %v174, %v173
  %v237 = vpack.c.b16 %v176, %v175
  %v238 = vpack.c.b16 %v178, %v177
  %v239 = vpack.c.b16 %v180, %v179
  %v240 = vpack.c.b16 %v182, %v181
  %v241 = vpack.c.b16 %v184, %v183
  %v242 = vpack.c.b16 %v186, %v185
  %v243 = vpack.c.b16 %v188, %v187
  %v244 = vpack.c.b16 %v190, %v189
  %v245 = vpack.c.b16 %v192, %v191
  %v246 = vpack.c.b16 %v194, %v193
  %v247 = vpack.c.b16 %v196, %v195
  %v248 = vpack.c.b16 %v198, %v197
  %v249 = vpack.c.b16 %v200, %v199
  %v250 = vpack.c.b16 %v202, %v201
  %v251 = vpack.c.b16 %v204, %v203
  %v252 = vpack.c.b16 %v206, %v205
  %v253 = vpack.c.b16 %v208, %v207
  %v254 = vpack.c.b16 %v210, %v209
  %v255 = vpack.c.b16 %v212, %v211
  %v256 = vpack.c.b16 %v214, %v213
  %v257 = vpack.c.b16 %v216, %v215
  %v258 = vpack.c.b16 %v218, %v217
  %v259 = vpack.c.b16 %v220, %v219
  %v260 = vpack.c.b16 %v222, %v221
  %v261 = vpack.c.b16 %v224, %v223
  %v262 = vpack.c.b16 %v226, %v225
  %v263 = vpack.c.b16 %v228, %v227
  %v264 = vpack.c.b16 %v230, %v229
  %v265 = vpack.c.b16 %v232, %v231
  %v266 = vpack.c.b16 %v234, %v233
  %v315 = vunpack.c.l.b16 %v87
  %v316 = vunpack.c.l.b16 %v88
  %v317 = vunpack.c.l.b16 %v89
  %v318 = vunpack.c.l.b16 %v90
  %v319 = vunpack.c.l.b16 %v91
  %v320 = vunpack.c.l.b16 %v92
  %v321 = vunpack.c.l.b16 %v93
  %v322 = vunpack.c.l.b16 %v94
  %v323 = vunpack.c.l.b16 %v95
  %v324 = vunpack.c.l.b16 %v96
  %v325 = vunpack.c.l.b16 %v97
  %v326 = vunpack.c.l.b16 %v98
  %v327 = vunpack.c.l.b16 %v99
  %v328 = vunpack.c.l.b16 %v100
  %v329 = vunpack.c.l.b16 %v101
  %v330 = vunpack.c.l.b16 %v102
  %v331 = vpack.c.b16 %v316, %v315
  %v332 = vpack.c.b16 %v318, %v317
  %v333 = vpack.c.b16 %v320, %v319
  %v334 = vpack.c.b16 %v322, %v321
  %v335 = vpack.c.b16 %v324, %v323
  %v336 = vpack.c.b16 %v326, %v325
  %v337 = vpack.c.b16 %v328, %v327
  %v338 = vpack.c.b16 %v330, %v329
  %347 = vmatpush.bf16.msra.mxu0 %v338
  %348 = vmatpush.bf16.msra.mxu0 %v337
  %349 = vmatpush.bf16.msra.mxu0 %v336
  %350 = vmatpush.bf16.msra.mxu0 %v335
  %351 = vmatpush.bf16.msra.mxu0 %v334
  %352 = vmatpush.bf16.msra.mxu0 %v333
  %353 = vmatpush.bf16.msra.mxu0 %v332
  %354 = vmatpush.bf16.msra.mxu0 %v331
  %355 = vmatmul.bf16.gmra.mxu0 %v235
  %v356 = vpop.f32.mrf.mxu0
  %v357 = vadd.f32 %v105, %v356
  %v358 = vpop.f32.mrf.mxu0
  %v359 = vadd.f32 %v105, %v358
  %360 = vmatmul.bf16.gmra.mxu0 %v236
  %v361 = vpop.f32.mrf.mxu0
  %v362 = vadd.f32 %v105, %v361
  %v363 = vpop.f32.mrf.mxu0
  %v364 = vadd.f32 %v105, %v363
  %365 = vmatmul.bf16.gmra.mxu0 %v237
  %v366 = vpop.f32.mrf.mxu0
  %v367 = vadd.f32 %v105, %v366
  %v368 = vpop.f32.mrf.mxu0
  %v369 = vadd.f32 %v105, %v368
  %370 = vmatmul.bf16.gmra.mxu0 %v238
  %v371 = vpop.f32.mrf.mxu0
  %v372 = vadd.f32 %v105, %v371
  %v373 = vpop.f32.mrf.mxu0
  %v374 = vadd.f32 %v105, %v373
  %375 = vmatmul.bf16.gmra.mxu0 %v239
  %v376 = vpop.f32.mrf.mxu0
  %v377 = vadd.f32 %v105, %v376
  %v378 = vpop.f32.mrf.mxu0
  %v379 = vadd.f32 %v105, %v378
  %380 = vmatmul.bf16.gmra.mxu0 %v240
  %v381 = vpop.f32.mrf.mxu0
  %v382 = vadd.f32 %v105, %v381
  %v383 = vpop.f32.mrf.mxu0
  %v384 = vadd.f32 %v105, %v383
  %385 = vmatmul.bf16.gmra.mxu0 %v241
  %v386 = vpop.f32.mrf.mxu0
  %v387 = vadd.f32 %v105, %v386
  %v388 = vpop.f32.mrf.mxu0
  %v389 = vadd.f32 %v105, %v388
  %390 = vmatmul.bf16.gmra.mxu0 %v242
  %v391 = vpop.f32.mrf.mxu0
  %v392 = vadd.f32 %v105, %v391
  %v393 = vpop.f32.mrf.mxu0
  %v394 = vadd.f32 %v105, %v393
  %395 = vmatmul.bf16.gmra.mxu0 %v243
  %v396 = vpop.f32.mrf.mxu0
  %v397 = vadd.f32 %v105, %v396
  %v398 = vpop.f32.mrf.mxu0
  %v399 = vadd.f32 %v105, %v398
  %400 = vmatmul.bf16.gmra.mxu0 %v244
  %v401 = vpop.f32.mrf.mxu0
  %v402 = vadd.f32 %v105, %v401
  %v403 = vpop.f32.mrf.mxu0
  %v404 = vadd.f32 %v105, %v403
  %405 = vmatmul.bf16.gmra.mxu0 %v245
  %v406 = vpop.f32.mrf.mxu0
  %v407 = vadd.f32 %v105, %v406
  %v408 = vpop.f32.mrf.mxu0
  %v409 = vadd.f32 %v105, %v408
  %410 = vmatmul.bf16.gmra.mxu0 %v246
  %v411 = vpop.f32.mrf.mxu0
  %v412 = vadd.f32 %v105, %v411
  %v413 = vpop.f32.mrf.mxu0
  %v414 = vadd.f32 %v105, %v413
  %415 = vmatmul.bf16.gmra.mxu0 %v247
  %v416 = vpop.f32.mrf.mxu0
  %v417 = vadd.f32 %v105, %v416
  %v418 = vpop.f32.mrf.mxu0
  %v419 = vadd.f32 %v105, %v418
  %420 = vmatmul.bf16.gmra.mxu0 %v248
  %v421 = vpop.f32.mrf.mxu0
  %v422 = vadd.f32 %v105, %v421
  %v423 = vpop.f32.mrf.mxu0
  %v424 = vadd.f32 %v105, %v423
  %425 = vmatmul.bf16.gmra.mxu0 %v249
  %v426 = vpop.f32.mrf.mxu0
  %v427 = vadd.f32 %v105, %v426
  %v428 = vpop.f32.mrf.mxu0
  %v429 = vadd.f32 %v105, %v428
  %430 = vmatmul.bf16.gmra.mxu0 %v250
  %v431 = vpop.f32.mrf.mxu0
  %v432 = vadd.f32 %v105, %v431
  %v433 = vpop.f32.mrf.mxu0
  %v434 = vadd.f32 %v105, %v433
  %435 = vmatmul.bf16.gmra.mxu0 %v251
  %v436 = vpop.f32.mrf.mxu0
  %v437 = vadd.f32 %v105, %v436
  %v438 = vpop.f32.mrf.mxu0
  %v439 = vadd.f32 %v105, %v438
  %440 = vmatmul.bf16.gmra.mxu0 %v252
  %v441 = vpop.f32.mrf.mxu0
  %v442 = vadd.f32 %v105, %v441
  %v443 = vpop.f32.mrf.mxu0
  %v444 = vadd.f32 %v105, %v443
  %445 = vmatmul.bf16.gmra.mxu0 %v253
  %v446 = vpop.f32.mrf.mxu0
  %v447 = vadd.f32 %v105, %v446
  %v448 = vpop.f32.mrf.mxu0
  %v449 = vadd.f32 %v105, %v448
  %450 = vmatmul.bf16.gmra.mxu0 %v254
  %v451 = vpop.f32.mrf.mxu0
  %v452 = vadd.f32 %v105, %v451
  %v453 = vpop.f32.mrf.mxu0
  %v454 = vadd.f32 %v105, %v453
  %455 = vmatmul.bf16.gmra.mxu0 %v255
  %v456 = vpop.f32.mrf.mxu0
  %v457 = vadd.f32 %v105, %v456
  %v458 = vpop.f32.mrf.mxu0
  %v459 = vadd.f32 %v105, %v458
  %460 = vmatmul.bf16.gmra.mxu0 %v256
  %v461 = vpop.f32.mrf.mxu0
  %v462 = vadd.f32 %v105, %v461
  %v463 = vpop.f32.mrf.mxu0
  %v464 = vadd.f32 %v105, %v463
  %465 = vmatmul.bf16.gmra.mxu0 %v257
  %v466 = vpop.f32.mrf.mxu0
  %v467 = vadd.f32 %v105, %v466
  %v468 = vpop.f32.mrf.mxu0
  %v469 = vadd.f32 %v105, %v468
  %470 = vmatmul.bf16.gmra.mxu0 %v258
  %v471 = vpop.f32.mrf.mxu0
  %v472 = vadd.f32 %v105, %v471
  %v473 = vpop.f32.mrf.mxu0
  %v474 = vadd.f32 %v105, %v473
  %475 = vmatmul.bf16.gmra.mxu0 %v259
  %v476 = vpop.f32.mrf.mxu0
  %v477 = vadd.f32 %v105, %v476
  %v478 = vpop.f32.mrf.mxu0
  %v479 = vadd.f32 %v105, %v478
  %480 = vmatmul.bf16.gmra.mxu0 %v260
  %v481 = vpop.f32.mrf.mxu0
  %v482 = vadd.f32 %v105, %v481
  %v483 = vpop.f32.mrf.mxu0
  %v484 = vadd.f32 %v105, %v483
  %485 = vmatmul.bf16.gmra.mxu0 %v261
  %v486 = vpop.f32.mrf.mxu0
  %v487 = vadd.f32 %v105, %v486
  %v488 = vpop.f32.mrf.mxu0
  %v489 = vadd.f32 %v105, %v488
  %490 = vmatmul.bf16.gmra.mxu0 %v262
  %v491 = vpop.f32.mrf.mxu0
  %v492 = vadd.f32 %v105, %v491
  %v493 = vpop.f32.mrf.mxu0
  %v494 = vadd.f32 %v105, %v493
  %495 = vmatmul.bf16.gmra.mxu0 %v263
  %v496 = vpop.f32.mrf.mxu0
  %v497 = vadd.f32 %v105, %v496
  %v498 = vpop.f32.mrf.mxu0
  %v499 = vadd.f32 %v105, %v498
  %500 = vmatmul.bf16.gmra.mxu0 %v264
  %v501 = vpop.f32.mrf.mxu0
  %v502 = vadd.f32 %v105, %v501
  %v503 = vpop.f32.mrf.mxu0
  %v504 = vadd.f32 %v105, %v503
  %505 = vmatmul.bf16.gmra.mxu0 %v265
  %v506 = vpop.f32.mrf.mxu0
  %v507 = vadd.f32 %v105, %v506
  %v508 = vpop.f32.mrf.mxu0
  %v509 = vadd.f32 %v105, %v508
  %510 = vmatmul.bf16.gmra.mxu0 %v266
  %v511 = vpop.f32.mrf.mxu0
  %v512 = vadd.f32 %v105, %v511
  %v513 = vpop.f32.mrf.mxu0
  %v514 = vadd.f32 %v105, %v513
  %515 = vdwg.mxu0
  %v516 = vld [vmem:[%s0] sm:$0xf]
  %v517 = vld [vmem:[%s0 + $0x4] sm:$0xf]
  %v518 = vld [vmem:[%s0 + $0x8] sm:$0xf]
  %v519 = vld [vmem:[%s0 + $0xc] sm:$0xf]
  %v520 = vld [vmem:[%s0 + $0x10] sm:$0xf]
  %v521 = vld [vmem:[%s0 + $0x14] sm:$0xf]
  %v522 = vld [vmem:[%s0 + $0x18] sm:$0xf]
  %v523 = vld [vmem:[%s0 + $0x1c] sm:$0xf]
  %v524 = vld [vmem:[%s0 + $0x20] sm:$0xf]
  %v525 = vld [vmem:[%s0 + $0x24] sm:$0xf]
  %v526 = vld [vmem:[%s0 + $0x28] sm:$0xf]
  %v527 = vld [vmem:[%s0 + $0x2c] sm:$0xf]
  %v528 = vld [vmem:[%s0 + $0x30] sm:$0xf]
  %v529 = vld [vmem:[%s0 + $0x34] sm:$0xf]
  %v530 = vld [vmem:[%s0 + $0x38] sm:$0xf]
  %v531 = vld [vmem:[%s0 + $0x3c] sm:$0xf]
  %v532 = vld [vmem:[%s0 + $0x40] sm:$0xf]
  %v533 = vld [vmem:[%s0 + $0x44] sm:$0xf]
  %v534 = vld [vmem:[%s0 + $0x48] sm:$0xf]
  %v535 = vld [vmem:[%s0 + $0x4c] sm:$0xf]
  %v536 = vld [vmem:[%s0 + $0x50] sm:$0xf]
  %v537 = vld [vmem:[%s0 + $0x54] sm:$0xf]
  %v538 = vld [vmem:[%s0 + $0x58] sm:$0xf]
  %v539 = vld [vmem:[%s0 + $0x5c] sm:$0xf]
  %v540 = vld [vmem:[%s0 + $0x60] sm:$0xf]
  %v541 = vld [vmem:[%s0 + $0x64] sm:$0xf]
  %v542 = vld [vmem:[%s0 + $0x68] sm:$0xf]
  %v543 = vld [vmem:[%s0 + $0x6c] sm:$0xf]
  %v544 = vld [vmem:[%s0 + $0x70] sm:$0xf]
  %v545 = vld [vmem:[%s0 + $0x74] sm:$0xf]
  %v546 = vld [vmem:[%s0 + $0x78] sm:$0xf]
  %v547 = vld [vmem:[%s0 + $0x7c] sm:$0xf]
  %v548 = vld [vmem:[%s0 + $0x80] sm:$0xf]
  %v549 = vld [vmem:[%s0 + $0x84] sm:$0xf]
  %v550 = vld [vmem:[%s0 + $0x88] sm:$0xf]
  %v551 = vld [vmem:[%s0 + $0x8c] sm:$0xf]
  %v552 = vld [vmem:[%s0 + $0x90] sm:$0xf]
  %v553 = vld [vmem:[%s0 + $0x94] sm:$0xf]
  %v554 = vld [vmem:[%s0 + $0x98] sm:$0xf]
  %v555 = vld [vmem:[%s0 + $0x9c] sm:$0xf]
  %v556 = vld [vmem:[%s0 + $0xa0] sm:$0xf]
  %v557 = vld [vmem:[%s0 + $0xa4] sm:$0xf]
  %v558 = vld [vmem:[%s0 + $0xa8] sm:$0xf]
  %v559 = vld [vmem:[%s0 + $0xac] sm:$0xf]
  %v560 = vld [vmem:[%s0 + $0xb0] sm:$0xf]
  %v561 = vld [vmem:[%s0 + $0xb4] sm:$0xf]
  %v562 = vld [vmem:[%s0 + $0xb8] sm:$0xf]
  %v563 = vld [vmem:[%s0 + $0xbc] sm:$0xf]
  %v564 = vld [vmem:[%s0 + $0xc0] sm:$0xf]
  %v565 = vld [vmem:[%s0 + $0xc4] sm:$0xf]
  %v566 = vld [vmem:[%s0 + $0xc8] sm:$0xf]
  %v567 = vld [vmem:[%s0 + $0xcc] sm:$0xf]
  %v568 = vld [vmem:[%s0 + $0xd0] sm:$0xf]
  %v569 = vld [vmem:[%s0 + $0xd4] sm:$0xf]
  %v570 = vld [vmem:[%s0 + $0xd8] sm:$0xf]
  %v571 = vld [vmem:[%s0 + $0xdc] sm:$0xf]
  %v572 = vld [vmem:[%s0 + $0xe0] sm:$0xf]
  %v573 = vld [vmem:[%s0 + $0xe4] sm:$0xf]
  %v574 = vld [vmem:[%s0 + $0xe8] sm:$0xf]
  %v575 = vld [vmem:[%s0 + $0xec] sm:$0xf]
  %v576 = vld [vmem:[%s0 + $0xf0] sm:$0xf]
  %v577 = vld [vmem:[%s0 + $0xf4] sm:$0xf]
  %v578 = vld [vmem:[%s0 + $0xf8] sm:$0xf]
  %v579 = vld [vmem:[%s0 + $0xfc] sm:$0xf]
  %v580 = vunpack.c.l.bf16 %v516
  %v581 = vunpack.c.l.bf16 %v517
  %v582 = vunpack.c.l.bf16 %v518
  %v583 = vunpack.c.l.bf16 %v519
  %v584 = vunpack.c.l.bf16 %v520
  %v585 = vunpack.c.l.bf16 %v521
  %v586 = vunpack.c.l.bf16 %v522
  %v587 = vunpack.c.l.bf16 %v523
  %v588 = vunpack.c.l.bf16 %v524
  %v589 = vunpack.c.l.bf16 %v525
  %v590 = vunpack.c.l.bf16 %v526
  %v591 = vunpack.c.l.bf16 %v527
  %v592 = vunpack.c.l.bf16 %v528
  %v593 = vunpack.c.l.bf16 %v529
  %v594 = vunpack.c.l.bf16 %v530
  %v595 = vunpack.c.l.bf16 %v531
  %v596 = vunpack.c.l.bf16 %v532
  %v597 = vunpack.c.l.bf16 %v533
  %v598 = vunpack.c.l.bf16 %v534
  %v599 = vunpack.c.l.bf16 %v535
  %v600 = vunpack.c.l.bf16 %v536
  %v601 = vunpack.c.l.bf16 %v537
  %v602 = vunpack.c.l.bf16 %v538
  %v603 = vunpack.c.l.bf16 %v539
  %v604 = vunpack.c.l.bf16 %v540
  %v605 = vunpack.c.l.bf16 %v541
  %v606 = vunpack.c.l.bf16 %v542
  %v607 = vunpack.c.l.bf16 %v543
  %v608 = vunpack.c.l.bf16 %v544
  %v609 = vunpack.c.l.bf16 %v545
  %v610 = vunpack.c.l.bf16 %v546
  %v611 = vunpack.c.l.bf16 %v547
  %v612 = vunpack.c.l.bf16 %v548
  %v613 = vunpack.c.l.bf16 %v549
  %v614 = vunpack.c.l.bf16 %v550
  %v615 = vunpack.c.l.bf16 %v551
  %v616 = vunpack.c.l.bf16 %v552
  %v617 = vunpack.c.l.bf16 %v553
  %v618 = vunpack.c.l.bf16 %v554
  %v619 = vunpack.c.l.bf16 %v555
  %v620 = vunpack.c.l.bf16 %v556
  %v621 = vunpack.c.l.bf16 %v557
  %v622 = vunpack.c.l.bf16 %v558
  %v623 = vunpack.c.l.bf16 %v559
  %v624 = vunpack.c.l.bf16 %v560
  %v625 = vunpack.c.l.bf16 %v561
  %v626 = vunpack.c.l.bf16 %v562
  %v627 = vunpack.c.l.bf16 %v563
  %v628 = vunpack.c.l.bf16 %v564
  %v629 = vunpack.c.l.bf16 %v565
  %v630 = vunpack.c.l.bf16 %v566
  %v631 = vunpack.c.l.bf16 %v567
  %v632 = vunpack.c.l.bf16 %v568
  %v633 = vunpack.c.l.bf16 %v569
  %v634 = vunpack.c.l.bf16 %v570
  %v635 = vunpack.c.l.bf16 %v571
  %v636 = vunpack.c.l.bf16 %v572
  %v637 = vunpack.c.l.bf16 %v573
  %v638 = vunpack.c.l.bf16 %v574
  %v639 = vunpack.c.l.bf16 %v575
  %v640 = vunpack.c.l.bf16 %v576
  %v641 = vunpack.c.l.bf16 %v577
  %v642 = vunpack.c.l.bf16 %v578
  %v643 = vunpack.c.l.bf16 %v579
  %v644 = vld [vmem:[%s1] sm:$0x1]
  %v646 = vperm.slane %v644, 0
  %v648 = vmul.f32 %v580, %v646
  %v649 = vmul.f32 %v581, %v646
  %v650 = vmul.f32 %v582, %v646
  %v651 = vmul.f32 %v583, %v646
  %v652 = vmul.f32 %v584, %v646
  %v653 = vmul.f32 %v585, %v646
  %v654 = vmul.f32 %v586, %v646
  %v655 = vmul.f32 %v587, %v646
  %v656 = vmul.f32 %v588, %v646
  %v657 = vmul.f32 %v589, %v646
  %v658 = vmul.f32 %v590, %v646
  %v659 = vmul.f32 %v591, %v646
  %v660 = vmul.f32 %v592, %v646
  %v661 = vmul.f32 %v593, %v646
  %v662 = vmul.f32 %v594, %v646
  %v663 = vmul.f32 %v595, %v646
  %v664 = vmul.f32 %v596, %v646
  %v665 = vmul.f32 %v597, %v646
  %v666 = vmul.f32 %v598, %v646
  %v667 = vmul.f32 %v599, %v646
  %v668 = vmul.f32 %v600, %v646
  %v669 = vmul.f32 %v601, %v646
  %v670 = vmul.f32 %v602, %v646
  %v671 = vmul.f32 %v603, %v646
  %v672 = vmul.f32 %v604, %v646
  %v673 = vmul.f32 %v605, %v646
  %v674 = vmul.f32 %v606, %v646
  %v675 = vmul.f32 %v607, %v646
  %v676 = vmul.f32 %v608, %v646
  %v677 = vmul.f32 %v609, %v646
  %v678 = vmul.f32 %v610, %v646
  %v679 = vmul.f32 %v611, %v646
  %v680 = vmul.f32 %v612, %v646
  %v681 = vmul.f32 %v613, %v646
  %v682 = vmul.f32 %v614, %v646
  %v683 = vmul.f32 %v615, %v646
  %v684 = vmul.f32 %v616, %v646
  %v685 = vmul.f32 %v617, %v646
  %v686 = vmul.f32 %v618, %v646
  %v687 = vmul.f32 %v619, %v646
  %v688 = vmul.f32 %v620, %v646
  %v689 = vmul.f32 %v621, %v646
  %v690 = vmul.f32 %v622, %v646
  %v691 = vmul.f32 %v623, %v646
  %v692 = vmul.f32 %v624, %v646
  %v693 = vmul.f32 %v625, %v646
  %v694 = vmul.f32 %v626, %v646
  %v695 = vmul.f32 %v627, %v646
  %v696 = vmul.f32 %v628, %v646
  %v697 = vmul.f32 %v629, %v646
  %v698 = vmul.f32 %v630, %v646
  %v699 = vmul.f32 %v631, %v646
  %v700 = vmul.f32 %v632, %v646
  %v701 = vmul.f32 %v633, %v646
  %v702 = vmul.f32 %v634, %v646
  %v703 = vmul.f32 %v635, %v646
  %v704 = vmul.f32 %v636, %v646
  %v705 = vmul.f32 %v637, %v646
  %v706 = vmul.f32 %v638, %v646
  %v707 = vmul.f32 %v639, %v646
  %v708 = vmul.f32 %v640, %v646
  %v709 = vmul.f32 %v641, %v646
  %v710 = vmul.f32 %v642, %v646
  %v711 = vmul.f32 %v643, %v646
  %v712 = vld [vmem:[%s2] sm:$0x1]
  %v714 = vperm.slane %v712, 0
  %v716 = vadd.f32 %v648, %v714
  %v717 = vadd.f32 %v649, %v714
  %v718 = vadd.f32 %v650, %v714
  %v719 = vadd.f32 %v651, %v714
  %v720 = vadd.f32 %v652, %v714
  %v721 = vadd.f32 %v653, %v714
  %v722 = vadd.f32 %v654, %v714
  %v723 = vadd.f32 %v655, %v714
  %v724 = vadd.f32 %v656, %v714
  %v725 = vadd.f32 %v657, %v714
  %v726 = vadd.f32 %v658, %v714
  %v727 = vadd.f32 %v659, %v714
  %v728 = vadd.f32 %v660, %v714
  %v729 = vadd.f32 %v661, %v714
  %v730 = vadd.f32 %v662, %v714
  %v731 = vadd.f32 %v663, %v714
  %v732 = vadd.f32 %v664, %v714
  %v733 = vadd.f32 %v665, %v714
  %v734 = vadd.f32 %v666, %v714
  %v735 = vadd.f32 %v667, %v714
  %v736 = vadd.f32 %v668, %v714
  %v737 = vadd.f32 %v669, %v714
  %v738 = vadd.f32 %v670, %v714
  %v739 = vadd.f32 %v671, %v714
  %v740 = vadd.f32 %v672, %v714
  %v741 = vadd.f32 %v673, %v714
  %v742 = vadd.f32 %v674, %v714
  %v743 = vadd.f32 %v675, %v714
  %v744 = vadd.f32 %v676, %v714
  %v745 = vadd.f32 %v677, %v714
  %v746 = vadd.f32 %v678, %v714
  %v747 = vadd.f32 %v679, %v714
  %v748 = vadd.f32 %v680, %v714
  %v749 = vadd.f32 %v681, %v714
  %v750 = vadd.f32 %v682, %v714
  %v751 = vadd.f32 %v683, %v714
  %v752 = vadd.f32 %v684, %v714
  %v753 = vadd.f32 %v685, %v714
  %v754 = vadd.f32 %v686, %v714
  %v755 = vadd.f32 %v687, %v714
  %v756 = vadd.f32 %v688, %v714
  %v757 = vadd.f32 %v689, %v714
  %v758 = vadd.f32 %v690, %v714
  %v759 = vadd.f32 %v691, %v714
  %v760 = vadd.f32 %v692, %v714
  %v761 = vadd.f32 %v693, %v714
  %v762 = vadd.f32 %v694, %v714
  %v763 = vadd.f32 %v695, %v714
  %v764 = vadd.f32 %v696, %v714
  %v765 = vadd.f32 %v697, %v714
  %v766 = vadd.f32 %v698, %v714
  %v767 = vadd.f32 %v699, %v714
  %v768 = vadd.f32 %v700, %v714
  %v769 = vadd.f32 %v701, %v714
  %v770 = vadd.f32 %v702, %v714
  %v771 = vadd.f32 %v703, %v714
  %v772 = vadd.f32 %v704, %v714
  %v773 = vadd.f32 %v705, %v714
  %v774 = vadd.f32 %v706, %v714
  %v775 = vadd.f32 %v707, %v714
  %v776 = vadd.f32 %v708, %v714
  %v777 = vadd.f32 %v709, %v714
  %v778 = vadd.f32 %v710, %v714
  %v779 = vadd.f32 %v711, %v714
  %v780 = vadd.f32 %v716, %v357
  %v781 = vadd.f32 %v717, %v359
  %v782 = vadd.f32 %v718, %v362
  %v783 = vadd.f32 %v719, %v364
  %v784 = vadd.f32 %v720, %v367
  %v785 = vadd.f32 %v721, %v369
  %v786 = vadd.f32 %v722, %v372
  %v787 = vadd.f32 %v723, %v374
  %v788 = vadd.f32 %v724, %v377
  %v789 = vadd.f32 %v725, %v379
  %v790 = vadd.f32 %v726, %v382
  %v791 = vadd.f32 %v727, %v384
  %v792 = vadd.f32 %v728, %v387
  %v793 = vadd.f32 %v729, %v389
  %v794 = vadd.f32 %v730, %v392
  %v795 = vadd.f32 %v731, %v394
  %v796 = vadd.f32 %v732, %v397
  %v797 = vadd.f32 %v733, %v399
  %v798 = vadd.f32 %v734, %v402
  %v799 = vadd.f32 %v735, %v404
  %v800 = vadd.f32 %v736, %v407
  %v801 = vadd.f32 %v737, %v409
  %v802 = vadd.f32 %v738, %v412
  %v803 = vadd.f32 %v739, %v414
  %v804 = vadd.f32 %v740, %v417
  %v805 = vadd.f32 %v741, %v419
  %v806 = vadd.f32 %v742, %v422
  %v807 = vadd.f32 %v743, %v424
  %v808 = vadd.f32 %v744, %v427
  %v809 = vadd.f32 %v745, %v429
  %v810 = vadd.f32 %v746, %v432
  %v811 = vadd.f32 %v747, %v434
  %v812 = vadd.f32 %v748, %v437
  %v813 = vadd.f32 %v749, %v439
  %v814 = vadd.f32 %v750, %v442
  %v815 = vadd.f32 %v751, %v444
  %v816 = vadd.f32 %v752, %v447
  %v817 = vadd.f32 %v753, %v449
  %v818 = vadd.f32 %v754, %v452
  %v819 = vadd.f32 %v755, %v454
  %v820 = vadd.f32 %v756, %v457
  %v821 = vadd.f32 %v757, %v459
  %v822 = vadd.f32 %v758, %v462
  %v823 = vadd.f32 %v759, %v464
  %v824 = vadd.f32 %v760, %v467
  %v825 = vadd.f32 %v761, %v469
  %v826 = vadd.f32 %v762, %v472
  %v827 = vadd.f32 %v763, %v474
  %v828 = vadd.f32 %v764, %v477
  %v829 = vadd.f32 %v765, %v479
  %v830 = vadd.f32 %v766, %v482
  %v831 = vadd.f32 %v767, %v484
  %v832 = vadd.f32 %v768, %v487
  %v833 = vadd.f32 %v769, %v489
  %v834 = vadd.f32 %v770, %v492
  %v835 = vadd.f32 %v771, %v494
  %v836 = vadd.f32 %v772, %v497
  %v837 = vadd.f32 %v773, %v499
  %v838 = vadd.f32 %v774, %v502
  %v839 = vadd.f32 %v775, %v504
  %v840 = vadd.f32 %v776, %v507
  %v841 = vadd.f32 %v777, %v509
  %v842 = vadd.f32 %v778, %v512
  %v843 = vadd.f32 %v779, %v514
  %v844 = vmax.f32 %v780, 0.0
  %v845 = vmax.f32 %v781, 0.0
  %v846 = vmax.f32 %v782, 0.0
  %v847 = vmax.f32 %v783, 0.0
  %v848 = vmax.f32 %v784, 0.0
  %v849 = vmax.f32 %v785, 0.0
  %v850 = vmax.f32 %v786, 0.0
  %v851 = vmax.f32 %v787, 0.0
  %v852 = vmax.f32 %v788, 0.0
  %v853 = vmax.f32 %v789, 0.0
  %v854 = vmax.f32 %v790, 0.0
  %v855 = vmax.f32 %v791, 0.0
  %v856 = vmax.f32 %v792, 0.0
  %v857 = vmax.f32 %v793, 0.0
  %v858 = vmax.f32 %v794, 0.0
  %v859 = vmax.f32 %v795, 0.0
  %v860 = vmax.f32 %v796, 0.0
  %v861 = vmax.f32 %v797, 0.0
  %v862 = vmax.f32 %v798, 0.0
  %v863 = vmax.f32 %v799, 0.0
  %v864 = vmax.f32 %v800, 0.0
  %v865 = vmax.f32 %v801, 0.0
  %v866 = vmax.f32 %v802, 0.0
  %v867 = vmax.f32 %v803, 0.0
  %v868 = vmax.f32 %v804, 0.0
  %v869 = vmax.f32 %v805, 0.0
  %v870 = vmax.f32 %v806, 0.0
  %v871 = vmax.f32 %v807, 0.0
  %v872 = vmax.f32 %v808, 0.0
  %v873 = vmax.f32 %v809, 0.0
  %v874 = vmax.f32 %v810, 0.0
  %v875 = vmax.f32 %v811, 0.0
  %v876 = vmax.f32 %v812, 0.0
  %v877 = vmax.f32 %v813, 0.0
  %v878 = vmax.f32 %v814, 0.0
  %v879 = vmax.f32 %v815, 0.0
  %v880 = vmax.f32 %v816, 0.0
  %v881 = vmax.f32 %v817, 0.0
  %v882 = vmax.f32 %v818, 0.0
  %v883 = vmax.f32 %v819, 0.0
  %v884 = vmax.f32 %v820, 0.0
  %v885 = vmax.f32 %v821, 0.0
  %v886 = vmax.f32 %v822, 0.0
  %v887 = vmax.f32 %v823, 0.0
  %v888 = vmax.f32 %v824, 0.0
  %v889 = vmax.f32 %v825, 0.0
  %v890 = vmax.f32 %v826, 0.0
  %v891 = vmax.f32 %v827, 0.0
  %v892 = vmax.f32 %v828, 0.0
  %v893 = vmax.f32 %v829, 0.0
  %v894 = vmax.f32 %v830, 0.0
  %v895 = vmax.f32 %v831, 0.0
  %v896 = vmax.f32 %v832, 0.0
  %v897 = vmax.f32 %v833, 0.0
  %v898 = vmax.f32 %v834, 0.0
  %v899 = vmax.f32 %v835, 0.0
  %v900 = vmax.f32 %v836, 0.0
  %v901 = vmax.f32 %v837, 0.0
  %v902 = vmax.f32 %v838, 0.0
  %v903 = vmax.f32 %v839, 0.0
  %v904 = vmax.f32 %v840, 0.0
  %v905 = vmax.f32 %v841, 0.0
  %v906 = vmax.f32 %v842, 0.0
  %v907 = vmax.f32 %v843, 0.0
  %908 = vst [vmem:[%s6] sm:$0xff] %v844
  %909 = vst [vmem:[%s6 + $0x8] sm:$0xff] %v845
  %910 = vst [vmem:[%s6 + $0x10] sm:$0xff] %v846
  %911 = vst [vmem:[%s6 + $0x18] sm:$0xff] %v847
  %912 = vst [vmem:[%s6 + $0x20] sm:$0xff] %v848
  %913 = vst [vmem:[%s6 + $0x28] sm:$0xff] %v849
  %914 = vst [vmem:[%s6 + $0x30] sm:$0xff] %v850
  %915 = vst [vmem:[%s6 + $0x38] sm:$0xff] %v851
  %916 = vst [vmem:[%s6 + $0x40] sm:$0xff] %v852
  %917 = vst [vmem:[%s6 + $0x48] sm:$0xff] %v853
  %918 = vst [vmem:[%s6 + $0x50] sm:$0xff] %v854
  %919 = vst [vmem:[%s6 + $0x58] sm:$0xff] %v855
  %920 = vst [vmem:[%s6 + $0x60] sm:$0xff] %v856
  %921 = vst [vmem:[%s6 + $0x68] sm:$0xff] %v857
  %922 = vst [vmem:[%s6 + $0x70] sm:$0xff] %v858
  %923 = vst [vmem:[%s6 + $0x78] sm:$0xff] %v859
  %924 = vst [vmem:[%s6 + $0x80] sm:$0xff] %v860
  %925 = vst [vmem:[%s6 + $0x88] sm:$0xff] %v861
  %926 = vst [vmem:[%s6 + $0x90] sm:$0xff] %v862
  %927 = vst [vmem:[%s6 + $0x98] sm:$0xff] %v863
  %928 = vst [vmem:[%s6 + $0xa0] sm:$0xff] %v864
  %929 = vst [vmem:[%s6 + $0xa8] sm:$0xff] %v865
  %930 = vst [vmem:[%s6 + $0xb0] sm:$0xff] %v866
  %931 = vst [vmem:[%s6 + $0xb8] sm:$0xff] %v867
  %932 = vst [vmem:[%s6 + $0xc0] sm:$0xff] %v868
  %933 = vst [vmem:[%s6 + $0xc8] sm:$0xff] %v869
  %934 = vst [vmem:[%s6 + $0xd0] sm:$0xff] %v870
  %935 = vst [vmem:[%s6 + $0xd8] sm:$0xff] %v871
  %936 = vst [vmem:[%s6 + $0xe0] sm:$0xff] %v872
  %937 = vst [vmem:[%s6 + $0xe8] sm:$0xff] %v873
  %938 = vst [vmem:[%s6 + $0xf0] sm:$0xff] %v874
  %939 = vst [vmem:[%s6 + $0xf8] sm:$0xff] %v875
  %940 = vst [vmem:[%s6 + $0x100] sm:$0xff] %v876
  %941 = vst [vmem:[%s6 + $0x108] sm:$0xff] %v877
  %942 = vst [vmem:[%s6 + $0x110] sm:$0xff] %v878
  %943 = vst [vmem:[%s6 + $0x118] sm:$0xff] %v879
  %944 = vst [vmem:[%s6 + $0x120] sm:$0xff] %v880
  %945 = vst [vmem:[%s6 + $0x128] sm:$0xff] %v881
  %946 = vst [vmem:[%s6 + $0x130] sm:$0xff] %v882
  %947 = vst [vmem:[%s6 + $0x138] sm:$0xff] %v883
  %948 = vst [vmem:[%s6 + $0x140] sm:$0xff] %v884
  %949 = vst [vmem:[%s6 + $0x148] sm:$0xff] %v885
  %950 = vst [vmem:[%s6 + $0x150] sm:$0xff] %v886
  %951 = vst [vmem:[%s6 + $0x158] sm:$0xff] %v887
  %952 = vst [vmem:[%s6 + $0x160] sm:$0xff] %v888
  %953 = vst [vmem:[%s6 + $0x168] sm:$0xff] %v889
  %954 = vst [vmem:[%s6 + $0x170] sm:$0xff] %v890
  %955 = vst [vmem:[%s6 + $0x178] sm:$0xff] %v891
  %956 = vst [vmem:[%s6 + $0x180] sm:$0xff] %v892
  %957 = vst [vmem:[%s6 + $0x188] sm:$0xff] %v893
  %958 = vst [vmem:[%s6 + $0x190] sm:$0xff] %v894
  %959 = vst [vmem:[%s6 + $0x198] sm:$0xff] %v895
  %960 = vst [vmem:[%s6 + $0x1a0] sm:$0xff] %v896
  %961 = vst [vmem:[%s6 + $0x1a8] sm:$0xff] %v897
  %962 = vst [vmem:[%s6 + $0x1b0] sm:$0xff] %v898
  %963 = vst [vmem:[%s6 + $0x1b8] sm:$0xff] %v899
  %964 = vst [vmem:[%s6 + $0x1c0] sm:$0xff] %v900
  %965 = vst [vmem:[%s6 + $0x1c8] sm:$0xff] %v901
  %966 = vst [vmem:[%s6 + $0x1d0] sm:$0xff] %v902
  %967 = vst [vmem:[%s6 + $0x1d8] sm:$0xff] %v903
  %968 = vst [vmem:[%s6 + $0x1e0] sm:$0xff] %v904
  %969 = vst [vmem:[%s6 + $0x1e8] sm:$0xff] %v905
  %970 = vst [vmem:[%s6 + $0x1f0] sm:$0xff] %v906
  %971 = vst [vmem:[%s6 + $0x1f8] sm:$0xff] %v907
  // Predicated region
  $region26: #{residual_block_forward.7} parent=0 // pred_check
    _
  $region27: #{residual_block_forward.7} parent=0 // pred_check_branch
    %973 = sbr.rel (0) target = $region29
  $region28: #{residual_block_forward.7} parent=0 // pred_region
    _
  $region29: #{residual_block_forward.7} parent=0 // pred_fallthru
    _
  // Predicated region
  $region30: #{residual_block_forward.7} parent=0 // pred_check
    _
  $region31: #{residual_block_forward.7} parent=0 // pred_check_branch
    %975 = sbr.rel (0) target = $region33
  $region32: #{residual_block_forward.7} parent=0 // pred_region
    _
  $region33: #{residual_block_forward.7} parent=0 // pred_fallthru
    _

// kernel: residual_block_forward.5
$region0: #{residual_block_forward.5}
  #allocation0 [shape = 'u32[]', space=smem, size = 0x4, offset = 0x4, fixed_abs, tag = 'smem constant byte address 0x4 - core index']
  #allocation1 [shape = 'u32[72,128]{1,0:T(1,128)}', space=vmem, size = 0x9000, scoped, tag = 'internal scratch']
  %s0 = inlined_call_operand.vmem [shape: bf16[512,128], index: 0, kind: input, shape index: {}]
  %s1 = inlined_call_operand.vmem [shape: f32[1,128], index: 1, kind: input, shape index: {}]
  %s2 = inlined_call_operand.vmem [shape: f32[1,128], index: 2, kind: input, shape index: {}]
  %s3 = inlined_call_operand.vmem [shape: f32[256,9], index: 3, kind: input, shape index: {}]
  %s4 = inlined_call_operand.vmem [shape: bf16[9,128,128], index: 4, kind: input, shape index: {}]
  %s5 = inlined_call_operand.vmem [shape: bf16[512,128], index: 5, kind: output, shape index: {0}]
  %s6 = inlined_call_operand.vmem [shape: f32[2,2,128], index: 6, kind: output, shape index: {1}]
  %7 = xla_tuple %s5, %s6
  %s8 = sld [smem:[#allocation0]]
  $region61: #{residual_block_forward.5} parent=0
    _
  %s10 = ssub.s32 1, %s8
  %s11 = scalar_select 0, %s10, %s8
  loop: start=0, step=1, limit=4
  $region2: #{residual_block_forward.5} parent=0 // loop_pre_header
    _
  $region3: #{residual_block_forward.5} parent=0 // loop_header
    %s13 = sphi 0, %s17
    %p14 = scmp.ge.s32.totalorder %s13, 4
    %s23 = sphi 0, %s25
    %s26 = sphi 0, %s23
    %s27 = sphi 0, %s26
    %s43 = sphi 0, %s27
    %s47 = sphi 0, %s47
    %s49 = sphi 0, %s47
    %s50 = sphi 0, %s49
    %s64 = sphi 0, %s50
    %s68 = sphi 0, %s68
    %s70 = sphi 0, %s68
    %s71 = sphi 0, %s70
    %s85 = sphi 0, %s71
    %s89 = sphi 0, %s89
    %s91 = sphi 0, %s89
    %s92 = sphi 0, %s91
    %s106 = sphi 0, %s92
    %s110 = sphi 0, %s110
    %s112 = sphi 0, %s110
    %s113 = sphi 0, %s112
    %s127 = sphi 0, %s113
    %s133 = sphi 0, %s135
    %s136 = sphi 0, %s133
    %s137 = sphi 0, %s136
    %s153 = sphi 0, %s137
    %s159 = sphi 0, %s161
    %s162 = sphi 0, %s159
    %s163 = sphi 0, %s162
    %s179 = sphi 0, %s163
  $region4: #{residual_block_forward.5} parent=0 // loop_header_branch
    %16 = sbr.rel (%p14) target = $region8
  $region5: #{residual_block_forward.5} parent=0 // loop_body
    %s18 = ssub.s32 %s13, 1
    %s19 = ssub.s32 %s13, 2
    %s20 = sadd.s32 %s13, 1
    %s21 = ssub.s32 %s13, %s20
    %p22 = scmp.eq.s32.totalorder %s21, 0
    %s24 = sadd.s32 %s23, 1
    %s25 = scalar_select %p22, %s23, %s24
    %p28 = pneg %p22
    %p29 = scmp.eq.s32.totalorder %s13, 1
    %p30 = por %p28, %p29
    %p31 = scmp.ne.s32.totalorder %s23, %s26
    %p32 = scmp.eq.s32.totalorder %s13, 0
    %p33 = por %p31, %p32
    %p34 = scmp.ne.s32.totalorder %s23, %s26
    %p35 = scmp.eq.s32.totalorder %s18, 1
    %p36 = por %p34, %p35
    %p37 = scmp.ne.s32.totalorder %s26, %s27
    %p38 = scmp.eq.s32.totalorder %s18, 0
    %p39 = por %p37, %p38
    %p40 = scmp.ne.s32.totalorder %s26, %s27
    %p41 = scmp.eq.s32.totalorder %s19, 1
    %p42 = por %p40, %p41
    %p44 = scmp.ne.s32.totalorder %s27, %s43
    %p45 = scmp.eq.s32.totalorder %s19, 0
    %p46 = por %p44, %p45
    %s48 = sadd.s32 %s47, 1
    %p51 = scmp.eq.s32.totalorder %s13, 1
    %p52 = scmp.ne.s32.totalorder %s47, %s49
    %p53 = scmp.eq.s32.totalorder %s13, 0
    %p54 = por %p52, %p53
    %p55 = scmp.ne.s32.totalorder %s47, %s49
    %p56 = scmp.eq.s32.totalorder %s18, 1
    %p57 = por %p55, %p56
    %p58 = scmp.ne.s32.totalorder %s49, %s50
    %p59 = scmp.eq.s32.totalorder %s18, 0
    %p60 = por %p58, %p59
    %p61 = scmp.ne.s32.totalorder %s49, %s50
    %p62 = scmp.eq.s32.totalorder %s19, 1
    %p63 = por %p61, %p62
    %p65 = scmp.ne.s32.totalorder %s50, %s64
    %p66 = scmp.eq.s32.totalorder %s19, 0
    %p67 = por %p65, %p66
    %s69 = sadd.s32 %s68, 1
    %p72 = scmp.eq.s32.totalorder %s13, 1
    %p73 = scmp.ne.s32.totalorder %s68, %s70
    %p74 = scmp.eq.s32.totalorder %s13, 0
    %p75 = por %p73, %p74
    %p76 = scmp.ne.s32.totalorder %s68, %s70
    %p77 = scmp.eq.s32.totalorder %s18, 1
    %p78 = por %p76, %p77
    %p79 = scmp.ne.s32.totalorder %s70, %s71
    %p80 = scmp.eq.s32.totalorder %s18, 0
    %p81 = por %p79, %p80
    %p82 = scmp.ne.s32.totalorder %s70, %s71
    %p83 = scmp.eq.s32.totalorder %s19, 1
    %p84 = por %p82, %p83
    %p86 = scmp.ne.s32.totalorder %s71, %s85
    %p87 = scmp.eq.s32.totalorder %s19, 0
    %p88 = por %p86, %p87
    %s90 = sadd.s32 %s89, 1
    %p93 = scmp.eq.s32.totalorder %s13, 1
    %p94 = scmp.ne.s32.totalorder %s89, %s91
    %p95 = scmp.eq.s32.totalorder %s13, 0
    %p96 = por %p94, %p95
    %p97 = scmp.ne.s32.totalorder %s89, %s91
    %p98 = scmp.eq.s32.totalorder %s18, 1
    %p99 = por %p97, %p98
    %p100 = scmp.ne.s32.totalorder %s91, %s92
    %p101 = scmp.eq.s32.totalorder %s18, 0
    %p102 = por %p100, %p101
    %p103 = scmp.ne.s32.totalorder %s91, %s92
    %p104 = scmp.eq.s32.totalorder %s19, 1
    %p105 = por %p103, %p104
    %p107 = scmp.ne.s32.totalorder %s92, %s106
    %p108 = scmp.eq.s32.totalorder %s19, 0
    %p109 = por %p107, %p108
    %s111 = sadd.s32 %s110, 1
    %p114 = scmp.eq.s32.totalorder %s13, 1
    %p115 = scmp.ne.s32.totalorder %s110, %s112
    %p116 = scmp.eq.s32.totalorder %s13, 0
    %p117 = por %p115, %p116
    %p118 = scmp.ne.s32.totalorder %s110, %s112
    %p119 = scmp.eq.s32.totalorder %s18, 1
    %p120 = por %p118, %p119
    %p121 = scmp.ne.s32.totalorder %s112, %s113
    %p122 = scmp.eq.s32.totalorder %s18, 0
    %p123 = por %p121, %p122
    %p124 = scmp.ne.s32.totalorder %s112, %s113
    %p125 = scmp.eq.s32.totalorder %s19, 1
    %p126 = por %p124, %p125
    %p128 = scmp.ne.s32.totalorder %s113, %s127
    %p129 = scmp.eq.s32.totalorder %s19, 0
    %p130 = por %p128, %p129
    %s131 = ssub.s32 %s13, %s20
    %p132 = scmp.eq.s32.totalorder %s131, 0
    %s134 = sadd.s32 %s133, 1
    %s135 = scalar_select %p132, %s133, %s134
    %p138 = pneg %p132
    %p139 = scmp.eq.s32.totalorder %s13, 1
    %p140 = por %p138, %p139
    %p141 = scmp.ne.s32.totalorder %s133, %s136
    %p142 = scmp.eq.s32.totalorder %s13, 0
    %p143 = por %p141, %p142
    %p144 = scmp.ne.s32.totalorder %s133, %s136
    %p145 = scmp.eq.s32.totalorder %s18, 1
    %p146 = por %p144, %p145
    %p147 = scmp.ne.s32.totalorder %s136, %s137
    %p148 = scmp.eq.s32.totalorder %s18, 0
    %p149 = por %p147, %p148
    %p150 = scmp.ne.s32.totalorder %s136, %s137
    %p151 = scmp.eq.s32.totalorder %s19, 1
    %p152 = por %p150, %p151
    %p154 = scmp.ne.s32.totalorder %s137, %s153
    %p155 = scmp.eq.s32.totalorder %s19, 0
    %p156 = por %p154, %p155
    %s157 = ssub.s32 %s13, %s20
    %p158 = scmp.eq.s32.totalorder %s157, 0
    %s160 = sadd.s32 %s159, 1
    %s161 = scalar_select %p158, %s159, %s160
    %p164 = pneg %p158
    %p165 = scmp.eq.s32.totalorder %s13, 1
    %p166 = por %p164, %p165
    %p167 = scmp.ne.s32.totalorder %s159, %s162
    %p168 = scmp.eq.s32.totalorder %s13, 0
    %p169 = por %p167, %p168
    %p170 = scmp.ne.s32.totalorder %s159, %s162
    %p171 = scmp.eq.s32.totalorder %s18, 1
    %p172 = por %p170, %p171
    %p173 = scmp.ne.s32.totalorder %s162, %s163
    %p174 = scmp.eq.s32.totalorder %s18, 0
    %p175 = por %p173, %p174
    %p176 = scmp.ne.s32.totalorder %s162, %s163
    %p177 = scmp.eq.s32.totalorder %s19, 1
    %p178 = por %p176, %p177
    %p180 = scmp.ne.s32.totalorder %s163, %s179
    %p181 = scmp.eq.s32.totalorder %s19, 0
    %p182 = por %p180, %p181
    %p183 = scmp.le.s32.totalorder 1, %s13
    %p184 = scmp.lt.s32.totalorder %s13, 3
    %p185 = pnand %p183, %p184
    %p186 = pneg %p185
    // Predicated region
    $region9: #{residual_block_forward.5} parent=5 // pred_check
      _
    $region10: #{residual_block_forward.5} parent=5 // pred_check_branch
      %188 = sbr.rel (%p185) target = $region12
    $region11: #{residual_block_forward.5} parent=5 // pred_region
      %s189 = ssub.s32 %s13, 1
      // Predicated region
      $region13: #{residual_block_forward.5} parent=11 // pred_check
        %p190 = pneg %p60
      $region14: #{residual_block_forward.5} parent=11 // pred_check_branch
        %192 = sbr.rel (%p190) target = $region16
      $region15: #{residual_block_forward.5} parent=11 // pred_region
        _
      $region16: #{residual_block_forward.5} parent=11 // pred_fallthru
        _
      // Predicated region
      $region17: #{residual_block_forward.5} parent=11 // pred_check
        %p193 = pneg %p81
      $region18: #{residual_block_forward.5} parent=11 // pred_check_branch
        %195 = sbr.rel (%p193) target = $region20
      $region19: #{residual_block_forward.5} parent=11 // pred_region
        _
      $region20: #{residual_block_forward.5} parent=11 // pred_fallthru
        _
      // Predicated region
      $region21: #{residual_block_forward.5} parent=11 // pred_check
        %p196 = pneg %p102
      $region22: #{residual_block_forward.5} parent=11 // pred_check_branch
        %198 = sbr.rel (%p196) target = $region24
      $region23: #{residual_block_forward.5} parent=11 // pred_region
        _
      $region24: #{residual_block_forward.5} parent=11 // pred_fallthru
        _
      // Predicated region
      $region25: #{residual_block_forward.5} parent=11 // pred_check
        %p199 = pneg %p123
      $region26: #{residual_block_forward.5} parent=11 // pred_check_branch
        %201 = sbr.rel (%p199) target = $region28
      $region27: #{residual_block_forward.5} parent=11 // pred_region
        _
      $region28: #{residual_block_forward.5} parent=11 // pred_fallthru
        _
    $region12: #{residual_block_forward.5} parent=5 // pred_fallthru
      _
    %p202 = scmp.lt.s32.totalorder %s13, 2
    // Predicated region
    $region29: #{residual_block_forward.5} parent=5 // pred_check
      %p203 = pneg %p202
    $region30: #{residual_block_forward.5} parent=5 // pred_check_branch
      %205 = sbr.rel (%p203) target = $region32
    $region31: #{residual_block_forward.5} parent=5 // pred_region
      // Predicated region
      $region33: #{residual_block_forward.5} parent=31 // pred_check
        %p206 = pneg %p33
      $region34: #{residual_block_forward.5} parent=31 // pred_check_branch
        %208 = sbr.rel (%p206) target = $region36
      $region35: #{residual_block_forward.5} parent=31 // pred_region
        %s209 = smul.u32 32, %s13
        %p210 = scmp.lt.s32.totalorder %s209, 63
        %s211 = scalar_select %p210, %s209, 63
        %s212 = smul.addr %s211, 4
        %s213 = scalar_lea.vmem %s0, %s212
        %s214 = smul.u32 32, %s13
      $region36: #{residual_block_forward.5} parent=31 // pred_fallthru
        _
    $region32: #{residual_block_forward.5} parent=5 // pred_fallthru
      _
    %p215 = scmp.le.s32.totalorder 1, %s13
    %p216 = scmp.lt.s32.totalorder %s13, 3
    %p217 = pnand %p215, %p216
    %p218 = pneg %p217
    // Predicated region
    $region37: #{residual_block_forward.5} parent=5 // pred_check
      _
    $region38: #{residual_block_forward.5} parent=5 // pred_check_branch
      %220 = sbr.rel (%p217) target = $region40
    $region39: #{residual_block_forward.5} parent=5 // pred_region
      %s221 = ssub.s32 %s13, 1
      %s222 = smul.u32 32, %s18
      %p223 = scmp.lt.s32.totalorder %s222, 63
      %s224 = scalar_select %p223, %s222, 63
      %s225 = smul.addr %s224, 4
      %s226 = scalar_lea.vmem %s0, %s225
      %p227 = pneg %p39
      %p228 = pneg %p36
      %p229 = pneg %p60
      %p230 = pneg %p57
      %p231 = pneg %p81
      %p232 = pneg %p78
      %p233 = pneg %p102
      %p234 = pneg %p99
      %p235 = pneg %p123
      %p236 = pneg %p120
      %p237 = pneg %p149
      %p238 = pneg %p146
      %s239 = smul.u32 32, %s18
      %p240 = scmp.lt.s32.totalorder %s239, 63
      %s241 = scalar_select %p240, %s239, 63
      %s242 = smul.addr %s241, 4
      %s243 = scalar_lea.vmem %s5, %s242
      %p244 = pneg %p175
      %p245 = pneg %p172
      %p246 = scmp.lt.s32.totalorder %s18, 1
      %s247 = scalar_select %p246, %s18, 1
      %s248 = smul.addr %s247, 2
      %s249 = scalar_lea.vmem %s6, %s248
      %s250 = smul.u32 32, %s18
      %p251 = scmp.lt.s32.totalorder %s250, 63
      %s252 = scalar_select %p251, %s250, 63
      %s253 = smul.addr %s252, 4
      %s254 = scalar_lea.vmem %s0, %s253
      %s255 = smul.u32 32, %s18
      %s256 = smul.u32 32, %s18
      %p257 = scmp.lt.s32.totalorder %s256, 63
      %s258 = scalar_select %p257, %s256, 63
      %s259 = smul.addr %s258, 4
      %s260 = scalar_lea.vmem %s5, %s259
      %s261 = smul.u32 32, %s18
      %p262 = scmp.lt.s32.totalorder %s18, 1
      %s263 = scalar_select %p262, %s18, 1
      %s264 = smul.addr %s263, 2
      %s265 = scalar_lea.vmem %s6, %s264
      %v266 = vld [vmem:[%s254] sm:$0xf]
      %v267 = vld [vmem:[%s254 + $0x4] sm:$0xf]
      %v268 = vld [vmem:[%s254 + $0x8] sm:$0xf]
      %v269 = vld [vmem:[%s254 + $0xc] sm:$0xf]
      %v270 = vld [vmem:[%s254 + $0x10] sm:$0xf]
      %v271 = vld [vmem:[%s254 + $0x14] sm:$0xf]
      %v272 = vld [vmem:[%s254 + $0x18] sm:$0xf]
      %v273 = vld [vmem:[%s254 + $0x1c] sm:$0xf]
      %v274 = vld [vmem:[%s254 + $0x20] sm:$0xf]
      %v275 = vld [vmem:[%s254 + $0x24] sm:$0xf]
      %v276 = vld [vmem:[%s254 + $0x28] sm:$0xf]
      %v277 = vld [vmem:[%s254 + $0x2c] sm:$0xf]
      %v278 = vld [vmem:[%s254 + $0x30] sm:$0xf]
      %v279 = vld [vmem:[%s254 + $0x34] sm:$0xf]
      %v280 = vld [vmem:[%s254 + $0x38] sm:$0xf]
      %v281 = vld [vmem:[%s254 + $0x3c] sm:$0xf]
      %v282 = vld [vmem:[%s254 + $0x40] sm:$0xf]
      %v283 = vld [vmem:[%s254 + $0x44] sm:$0xf]
      %v284 = vld [vmem:[%s254 + $0x48] sm:$0xf]
      %v285 = vld [vmem:[%s254 + $0x4c] sm:$0xf]
      %v286 = vld [vmem:[%s254 + $0x50] sm:$0xf]
      %v287 = vld [vmem:[%s254 + $0x54] sm:$0xf]
      %v288 = vld [vmem:[%s254 + $0x58] sm:$0xf]
      %v289 = vld [vmem:[%s254 + $0x5c] sm:$0xf]
      %v290 = vld [vmem:[%s254 + $0x60] sm:$0xf]
      %v291 = vld [vmem:[%s254 + $0x64] sm:$0xf]
      %v292 = vld [vmem:[%s254 + $0x68] sm:$0xf]
      %v293 = vld [vmem:[%s254 + $0x6c] sm:$0xf]
      %v294 = vld [vmem:[%s254 + $0x70] sm:$0xf]
      %v295 = vld [vmem:[%s254 + $0x74] sm:$0xf]
      %v296 = vld [vmem:[%s254 + $0x78] sm:$0xf]
      %v297 = vld [vmem:[%s254 + $0x7c] sm:$0xf]
      %v298 = vunpack.c.l.bf16 %v266
      %v299 = vunpack.c.l.bf16 %v267
      %v300 = vunpack.c.l.bf16 %v268
      %v301 = vunpack.c.l.bf16 %v269
      %v302 = vunpack.c.l.bf16 %v270
      %v303 = vunpack.c.l.bf16 %v271
      %v304 = vunpack.c.l.bf16 %v272
      %v305 = vunpack.c.l.bf16 %v273
      %v306 = vunpack.c.l.bf16 %v274
      %v307 = vunpack.c.l.bf16 %v275
      %v308 = vunpack.c.l.bf16 %v276
      %v309 = vunpack.c.l.bf16 %v277
      %v310 = vunpack.c.l.bf16 %v278
      %v311 = vunpack.c.l.bf16 %v279
      %v312 = vunpack.c.l.bf16 %v280
      %v313 = vunpack.c.l.bf16 %v281
      %v314 = vunpack.c.l.bf16 %v282
      %v315 = vunpack.c.l.bf16 %v283
      %v316 = vunpack.c.l.bf16 %v284
      %v317 = vunpack.c.l.bf16 %v285
      %v318 = vunpack.c.l.bf16 %v286
      %v319 = vunpack.c.l.bf16 %v287
      %v320 = vunpack.c.l.bf16 %v288
      %v321 = vunpack.c.l.bf16 %v289
      %v322 = vunpack.c.l.bf16 %v290
      %v323 = vunpack.c.l.bf16 %v291
      %v324 = vunpack.c.l.bf16 %v292
      %v325 = vunpack.c.l.bf16 %v293
      %v326 = vunpack.c.l.bf16 %v294
      %v327 = vunpack.c.l.bf16 %v295
      %v328 = vunpack.c.l.bf16 %v296
      %v329 = vunpack.c.l.bf16 %v297
      %v330 = vld [vmem:[%s1] sm:$0x1]
      %v332 = vperm.slane %v330, 0
      %v334 = vmul.f32 %v298, %v332
      %v335 = vmul.f32 %v299, %v332
      %v336 = vmul.f32 %v300, %v332
      %v337 = vmul.f32 %v301, %v332
      %v338 = vmul.f32 %v302, %v332
      %v339 = vmul.f32 %v303, %v332
      %v340 = vmul.f32 %v304, %v332
      %v341 = vmul.f32 %v305, %v332
      %v342 = vmul.f32 %v306, %v332
      %v343 = vmul.f32 %v307, %v332
      %v344 = vmul.f32 %v308, %v332
      %v345 = vmul.f32 %v309, %v332
      %v346 = vmul.f32 %v310, %v332
      %v347 = vmul.f32 %v311, %v332
      %v348 = vmul.f32 %v312, %v332
      %v349 = vmul.f32 %v313, %v332
      %v350 = vmul.f32 %v314, %v332
      %v351 = vmul.f32 %v315, %v332
      %v352 = vmul.f32 %v316, %v332
      %v353 = vmul.f32 %v317, %v332
      %v354 = vmul.f32 %v318, %v332
      %v355 = vmul.f32 %v319, %v332
      %v356 = vmul.f32 %v320, %v332
      %v357 = vmul.f32 %v321, %v332
      %v358 = vmul.f32 %v322, %v332
      %v359 = vmul.f32 %v323, %v332
      %v360 = vmul.f32 %v324, %v332
      %v361 = vmul.f32 %v325, %v332
      %v362 = vmul.f32 %v326, %v332
      %v363 = vmul.f32 %v327, %v332
      %v364 = vmul.f32 %v328, %v332
      %v365 = vmul.f32 %v329, %v332
      %v366 = vld [vmem:[%s2] sm:$0x1]
      %v368 = vperm.slane %v366, 0
      %v370 = vadd.f32 %v334, %v368
      %v371 = vadd.f32 %v335, %v368
      %v372 = vadd.f32 %v336, %v368
      %v373 = vadd.f32 %v337, %v368
      %v374 = vadd.f32 %v338, %v368
      %v375 = vadd.f32 %v339, %v368
      %v376 = vadd.f32 %v340, %v368
      %v377 = vadd.f32 %v341, %v368
      %v378 = vadd.f32 %v342, %v368
      %v379 = vadd.f32 %v343, %v368
      %v380 = vadd.f32 %v344, %v368
      %v381 = vadd.f32 %v345, %v368
      %v382 = vadd.f32 %v346, %v368
      %v383 = vadd.f32 %v347, %v368
      %v384 = vadd.f32 %v348, %v368
      %v385 = vadd.f32 %v349, %v368
      %v386 = vadd.f32 %v350, %v368
      %v387 = vadd.f32 %v351, %v368
      %v388 = vadd.f32 %v352, %v368
      %v389 = vadd.f32 %v353, %v368
      %v390 = vadd.f32 %v354, %v368
      %v391 = vadd.f32 %v355, %v368
      %v392 = vadd.f32 %v356, %v368
      %v393 = vadd.f32 %v357, %v368
      %v394 = vadd.f32 %v358, %v368
      %v395 = vadd.f32 %v359, %v368
      %v396 = vadd.f32 %v360, %v368
      %v397 = vadd.f32 %v361, %v368
      %v398 = vadd.f32 %v362, %v368
      %v399 = vadd.f32 %v363, %v368
      %v400 = vadd.f32 %v364, %v368
      %v401 = vadd.f32 %v365, %v368
      %v402 = vmax.f32 %v370, 0.0
      %v403 = vmax.f32 %v371, 0.0
      %v404 = vmax.f32 %v372, 0.0
      %v405 = vmax.f32 %v373, 0.0
      %v406 = vmax.f32 %v374, 0.0
      %v407 = vmax.f32 %v375, 0.0
      %v408 = vmax.f32 %v376, 0.0
      %v409 = vmax.f32 %v377, 0.0
      %v410 = vmax.f32 %v378, 0.0
      %v411 = vmax.f32 %v379, 0.0
      %v412 = vmax.f32 %v380, 0.0
      %v413 = vmax.f32 %v381, 0.0
      %v414 = vmax.f32 %v382, 0.0
      %v415 = vmax.f32 %v383, 0.0
      %v416 = vmax.f32 %v384, 0.0
      %v417 = vmax.f32 %v385, 0.0
      %v418 = vmax.f32 %v386, 0.0
      %v419 = vmax.f32 %v387, 0.0
      %v420 = vmax.f32 %v388, 0.0
      %v421 = vmax.f32 %v389, 0.0
      %v422 = vmax.f32 %v390, 0.0
      %v423 = vmax.f32 %v391, 0.0
      %v424 = vmax.f32 %v392, 0.0
      %v425 = vmax.f32 %v393, 0.0
      %v426 = vmax.f32 %v394, 0.0
      %v427 = vmax.f32 %v395, 0.0
      %v428 = vmax.f32 %v396, 0.0
      %v429 = vmax.f32 %v397, 0.0
      %v430 = vmax.f32 %v398, 0.0
      %v431 = vmax.f32 %v399, 0.0
      %v432 = vmax.f32 %v400, 0.0
      %v433 = vmax.f32 %v401, 0.0
      %v434 = vld [vmem:[%s3] sm:$0xff]
      %v435 = vld [vmem:[%s3 + $0x8] sm:$0xff]
      %v436 = vld [vmem:[%s3 + $0x10] sm:$0xff]
      %v437 = vld [vmem:[%s3 + $0x18] sm:$0xff]
      %v438 = vld [vmem:[%s3 + $0x20] sm:$0xff]
      %v439 = vld [vmem:[%s3 + $0x28] sm:$0xff]
      %v440 = vld [vmem:[%s3 + $0x30] sm:$0xff]
      %v441 = vld [vmem:[%s3 + $0x38] sm:$0xff]
      %v442 = vld [vmem:[%s3 + $0x40] sm:$0xff]
      %v443 = vld [vmem:[%s3 + $0x48] sm:$0xff]
      %v444 = vld [vmem:[%s3 + $0x50] sm:$0xff]
      %v445 = vld [vmem:[%s3 + $0x58] sm:$0xff]
      %v446 = vld [vmem:[%s3 + $0x60] sm:$0xff]
      %v447 = vld [vmem:[%s3 + $0x68] sm:$0xff]
      %v448 = vld [vmem:[%s3 + $0x70] sm:$0xff]
      %v449 = vld [vmem:[%s3 + $0x78] sm:$0xff]
      %v450 = vld [vmem:[%s3 + $0x80] sm:$0xff]
      %v451 = vld [vmem:[%s3 + $0x88] sm:$0xff]
      %v452 = vld [vmem:[%s3 + $0x90] sm:$0xff]
      %v453 = vld [vmem:[%s3 + $0x98] sm:$0xff]
      %v454 = vld [vmem:[%s3 + $0xa0] sm:$0xff]
      %v455 = vld [vmem:[%s3 + $0xa8] sm:$0xff]
      %v456 = vld [vmem:[%s3 + $0xb0] sm:$0xff]
      %v457 = vld [vmem:[%s3 + $0xb8] sm:$0xff]
      %v458 = vld [vmem:[%s3 + $0xc0] sm:$0xff]
      %v459 = vld [vmem:[%s3 + $0xc8] sm:$0xff]
      %v460 = vld [vmem:[%s3 + $0xd0] sm:$0xff]
      %v461 = vld [vmem:[%s3 + $0xd8] sm:$0xff]
      %v462 = vld [vmem:[%s3 + $0xe0] sm:$0xff]
      %v463 = vld [vmem:[%s3 + $0xe8] sm:$0xff]
      %v464 = vld [vmem:[%s3 + $0xf0] sm:$0xff]
      %v465 = vld [vmem:[%s3 + $0xf8] sm:$0xff]
      %v466 = vrot.slane %v402, 7
      %v467 = vrot.slane %v403, 7
      %v468 = vrot.slane %v404, 7
      %v469 = vrot.slane %v405, 7
      %v470 = vrot.slane %v406, 7
      %v471 = vrot.slane %v407, 7
      %v472 = vrot.slane %v408, 7
      %v473 = vrot.slane %v409, 7
      %v474 = vrot.slane %v410, 7
      %v475 = vrot.slane %v411, 7
      %v476 = vrot.slane %v412, 7
      %v477 = vrot.slane %v413, 7
      %v478 = vrot.slane %v414, 7
      %v479 = vrot.slane %v415, 7
      %v480 = vrot.slane %v416, 7
      %v481 = vrot.slane %v417, 7
      %v482 = vrot.slane %v418, 7
      %v483 = vrot.slane %v419, 7
      %v484 = vrot.slane %v420, 7
      %v485 = vrot.slane %v421, 7
      %v486 = vrot.slane %v422, 7
      %v487 = vrot.slane %v423, 7
      %v488 = vrot.slane %v424, 7
      %v489 = vrot.slane %v425, 7
      %v490 = vrot.slane %v426, 7
      %v491 = vrot.slane %v427, 7
      %v492 = vrot.slane %v428, 7
      %v493 = vrot.slane %v429, 7
      %v494 = vrot.slane %v430, 7
      %v495 = vrot.slane %v431, 7
      %v496 = vrot.slane %v432, 7
      %v497 = vrot.slane %v433, 7
      %v498 = vlaneseq
      %v499 = vshrl.u32 %v498, 7
      %vm500 = vcmp.lt.s32.totalorder %v499, 1
      %v501 = vsel %vm500, %v496, %v497
      %v502 = vsel %vm500, %v495, %v496
      %v503 = vsel %vm500, %v494, %v495
      %v504 = vsel %vm500, %v493, %v494
      %v505 = vsel %vm500, %v492, %v493
      %v506 = vsel %vm500, %v491, %v492
      %v507 = vsel %vm500, %v490, %v491
      %v508 = vsel %vm500, %v489, %v490
      %v509 = vsel %vm500, %v488, %v489
      %v510 = vsel %vm500, %v487, %v488
      %v511 = vsel %vm500, %v486, %v487
      %v512 = vsel %vm500, %v485, %v486
      %v513 = vsel %vm500, %v484, %v485
      %v514 = vsel %vm500, %v483, %v484
      %v515 = vsel %vm500, %v482, %v483
      %v516 = vsel %vm500, %v481, %v482
      %v517 = vsel %vm500, %v480, %v481
      %v518 = vsel %vm500, %v479, %v480
      %v519 = vsel %vm500, %v478, %v479
      %v520 = vsel %vm500, %v477, %v478
      %v521 = vsel %vm500, %v476, %v477
      %v522 = vsel %vm500, %v475, %v476
      %v523 = vsel %vm500, %v474, %v475
      %v524 = vsel %vm500, %v473, %v474
      %v525 = vsel %vm500, %v472, %v473
      %v526 = vsel %vm500, %v471, %v472
      %v527 = vsel %vm500, %v470, %v471
      %v528 = vsel %vm500, %v469, %v470
      %v529 = vsel %vm500, %v468, %v469
      %v530 = vsel %vm500, %v467, %v468
      %v531 = vsel %vm500, %v466, %v467
      %v532 = vsel %vm500, %v497, %v466
      %534 = vset.pattern.permute.xlu0 0
      %535 = vperm.xlu0 %534, %v434
      %v536 = vpop.permute.xlu0 %535
      %539 = vset.pattern.permute.xlu0 0
      %540 = vperm.xlu0 %539, %v435
      %v541 = vpop.permute.xlu0 %540
      %544 = vset.pattern.permute.xlu0 0
      %545 = vperm.xlu0 %544, %v436
      %v546 = vpop.permute.xlu0 %545
      %549 = vset.pattern.permute.xlu0 0
      %550 = vperm.xlu0 %549, %v437
      %v551 = vpop.permute.xlu0 %550
      %554 = vset.pattern.permute.xlu0 0
      %555 = vperm.xlu0 %554, %v438
      %v556 = vpop.permute.xlu0 %555
      %559 = vset.pattern.permute.xlu0 0
      %560 = vperm.xlu0 %559, %v439
      %v561 = vpop.permute.xlu0 %560
      %564 = vset.pattern.permute.xlu0 0
      %565 = vperm.xlu0 %564, %v440
      %v566 = vpop.permute.xlu0 %565
      %569 = vset.pattern.permute.xlu0 0
      %570 = vperm.xlu0 %569, %v441
      %v571 = vpop.permute.xlu0 %570
      %574 = vset.pattern.permute.xlu0 0
      %575 = vperm.xlu0 %574, %v442
      %v576 = vpop.permute.xlu0 %575
      %579 = vset.pattern.permute.xlu0 0
      %580 = vperm.xlu0 %579, %v443
      %v581 = vpop.permute.xlu0 %580
      %584 = vset.pattern.permute.xlu0 0
      %585 = vperm.xlu0 %584, %v444
      %v586 = vpop.permute.xlu0 %585
      %589 = vset.pattern.permute.xlu0 0
      %590 = vperm.xlu0 %589, %v445
      %v591 = vpop.permute.xlu0 %590
      %594 = vset.pattern.permute.xlu0 0
      %595 = vperm.xlu0 %594, %v446
      %v596 = vpop.permute.xlu0 %595
      %599 = vset.pattern.permute.xlu0 0
      %600 = vperm.xlu0 %599, %v447
      %v601 = vpop.permute.xlu0 %600
      %604 = vset.pattern.permute.xlu0 0
      %605 = vperm.xlu0 %604, %v448
      %v606 = vpop.permute.xlu0 %605
      %609 = vset.pattern.permute.xlu0 0
      %610 = vperm.xlu0 %609, %v449
      %v611 = vpop.permute.xlu0 %610
      %614 = vset.pattern.permute.xlu0 0
      %615 = vperm.xlu0 %614, %v450
      %v616 = vpop.permute.xlu0 %615
      %619 = vset.pattern.permute.xlu0 0
      %620 = vperm.xlu0 %619, %v451
      %v621 = vpop.permute.xlu0 %620
      %624 = vset.pattern.permute.xlu0 0
      %625 = vperm.xlu0 %624, %v452
      %v626 = vpop.permute.xlu0 %625
      %629 = vset.pattern.permute.xlu0 0
      %630 = vperm.xlu0 %629, %v453
      %v631 = vpop.permute.xlu0 %630
      %634 = vset.pattern.permute.xlu0 0
      %635 = vperm.xlu0 %634, %v454
      %v636 = vpop.permute.xlu0 %635
      %639 = vset.pattern.permute.xlu0 0
      %640 = vperm.xlu0 %639, %v455
      %v641 = vpop.permute.xlu0 %640
      %644 = vset.pattern.permute.xlu0 0
      %645 = vperm.xlu0 %644, %v456
      %v646 = vpop.permute.xlu0 %645
      %649 = vset.pattern.permute.xlu0 0
      %650 = vperm.xlu0 %649, %v457
      %v651 = vpop.permute.xlu0 %650
      %654 = vset.pattern.permute.xlu0 0
      %655 = vperm.xlu0 %654, %v458
      %v656 = vpop.permute.xlu0 %655
      %659 = vset.pattern.permute.xlu0 0
      %660 = vperm.xlu0 %659, %v459
      %v661 = vpop.permute.xlu0 %660
      %664 = vset.pattern.permute.xlu0 0
      %665 = vperm.xlu0 %664, %v460
      %v666 = vpop.permute.xlu0 %665
      %669 = vset.pattern.permute.xlu0 0
      %670 = vperm.xlu0 %669, %v461
      %v671 = vpop.permute.xlu0 %670
      %674 = vset.pattern.permute.xlu0 0
      %675 = vperm.xlu0 %674, %v462
      %v676 = vpop.permute.xlu0 %675
      %679 = vset.pattern.permute.xlu0 0
      %680 = vperm.xlu0 %679, %v463
      %v681 = vpop.permute.xlu0 %680
      %684 = vset.pattern.permute.xlu0 0
      %685 = vperm.xlu0 %684, %v464
      %v686 = vpop.permute.xlu0 %685
      %689 = vset.pattern.permute.xlu0 0
      %690 = vperm.xlu0 %689, %v465
      %v691 = vpop.permute.xlu0 %690
      %v693 = vmul.f32 %v502, %v536
      %v694 = vmul.f32 %v501, %v541
      %v695 = vmul.f32 %v532, %v546
      %v696 = vmul.f32 %v531, %v551
      %v697 = vmul.f32 %v530, %v556
      %v698 = vmul.f32 %v529, %v561
      %v699 = vmul.f32 %v528, %v566
      %v700 = vmul.f32 %v527, %v571
      %v701 = vmul.f32 %v526, %v576
      %v702 = vmul.f32 %v525, %v581
      %v703 = vmul.f32 %v524, %v586
      %v704 = vmul.f32 %v523, %v591
      %v705 = vmul.f32 %v522, %v596
      %v706 = vmul.f32 %v521, %v601
      %v707 = vmul.f32 %v520, %v606
      %v708 = vmul.f32 %v519, %v611
      %v709 = vmul.f32 %v518, %v616
      %v710 = vmul.f32 %v517, %v621
      %v711 = vmul.f32 %v516, %v626
      %v712 = vmul.f32 %v515, %v631
      %v713 = vmul.f32 %v514, %v636
      %v714 = vmul.f32 %v513, %v641
      %v715 = vmul.f32 %v512, %v646
      %v716 = vmul.f32 %v511, %v651
      %v717 = vmul.f32 %v510, %v656
      %v718 = vmul.f32 %v509, %v661
      %v719 = vmul.f32 %v508, %v666
      %v720 = vmul.f32 %v507, %v671
      %v721 = vmul.f32 %v506, %v676
      %v722 = vmul.f32 %v505, %v681
      %v723 = vmul.f32 %v504, %v686
      %v724 = vmul.f32 %v503, %v691
      %v725 = vpack.c.bf16 %v694, %v693
      %v726 = vpack.c.bf16 %v696, %v695
      %v727 = vpack.c.bf16 %v698, %v697
      %v728 = vpack.c.bf16 %v700, %v699
      %v729 = vpack.c.bf16 %v702, %v701
      %v730 = vpack.c.bf16 %v704, %v703
      %v731 = vpack.c.bf16 %v706, %v705
      %v732 = vpack.c.bf16 %v708, %v707
      %v733 = vpack.c.bf16 %v710, %v709
      %v734 = vpack.c.bf16 %v712, %v711
      %v735 = vpack.c.bf16 %v714, %v713
      %v736 = vpack.c.bf16 %v716, %v715
      %v737 = vpack.c.bf16 %v718, %v717
      %v738 = vpack.c.bf16 %v720, %v719
      %v739 = vpack.c.bf16 %v722, %v721
      %v740 = vpack.c.bf16 %v724, %v723
      %v741 = vld [vmem:[%s4] sm:$0xf]
      %v742 = vld [vmem:[%s4 + $0x4] sm:$0xf]
      %v743 = vld [vmem:[%s4 + $0x8] sm:$0xf]
      %v744 = vld [vmem:[%s4 + $0xc] sm:$0xf]
      %v745 = vld [vmem:[%s4 + $0x10] sm:$0xf]
      %v746 = vld [vmem:[%s4 + $0x14] sm:$0xf]
      %v747 = vld [vmem:[%s4 + $0x18] sm:$0xf]
      %v748 = vld [vmem:[%s4 + $0x1c] sm:$0xf]
      %v749 = vld [vmem:[%s4 + $0x20] sm:$0xf]
      %v750 = vld [vmem:[%s4 + $0x24] sm:$0xf]
      %v751 = vld [vmem:[%s4 + $0x28] sm:$0xf]
      %v752 = vld [vmem:[%s4 + $0x2c] sm:$0xf]
      %v753 = vld [vmem:[%s4 + $0x30] sm:$0xf]
      %v754 = vld [vmem:[%s4 + $0x34] sm:$0xf]
      %v755 = vld [vmem:[%s4 + $0x38] sm:$0xf]
      %v756 = vld [vmem:[%s4 + $0x3c] sm:$0xf]
      %757 = vset.pattern.permute.xlu0 1
      %758 = vperm.xlu0 %757, %v434
      %v759 = vpop.permute.xlu0 %758
      %761 = vset.pattern.permute.xlu0 1
      %762 = vperm.xlu0 %761, %v435
      %v763 = vpop.permute.xlu0 %762
      %765 = vset.pattern.permute.xlu0 1
      %766 = vperm.xlu0 %765, %v436
      %v767 = vpop.permute.xlu0 %766
      %769 = vset.pattern.permute.xlu0 1
      %770 = vperm.xlu0 %769, %v437
      %v771 = vpop.permute.xlu0 %770
      %773 = vset.pattern.permute.xlu0 1
      %774 = vperm.xlu0 %773, %v438
      %v775 = vpop.permute.xlu0 %774
      %777 = vset.pattern.permute.xlu0 1
      %778 = vperm.xlu0 %777, %v439
      %v779 = vpop.permute.xlu0 %778
      %781 = vset.pattern.permute.xlu0 1
      %782 = vperm.xlu0 %781, %v440
      %v783 = vpop.permute.xlu0 %782
      %785 = vset.pattern.permute.xlu0 1
      %786 = vperm.xlu0 %785, %v441
      %v787 = vpop.permute.xlu0 %786
      %789 = vset.pattern.permute.xlu0 1
      %790 = vperm.xlu0 %789, %v442
      %v791 = vpop.permute.xlu0 %790
      %793 = vset.pattern.permute.xlu0 1
      %794 = vperm.xlu0 %793, %v443
      %v795 = vpop.permute.xlu0 %794
      %797 = vset.pattern.permute.xlu0 1
      %798 = vperm.xlu0 %797, %v444
      %v799 = vpop.permute.xlu0 %798
      %801 = vset.pattern.permute.xlu0 1
      %802 = vperm.xlu0 %801, %v445
      %v803 = vpop.permute.xlu0 %802
      %805 = vset.pattern.permute.xlu0 1
      %806 = vperm.xlu0 %805, %v446
      %v807 = vpop.permute.xlu0 %806
      %809 = vset.pattern.permute.xlu0 1
      %810 = vperm.xlu0 %809, %v447
      %v811 = vpop.permute.xlu0 %810
      %813 = vset.pattern.permute.xlu0 1
      %814 = vperm.xlu0 %813, %v448
      %v815 = vpop.permute.xlu0 %814
      %817 = vset.pattern.permute.xlu0 1
      %818 = vperm.xlu0 %817, %v449
      %v819 = vpop.permute.xlu0 %818
      %821 = vset.pattern.permute.xlu0 1
      %822 = vperm.xlu0 %821, %v450
      %v823 = vpop.permute.xlu0 %822
      %825 = vset.pattern.permute.xlu0 1
      %826 = vperm.xlu0 %825, %v451
      %v827 = vpop.permute.xlu0 %826
      %829 = vset.pattern.permute.xlu0 1
      %830 = vperm.xlu0 %829, %v452
      %v831 = vpop.permute.xlu0 %830
      %833 = vset.pattern.permute.xlu0 1
      %834 = vperm.xlu0 %833, %v453
      %v835 = vpop.permute.xlu0 %834
      %837 = vset.pattern.permute.xlu0 1
      %838 = vperm.xlu0 %837, %v454
      %v839 = vpop.permute.xlu0 %838
      %841 = vset.pattern.permute.xlu0 1
      %842 = vperm.xlu0 %841, %v455
      %v843 = vpop.permute.xlu0 %842
      %845 = vset.pattern.permute.xlu0 1
      %846 = vperm.xlu0 %845, %v456
      %v847 = vpop.permute.xlu0 %846
      %849 = vset.pattern.permute.xlu0 1
      %850 = vperm.xlu0 %849, %v457
      %v851 = vpop.permute.xlu0 %850
      %853 = vset.pattern.permute.xlu0 1
      %854 = vperm.xlu0 %853, %v458
      %v855 = vpop.permute.xlu0 %854
      %857 = vset.pattern.permute.xlu0 1
      %858 = vperm.xlu0 %857, %v459
      %v859 = vpop.permute.xlu0 %858
      %861 = vset.pattern.permute.xlu0 1
      %862 = vperm.xlu0 %861, %v460
      %v863 = vpop.permute.xlu0 %862
      %865 = vset.pattern.permute.xlu0 1
      %866 = vperm.xlu0 %865, %v461
      %v867 = vpop.permute.xlu0 %866
      %869 = vset.pattern.permute.xlu0 1
      %870 = vperm.xlu0 %869, %v462
      %v871 = vpop.permute.xlu0 %870
      %873 = vset.pattern.permute.xlu0 1
      %874 = vperm.xlu0 %873, %v463
      %v875 = vpop.permute.xlu0 %874
      %877 = vset.pattern.permute.xlu0 1
      %878 = vperm.xlu0 %877, %v464
      %v879 = vpop.permute.xlu0 %878
      %881 = vset.pattern.permute.xlu0 1
      %882 = vperm.xlu0 %881, %v465
      %v883 = vpop.permute.xlu0 %882
      %v885 = vmul.f32 %v432, %v759
      %v886 = vmul.f32 %v433, %v763
      %v887 = vmul.f32 %v402, %v767
      %v888 = vmul.f32 %v403, %v771
      %v889 = vmul.f32 %v404, %v775
      %v890 = vmul.f32 %v405, %v779
      %v891 = vmul.f32 %v406, %v783
      %v892 = vmul.f32 %v407, %v787
      %v893 = vmul.f32 %v408, %v791
      %v894 = vmul.f32 %v409, %v795
      %v895 = vmul.f32 %v410, %v799
      %v896 = vmul.f32 %v411, %v803
      %v897 = vmul.f32 %v412, %v807
      %v898 = vmul.f32 %v413, %v811
      %v899 = vmul.f32 %v414, %v815
      %v900 = vmul.f32 %v415, %v819
      %v901 = vmul.f32 %v416, %v823
      %v902 = vmul.f32 %v417, %v827
      %v903 = vmul.f32 %v418, %v831
      %v904 = vmul.f32 %v419, %v835
      %v905 = vmul.f32 %v420, %v839
      %v906 = vmul.f32 %v421, %v843
      %v907 = vmul.f32 %v422, %v847
      %v908 = vmul.f32 %v423, %v851
      %v909 = vmul.f32 %v424, %v855
      %v910 = vmul.f32 %v425, %v859
      %v911 = vmul.f32 %v426, %v863
      %v912 = vmul.f32 %v427, %v867
      %v913 = vmul.f32 %v428, %v871
      %v914 = vmul.f32 %v429, %v875
      %v915 = vmul.f32 %v430, %v879
      %v916 = vmul.f32 %v431, %v883
      %v917 = vpack.c.bf16 %v886, %v885
      %v918 = vpack.c.bf16 %v888, %v887
      %v919 = vpack.c.bf16 %v890, %v889
      %v920 = vpack.c.bf16 %v892, %v891
      %v921 = vpack.c.bf16 %v894, %v893
      %v922 = vpack.c.bf16 %v896, %v895
      %v923 = vpack.c.bf16 %v898, %v897
      %v924 = vpack.c.bf16 %v900, %v899
      %v925 = vpack.c.bf16 %v902, %v901
      %v926 = vpack.c.bf16 %v904, %v903
      %v927 = vpack.c.bf16 %v906, %v905
      %v928 = vpack.c.bf16 %v908, %v907
      %v929 = vpack.c.bf16 %v910, %v909
      %v930 = vpack.c.bf16 %v912, %v911
      %v931 = vpack.c.bf16 %v914, %v913
      %v932 = vpack.c.bf16 %v916, %v915
      %s933 = scalar_lea.vmem %s4, 64
      %v934 = vld [vmem:[%s933] sm:$0xf]
      %v935 = vld [vmem:[%s933 + $0x4] sm:$0xf]
      %v936 = vld [vmem:[%s933 + $0x8] sm:$0xf]
      %v937 = vld [vmem:[%s933 + $0xc] sm:$0xf]
      %v938 = vld [vmem:[%s933 + $0x10] sm:$0xf]
      %v939 = vld [vmem:[%s933 + $0x14] sm:$0xf]
      %v940 = vld [vmem:[%s933 + $0x18] sm:$0xf]
      %v941 = vld [vmem:[%s933 + $0x1c] sm:$0xf]
      %v942 = vld [vmem:[%s933 + $0x20] sm:$0xf]
      %v943 = vld [vmem:[%s933 + $0x24] sm:$0xf]
      %v944 = vld [vmem:[%s933 + $0x28] sm:$0xf]
      %v945 = vld [vmem:[%s933 + $0x2c] sm:$0xf]
      %v946 = vld [vmem:[%s933 + $0x30] sm:$0xf]
      %v947 = vld [vmem:[%s933 + $0x34] sm:$0xf]
      %v948 = vld [vmem:[%s933 + $0x38] sm:$0xf]
      %v949 = vld [vmem:[%s933 + $0x3c] sm:$0xf]
      %v966 = vunpack.c.l.b16 %v934
      %v967 = vunpack.c.l.b16 %v935
      %v968 = vunpack.c.l.b16 %v936
      %v969 = vunpack.c.l.b16 %v937
      %v970 = vunpack.c.l.b16 %v938
      %v971 = vunpack.c.l.b16 %v939
      %v972 = vunpack.c.l.b16 %v940
      %v973 = vunpack.c.l.b16 %v941
      %v974 = vunpack.c.l.b16 %v942
      %v975 = vunpack.c.l.b16 %v943
      %v976 = vunpack.c.l.b16 %v944
      %v977 = vunpack.c.l.b16 %v945
      %v978 = vunpack.c.l.b16 %v946
      %v979 = vunpack.c.l.b16 %v947
      %v980 = vunpack.c.l.b16 %v948
      %v981 = vunpack.c.l.b16 %v949
      %v982 = vpack.c.b16 %v967, %v966
      %v983 = vpack.c.b16 %v969, %v968
      %v984 = vpack.c.b16 %v971, %v970
      %v985 = vpack.c.b16 %v973, %v972
      %v986 = vpack.c.b16 %v975, %v974
      %v987 = vpack.c.b16 %v977, %v976
      %v988 = vpack.c.b16 %v979, %v978
      %v989 = vpack.c.b16 %v981, %v980
      %998 = vmatpush.bf16.msra.mxu0 %v989
      %999 = vmatpush.bf16.msra.mxu0 %v988
      %1000 = vmatpush.bf16.msra.mxu0 %v987
      %1001 = vmatpush.bf16.msra.mxu0 %v986
      %1002 = vmatpush.bf16.msra.mxu0 %v985
      %1003 = vmatpush.bf16.msra.mxu0 %v984
      %1004 = vmatpush.bf16.msra.mxu0 %v983
      %1005 = vmatpush.bf16.msra.mxu0 %v982
      %1006 = vmatmul.bf16.gmra.mxu0 %v917
      %v1007 = vpop.f32.mrf.mxu0
      %v1008 = vadd.f32 0.0, %v1007
      %v1009 = vpop.f32.mrf.mxu0
      %v1010 = vadd.f32 0.0, %v1009
      %1011 = vmatmul.bf16.gmra.mxu0 %v918
      %v1012 = vpop.f32.mrf.mxu0
      %v1013 = vadd.f32 0.0, %v1012
      %v1014 = vpop.f32.mrf.mxu0
      %v1015 = vadd.f32 0.0, %v1014
      %1016 = vmatmul.bf16.gmra.mxu0 %v919
      %v1017 = vpop.f32.mrf.mxu0
      %v1018 = vadd.f32 0.0, %v1017
      %v1019 = vpop.f32.mrf.mxu0
      %v1020 = vadd.f32 0.0, %v1019
      %1021 = vmatmul.bf16.gmra.mxu0 %v920
      %v1022 = vpop.f32.mrf.mxu0
      %v1023 = vadd.f32 0.0, %v1022
      %v1024 = vpop.f32.mrf.mxu0
      %v1025 = vadd.f32 0.0, %v1024
      %1026 = vmatmul.bf16.gmra.mxu0 %v921
      %v1027 = vpop.f32.mrf.mxu0
      %v1028 = vadd.f32 0.0, %v1027
      %v1029 = vpop.f32.mrf.mxu0
      %v1030 = vadd.f32 0.0, %v1029
      %1031 = vmatmul.bf16.gmra.mxu0 %v922
      %v1032 = vpop.f32.mrf.mxu0
      %v1033 = vadd.f32 0.0, %v1032
      %v1034 = vpop.f32.mrf.mxu0
      %v1035 = vadd.f32 0.0, %v1034
      %1036 = vmatmul.bf16.gmra.mxu0 %v923
      %v1037 = vpop.f32.mrf.mxu0
      %v1038 = vadd.f32 0.0, %v1037
      %v1039 = vpop.f32.mrf.mxu0
      %v1040 = vadd.f32 0.0, %v1039
      %1041 = vmatmul.bf16.gmra.mxu0 %v924
      %v1042 = vpop.f32.mrf.mxu0
      %v1043 = vadd.f32 0.0, %v1042
      %v1044 = vpop.f32.mrf.mxu0
      %v1045 = vadd.f32 0.0, %v1044
      %1046 = vmatmul.bf16.gmra.mxu0 %v925
      %v1047 = vpop.f32.mrf.mxu0
      %v1048 = vadd.f32 0.0, %v1047
      %v1049 = vpop.f32.mrf.mxu0
      %v1050 = vadd.f32 0.0, %v1049
      %1051 = vmatmul.bf16.gmra.mxu0 %v926
      %v1052 = vpop.f32.mrf.mxu0
      %v1053 = vadd.f32 0.0, %v1052
      %v1054 = vpop.f32.mrf.mxu0
      %v1055 = vadd.f32 0.0, %v1054
      %1056 = vmatmul.bf16.gmra.mxu0 %v927
      %v1057 = vpop.f32.mrf.mxu0
      %v1058 = vadd.f32 0.0, %v1057
      %v1059 = vpop.f32.mrf.mxu0
      %v1060 = vadd.f32 0.0, %v1059
      %1061 = vmatmul.bf16.gmra.mxu0 %v928
      %v1062 = vpop.f32.mrf.mxu0
      %v1063 = vadd.f32 0.0, %v1062
      %v1064 = vpop.f32.mrf.mxu0
      %v1065 = vadd.f32 0.0, %v1064
      %1066 = vmatmul.bf16.gmra.mxu0 %v929
      %v1067 = vpop.f32.mrf.mxu0
      %v1068 = vadd.f32 0.0, %v1067
      %v1069 = vpop.f32.mrf.mxu0
      %v1070 = vadd.f32 0.0, %v1069
      %1071 = vmatmul.bf16.gmra.mxu0 %v930
      %v1072 = vpop.f32.mrf.mxu0
      %v1073 = vadd.f32 0.0, %v1072
      %v1074 = vpop.f32.mrf.mxu0
      %v1075 = vadd.f32 0.0, %v1074
      %1076 = vmatmul.bf16.gmra.mxu0 %v931
      %v1077 = vpop.f32.mrf.mxu0
      %v1078 = vadd.f32 0.0, %v1077
      %v1079 = vpop.f32.mrf.mxu0
      %v1080 = vadd.f32 0.0, %v1079
      %1081 = vmatmul.bf16.gmra.mxu0 %v932
      %v1082 = vpop.f32.mrf.mxu0
      %v1083 = vadd.f32 0.0, %v1082
      %v1084 = vpop.f32.mrf.mxu0
      %v1085 = vadd.f32 0.0, %v1084
      %1086 = vdwg.mxu0
      %v1103 = vunpack.c.l.b16 %v741
      %v1104 = vunpack.c.l.b16 %v742
      %v1105 = vunpack.c.l.b16 %v743
      %v1106 = vunpack.c.l.b16 %v744
      %v1107 = vunpack.c.l.b16 %v745
      %v1108 = vunpack.c.l.b16 %v746
      %v1109 = vunpack.c.l.b16 %v747
      %v1110 = vunpack.c.l.b16 %v748
      %v1111 = vunpack.c.l.b16 %v749
      %v1112 = vunpack.c.l.b16 %v750
      %v1113 = vunpack.c.l.b16 %v751
      %v1114 = vunpack.c.l.b16 %v752
      %v1115 = vunpack.c.l.b16 %v753
      %v1116 = vunpack.c.l.b16 %v754
      %v1117 = vunpack.c.l.b16 %v755
      %v1118 = vunpack.c.l.b16 %v756
      %v1119 = vpack.c.b16 %v1104, %v1103
      %v1120 = vpack.c.b16 %v1106, %v1105
      %v1121 = vpack.c.b16 %v1108, %v1107
      %v1122 = vpack.c.b16 %v1110, %v1109
      %v1123 = vpack.c.b16 %v1112, %v1111
      %v1124 = vpack.c.b16 %v1114, %v1113
      %v1125 = vpack.c.b16 %v1116, %v1115
      %v1126 = vpack.c.b16 %v1118, %v1117
      %1135 = vmatpush.bf16.msra.mxu0 %v1126
      %1136 = vmatpush.bf16.msra.mxu0 %v1125
      %1137 = vmatpush.bf16.msra.mxu0 %v1124
      %1138 = vmatpush.bf16.msra.mxu0 %v1123
      %1139 = vmatpush.bf16.msra.mxu0 %v1122
      %1140 = vmatpush.bf16.msra.mxu0 %v1121
      %1141 = vmatpush.bf16.msra.mxu0 %v1120
      %1142 = vmatpush.bf16.msra.mxu0 %v1119
      %1143 = vmatmul.bf16.gmra.mxu0 %v725
      %v1144 = vpop.f32.mrf.mxu0
      %v1145 = vadd.f32 %v1008, %v1144
      %v1146 = vpop.f32.mrf.mxu0
      %v1147 = vadd.f32 %v1010, %v1146
      %1148 = vmatmul.bf16.gmra.mxu0 %v726
      %v1149 = vpop.f32.mrf.mxu0
      %v1150 = vadd.f32 %v1013, %v1149
      %v1151 = vpop.f32.mrf.mxu0
      %v1152 = vadd.f32 %v1015, %v1151
      %1153 = vmatmul.bf16.gmra.mxu0 %v727
      %v1154 = vpop.f32.mrf.mxu0
      %v1155 = vadd.f32 %v1018, %v1154
      %v1156 = vpop.f32.mrf.mxu0
      %v1157 = vadd.f32 %v1020, %v1156
      %1158 = vmatmul.bf16.gmra.mxu0 %v728
      %v1159 = vpop.f32.mrf.mxu0
      %v1160 = vadd.f32 %v1023, %v1159
      %v1161 = vpop.f32.mrf.mxu0
      %v1162 = vadd.f32 %v1025, %v1161
      %1163 = vmatmul.bf16.gmra.mxu0 %v729
      %v1164 = vpop.f32.mrf.mxu0
      %v1165 = vadd.f32 %v1028, %v1164
      %v1166 = vpop.f32.mrf.mxu0
      %v1167 = vadd.f32 %v1030, %v1166
      %1168 = vmatmul.bf16.gmra.mxu0 %v730
      %v1169 = vpop.f32.mrf.mxu0
      %v1170 = vadd.f32 %v1033, %v1169
      %v1171 = vpop.f32.mrf.mxu0
      %v1172 = vadd.f32 %v1035, %v1171
      %1173 = vmatmul.bf16.gmra.mxu0 %v731
      %v1174 = vpop.f32.mrf.mxu0
      %v1175 = vadd.f32 %v1038, %v1174
      %v1176 = vpop.f32.mrf.mxu0
      %v1177 = vadd.f32 %v1040, %v1176
      %1178 = vmatmul.bf16.gmra.mxu0 %v732
      %v1179 = vpop.f32.mrf.mxu0
      %v1180 = vadd.f32 %v1043, %v1179
      %v1181 = vpop.f32.mrf.mxu0
      %v1182 = vadd.f32 %v1045, %v1181
      %1183 = vmatmul.bf16.gmra.mxu0 %v733
      %v1184 = vpop.f32.mrf.mxu0
      %v1185 = vadd.f32 %v1048, %v1184
      %v1186 = vpop.f32.mrf.mxu0
      %v1187 = vadd.f32 %v1050, %v1186
      %1188 = vmatmul.bf16.gmra.mxu0 %v734
      %v1189 = vpop.f32.mrf.mxu0
      %v1190 = vadd.f32 %v1053, %v1189
      %v1191 = vpop.f32.mrf.mxu0
      %v1192 = vadd.f32 %v1055, %v1191
      %1193 = vmatmul.bf16.gmra.mxu0 %v735
      %v1194 = vpop.f32.mrf.mxu0
      %v1195 = vadd.f32 %v1058, %v1194
      %v1196 = vpop.f32.mrf.mxu0
      %v1197 = vadd.f32 %v1060, %v1196
      %1198 = vmatmul.bf16.gmra.mxu0 %v736
      %v1199 = vpop.f32.mrf.mxu0
      %v1200 = vadd.f32 %v1063, %v1199
      %v1201 = vpop.f32.mrf.mxu0
      %v1202 = vadd.f32 %v1065, %v1201
      %1203 = vmatmul.bf16.gmra.mxu0 %v737
      %v1204 = vpop.f32.mrf.mxu0
      %v1205 = vadd.f32 %v1068, %v1204
      %v1206 = vpop.f32.mrf.mxu0
      %v1207 = vadd.f32 %v1070, %v1206
      %1208 = vmatmul.bf16.gmra.mxu0 %v738
      %v1209 = vpop.f32.mrf.mxu0
      %v1210 = vadd.f32 %v1073, %v1209
      %v1211 = vpop.f32.mrf.mxu0
      %v1212 = vadd.f32 %v1075, %v1211
      %1213 = vmatmul.bf16.gmra.mxu0 %v739
      %v1214 = vpop.f32.mrf.mxu0
      %v1215 = vadd.f32 %v1078, %v1214
      %v1216 = vpop.f32.mrf.mxu0
      %v1217 = vadd.f32 %v1080, %v1216
      %1218 = vmatmul.bf16.gmra.mxu0 %v740
      %v1219 = vpop.f32.mrf.mxu0
      %v1220 = vadd.f32 %v1083, %v1219
      %v1221 = vpop.f32.mrf.mxu0
      %v1222 = vadd.f32 %v1085, %v1221
      %1223 = vdwg.mxu0
      %v1224 = vrot.slane %v402, 1
      %v1225 = vrot.slane %v403, 1
      %v1226 = vrot.slane %v404, 1
      %v1227 = vrot.slane %v405, 1
      %v1228 = vrot.slane %v406, 1
      %v1229 = vrot.slane %v407, 1
      %v1230 = vrot.slane %v408, 1
      %v1231 = vrot.slane %v409, 1
      %v1232 = vrot.slane %v410, 1
      %v1233 = vrot.slane %v411, 1
      %v1234 = vrot.slane %v412, 1
      %v1235 = vrot.slane %v413, 1
      %v1236 = vrot.slane %v414, 1
      %v1237 = vrot.slane %v415, 1
      %v1238 = vrot.slane %v416, 1
      %v1239 = vrot.slane %v417, 1
      %v1240 = vrot.slane %v418, 1
      %v1241 = vrot.slane %v419, 1
      %v1242 = vrot.slane %v420, 1
      %v1243 = vrot.slane %v421, 1
      %v1244 = vrot.slane %v422, 1
      %v1245 = vrot.slane %v423, 1
      %v1246 = vrot.slane %v424, 1
      %v1247 = vrot.slane %v425, 1
      %v1248 = vrot.slane %v426, 1
      %v1249 = vrot.slane %v427, 1
      %v1250 = vrot.slane %v428, 1
      %v1251 = vrot.slane %v429, 1
      %v1252 = vrot.slane %v430, 1
      %v1253 = vrot.slane %v431, 1
      %v1254 = vrot.slane %v432, 1
      %v1255 = vrot.slane %v433, 1
      %vm1256 = vcmp.lt.s32.totalorder %v499, 7
      %v1257 = vsel %vm1256, %v1254, %v1255
      %v1258 = vsel %vm1256, %v1253, %v1254
      %v1259 = vsel %vm1256, %v1252, %v1253
      %v1260 = vsel %vm1256, %v1251, %v1252
      %v1261 = vsel %vm1256, %v1250, %v1251
      %v1262 = vsel %vm1256, %v1249, %v1250
      %v1263 = vsel %vm1256, %v1248, %v1249
      %v1264 = vsel %vm1256, %v1247, %v1248
      %v1265 = vsel %vm1256, %v1246, %v1247
      %v1266 = vsel %vm1256, %v1245, %v1246
      %v1267 = vsel %vm1256, %v1244, %v1245
      %v1268 = vsel %vm1256, %v1243, %v1244
      %v1269 = vsel %vm1256, %v1242, %v1243
      %v1270 = vsel %vm1256, %v1241, %v1242
      %v1271 = vsel %vm1256, %v1240, %v1241
      %v1272 = vsel %vm1256, %v1239, %v1240
      %v1273 = vsel %vm1256, %v1238, %v1239
      %v1274 = vsel %vm1256, %v1237, %v1238
      %v1275 = vsel %vm1256, %v1236, %v1237
      %v1276 = vsel %vm1256, %v1235, %v1236
      %v1277 = vsel %vm1256, %v1234, %v1235
      %v1278 = vsel %vm1256, %v1233, %v1234
      %v1279 = vsel %vm1256, %v1232, %v1233
      %v1280 = vsel %vm1256, %v1231, %v1232
      %v1281 = vsel %vm1256, %v1230, %v1231
      %v1282 = vsel %vm1256, %v1229, %v1230
      %v1283 = vsel %vm1256, %v1228, %v1229
      %v1284 = vsel %vm1256, %v1227, %v1228
      %v1285 = vsel %vm1256, %v1226, %v1227
      %v1286 = vsel %vm1256, %v1225, %v1226
      %v1287 = vsel %vm1256, %v1224, %v1225
      %v1288 = vsel %vm1256, %v1255, %v1224
      %1289 = vset.pattern.permute.xlu0 2
      %1290 = vperm.xlu0 %1289, %v434
      %v1291 = vpop.permute.xlu0 %1290
      %1293 = vset.pattern.permute.xlu0 2
      %1294 = vperm.xlu0 %1293, %v435
      %v1295 = vpop.permute.xlu0 %1294
      %1297 = vset.pattern.permute.xlu0 2
      %1298 = vperm.xlu0 %1297, %v436
      %v1299 = vpop.permute.xlu0 %1298
      %1301 = vset.pattern.permute.xlu0 2
      %1302 = vperm.xlu0 %1301, %v437
      %v1303 = vpop.permute.xlu0 %1302
      %1305 = vset.pattern.permute.xlu0 2
      %1306 = vperm.xlu0 %1305, %v438
      %v1307 = vpop.permute.xlu0 %1306
      %1309 = vset.pattern.permute.xlu0 2
      %1310 = vperm.xlu0 %1309, %v439
      %v1311 = vpop.permute.xlu0 %1310
      %1313 = vset.pattern.permute.xlu0 2
      %1314 = vperm.xlu0 %1313, %v440
      %v1315 = vpop.permute.xlu0 %1314
      %1317 = vset.pattern.permute.xlu0 2
      %1318 = vperm.xlu0 %1317, %v441
      %v1319 = vpop.permute.xlu0 %1318
      %1321 = vset.pattern.permute.xlu0 2
      %1322 = vperm.xlu0 %1321, %v442
      %v1323 = vpop.permute.xlu0 %1322
      %1325 = vset.pattern.permute.xlu0 2
      %1326 = vperm.xlu0 %1325, %v443
      %v1327 = vpop.permute.xlu0 %1326
      %1329 = vset.pattern.permute.xlu0 2
      %1330 = vperm.xlu0 %1329, %v444
      %v1331 = vpop.permute.xlu0 %1330
      %1333 = vset.pattern.permute.xlu0 2
      %1334 = vperm.xlu0 %1333, %v445
      %v1335 = vpop.permute.xlu0 %1334
      %1337 = vset.pattern.permute.xlu0 2
      %1338 = vperm.xlu0 %1337, %v446
      %v1339 = vpop.permute.xlu0 %1338
      %1341 = vset.pattern.permute.xlu0 2
      %1342 = vperm.xlu0 %1341, %v447
      %v1343 = vpop.permute.xlu0 %1342
      %1345 = vset.pattern.permute.xlu0 2
      %1346 = vperm.xlu0 %1345, %v448
      %v1347 = vpop.permute.xlu0 %1346
      %1349 = vset.pattern.permute.xlu0 2
      %1350 = vperm.xlu0 %1349, %v449
      %v1351 = vpop.permute.xlu0 %1350
      %1353 = vset.pattern.permute.xlu0 2
      %1354 = vperm.xlu0 %1353, %v450
      %v1355 = vpop.permute.xlu0 %1354
      %1357 = vset.pattern.permute.xlu0 2
      %1358 = vperm.xlu0 %1357, %v451
      %v1359 = vpop.permute.xlu0 %1358
      %1361 = vset.pattern.permute.xlu0 2
      %1362 = vperm.xlu0 %1361, %v452
      %v1363 = vpop.permute.xlu0 %1362
      %1365 = vset.pattern.permute.xlu0 2
      %1366 = vperm.xlu0 %1365, %v453
      %v1367 = vpop.permute.xlu0 %1366
      %1369 = vset.pattern.permute.xlu0 2
      %1370 = vperm.xlu0 %1369, %v454
      %v1371 = vpop.permute.xlu0 %1370
      %1373 = vset.pattern.permute.xlu0 2
      %1374 = vperm.xlu0 %1373, %v455
      %v1375 = vpop.permute.xlu0 %1374
      %1377 = vset.pattern.permute.xlu0 2
      %1378 = vperm.xlu0 %1377, %v456
      %v1379 = vpop.permute.xlu0 %1378
      %1381 = vset.pattern.permute.xlu0 2
      %1382 = vperm.xlu0 %1381, %v457
      %v1383 = vpop.permute.xlu0 %1382
      %1385 = vset.pattern.permute.xlu0 2
      %1386 = vperm.xlu0 %1385, %v458
      %v1387 = vpop.permute.xlu0 %1386
      %1389 = vset.pattern.permute.xlu0 2
      %1390 = vperm.xlu0 %1389, %v459
      %v1391 = vpop.permute.xlu0 %1390
      %1393 = vset.pattern.permute.xlu0 2
      %1394 = vperm.xlu0 %1393, %v460
      %v1395 = vpop.permute.xlu0 %1394
      %1397 = vset.pattern.permute.xlu0 2
      %1398 = vperm.xlu0 %1397, %v461
      %v1399 = vpop.permute.xlu0 %1398
      %1401 = vset.pattern.permute.xlu0 2
      %1402 = vperm.xlu0 %1401, %v462
      %v1403 = vpop.permute.xlu0 %1402
      %1405 = vset.pattern.permute.xlu0 2
      %1406 = vperm.xlu0 %1405, %v463
      %v1407 = vpop.permute.xlu0 %1406
      %1409 = vset.pattern.permute.xlu0 2
      %1410 = vperm.xlu0 %1409, %v464
      %v1411 = vpop.permute.xlu0 %1410
      %1413 = vset.pattern.permute.xlu0 2
      %1414 = vperm.xlu0 %1413, %v465
      %v1415 = vpop.permute.xlu0 %1414
      %v1417 = vmul.f32 %v1257, %v1291
      %v1418 = vmul.f32 %v1288, %v1295
      %v1419 = vmul.f32 %v1287, %v1299
      %v1420 = vmul.f32 %v1286, %v1303
      %v1421 = vmul.f32 %v1285, %v1307
      %v1422 = vmul.f32 %v1284, %v1311
      %v1423 = vmul.f32 %v1283, %v1315
      %v1424 = vmul.f32 %v1282, %v1319
      %v1425 = vmul.f32 %v1281, %v1323
      %v1426 = vmul.f32 %v1280, %v1327
      %v1427 = vmul.f32 %v1279, %v1331
      %v1428 = vmul.f32 %v1278, %v1335
      %v1429 = vmul.f32 %v1277, %v1339
      %v1430 = vmul.f32 %v1276, %v1343
      %v1431 = vmul.f32 %v1275, %v1347
      %v1432 = vmul.f32 %v1274, %v1351
      %v1433 = vmul.f32 %v1273, %v1355
      %v1434 = vmul.f32 %v1272, %v1359
      %v1435 = vmul.f32 %v1271, %v1363
      %v1436 = vmul.f32 %v1270, %v1367
      %v1437 = vmul.f32 %v1269, %v1371
      %v1438 = vmul.f32 %v1268, %v1375
      %v1439 = vmul.f32 %v1267, %v1379
      %v1440 = vmul.f32 %v1266, %v1383
      %v1441 = vmul.f32 %v1265, %v1387
      %v1442 = vmul.f32 %v1264, %v1391
      %v1443 = vmul.f32 %v1263, %v1395
      %v1444 = vmul.f32 %v1262, %v1399
      %v1445 = vmul.f32 %v1261, %v1403
      %v1446 = vmul.f32 %v1260, %v1407
      %v1447 = vmul.f32 %v1259, %v1411
      %v1448 = vmul.f32 %v1258, %v1415
      %v1449 = vpack.c.bf16 %v1418, %v1417
      %v1450 = vpack.c.bf16 %v1420, %v1419
      %v1451 = vpack.c.bf16 %v1422, %v1421
      %v1452 = vpack.c.bf16 %v1424, %v1423
      %v1453 = vpack.c.bf16 %v1426, %v1425
      %v1454 = vpack.c.bf16 %v1428, %v1427
      %v1455 = vpack.c.bf16 %v1430, %v1429
      %v1456 = vpack.c.bf16 %v1432, %v1431
      %v1457 = vpack.c.bf16 %v1434, %v1433
      %v1458 = vpack.c.bf16 %v1436, %v1435
      %v1459 = vpack.c.bf16 %v1438, %v1437
      %v1460 = vpack.c.bf16 %v1440, %v1439
      %v1461 = vpack.c.bf16 %v1442, %v1441
      %v1462 = vpack.c.bf16 %v1444, %v1443
      %v1463 = vpack.c.bf16 %v1446, %v1445
      %v1464 = vpack.c.bf16 %v1448, %v1447
      %s1465 = scalar_lea.vmem %s4, 128
      %v1466 = vld [vmem:[%s1465] sm:$0xf]
      %v1467 = vld [vmem:[%s1465 + $0x4] sm:$0xf]
      %v1468 = vld [vmem:[%s1465 + $0x8] sm:$0xf]
      %v1469 = vld [vmem:[%s1465 + $0xc] sm:$0xf]
      %v1470 = vld [vmem:[%s1465 + $0x10] sm:$0xf]
      %v1471 = vld [vmem:[%s1465 + $0x14] sm:$0xf]
      %v1472 = vld [vmem:[%s1465 + $0x18] sm:$0xf]
      %v1473 = vld [vmem:[%s1465 + $0x1c] sm:$0xf]
      %v1474 = vld [vmem:[%s1465 + $0x20] sm:$0xf]
      %v1475 = vld [vmem:[%s1465 + $0x24] sm:$0xf]
      %v1476 = vld [vmem:[%s1465 + $0x28] sm:$0xf]
      %v1477 = vld [vmem:[%s1465 + $0x2c] sm:$0xf]
      %v1478 = vld [vmem:[%s1465 + $0x30] sm:$0xf]
      %v1479 = vld [vmem:[%s1465 + $0x34] sm:$0xf]
      %v1480 = vld [vmem:[%s1465 + $0x38] sm:$0xf]
      %v1481 = vld [vmem:[%s1465 + $0x3c] sm:$0xf]
      %v1498 = vunpack.c.l.b16 %v1466
      %v1499 = vunpack.c.l.b16 %v1467
      %v1500 = vunpack.c.l.b16 %v1468
      %v1501 = vunpack.c.l.b16 %v1469
      %v1502 = vunpack.c.l.b16 %v1470
      %v1503 = vunpack.c.l.b16 %v1471
      %v1504 = vunpack.c.l.b16 %v1472
      %v1505 = vunpack.c.l.b16 %v1473
      %v1506 = vunpack.c.l.b16 %v1474
      %v1507 = vunpack.c.l.b16 %v1475
      %v1508 = vunpack.c.l.b16 %v1476
      %v1509 = vunpack.c.l.b16 %v1477
      %v1510 = vunpack.c.l.b16 %v1478
      %v1511 = vunpack.c.l.b16 %v1479
      %v1512 = vunpack.c.l.b16 %v1480
      %v1513 = vunpack.c.l.b16 %v1481
      %v1514 = vpack.c.b16 %v1499, %v1498
      %v1515 = vpack.c.b16 %v1501, %v1500
      %v1516 = vpack.c.b16 %v1503, %v1502
      %v1517 = vpack.c.b16 %v1505, %v1504
      %v1518 = vpack.c.b16 %v1507, %v1506
      %v1519 = vpack.c.b16 %v1509, %v1508
      %v1520 = vpack.c.b16 %v1511, %v1510
      %v1521 = vpack.c.b16 %v1513, %v1512
      %1530 = vmatpush.bf16.msra.mxu0 %v1521
      %1531 = vmatpush.bf16.msra.mxu0 %v1520
      %1532 = vmatpush.bf16.msra.mxu0 %v1519
      %1533 = vmatpush.bf16.msra.mxu0 %v1518
      %1534 = vmatpush.bf16.msra.mxu0 %v1517
      %1535 = vmatpush.bf16.msra.mxu0 %v1516
      %1536 = vmatpush.bf16.msra.mxu0 %v1515
      %1537 = vmatpush.bf16.msra.mxu0 %v1514
      %1538 = vmatmul.bf16.gmra.mxu0 %v1449
      %v1539 = vpop.f32.mrf.mxu0
      %v1540 = vadd.f32 0.0, %v1539
      %v1541 = vpop.f32.mrf.mxu0
      %v1542 = vadd.f32 0.0, %v1541
      %1543 = vmatmul.bf16.gmra.mxu0 %v1450
      %v1544 = vpop.f32.mrf.mxu0
      %v1545 = vadd.f32 0.0, %v1544
      %v1546 = vpop.f32.mrf.mxu0
      %v1547 = vadd.f32 0.0, %v1546
      %1548 = vmatmul.bf16.gmra.mxu0 %v1451
      %v1549 = vpop.f32.mrf.mxu0
      %v1550 = vadd.f32 0.0, %v1549
      %v1551 = vpop.f32.mrf.mxu0
      %v1552 = vadd.f32 0.0, %v1551
      %1553 = vmatmul.bf16.gmra.mxu0 %v1452
      %v1554 = vpop.f32.mrf.mxu0
      %v1555 = vadd.f32 0.0, %v1554
      %v1556 = vpop.f32.mrf.mxu0
      %v1557 = vadd.f32 0.0, %v1556
      %1558 = vmatmul.bf16.gmra.mxu0 %v1453
      %v1559 = vpop.f32.mrf.mxu0
      %v1560 = vadd.f32 0.0, %v1559
      %v1561 = vpop.f32.mrf.mxu0
      %v1562 = vadd.f32 0.0, %v1561
      %1563 = vmatmul.bf16.gmra.mxu0 %v1454
      %v1564 = vpop.f32.mrf.mxu0
      %v1565 = vadd.f32 0.0, %v1564
      %v1566 = vpop.f32.mrf.mxu0
      %v1567 = vadd.f32 0.0, %v1566
      %1568 = vmatmul.bf16.gmra.mxu0 %v1455
      %v1569 = vpop.f32.mrf.mxu0
      %v1570 = vadd.f32 0.0, %v1569
      %v1571 = vpop.f32.mrf.mxu0
      %v1572 = vadd.f32 0.0, %v1571
      %1573 = vmatmul.bf16.gmra.mxu0 %v1456
      %v1574 = vpop.f32.mrf.mxu0
      %v1575 = vadd.f32 0.0, %v1574
      %v1576 = vpop.f32.mrf.mxu0
      %v1577 = vadd.f32 0.0, %v1576
      %1578 = vmatmul.bf16.gmra.mxu0 %v1457
      %v1579 = vpop.f32.mrf.mxu0
      %v1580 = vadd.f32 0.0, %v1579
      %v1581 = vpop.f32.mrf.mxu0
      %v1582 = vadd.f32 0.0, %v1581
      %1583 = vmatmul.bf16.gmra.mxu0 %v1458
      %v1584 = vpop.f32.mrf.mxu0
      %v1585 = vadd.f32 0.0, %v1584
      %v1586 = vpop.f32.mrf.mxu0
      %v1587 = vadd.f32 0.0, %v1586
      %1588 = vmatmul.bf16.gmra.mxu0 %v1459
      %v1589 = vpop.f32.mrf.mxu0
      %v1590 = vadd.f32 0.0, %v1589
      %v1591 = vpop.f32.mrf.mxu0
      %v1592 = vadd.f32 0.0, %v1591
      %1593 = vmatmul.bf16.gmra.mxu0 %v1460
      %v1594 = vpop.f32.mrf.mxu0
      %v1595 = vadd.f32 0.0, %v1594
      %v1596 = vpop.f32.mrf.mxu0
      %v1597 = vadd.f32 0.0, %v1596
      %1598 = vmatmul.bf16.gmra.mxu0 %v1461
      %v1599 = vpop.f32.mrf.mxu0
      %v1600 = vadd.f32 0.0, %v1599
      %v1601 = vpop.f32.mrf.mxu0
      %v1602 = vadd.f32 0.0, %v1601
      %1603 = vmatmul.bf16.gmra.mxu0 %v1462
      %v1604 = vpop.f32.mrf.mxu0
      %v1605 = vadd.f32 0.0, %v1604
      %v1606 = vpop.f32.mrf.mxu0
      %v1607 = vadd.f32 0.0, %v1606
      %1608 = vmatmul.bf16.gmra.mxu0 %v1463
      %v1609 = vpop.f32.mrf.mxu0
      %v1610 = vadd.f32 0.0, %v1609
      %v1611 = vpop.f32.mrf.mxu0
      %v1612 = vadd.f32 0.0, %v1611
      %1613 = vmatmul.bf16.gmra.mxu0 %v1464
      %v1614 = vpop.f32.mrf.mxu0
      %v1615 = vadd.f32 0.0, %v1614
      %v1616 = vpop.f32.mrf.mxu0
      %v1617 = vadd.f32 0.0, %v1616
      %1618 = vdwg.mxu0
      %v1619 = vadd.f32 %v1145, %v1540
      %v1620 = vadd.f32 %v1147, %v1542
      %v1621 = vadd.f32 %v1150, %v1545
      %v1622 = vadd.f32 %v1152, %v1547
      %v1623 = vadd.f32 %v1155, %v1550
      %v1624 = vadd.f32 %v1157, %v1552
      %v1625 = vadd.f32 %v1160, %v1555
      %v1626 = vadd.f32 %v1162, %v1557
      %v1627 = vadd.f32 %v1165, %v1560
      %v1628 = vadd.f32 %v1167, %v1562
      %v1629 = vadd.f32 %v1170, %v1565
      %v1630 = vadd.f32 %v1172, %v1567
      %v1631 = vadd.f32 %v1175, %v1570
      %v1632 = vadd.f32 %v1177, %v1572
      %v1633 = vadd.f32 %v1180, %v1575
      %v1634 = vadd.f32 %v1182, %v1577
      %v1635 = vadd.f32 %v1185, %v1580
      %v1636 = vadd.f32 %v1187, %v1582
      %v1637 = vadd.f32 %v1190, %v1585
      %v1638 = vadd.f32 %v1192, %v1587
      %v1639 = vadd.f32 %v1195, %v1590
      %v1640 = vadd.f32 %v1197, %v1592
      %v1641 = vadd.f32 %v1200, %v1595
      %v1642 = vadd.f32 %v1202, %v1597
      %v1643 = vadd.f32 %v1205, %v1600
      %v1644 = vadd.f32 %v1207, %v1602
      %v1645 = vadd.f32 %v1210, %v1605
      %v1646 = vadd.f32 %v1212, %v1607
      %v1647 = vadd.f32 %v1215, %v1610
      %v1648 = vadd.f32 %v1217, %v1612
      %v1649 = vadd.f32 %v1220, %v1615
      %v1650 = vadd.f32 %v1222, %v1617
      %1651 = vset.pattern.permute.xlu0 3
      %1652 = vperm.xlu0 %1651, %v434
      %v1653 = vpop.permute.xlu0 %1652
      %1655 = vset.pattern.permute.xlu0 3
      %1656 = vperm.xlu0 %1655, %v435
      %v1657 = vpop.permute.xlu0 %1656
      %1659 = vset.pattern.permute.xlu0 3
      %1660 = vperm.xlu0 %1659, %v436
      %v1661 = vpop.permute.xlu0 %1660
      %1663 = vset.pattern.permute.xlu0 3
      %1664 = vperm.xlu0 %1663, %v437
      %v1665 = vpop.permute.xlu0 %1664
      %1667 = vset.pattern.permute.xlu0 3
      %1668 = vperm.xlu0 %1667, %v438
      %v1669 = vpop.permute.xlu0 %1668
      %1671 = vset.pattern.permute.xlu0 3
      %1672 = vperm.xlu0 %1671, %v439
      %v1673 = vpop.permute.xlu0 %1672
      %1675 = vset.pattern.permute.xlu0 3
      %1676 = vperm.xlu0 %1675, %v440
      %v1677 = vpop.permute.xlu0 %1676
      %1679 = vset.pattern.permute.xlu0 3
      %1680 = vperm.xlu0 %1679, %v441
      %v1681 = vpop.permute.xlu0 %1680
      %1683 = vset.pattern.permute.xlu0 3
      %1684 = vperm.xlu0 %1683, %v442
      %v1685 = vpop.permute.xlu0 %1684
      %1687 = vset.pattern.permute.xlu0 3
      %1688 = vperm.xlu0 %1687, %v443
      %v1689 = vpop.permute.xlu0 %1688
      %1691 = vset.pattern.permute.xlu0 3
      %1692 = vperm.xlu0 %1691, %v444
      %v1693 = vpop.permute.xlu0 %1692
      %1695 = vset.pattern.permute.xlu0 3
      %1696 = vperm.xlu0 %1695, %v445
      %v1697 = vpop.permute.xlu0 %1696
      %1699 = vset.pattern.permute.xlu0 3
      %1700 = vperm.xlu0 %1699, %v446
      %v1701 = vpop.permute.xlu0 %1700
      %1703 = vset.pattern.permute.xlu0 3
      %1704 = vperm.xlu0 %1703, %v447
      %v1705 = vpop.permute.xlu0 %1704
      %1707 = vset.pattern.permute.xlu0 3
      %1708 = vperm.xlu0 %1707, %v448
      %v1709 = vpop.permute.xlu0 %1708
      %1711 = vset.pattern.permute.xlu0 3
      %1712 = vperm.xlu0 %1711, %v449
      %v1713 = vpop.permute.xlu0 %1712
      %1715 = vset.pattern.permute.xlu0 3
      %1716 = vperm.xlu0 %1715, %v450
      %v1717 = vpop.permute.xlu0 %1716
      %1719 = vset.pattern.permute.xlu0 3
      %1720 = vperm.xlu0 %1719, %v451
      %v1721 = vpop.permute.xlu0 %1720
      %1723 = vset.pattern.permute.xlu0 3
      %1724 = vperm.xlu0 %1723, %v452
      %v1725 = vpop.permute.xlu0 %1724
      %1727 = vset.pattern.permute.xlu0 3
      %1728 = vperm.xlu0 %1727, %v453
      %v1729 = vpop.permute.xlu0 %1728
      %1731 = vset.pattern.permute.xlu0 3
      %1732 = vperm.xlu0 %1731, %v454
      %v1733 = vpop.permute.xlu0 %1732
      %1735 = vset.pattern.permute.xlu0 3
      %1736 = vperm.xlu0 %1735, %v455
      %v1737 = vpop.permute.xlu0 %1736
      %1739 = vset.pattern.permute.xlu0 3
      %1740 = vperm.xlu0 %1739, %v456
      %v1741 = vpop.permute.xlu0 %1740
      %1743 = vset.pattern.permute.xlu0 3
      %1744 = vperm.xlu0 %1743, %v457
      %v1745 = vpop.permute.xlu0 %1744
      %1747 = vset.pattern.permute.xlu0 3
      %1748 = vperm.xlu0 %1747, %v458
      %v1749 = vpop.permute.xlu0 %1748
      %1751 = vset.pattern.permute.xlu0 3
      %1752 = vperm.xlu0 %1751, %v459
      %v1753 = vpop.permute.xlu0 %1752
      %1755 = vset.pattern.permute.xlu0 3
      %1756 = vperm.xlu0 %1755, %v460
      %v1757 = vpop.permute.xlu0 %1756
      %1759 = vset.pattern.permute.xlu0 3
      %1760 = vperm.xlu0 %1759, %v461
      %v1761 = vpop.permute.xlu0 %1760
      %1763 = vset.pattern.permute.xlu0 3
      %1764 = vperm.xlu0 %1763, %v462
      %v1765 = vpop.permute.xlu0 %1764
      %1767 = vset.pattern.permute.xlu0 3
      %1768 = vperm.xlu0 %1767, %v463
      %v1769 = vpop.permute.xlu0 %1768
      %1771 = vset.pattern.permute.xlu0 3
      %1772 = vperm.xlu0 %1771, %v464
      %v1773 = vpop.permute.xlu0 %1772
      %1775 = vset.pattern.permute.xlu0 3
      %1776 = vperm.xlu0 %1775, %v465
      %v1777 = vpop.permute.xlu0 %1776
      %v1779 = vmul.f32 %v532, %v1653
      %v1780 = vmul.f32 %v531, %v1657
      %v1781 = vmul.f32 %v530, %v1661
      %v1782 = vmul.f32 %v529, %v1665
      %v1783 = vmul.f32 %v528, %v1669
      %v1784 = vmul.f32 %v527, %v1673
      %v1785 = vmul.f32 %v526, %v1677
      %v1786 = vmul.f32 %v525, %v1681
      %v1787 = vmul.f32 %v524, %v1685
      %v1788 = vmul.f32 %v523, %v1689
      %v1789 = vmul.f32 %v522, %v1693
      %v1790 = vmul.f32 %v521, %v1697
      %v1791 = vmul.f32 %v520, %v1701
      %v1792 = vmul.f32 %v519, %v1705
      %v1793 = vmul.f32 %v518, %v1709
      %v1794 = vmul.f32 %v517, %v1713
      %v1795 = vmul.f32 %v516, %v1717
      %v1796 = vmul.f32 %v515, %v1721
      %v1797 = vmul.f32 %v514, %v1725
      %v1798 = vmul.f32 %v513, %v1729
      %v1799 = vmul.f32 %v512, %v1733
      %v1800 = vmul.f32 %v511, %v1737
      %v1801 = vmul.f32 %v510, %v1741
      %v1802 = vmul.f32 %v509, %v1745
      %v1803 = vmul.f32 %v508, %v1749
      %v1804 = vmul.f32 %v507, %v1753
      %v1805 = vmul.f32 %v506, %v1757
      %v1806 = vmul.f32 %v505, %v1761
      %v1807 = vmul.f32 %v504, %v1765
      %v1808 = vmul.f32 %v503, %v1769
      %v1809 = vmul.f32 %v502, %v1773
      %v1810 = vmul.f32 %v501, %v1777
      %v1811 = vpack.c.bf16 %v1780, %v1779
      %v1812 = vpack.c.bf16 %v1782, %v1781
      %v1813 = vpack.c.bf16 %v1784, %v1783
      %v1814 = vpack.c.bf16 %v1786, %v1785
      %v1815 = vpack.c.bf16 %v1788, %v1787
      %v1816 = vpack.c.bf16 %v1790, %v1789
      %v1817 = vpack.c.bf16 %v1792, %v1791
      %v1818 = vpack.c.bf16 %v1794, %v1793
      %v1819 = vpack.c.bf16 %v1796, %v1795
      %v1820 = vpack.c.bf16 %v1798, %v1797
      %v1821 = vpack.c.bf16 %v1800, %v1799
      %v1822 = vpack.c.bf16 %v1802, %v1801
      %v1823 = vpack.c.bf16 %v1804, %v1803
      %v1824 = vpack.c.bf16 %v1806, %v1805
      %v1825 = vpack.c.bf16 %v1808, %v1807
      %v1826 = vpack.c.bf16 %v1810, %v1809
      %s1827 = scalar_lea.vmem %s4, 192
      %v1828 = vld [vmem:[%s1827] sm:$0xf]
      %v1829 = vld [vmem:[%s1827 + $0x4] sm:$0xf]
      %v1830 = vld [vmem:[%s1827 + $0x8] sm:$0xf]
      %v1831 = vld [vmem:[%s1827 + $0xc] sm:$0xf]
      %v1832 = vld [vmem:[%s1827 + $0x10] sm:$0xf]
      %v1833 = vld [vmem:[%s1827 + $0x14] sm:$0xf]
      %v1834 = vld [vmem:[%s1827 + $0x18] sm:$0xf]
      %v1835 = vld [vmem:[%s1827 + $0x1c] sm:$0xf]
      %v1836 = vld [vmem:[%s1827 + $0x20] sm:$0xf]
      %v1837 = vld [vmem:[%s1827 + $0x24] sm:$0xf]
      %v1838 = vld [vmem:[%s1827 + $0x28] sm:$0xf]
      %v1839 = vld [vmem:[%s1827 + $0x2c] sm:$0xf]
      %v1840 = vld [vmem:[%s1827 + $0x30] sm:$0xf]
      %v1841 = vld [vmem:[%s1827 + $0x34] sm:$0xf]
      %v1842 = vld [vmem:[%s1827 + $0x38] sm:$0xf]
      %v1843 = vld [vmem:[%s1827 + $0x3c] sm:$0xf]
      %v1860 = vunpack.c.l.b16 %v1828
      %v1861 = vunpack.c.l.b16 %v1829
      %v1862 = vunpack.c.l.b16 %v1830
      %v1863 = vunpack.c.l.b16 %v1831
      %v1864 = vunpack.c.l.b16 %v1832
      %v1865 = vunpack.c.l.b16 %v1833
      %v1866 = vunpack.c.l.b16 %v1834
      %v1867 = vunpack.c.l.b16 %v1835
      %v1868 = vunpack.c.l.b16 %v1836
      %v1869 = vunpack.c.l.b16 %v1837
      %v1870 = vunpack.c.l.b16 %v1838
      %v1871 = vunpack.c.l.b16 %v1839
      %v1872 = vunpack.c.l.b16 %v1840
      %v1873 = vunpack.c.l.b16 %v1841
      %v1874 = vunpack.c.l.b16 %v1842
      %v1875 = vunpack.c.l.b16 %v1843
      %v1876 = vpack.c.b16 %v1861, %v1860
      %v1877 = vpack.c.b16 %v1863, %v1862
      %v1878 = vpack.c.b16 %v1865, %v1864
      %v1879 = vpack.c.b16 %v1867, %v1866
      %v1880 = vpack.c.b16 %v1869, %v1868
      %v1881 = vpack.c.b16 %v1871, %v1870
      %v1882 = vpack.c.b16 %v1873, %v1872
      %v1883 = vpack.c.b16 %v1875, %v1874
      %1892 = vmatpush.bf16.msra.mxu0 %v1883
      %1893 = vmatpush.bf16.msra.mxu0 %v1882
      %1894 = vmatpush.bf16.msra.mxu0 %v1881
      %1895 = vmatpush.bf16.msra.mxu0 %v1880
      %1896 = vmatpush.bf16.msra.mxu0 %v1879
      %1897 = vmatpush.bf16.msra.mxu0 %v1878
      %1898 = vmatpush.bf16.msra.mxu0 %v1877
      %1899 = vmatpush.bf16.msra.mxu0 %v1876
      %1900 = vmatmul.bf16.gmra.mxu0 %v1811
      %v1901 = vpop.f32.mrf.mxu0
      %v1902 = vadd.f32 0.0, %v1901
      %v1903 = vpop.f32.mrf.mxu0
      %v1904 = vadd.f32 0.0, %v1903
      %1905 = vmatmul.bf16.gmra.mxu0 %v1812
      %v1906 = vpop.f32.mrf.mxu0
      %v1907 = vadd.f32 0.0, %v1906
      %v1908 = vpop.f32.mrf.mxu0
      %v1909 = vadd.f32 0.0, %v1908
      %1910 = vmatmul.bf16.gmra.mxu0 %v1813
      %v1911 = vpop.f32.mrf.mxu0
      %v1912 = vadd.f32 0.0, %v1911
      %v1913 = vpop.f32.mrf.mxu0
      %v1914 = vadd.f32 0.0, %v1913
      %1915 = vmatmul.bf16.gmra.mxu0 %v1814
      %v1916 = vpop.f32.mrf.mxu0
      %v1917 = vadd.f32 0.0, %v1916
      %v1918 = vpop.f32.mrf.mxu0
      %v1919 = vadd.f32 0.0, %v1918
      %1920 = vmatmul.bf16.gmra.mxu0 %v1815
      %v1921 = vpop.f32.mrf.mxu0
      %v1922 = vadd.f32 0.0, %v1921
      %v1923 = vpop.f32.mrf.mxu0
      %v1924 = vadd.f32 0.0, %v1923
      %1925 = vmatmul.bf16.gmra.mxu0 %v1816
      %v1926 = vpop.f32.mrf.mxu0
      %v1927 = vadd.f32 0.0, %v1926
      %v1928 = vpop.f32.mrf.mxu0
      %v1929 = vadd.f32 0.0, %v1928
      %1930 = vmatmul.bf16.gmra.mxu0 %v1817
      %v1931 = vpop.f32.mrf.mxu0
      %v1932 = vadd.f32 0.0, %v1931
      %v1933 = vpop.f32.mrf.mxu0
      %v1934 = vadd.f32 0.0, %v1933
      %1935 = vmatmul.bf16.gmra.mxu0 %v1818
      %v1936 = vpop.f32.mrf.mxu0
      %v1937 = vadd.f32 0.0, %v1936
      %v1938 = vpop.f32.mrf.mxu0
      %v1939 = vadd.f32 0.0, %v1938
      %1940 = vmatmul.bf16.gmra.mxu0 %v1819
      %v1941 = vpop.f32.mrf.mxu0
      %v1942 = vadd.f32 0.0, %v1941
      %v1943 = vpop.f32.mrf.mxu0
      %v1944 = vadd.f32 0.0, %v1943
      %1945 = vmatmul.bf16.gmra.mxu0 %v1820
      %v1946 = vpop.f32.mrf.mxu0
      %v1947 = vadd.f32 0.0, %v1946
      %v1948 = vpop.f32.mrf.mxu0
      %v1949 = vadd.f32 0.0, %v1948
      %1950 = vmatmul.bf16.gmra.mxu0 %v1821
      %v1951 = vpop.f32.mrf.mxu0
      %v1952 = vadd.f32 0.0, %v1951
      %v1953 = vpop.f32.mrf.mxu0
      %v1954 = vadd.f32 0.0, %v1953
      %1955 = vmatmul.bf16.gmra.mxu0 %v1822
      %v1956 = vpop.f32.mrf.mxu0
      %v1957 = vadd.f32 0.0, %v1956
      %v1958 = vpop.f32.mrf.mxu0
      %v1959 = vadd.f32 0.0, %v1958
      %1960 = vmatmul.bf16.gmra.mxu0 %v1823
      %v1961 = vpop.f32.mrf.mxu0
      %v1962 = vadd.f32 0.0, %v1961
      %v1963 = vpop.f32.mrf.mxu0
      %v1964 = vadd.f32 0.0, %v1963
      %1965 = vmatmul.bf16.gmra.mxu0 %v1824
      %v1966 = vpop.f32.mrf.mxu0
      %v1967 = vadd.f32 0.0, %v1966
      %v1968 = vpop.f32.mrf.mxu0
      %v1969 = vadd.f32 0.0, %v1968
      %1970 = vmatmul.bf16.gmra.mxu0 %v1825
      %v1971 = vpop.f32.mrf.mxu0
      %v1972 = vadd.f32 0.0, %v1971
      %v1973 = vpop.f32.mrf.mxu0
      %v1974 = vadd.f32 0.0, %v1973
      %1975 = vmatmul.bf16.gmra.mxu0 %v1826
      %v1976 = vpop.f32.mrf.mxu0
      %v1977 = vadd.f32 0.0, %v1976
      %v1978 = vpop.f32.mrf.mxu0
      %v1979 = vadd.f32 0.0, %v1978
      %1980 = vdwg.mxu0
      %v1981 = vadd.f32 %v1619, %v1902
      %v1982 = vadd.f32 %v1620, %v1904
      %v1983 = vadd.f32 %v1621, %v1907
      %v1984 = vadd.f32 %v1622, %v1909
      %v1985 = vadd.f32 %v1623, %v1912
      %v1986 = vadd.f32 %v1624, %v1914
      %v1987 = vadd.f32 %v1625, %v1917
      %v1988 = vadd.f32 %v1626, %v1919
      %v1989 = vadd.f32 %v1627, %v1922
      %v1990 = vadd.f32 %v1628, %v1924
      %v1991 = vadd.f32 %v1629, %v1927
      %v1992 = vadd.f32 %v1630, %v1929
      %v1993 = vadd.f32 %v1631, %v1932
      %v1994 = vadd.f32 %v1632, %v1934
      %v1995 = vadd.f32 %v1633, %v1937
      %v1996 = vadd.f32 %v1634, %v1939
      %v1997 = vadd.f32 %v1635, %v1942
      %v1998 = vadd.f32 %v1636, %v1944
      %v1999 = vadd.f32 %v1637, %v1947
      %v2000 = vadd.f32 %v1638, %v1949
      %v2001 = vadd.f32 %v1639, %v1952
      %v2002 = vadd.f32 %v1640, %v1954
      %v2003 = vadd.f32 %v1641, %v1957
      %v2004 = vadd.f32 %v1642, %v1959
      %v2005 = vadd.f32 %v1643, %v1962
      %v2006 = vadd.f32 %v1644, %v1964
      %v2007 = vadd.f32 %v1645, %v1967
      %v2008 = vadd.f32 %v1646, %v1969
      %v2009 = vadd.f32 %v1647, %v1972
      %v2010 = vadd.f32 %v1648, %v1974
      %v2011 = vadd.f32 %v1649, %v1977
      %v2012 = vadd.f32 %v1650, %v1979
      %2013 = vset.pattern.permute.xlu0 4
      %2014 = vperm.xlu0 %2013, %v434
      %v2015 = vpop.permute.xlu0 %2014
      %2017 = vset.pattern.permute.xlu0 4
      %2018 = vperm.xlu0 %2017, %v435
      %v2019 = vpop.permute.xlu0 %2018
      %2021 = vset.pattern.permute.xlu0 4
      %2022 = vperm.xlu0 %2021, %v436
      %v2023 = vpop.permute.xlu0 %2022
      %2025 = vset.pattern.permute.xlu0 4
      %2026 = vperm.xlu0 %2025, %v437
      %v2027 = vpop.permute.xlu0 %2026
      %2029 = vset.pattern.permute.xlu0 4
      %2030 = vperm.xlu0 %2029, %v438
      %v2031 = vpop.permute.xlu0 %2030
      %2033 = vset.pattern.permute.xlu0 4
      %2034 = vperm.xlu0 %2033, %v439
      %v2035 = vpop.permute.xlu0 %2034
      %2037 = vset.pattern.permute.xlu0 4
      %2038 = vperm.xlu0 %2037, %v440
      %v2039 = vpop.permute.xlu0 %2038
      %2041 = vset.pattern.permute.xlu0 4
      %2042 = vperm.xlu0 %2041, %v441
      %v2043 = vpop.permute.xlu0 %2042
      %2045 = vset.pattern.permute.xlu0 4
      %2046 = vperm.xlu0 %2045, %v442
      %v2047 = vpop.permute.xlu0 %2046
      %2049 = vset.pattern.permute.xlu0 4
      %2050 = vperm.xlu0 %2049, %v443
      %v2051 = vpop.permute.xlu0 %2050
      %2053 = vset.pattern.permute.xlu0 4
      %2054 = vperm.xlu0 %2053, %v444
      %v2055 = vpop.permute.xlu0 %2054
      %2057 = vset.pattern.permute.xlu0 4
      %2058 = vperm.xlu0 %2057, %v445
      %v2059 = vpop.permute.xlu0 %2058
      %2061 = vset.pattern.permute.xlu0 4
      %2062 = vperm.xlu0 %2061, %v446
      %v2063 = vpop.permute.xlu0 %2062
      %2065 = vset.pattern.permute.xlu0 4
      %2066 = vperm.xlu0 %2065, %v447
      %v2067 = vpop.permute.xlu0 %2066
      %2069 = vset.pattern.permute.xlu0 4
      %2070 = vperm.xlu0 %2069, %v448
      %v2071 = vpop.permute.xlu0 %2070
      %2073 = vset.pattern.permute.xlu0 4
      %2074 = vperm.xlu0 %2073, %v449
      %v2075 = vpop.permute.xlu0 %2074
      %2077 = vset.pattern.permute.xlu0 4
      %2078 = vperm.xlu0 %2077, %v450
      %v2079 = vpop.permute.xlu0 %2078
      %2081 = vset.pattern.permute.xlu0 4
      %2082 = vperm.xlu0 %2081, %v451
      %v2083 = vpop.permute.xlu0 %2082
      %2085 = vset.pattern.permute.xlu0 4
      %2086 = vperm.xlu0 %2085, %v452
      %v2087 = vpop.permute.xlu0 %2086
      %2089 = vset.pattern.permute.xlu0 4
      %2090 = vperm.xlu0 %2089, %v453
      %v2091 = vpop.permute.xlu0 %2090
      %2093 = vset.pattern.permute.xlu0 4
      %2094 = vperm.xlu0 %2093, %v454
      %v2095 = vpop.permute.xlu0 %2094
      %2097 = vset.pattern.permute.xlu0 4
      %2098 = vperm.xlu0 %2097, %v455
      %v2099 = vpop.permute.xlu0 %2098
      %2101 = vset.pattern.permute.xlu0 4
      %2102 = vperm.xlu0 %2101, %v456
      %v2103 = vpop.permute.xlu0 %2102
      %2105 = vset.pattern.permute.xlu0 4
      %2106 = vperm.xlu0 %2105, %v457
      %v2107 = vpop.permute.xlu0 %2106
      %2109 = vset.pattern.permute.xlu0 4
      %2110 = vperm.xlu0 %2109, %v458
      %v2111 = vpop.permute.xlu0 %2110
      %2113 = vset.pattern.permute.xlu0 4
      %2114 = vperm.xlu0 %2113, %v459
      %v2115 = vpop.permute.xlu0 %2114
      %2117 = vset.pattern.permute.xlu0 4
      %2118 = vperm.xlu0 %2117, %v460
      %v2119 = vpop.permute.xlu0 %2118
      %2121 = vset.pattern.permute.xlu0 4
      %2122 = vperm.xlu0 %2121, %v461
      %v2123 = vpop.permute.xlu0 %2122
      %2125 = vset.pattern.permute.xlu0 4
      %2126 = vperm.xlu0 %2125, %v462
      %v2127 = vpop.permute.xlu0 %2126
      %2129 = vset.pattern.permute.xlu0 4
      %2130 = vperm.xlu0 %2129, %v463
      %v2131 = vpop.permute.xlu0 %2130
      %2133 = vset.pattern.permute.xlu0 4
      %2134 = vperm.xlu0 %2133, %v464
      %v2135 = vpop.permute.xlu0 %2134
      %2137 = vset.pattern.permute.xlu0 4
      %2138 = vperm.xlu0 %2137, %v465
      %v2139 = vpop.permute.xlu0 %2138
      %v2141 = vmul.f32 %v402, %v2015
      %v2142 = vmul.f32 %v403, %v2019
      %v2143 = vmul.f32 %v404, %v2023
      %v2144 = vmul.f32 %v405, %v2027
      %v2145 = vmul.f32 %v406, %v2031
      %v2146 = vmul.f32 %v407, %v2035
      %v2147 = vmul.f32 %v408, %v2039
      %v2148 = vmul.f32 %v409, %v2043
      %v2149 = vmul.f32 %v410, %v2047
      %v2150 = vmul.f32 %v411, %v2051
      %v2151 = vmul.f32 %v412, %v2055
      %v2152 = vmul.f32 %v413, %v2059
      %v2153 = vmul.f32 %v414, %v2063
      %v2154 = vmul.f32 %v415, %v2067
      %v2155 = vmul.f32 %v416, %v2071
      %v2156 = vmul.f32 %v417, %v2075
      %v2157 = vmul.f32 %v418, %v2079
      %v2158 = vmul.f32 %v419, %v2083
      %v2159 = vmul.f32 %v420, %v2087
      %v2160 = vmul.f32 %v421, %v2091
      %v2161 = vmul.f32 %v422, %v2095
      %v2162 = vmul.f32 %v423, %v2099
      %v2163 = vmul.f32 %v424, %v2103
      %v2164 = vmul.f32 %v425, %v2107
      %v2165 = vmul.f32 %v426, %v2111
      %v2166 = vmul.f32 %v427, %v2115
      %v2167 = vmul.f32 %v428, %v2119
      %v2168 = vmul.f32 %v429, %v2123
      %v2169 = vmul.f32 %v430, %v2127
      %v2170 = vmul.f32 %v431, %v2131
      %v2171 = vmul.f32 %v432, %v2135
      %v2172 = vmul.f32 %v433, %v2139
      %v2173 = vpack.c.bf16 %v2142, %v2141
      %v2174 = vpack.c.bf16 %v2144, %v2143
      %v2175 = vpack.c.bf16 %v2146, %v2145
      %v2176 = vpack.c.bf16 %v2148, %v2147
      %v2177 = vpack.c.bf16 %v2150, %v2149
      %v2178 = vpack.c.bf16 %v2152, %v2151
      %v2179 = vpack.c.bf16 %v2154, %v2153
      %v2180 = vpack.c.bf16 %v2156, %v2155
      %v2181 = vpack.c.bf16 %v2158, %v2157
      %v2182 = vpack.c.bf16 %v2160, %v2159
      %v2183 = vpack.c.bf16 %v2162, %v2161
      %v2184 = vpack.c.bf16 %v2164, %v2163
      %v2185 = vpack.c.bf16 %v2166, %v2165
      %v2186 = vpack.c.bf16 %v2168, %v2167
      %v2187 = vpack.c.bf16 %v2170, %v2169
      %v2188 = vpack.c.bf16 %v2172, %v2171
      %s2189 = scalar_lea.vmem %s4, 256
      %v2190 = vld [vmem:[%s2189] sm:$0xf]
      %v2191 = vld [vmem:[%s2189 + $0x4] sm:$0xf]
      %v2192 = vld [vmem:[%s2189 + $0x8] sm:$0xf]
      %v2193 = vld [vmem:[%s2189 + $0xc] sm:$0xf]
      %v2194 = vld [vmem:[%s2189 + $0x10] sm:$0xf]
      %v2195 = vld [vmem:[%s2189 + $0x14] sm:$0xf]
      %v2196 = vld [vmem:[%s2189 + $0x18] sm:$0xf]
      %v2197 = vld [vmem:[%s2189 + $0x1c] sm:$0xf]
      %v2198 = vld [vmem:[%s2189 + $0x20] sm:$0xf]
      %v2199 = vld [vmem:[%s2189 + $0x24] sm:$0xf]
      %v2200 = vld [vmem:[%s2189 + $0x28] sm:$0xf]
      %v2201 = vld [vmem:[%s2189 + $0x2c] sm:$0xf]
      %v2202 = vld [vmem:[%s2189 + $0x30] sm:$0xf]
      %v2203 = vld [vmem:[%s2189 + $0x34] sm:$0xf]
      %v2204 = vld [vmem:[%s2189 + $0x38] sm:$0xf]
      %v2205 = vld [vmem:[%s2189 + $0x3c] sm:$0xf]
      %v2222 = vunpack.c.l.b16 %v2190
      %v2223 = vunpack.c.l.b16 %v2191
      %v2224 = vunpack.c.l.b16 %v2192
      %v2225 = vunpack.c.l.b16 %v2193
      %v2226 = vunpack.c.l.b16 %v2194
      %v2227 = vunpack.c.l.b16 %v2195
      %v2228 = vunpack.c.l.b16 %v2196
      %v2229 = vunpack.c.l.b16 %v2197
      %v2230 = vunpack.c.l.b16 %v2198
      %v2231 = vunpack.c.l.b16 %v2199
      %v2232 = vunpack.c.l.b16 %v2200
      %v2233 = vunpack.c.l.b16 %v2201
      %v2234 = vunpack.c.l.b16 %v2202
      %v2235 = vunpack.c.l.b16 %v2203
      %v2236 = vunpack.c.l.b16 %v2204
      %v2237 = vunpack.c.l.b16 %v2205
      %v2238 = vpack.c.b16 %v2223, %v2222
      %v2239 = vpack.c.b16 %v2225, %v2224
      %v2240 = vpack.c.b16 %v2227, %v2226
      %v2241 = vpack.c.b16 %v2229, %v2228
      %v2242 = vpack.c.b16 %v2231, %v2230
      %v2243 = vpack.c.b16 %v2233, %v2232
      %v2244 = vpack.c.b16 %v2235, %v2234
      %v2245 = vpack.c.b16 %v2237, %v2236
      %2254 = vmatpush.bf16.msra.mxu0 %v2245
      %2255 = vmatpush.bf16.msra.mxu0 %v2244
      %2256 = vmatpush.bf16.msra.mxu0 %v2243
      %2257 = vmatpush.bf16.msra.mxu0 %v2242
      %2258 = vmatpush.bf16.msra.mxu0 %v2241
      %2259 = vmatpush.bf16.msra.mxu0 %v2240
      %2260 = vmatpush.bf16.msra.mxu0 %v2239
      %2261 = vmatpush.bf16.msra.mxu0 %v2238
      %2262 = vmatmul.bf16.gmra.mxu0 %v2173
      %v2263 = vpop.f32.mrf.mxu0
      %v2264 = vadd.f32 0.0, %v2263
      %v2265 = vpop.f32.mrf.mxu0
      %v2266 = vadd.f32 0.0, %v2265
      %2267 = vmatmul.bf16.gmra.mxu0 %v2174
      %v2268 = vpop.f32.mrf.mxu0
      %v2269 = vadd.f32 0.0, %v2268
      %v2270 = vpop.f32.mrf.mxu0
      %v2271 = vadd.f32 0.0, %v2270
      %2272 = vmatmul.bf16.gmra.mxu0 %v2175
      %v2273 = vpop.f32.mrf.mxu0
      %v2274 = vadd.f32 0.0, %v2273
      %v2275 = vpop.f32.mrf.mxu0
      %v2276 = vadd.f32 0.0, %v2275
      %2277 = vmatmul.bf16.gmra.mxu0 %v2176
      %v2278 = vpop.f32.mrf.mxu0
      %v2279 = vadd.f32 0.0, %v2278
      %v2280 = vpop.f32.mrf.mxu0
      %v2281 = vadd.f32 0.0, %v2280
      %2282 = vmatmul.bf16.gmra.mxu0 %v2177
      %v2283 = vpop.f32.mrf.mxu0
      %v2284 = vadd.f32 0.0, %v2283
      %v2285 = vpop.f32.mrf.mxu0
      %v2286 = vadd.f32 0.0, %v2285
      %2287 = vmatmul.bf16.gmra.mxu0 %v2178
      %v2288 = vpop.f32.mrf.mxu0
      %v2289 = vadd.f32 0.0, %v2288
      %v2290 = vpop.f32.mrf.mxu0
      %v2291 = vadd.f32 0.0, %v2290
      %2292 = vmatmul.bf16.gmra.mxu0 %v2179
      %v2293 = vpop.f32.mrf.mxu0
      %v2294 = vadd.f32 0.0, %v2293
      %v2295 = vpop.f32.mrf.mxu0
      %v2296 = vadd.f32 0.0, %v2295
      %2297 = vmatmul.bf16.gmra.mxu0 %v2180
      %v2298 = vpop.f32.mrf.mxu0
      %v2299 = vadd.f32 0.0, %v2298
      %v2300 = vpop.f32.mrf.mxu0
      %v2301 = vadd.f32 0.0, %v2300
      %2302 = vmatmul.bf16.gmra.mxu0 %v2181
      %v2303 = vpop.f32.mrf.mxu0
      %v2304 = vadd.f32 0.0, %v2303
      %v2305 = vpop.f32.mrf.mxu0
      %v2306 = vadd.f32 0.0, %v2305
      %2307 = vmatmul.bf16.gmra.mxu0 %v2182
      %v2308 = vpop.f32.mrf.mxu0
      %v2309 = vadd.f32 0.0, %v2308
      %v2310 = vpop.f32.mrf.mxu0
      %v2311 = vadd.f32 0.0, %v2310
      %2312 = vmatmul.bf16.gmra.mxu0 %v2183
      %v2313 = vpop.f32.mrf.mxu0
      %v2314 = vadd.f32 0.0, %v2313
      %v2315 = vpop.f32.mrf.mxu0
      %v2316 = vadd.f32 0.0, %v2315
      %2317 = vmatmul.bf16.gmra.mxu0 %v2184
      %v2318 = vpop.f32.mrf.mxu0
      %v2319 = vadd.f32 0.0, %v2318
      %v2320 = vpop.f32.mrf.mxu0
      %v2321 = vadd.f32 0.0, %v2320
      %2322 = vmatmul.bf16.gmra.mxu0 %v2185
      %v2323 = vpop.f32.mrf.mxu0
      %v2324 = vadd.f32 0.0, %v2323
      %v2325 = vpop.f32.mrf.mxu0
      %v2326 = vadd.f32 0.0, %v2325
      %2327 = vmatmul.bf16.gmra.mxu0 %v2186
      %v2328 = vpop.f32.mrf.mxu0
      %v2329 = vadd.f32 0.0, %v2328
      %v2330 = vpop.f32.mrf.mxu0
      %v2331 = vadd.f32 0.0, %v2330
      %2332 = vmatmul.bf16.gmra.mxu0 %v2187
      %v2333 = vpop.f32.mrf.mxu0
      %v2334 = vadd.f32 0.0, %v2333
      %v2335 = vpop.f32.mrf.mxu0
      %v2336 = vadd.f32 0.0, %v2335
      %2337 = vmatmul.bf16.gmra.mxu0 %v2188
      %v2338 = vpop.f32.mrf.mxu0
      %v2339 = vadd.f32 0.0, %v2338
      %v2340 = vpop.f32.mrf.mxu0
      %v2341 = vadd.f32 0.0, %v2340
      %2342 = vdwg.mxu0
      %v2343 = vadd.f32 %v1981, %v2264
      %v2344 = vadd.f32 %v1982, %v2266
      %v2345 = vadd.f32 %v1983, %v2269
      %v2346 = vadd.f32 %v1984, %v2271
      %v2347 = vadd.f32 %v1985, %v2274
      %v2348 = vadd.f32 %v1986, %v2276
      %v2349 = vadd.f32 %v1987, %v2279
      %v2350 = vadd.f32 %v1988, %v2281
      %v2351 = vadd.f32 %v1989, %v2284
      %v2352 = vadd.f32 %v1990, %v2286
      %v2353 = vadd.f32 %v1991, %v2289
      %v2354 = vadd.f32 %v1992, %v2291
      %v2355 = vadd.f32 %v1993, %v2294
      %v2356 = vadd.f32 %v1994, %v2296
      %v2357 = vadd.f32 %v1995, %v2299
      %v2358 = vadd.f32 %v1996, %v2301
      %v2359 = vadd.f32 %v1997, %v2304
      %v2360 = vadd.f32 %v1998, %v2306
      %v2361 = vadd.f32 %v1999, %v2309
      %v2362 = vadd.f32 %v2000, %v2311
      %v2363 = vadd.f32 %v2001, %v2314
      %v2364 = vadd.f32 %v2002, %v2316
      %v2365 = vadd.f32 %v2003, %v2319
      %v2366 = vadd.f32 %v2004, %v2321
      %v2367 = vadd.f32 %v2005, %v2324
      %v2368 = vadd.f32 %v2006, %v2326
      %v2369 = vadd.f32 %v2007, %v2329
      %v2370 = vadd.f32 %v2008, %v2331
      %v2371 = vadd.f32 %v2009, %v2334
      %v2372 = vadd.f32 %v2010, %v2336
      %v2373 = vadd.f32 %v2011, %v2339
      %v2374 = vadd.f32 %v2012, %v2341
      %2375 = vset.pattern.permute.xlu0 5
      %2376 = vperm.xlu0 %2375, %v434
      %v2377 = vpop.permute.xlu0 %2376
      %2379 = vset.pattern.permute.xlu0 5
      %2380 = vperm.xlu0 %2379, %v435
      %v2381 = vpop.permute.xlu0 %2380
      %2383 = vset.pattern.permute.xlu0 5
      %2384 = vperm.xlu0 %2383, %v436
      %v2385 = vpop.permute.xlu0 %2384
      %2387 = vset.pattern.permute.xlu0 5
      %2388 = vperm.xlu0 %2387, %v437
      %v2389 = vpop.permute.xlu0 %2388
      %2391 = vset.pattern.permute.xlu0 5
      %2392 = vperm.xlu0 %2391, %v438
      %v2393 = vpop.permute.xlu0 %2392
      %2395 = vset.pattern.permute.xlu0 5
      %2396 = vperm.xlu0 %2395, %v439
      %v2397 = vpop.permute.xlu0 %2396
      %2399 = vset.pattern.permute.xlu0 5
      %2400 = vperm.xlu0 %2399, %v440
      %v2401 = vpop.permute.xlu0 %2400
      %2403 = vset.pattern.permute.xlu0 5
      %2404 = vperm.xlu0 %2403, %v441
      %v2405 = vpop.permute.xlu0 %2404
      %2407 = vset.pattern.permute.xlu0 5
      %2408 = vperm.xlu0 %2407, %v442
      %v2409 = vpop.permute.xlu0 %2408
      %2411 = vset.pattern.permute.xlu0 5
      %2412 = vperm.xlu0 %2411, %v443
      %v2413 = vpop.permute.xlu0 %2412
      %2415 = vset.pattern.permute.xlu0 5
      %2416 = vperm.xlu0 %2415, %v444
      %v2417 = vpop.permute.xlu0 %2416
      %2419 = vset.pattern.permute.xlu0 5
      %2420 = vperm.xlu0 %2419, %v445
      %v2421 = vpop.permute.xlu0 %2420
      %2423 = vset.pattern.permute.xlu0 5
      %2424 = vperm.xlu0 %2423, %v446
      %v2425 = vpop.permute.xlu0 %2424
      %2427 = vset.pattern.permute.xlu0 5
      %2428 = vperm.xlu0 %2427, %v447
      %v2429 = vpop.permute.xlu0 %2428
      %2431 = vset.pattern.permute.xlu0 5
      %2432 = vperm.xlu0 %2431, %v448
      %v2433 = vpop.permute.xlu0 %2432
      %2435 = vset.pattern.permute.xlu0 5
      %2436 = vperm.xlu0 %2435, %v449
      %v2437 = vpop.permute.xlu0 %2436
      %2439 = vset.pattern.permute.xlu0 5
      %2440 = vperm.xlu0 %2439, %v450
      %v2441 = vpop.permute.xlu0 %2440
      %2443 = vset.pattern.permute.xlu0 5
      %2444 = vperm.xlu0 %2443, %v451
      %v2445 = vpop.permute.xlu0 %2444
      %2447 = vset.pattern.permute.xlu0 5
      %2448 = vperm.xlu0 %2447, %v452
      %v2449 = vpop.permute.xlu0 %2448
      %2451 = vset.pattern.permute.xlu0 5
      %2452 = vperm.xlu0 %2451, %v453
      %v2453 = vpop.permute.xlu0 %2452
      %2455 = vset.pattern.permute.xlu0 5
      %2456 = vperm.xlu0 %2455, %v454
      %v2457 = vpop.permute.xlu0 %2456
      %2459 = vset.pattern.permute.xlu0 5
      %2460 = vperm.xlu0 %2459, %v455
      %v2461 = vpop.permute.xlu0 %2460
      %2463 = vset.pattern.permute.xlu0 5
      %2464 = vperm.xlu0 %2463, %v456
      %v2465 = vpop.permute.xlu0 %2464
      %2467 = vset.pattern.permute.xlu0 5
      %2468 = vperm.xlu0 %2467, %v457
      %v2469 = vpop.permute.xlu0 %2468
      %2471 = vset.pattern.permute.xlu0 5
      %2472 = vperm.xlu0 %2471, %v458
      %v2473 = vpop.permute.xlu0 %2472
      %2475 = vset.pattern.permute.xlu0 5
      %2476 = vperm.xlu0 %2475, %v459
      %v2477 = vpop.permute.xlu0 %2476
      %2479 = vset.pattern.permute.xlu0 5
      %2480 = vperm.xlu0 %2479, %v460
      %v2481 = vpop.permute.xlu0 %2480
      %2483 = vset.pattern.permute.xlu0 5
      %2484 = vperm.xlu0 %2483, %v461
      %v2485 = vpop.permute.xlu0 %2484
      %2487 = vset.pattern.permute.xlu0 5
      %2488 = vperm.xlu0 %2487, %v462
      %v2489 = vpop.permute.xlu0 %2488
      %2491 = vset.pattern.permute.xlu0 5
      %2492 = vperm.xlu0 %2491, %v463
      %v2493 = vpop.permute.xlu0 %2492
      %2495 = vset.pattern.permute.xlu0 5
      %2496 = vperm.xlu0 %2495, %v464
      %v2497 = vpop.permute.xlu0 %2496
      %2499 = vset.pattern.permute.xlu0 5
      %2500 = vperm.xlu0 %2499, %v465
      %v2501 = vpop.permute.xlu0 %2500
      %v2503 = vmul.f32 %v1287, %v2377
      %v2504 = vmul.f32 %v1286, %v2381
      %v2505 = vmul.f32 %v1285, %v2385
      %v2506 = vmul.f32 %v1284, %v2389
      %v2507 = vmul.f32 %v1283, %v2393
      %v2508 = vmul.f32 %v1282, %v2397
      %v2509 = vmul.f32 %v1281, %v2401
      %v2510 = vmul.f32 %v1280, %v2405
      %v2511 = vmul.f32 %v1279, %v2409
      %v2512 = vmul.f32 %v1278, %v2413
      %v2513 = vmul.f32 %v1277, %v2417
      %v2514 = vmul.f32 %v1276, %v2421
      %v2515 = vmul.f32 %v1275, %v2425
      %v2516 = vmul.f32 %v1274, %v2429
      %v2517 = vmul.f32 %v1273, %v2433
      %v2518 = vmul.f32 %v1272, %v2437
      %v2519 = vmul.f32 %v1271, %v2441
      %v2520 = vmul.f32 %v1270, %v2445
      %v2521 = vmul.f32 %v1269, %v2449
      %v2522 = vmul.f32 %v1268, %v2453
      %v2523 = vmul.f32 %v1267, %v2457
      %v2524 = vmul.f32 %v1266, %v2461
      %v2525 = vmul.f32 %v1265, %v2465
      %v2526 = vmul.f32 %v1264, %v2469
      %v2527 = vmul.f32 %v1263, %v2473
      %v2528 = vmul.f32 %v1262, %v2477
      %v2529 = vmul.f32 %v1261, %v2481
      %v2530 = vmul.f32 %v1260, %v2485
      %v2531 = vmul.f32 %v1259, %v2489
      %v2532 = vmul.f32 %v1258, %v2493
      %v2533 = vmul.f32 %v1257, %v2497
      %v2534 = vmul.f32 %v1288, %v2501
      %v2535 = vpack.c.bf16 %v2504, %v2503
      %v2536 = vpack.c.bf16 %v2506, %v2505
      %v2537 = vpack.c.bf16 %v2508, %v2507
      %v2538 = vpack.c.bf16 %v2510, %v2509
      %v2539 = vpack.c.bf16 %v2512, %v2511
      %v2540 = vpack.c.bf16 %v2514, %v2513
      %v2541 = vpack.c.bf16 %v2516, %v2515
      %v2542 = vpack.c.bf16 %v2518, %v2517
      %v2543 = vpack.c.bf16 %v2520, %v2519
      %v2544 = vpack.c.bf16 %v2522, %v2521
      %v2545 = vpack.c.bf16 %v2524, %v2523
      %v2546 = vpack.c.bf16 %v2526, %v2525
      %v2547 = vpack.c.bf16 %v2528, %v2527
      %v2548 = vpack.c.bf16 %v2530, %v2529
      %v2549 = vpack.c.bf16 %v2532, %v2531
      %v2550 = vpack.c.bf16 %v2534, %v2533
      %s2551 = scalar_lea.vmem %s4, 320
      %v2552 = vld [vmem:[%s2551] sm:$0xf]
      %v2553 = vld [vmem:[%s2551 + $0x4] sm:$0xf]
      %v2554 = vld [vmem:[%s2551 + $0x8] sm:$0xf]
      %v2555 = vld [vmem:[%s2551 + $0xc] sm:$0xf]
      %v2556 = vld [vmem:[%s2551 + $0x10] sm:$0xf]
      %v2557 = vld [vmem:[%s2551 + $0x14] sm:$0xf]
      %v2558 = vld [vmem:[%s2551 + $0x18] sm:$0xf]
      %v2559 = vld [vmem:[%s2551 + $0x1c] sm:$0xf]
      %v2560 = vld [vmem:[%s2551 + $0x20] sm:$0xf]
      %v2561 = vld [vmem:[%s2551 + $0x24] sm:$0xf]
      %v2562 = vld [vmem:[%s2551 + $0x28] sm:$0xf]
      %v2563 = vld [vmem:[%s2551 + $0x2c] sm:$0xf]
      %v2564 = vld [vmem:[%s2551 + $0x30] sm:$0xf]
      %v2565 = vld [vmem:[%s2551 + $0x34] sm:$0xf]
      %v2566 = vld [vmem:[%s2551 + $0x38] sm:$0xf]
      %v2567 = vld [vmem:[%s2551 + $0x3c] sm:$0xf]
      %v2584 = vunpack.c.l.b16 %v2552
      %v2585 = vunpack.c.l.b16 %v2553
      %v2586 = vunpack.c.l.b16 %v2554
      %v2587 = vunpack.c.l.b16 %v2555
      %v2588 = vunpack.c.l.b16 %v2556
      %v2589 = vunpack.c.l.b16 %v2557
      %v2590 = vunpack.c.l.b16 %v2558
      %v2591 = vunpack.c.l.b16 %v2559
      %v2592 = vunpack.c.l.b16 %v2560
      %v2593 = vunpack.c.l.b16 %v2561
      %v2594 = vunpack.c.l.b16 %v2562
      %v2595 = vunpack.c.l.b16 %v2563
      %v2596 = vunpack.c.l.b16 %v2564
      %v2597 = vunpack.c.l.b16 %v2565
      %v2598 = vunpack.c.l.b16 %v2566
      %v2599 = vunpack.c.l.b16 %v2567
      %v2600 = vpack.c.b16 %v2585, %v2584
      %v2601 = vpack.c.b16 %v2587, %v2586
      %v2602 = vpack.c.b16 %v2589, %v2588
      %v2603 = vpack.c.b16 %v2591, %v2590
      %v2604 = vpack.c.b16 %v2593, %v2592
      %v2605 = vpack.c.b16 %v2595, %v2594
      %v2606 = vpack.c.b16 %v2597, %v2596
      %v2607 = vpack.c.b16 %v2599, %v2598
      %2616 = vmatpush.bf16.msra.mxu0 %v2607
      %2617 = vmatpush.bf16.msra.mxu0 %v2606
      %2618 = vmatpush.bf16.msra.mxu0 %v2605
      %2619 = vmatpush.bf16.msra.mxu0 %v2604
      %2620 = vmatpush.bf16.msra.mxu0 %v2603
      %2621 = vmatpush.bf16.msra.mxu0 %v2602
      %2622 = vmatpush.bf16.msra.mxu0 %v2601
      %2623 = vmatpush.bf16.msra.mxu0 %v2600
      %2624 = vmatmul.bf16.gmra.mxu0 %v2535
      %v2625 = vpop.f32.mrf.mxu0
      %v2626 = vadd.f32 0.0, %v2625
      %v2627 = vpop.f32.mrf.mxu0
      %v2628 = vadd.f32 0.0, %v2627
      %2629 = vmatmul.bf16.gmra.mxu0 %v2536
      %v2630 = vpop.f32.mrf.mxu0
      %v2631 = vadd.f32 0.0, %v2630
      %v2632 = vpop.f32.mrf.mxu0
      %v2633 = vadd.f32 0.0, %v2632
      %2634 = vmatmul.bf16.gmra.mxu0 %v2537
      %v2635 = vpop.f32.mrf.mxu0
      %v2636 = vadd.f32 0.0, %v2635
      %v2637 = vpop.f32.mrf.mxu0
      %v2638 = vadd.f32 0.0, %v2637
      %2639 = vmatmul.bf16.gmra.mxu0 %v2538
      %v2640 = vpop.f32.mrf.mxu0
      %v2641 = vadd.f32 0.0, %v2640
      %v2642 = vpop.f32.mrf.mxu0
      %v2643 = vadd.f32 0.0, %v2642
      %2644 = vmatmul.bf16.gmra.mxu0 %v2539
      %v2645 = vpop.f32.mrf.mxu0
      %v2646 = vadd.f32 0.0, %v2645
      %v2647 = vpop.f32.mrf.mxu0
      %v2648 = vadd.f32 0.0, %v2647
      %2649 = vmatmul.bf16.gmra.mxu0 %v2540
      %v2650 = vpop.f32.mrf.mxu0
      %v2651 = vadd.f32 0.0, %v2650
      %v2652 = vpop.f32.mrf.mxu0
      %v2653 = vadd.f32 0.0, %v2652
      %2654 = vmatmul.bf16.gmra.mxu0 %v2541
      %v2655 = vpop.f32.mrf.mxu0
      %v2656 = vadd.f32 0.0, %v2655
      %v2657 = vpop.f32.mrf.mxu0
      %v2658 = vadd.f32 0.0, %v2657
      %2659 = vmatmul.bf16.gmra.mxu0 %v2542
      %v2660 = vpop.f32.mrf.mxu0
      %v2661 = vadd.f32 0.0, %v2660
      %v2662 = vpop.f32.mrf.mxu0
      %v2663 = vadd.f32 0.0, %v2662
      %2664 = vmatmul.bf16.gmra.mxu0 %v2543
      %v2665 = vpop.f32.mrf.mxu0
      %v2666 = vadd.f32 0.0, %v2665
      %v2667 = vpop.f32.mrf.mxu0
      %v2668 = vadd.f32 0.0, %v2667
      %2669 = vmatmul.bf16.gmra.mxu0 %v2544
      %v2670 = vpop.f32.mrf.mxu0
      %v2671 = vadd.f32 0.0, %v2670
      %v2672 = vpop.f32.mrf.mxu0
      %v2673 = vadd.f32 0.0, %v2672
      %2674 = vmatmul.bf16.gmra.mxu0 %v2545
      %v2675 = vpop.f32.mrf.mxu0
      %v2676 = vadd.f32 0.0, %v2675
      %v2677 = vpop.f32.mrf.mxu0
      %v2678 = vadd.f32 0.0, %v2677
      %2679 = vmatmul.bf16.gmra.mxu0 %v2546
      %v2680 = vpop.f32.mrf.mxu0
      %v2681 = vadd.f32 0.0, %v2680
      %v2682 = vpop.f32.mrf.mxu0
      %v2683 = vadd.f32 0.0, %v2682
      %2684 = vmatmul.bf16.gmra.mxu0 %v2547
      %v2685 = vpop.f32.mrf.mxu0
      %v2686 = vadd.f32 0.0, %v2685
      %v2687 = vpop.f32.mrf.mxu0
      %v2688 = vadd.f32 0.0, %v2687
      %2689 = vmatmul.bf16.gmra.mxu0 %v2548
      %v2690 = vpop.f32.mrf.mxu0
      %v2691 = vadd.f32 0.0, %v2690
      %v2692 = vpop.f32.mrf.mxu0
      %v2693 = vadd.f32 0.0, %v2692
      %2694 = vmatmul.bf16.gmra.mxu0 %v2549
      %v2695 = vpop.f32.mrf.mxu0
      %v2696 = vadd.f32 0.0, %v2695
      %v2697 = vpop.f32.mrf.mxu0
      %v2698 = vadd.f32 0.0, %v2697
      %2699 = vmatmul.bf16.gmra.mxu0 %v2550
      %v2700 = vpop.f32.mrf.mxu0
      %v2701 = vadd.f32 0.0, %v2700
      %v2702 = vpop.f32.mrf.mxu0
      %v2703 = vadd.f32 0.0, %v2702
      %2704 = vdwg.mxu0
      %v2705 = vadd.f32 %v2343, %v2626
      %v2706 = vadd.f32 %v2344, %v2628
      %v2707 = vadd.f32 %v2345, %v2631
      %v2708 = vadd.f32 %v2346, %v2633
      %v2709 = vadd.f32 %v2347, %v2636
      %v2710 = vadd.f32 %v2348, %v2638
      %v2711 = vadd.f32 %v2349, %v2641
      %v2712 = vadd.f32 %v2350, %v2643
      %v2713 = vadd.f32 %v2351, %v2646
      %v2714 = vadd.f32 %v2352, %v2648
      %v2715 = vadd.f32 %v2353, %v2651
      %v2716 = vadd.f32 %v2354, %v2653
      %v2717 = vadd.f32 %v2355, %v2656
      %v2718 = vadd.f32 %v2356, %v2658
      %v2719 = vadd.f32 %v2357, %v2661
      %v2720 = vadd.f32 %v2358, %v2663
      %v2721 = vadd.f32 %v2359, %v2666
      %v2722 = vadd.f32 %v2360, %v2668
      %v2723 = vadd.f32 %v2361, %v2671
      %v2724 = vadd.f32 %v2362, %v2673
      %v2725 = vadd.f32 %v2363, %v2676
      %v2726 = vadd.f32 %v2364, %v2678
      %v2727 = vadd.f32 %v2365, %v2681
      %v2728 = vadd.f32 %v2366, %v2683
      %v2729 = vadd.f32 %v2367, %v2686
      %v2730 = vadd.f32 %v2368, %v2688
      %v2731 = vadd.f32 %v2369, %v2691
      %v2732 = vadd.f32 %v2370, %v2693
      %v2733 = vadd.f32 %v2371, %v2696
      %v2734 = vadd.f32 %v2372, %v2698
      %v2735 = vadd.f32 %v2373, %v2701
      %v2736 = vadd.f32 %v2374, %v2703
      %2737 = vset.pattern.permute.xlu0 6
      %2738 = vperm.xlu0 %2737, %v434
      %v2739 = vpop.permute.xlu0 %2738
      %2741 = vset.pattern.permute.xlu0 6
      %2742 = vperm.xlu0 %2741, %v435
      %v2743 = vpop.permute.xlu0 %2742
      %2745 = vset.pattern.permute.xlu0 6
      %2746 = vperm.xlu0 %2745, %v436
      %v2747 = vpop.permute.xlu0 %2746
      %2749 = vset.pattern.permute.xlu0 6
      %2750 = vperm.xlu0 %2749, %v437
      %v2751 = vpop.permute.xlu0 %2750
      %2753 = vset.pattern.permute.xlu0 6
      %2754 = vperm.xlu0 %2753, %v438
      %v2755 = vpop.permute.xlu0 %2754
      %2757 = vset.pattern.permute.xlu0 6
      %2758 = vperm.xlu0 %2757, %v439
      %v2759 = vpop.permute.xlu0 %2758
      %2761 = vset.pattern.permute.xlu0 6
      %2762 = vperm.xlu0 %2761, %v440
      %v2763 = vpop.permute.xlu0 %2762
      %2765 = vset.pattern.permute.xlu0 6
      %2766 = vperm.xlu0 %2765, %v441
      %v2767 = vpop.permute.xlu0 %2766
      %2769 = vset.pattern.permute.xlu0 6
      %2770 = vperm.xlu0 %2769, %v442
      %v2771 = vpop.permute.xlu0 %2770
      %2773 = vset.pattern.permute.xlu0 6
      %2774 = vperm.xlu0 %2773, %v443
      %v2775 = vpop.permute.xlu0 %2774
      %2777 = vset.pattern.permute.xlu0 6
      %2778 = vperm.xlu0 %2777, %v444
      %v2779 = vpop.permute.xlu0 %2778
      %2781 = vset.pattern.permute.xlu0 6
      %2782 = vperm.xlu0 %2781, %v445
      %v2783 = vpop.permute.xlu0 %2782
      %2785 = vset.pattern.permute.xlu0 6
      %2786 = vperm.xlu0 %2785, %v446
      %v2787 = vpop.permute.xlu0 %2786
      %2789 = vset.pattern.permute.xlu0 6
      %2790 = vperm.xlu0 %2789, %v447
      %v2791 = vpop.permute.xlu0 %2790
      %2793 = vset.pattern.permute.xlu0 6
      %2794 = vperm.xlu0 %2793, %v448
      %v2795 = vpop.permute.xlu0 %2794
      %2797 = vset.pattern.permute.xlu0 6
      %2798 = vperm.xlu0 %2797, %v449
      %v2799 = vpop.permute.xlu0 %2798
      %2801 = vset.pattern.permute.xlu0 6
      %2802 = vperm.xlu0 %2801, %v450
      %v2803 = vpop.permute.xlu0 %2802
      %2805 = vset.pattern.permute.xlu0 6
      %2806 = vperm.xlu0 %2805, %v451
      %v2807 = vpop.permute.xlu0 %2806
      %2809 = vset.pattern.permute.xlu0 6
      %2810 = vperm.xlu0 %2809, %v452
      %v2811 = vpop.permute.xlu0 %2810
      %2813 = vset.pattern.permute.xlu0 6
      %2814 = vperm.xlu0 %2813, %v453
      %v2815 = vpop.permute.xlu0 %2814
      %2817 = vset.pattern.permute.xlu0 6
      %2818 = vperm.xlu0 %2817, %v454
      %v2819 = vpop.permute.xlu0 %2818
      %2821 = vset.pattern.permute.xlu0 6
      %2822 = vperm.xlu0 %2821, %v455
      %v2823 = vpop.permute.xlu0 %2822
      %2825 = vset.pattern.permute.xlu0 6
      %2826 = vperm.xlu0 %2825, %v456
      %v2827 = vpop.permute.xlu0 %2826
      %2829 = vset.pattern.permute.xlu0 6
      %2830 = vperm.xlu0 %2829, %v457
      %v2831 = vpop.permute.xlu0 %2830
      %2833 = vset.pattern.permute.xlu0 6
      %2834 = vperm.xlu0 %2833, %v458
      %v2835 = vpop.permute.xlu0 %2834
      %2837 = vset.pattern.permute.xlu0 6
      %2838 = vperm.xlu0 %2837, %v459
      %v2839 = vpop.permute.xlu0 %2838
      %2841 = vset.pattern.permute.xlu0 6
      %2842 = vperm.xlu0 %2841, %v460
      %v2843 = vpop.permute.xlu0 %2842
      %2845 = vset.pattern.permute.xlu0 6
      %2846 = vperm.xlu0 %2845, %v461
      %v2847 = vpop.permute.xlu0 %2846
      %2849 = vset.pattern.permute.xlu0 6
      %2850 = vperm.xlu0 %2849, %v462
      %v2851 = vpop.permute.xlu0 %2850
      %2853 = vset.pattern.permute.xlu0 6
      %2854 = vperm.xlu0 %2853, %v463
      %v2855 = vpop.permute.xlu0 %2854
      %2857 = vset.pattern.permute.xlu0 6
      %2858 = vperm.xlu0 %2857, %v464
      %v2859 = vpop.permute.xlu0 %2858
      %2861 = vset.pattern.permute.xlu0 6
      %2862 = vperm.xlu0 %2861, %v465
      %v2863 = vpop.permute.xlu0 %2862
      %v2865 = vmul.f32 %v530, %v2739
      %v2866 = vmul.f32 %v529, %v2743
      %v2867 = vmul.f32 %v528, %v2747
      %v2868 = vmul.f32 %v527, %v2751
      %v2869 = vmul.f32 %v526, %v2755
      %v2870 = vmul.f32 %v525, %v2759
      %v2871 = vmul.f32 %v524, %v2763
      %v2872 = vmul.f32 %v523, %v2767
      %v2873 = vmul.f32 %v522, %v2771
      %v2874 = vmul.f32 %v521, %v2775
      %v2875 = vmul.f32 %v520, %v2779
      %v2876 = vmul.f32 %v519, %v2783
      %v2877 = vmul.f32 %v518, %v2787
      %v2878 = vmul.f32 %v517, %v2791
      %v2879 = vmul.f32 %v516, %v2795
      %v2880 = vmul.f32 %v515, %v2799
      %v2881 = vmul.f32 %v514, %v2803
      %v2882 = vmul.f32 %v513, %v2807
      %v2883 = vmul.f32 %v512, %v2811
      %v2884 = vmul.f32 %v511, %v2815
      %v2885 = vmul.f32 %v510, %v2819
      %v2886 = vmul.f32 %v509, %v2823
      %v2887 = vmul.f32 %v508, %v2827
      %v2888 = vmul.f32 %v507, %v2831
      %v2889 = vmul.f32 %v506, %v2835
      %v2890 = vmul.f32 %v505, %v2839
      %v2891 = vmul.f32 %v504, %v2843
      %v2892 = vmul.f32 %v503, %v2847
      %v2893 = vmul.f32 %v502, %v2851
      %v2894 = vmul.f32 %v501, %v2855
      %v2895 = vmul.f32 %v532, %v2859
      %v2896 = vmul.f32 %v531, %v2863
      %v2897 = vpack.c.bf16 %v2866, %v2865
      %v2898 = vpack.c.bf16 %v2868, %v2867
      %v2899 = vpack.c.bf16 %v2870, %v2869
      %v2900 = vpack.c.bf16 %v2872, %v2871
      %v2901 = vpack.c.bf16 %v2874, %v2873
      %v2902 = vpack.c.bf16 %v2876, %v2875
      %v2903 = vpack.c.bf16 %v2878, %v2877
      %v2904 = vpack.c.bf16 %v2880, %v2879
      %v2905 = vpack.c.bf16 %v2882, %v2881
      %v2906 = vpack.c.bf16 %v2884, %v2883
      %v2907 = vpack.c.bf16 %v2886, %v2885
      %v2908 = vpack.c.bf16 %v2888, %v2887
      %v2909 = vpack.c.bf16 %v2890, %v2889
      %v2910 = vpack.c.bf16 %v2892, %v2891
      %v2911 = vpack.c.bf16 %v2894, %v2893
      %v2912 = vpack.c.bf16 %v2896, %v2895
      %s2913 = scalar_lea.vmem %s4, 384
      %v2914 = vld [vmem:[%s2913] sm:$0xf]
      %v2915 = vld [vmem:[%s2913 + $0x4] sm:$0xf]
      %v2916 = vld [vmem:[%s2913 + $0x8] sm:$0xf]
      %v2917 = vld [vmem:[%s2913 + $0xc] sm:$0xf]
      %v2918 = vld [vmem:[%s2913 + $0x10] sm:$0xf]
      %v2919 = vld [vmem:[%s2913 + $0x14] sm:$0xf]
      %v2920 = vld [vmem:[%s2913 + $0x18] sm:$0xf]
      %v2921 = vld [vmem:[%s2913 + $0x1c] sm:$0xf]
      %v2922 = vld [vmem:[%s2913 + $0x20] sm:$0xf]
      %v2923 = vld [vmem:[%s2913 + $0x24] sm:$0xf]
      %v2924 = vld [vmem:[%s2913 + $0x28] sm:$0xf]
      %v2925 = vld [vmem:[%s2913 + $0x2c] sm:$0xf]
      %v2926 = vld [vmem:[%s2913 + $0x30] sm:$0xf]
      %v2927 = vld [vmem:[%s2913 + $0x34] sm:$0xf]
      %v2928 = vld [vmem:[%s2913 + $0x38] sm:$0xf]
      %v2929 = vld [vmem:[%s2913 + $0x3c] sm:$0xf]
      %v2946 = vunpack.c.l.b16 %v2914
      %v2947 = vunpack.c.l.b16 %v2915
      %v2948 = vunpack.c.l.b16 %v2916
      %v2949 = vunpack.c.l.b16 %v2917
      %v2950 = vunpack.c.l.b16 %v2918
      %v2951 = vunpack.c.l.b16 %v2919
      %v2952 = vunpack.c.l.b16 %v2920
      %v2953 = vunpack.c.l.b16 %v2921
      %v2954 = vunpack.c.l.b16 %v2922
      %v2955 = vunpack.c.l.b16 %v2923
      %v2956 = vunpack.c.l.b16 %v2924
      %v2957 = vunpack.c.l.b16 %v2925
      %v2958 = vunpack.c.l.b16 %v2926
      %v2959 = vunpack.c.l.b16 %v2927
      %v2960 = vunpack.c.l.b16 %v2928
      %v2961 = vunpack.c.l.b16 %v2929
      %v2962 = vpack.c.b16 %v2947, %v2946
      %v2963 = vpack.c.b16 %v2949, %v2948
      %v2964 = vpack.c.b16 %v2951, %v2950
      %v2965 = vpack.c.b16 %v2953, %v2952
      %v2966 = vpack.c.b16 %v2955, %v2954
      %v2967 = vpack.c.b16 %v2957, %v2956
      %v2968 = vpack.c.b16 %v2959, %v2958
      %v2969 = vpack.c.b16 %v2961, %v2960
      %2978 = vmatpush.bf16.msra.mxu0 %v2969
      %2979 = vmatpush.bf16.msra.mxu0 %v2968
      %2980 = vmatpush.bf16.msra.mxu0 %v2967
      %2981 = vmatpush.bf16.msra.mxu0 %v2966
      %2982 = vmatpush.bf16.msra.mxu0 %v2965
      %2983 = vmatpush.bf16.msra.mxu0 %v2964
      %2984 = vmatpush.bf16.msra.mxu0 %v2963
      %2985 = vmatpush.bf16.msra.mxu0 %v2962
      %2986 = vmatmul.bf16.gmra.mxu0 %v2897
      %v2987 = vpop.f32.mrf.mxu0
      %v2988 = vadd.f32 0.0, %v2987
      %v2989 = vpop.f32.mrf.mxu0
      %v2990 = vadd.f32 0.0, %v2989
      %2991 = vmatmul.bf16.gmra.mxu0 %v2898
      %v2992 = vpop.f32.mrf.mxu0
      %v2993 = vadd.f32 0.0, %v2992
      %v2994 = vpop.f32.mrf.mxu0
      %v2995 = vadd.f32 0.0, %v2994
      %2996 = vmatmul.bf16.gmra.mxu0 %v2899
      %v2997 = vpop.f32.mrf.mxu0
      %v2998 = vadd.f32 0.0, %v2997
      %v2999 = vpop.f32.mrf.mxu0
      %v3000 = vadd.f32 0.0, %v2999
      %3001 = vmatmul.bf16.gmra.mxu0 %v2900
      %v3002 = vpop.f32.mrf.mxu0
      %v3003 = vadd.f32 0.0, %v3002
      %v3004 = vpop.f32.mrf.mxu0
      %v3005 = vadd.f32 0.0, %v3004
      %3006 = vmatmul.bf16.gmra.mxu0 %v2901
      %v3007 = vpop.f32.mrf.mxu0
      %v3008 = vadd.f32 0.0, %v3007
      %v3009 = vpop.f32.mrf.mxu0
      %v3010 = vadd.f32 0.0, %v3009
      %3011 = vmatmul.bf16.gmra.mxu0 %v2902
      %v3012 = vpop.f32.mrf.mxu0
      %v3013 = vadd.f32 0.0, %v3012
      %v3014 = vpop.f32.mrf.mxu0
      %v3015 = vadd.f32 0.0, %v3014
      %3016 = vmatmul.bf16.gmra.mxu0 %v2903
      %v3017 = vpop.f32.mrf.mxu0
      %v3018 = vadd.f32 0.0, %v3017
      %v3019 = vpop.f32.mrf.mxu0
      %v3020 = vadd.f32 0.0, %v3019
      %3021 = vmatmul.bf16.gmra.mxu0 %v2904
      %v3022 = vpop.f32.mrf.mxu0
      %v3023 = vadd.f32 0.0, %v3022
      %v3024 = vpop.f32.mrf.mxu0
      %v3025 = vadd.f32 0.0, %v3024
      %3026 = vmatmul.bf16.gmra.mxu0 %v2905
      %v3027 = vpop.f32.mrf.mxu0
      %v3028 = vadd.f32 0.0, %v3027
      %v3029 = vpop.f32.mrf.mxu0
      %v3030 = vadd.f32 0.0, %v3029
      %3031 = vmatmul.bf16.gmra.mxu0 %v2906
      %v3032 = vpop.f32.mrf.mxu0
      %v3033 = vadd.f32 0.0, %v3032
      %v3034 = vpop.f32.mrf.mxu0
      %v3035 = vadd.f32 0.0, %v3034
      %3036 = vmatmul.bf16.gmra.mxu0 %v2907
      %v3037 = vpop.f32.mrf.mxu0
      %v3038 = vadd.f32 0.0, %v3037
      %v3039 = vpop.f32.mrf.mxu0
      %v3040 = vadd.f32 0.0, %v3039
      %3041 = vmatmul.bf16.gmra.mxu0 %v2908
      %v3042 = vpop.f32.mrf.mxu0
      %v3043 = vadd.f32 0.0, %v3042
      %v3044 = vpop.f32.mrf.mxu0
      %v3045 = vadd.f32 0.0, %v3044
      %3046 = vmatmul.bf16.gmra.mxu0 %v2909
      %v3047 = vpop.f32.mrf.mxu0
      %v3048 = vadd.f32 0.0, %v3047
      %v3049 = vpop.f32.mrf.mxu0
      %v3050 = vadd.f32 0.0, %v3049
      %3051 = vmatmul.bf16.gmra.mxu0 %v2910
      %v3052 = vpop.f32.mrf.mxu0
      %v3053 = vadd.f32 0.0, %v3052
      %v3054 = vpop.f32.mrf.mxu0
      %v3055 = vadd.f32 0.0, %v3054
      %3056 = vmatmul.bf16.gmra.mxu0 %v2911
      %v3057 = vpop.f32.mrf.mxu0
      %v3058 = vadd.f32 0.0, %v3057
      %v3059 = vpop.f32.mrf.mxu0
      %v3060 = vadd.f32 0.0, %v3059
      %3061 = vmatmul.bf16.gmra.mxu0 %v2912
      %v3062 = vpop.f32.mrf.mxu0
      %v3063 = vadd.f32 0.0, %v3062
      %v3064 = vpop.f32.mrf.mxu0
      %v3065 = vadd.f32 0.0, %v3064
      %3066 = vdwg.mxu0
      %v3067 = vadd.f32 %v2705, %v2988
      %v3068 = vadd.f32 %v2706, %v2990
      %v3069 = vadd.f32 %v2707, %v2993
      %v3070 = vadd.f32 %v2708, %v2995
      %v3071 = vadd.f32 %v2709, %v2998
      %v3072 = vadd.f32 %v2710, %v3000
      %v3073 = vadd.f32 %v2711, %v3003
      %v3074 = vadd.f32 %v2712, %v3005
      %v3075 = vadd.f32 %v2713, %v3008
      %v3076 = vadd.f32 %v2714, %v3010
      %v3077 = vadd.f32 %v2715, %v3013
      %v3078 = vadd.f32 %v2716, %v3015
      %v3079 = vadd.f32 %v2717, %v3018
      %v3080 = vadd.f32 %v2718, %v3020
      %v3081 = vadd.f32 %v2719, %v3023
      %v3082 = vadd.f32 %v2720, %v3025
      %v3083 = vadd.f32 %v2721, %v3028
      %v3084 = vadd.f32 %v2722, %v3030
      %v3085 = vadd.f32 %v2723, %v3033
      %v3086 = vadd.f32 %v2724, %v3035
      %v3087 = vadd.f32 %v2725, %v3038
      %v3088 = vadd.f32 %v2726, %v3040
      %v3089 = vadd.f32 %v2727, %v3043
      %v3090 = vadd.f32 %v2728, %v3045
      %v3091 = vadd.f32 %v2729, %v3048
      %v3092 = vadd.f32 %v2730, %v3050
      %v3093 = vadd.f32 %v2731, %v3053
      %v3094 = vadd.f32 %v2732, %v3055
      %v3095 = vadd.f32 %v2733, %v3058
      %v3096 = vadd.f32 %v2734, %v3060
      %v3097 = vadd.f32 %v2735, %v3063
      %v3098 = vadd.f32 %v2736, %v3065
      %3099 = vset.pattern.permute.xlu0 7
      %3100 = vperm.xlu0 %3099, %v434
      %v3101 = vpop.permute.xlu0 %3100
      %3103 = vset.pattern.permute.xlu0 7
      %3104 = vperm.xlu0 %3103, %v435
      %v3105 = vpop.permute.xlu0 %3104
      %3107 = vset.pattern.permute.xlu0 7
      %3108 = vperm.xlu0 %3107, %v436
      %v3109 = vpop.permute.xlu0 %3108
      %3111 = vset.pattern.permute.xlu0 7
      %3112 = vperm.xlu0 %3111, %v437
      %v3113 = vpop.permute.xlu0 %3112
      %3115 = vset.pattern.permute.xlu0 7
      %3116 = vperm.xlu0 %3115, %v438
      %v3117 = vpop.permute.xlu0 %3116
      %3119 = vset.pattern.permute.xlu0 7
      %3120 = vperm.xlu0 %3119, %v439
      %v3121 = vpop.permute.xlu0 %3120
      %3123 = vset.pattern.permute.xlu0 7
      %3124 = vperm.xlu0 %3123, %v440
      %v3125 = vpop.permute.xlu0 %3124
      %3127 = vset.pattern.permute.xlu0 7
      %3128 = vperm.xlu0 %3127, %v441
      %v3129 = vpop.permute.xlu0 %3128
      %3131 = vset.pattern.permute.xlu0 7
      %3132 = vperm.xlu0 %3131, %v442
      %v3133 = vpop.permute.xlu0 %3132
      %3135 = vset.pattern.permute.xlu0 7
      %3136 = vperm.xlu0 %3135, %v443
      %v3137 = vpop.permute.xlu0 %3136
      %3139 = vset.pattern.permute.xlu0 7
      %3140 = vperm.xlu0 %3139, %v444
      %v3141 = vpop.permute.xlu0 %3140
      %3143 = vset.pattern.permute.xlu0 7
      %3144 = vperm.xlu0 %3143, %v445
      %v3145 = vpop.permute.xlu0 %3144
      %3147 = vset.pattern.permute.xlu0 7
      %3148 = vperm.xlu0 %3147, %v446
      %v3149 = vpop.permute.xlu0 %3148
      %3151 = vset.pattern.permute.xlu0 7
      %3152 = vperm.xlu0 %3151, %v447
      %v3153 = vpop.permute.xlu0 %3152
      %3155 = vset.pattern.permute.xlu0 7
      %3156 = vperm.xlu0 %3155, %v448
      %v3157 = vpop.permute.xlu0 %3156
      %3159 = vset.pattern.permute.xlu0 7
      %3160 = vperm.xlu0 %3159, %v449
      %v3161 = vpop.permute.xlu0 %3160
      %3163 = vset.pattern.permute.xlu0 7
      %3164 = vperm.xlu0 %3163, %v450
      %v3165 = vpop.permute.xlu0 %3164
      %3167 = vset.pattern.permute.xlu0 7
      %3168 = vperm.xlu0 %3167, %v451
      %v3169 = vpop.permute.xlu0 %3168
      %3171 = vset.pattern.permute.xlu0 7
      %3172 = vperm.xlu0 %3171, %v452
      %v3173 = vpop.permute.xlu0 %3172
      %3175 = vset.pattern.permute.xlu0 7
      %3176 = vperm.xlu0 %3175, %v453
      %v3177 = vpop.permute.xlu0 %3176
      %3179 = vset.pattern.permute.xlu0 7
      %3180 = vperm.xlu0 %3179, %v454
      %v3181 = vpop.permute.xlu0 %3180
      %3183 = vset.pattern.permute.xlu0 7
      %3184 = vperm.xlu0 %3183, %v455
      %v3185 = vpop.permute.xlu0 %3184
      %3187 = vset.pattern.permute.xlu0 7
      %3188 = vperm.xlu0 %3187, %v456
      %v3189 = vpop.permute.xlu0 %3188
      %3191 = vset.pattern.permute.xlu0 7
      %3192 = vperm.xlu0 %3191, %v457
      %v3193 = vpop.permute.xlu0 %3192
      %3195 = vset.pattern.permute.xlu0 7
      %3196 = vperm.xlu0 %3195, %v458
      %v3197 = vpop.permute.xlu0 %3196
      %3199 = vset.pattern.permute.xlu0 7
      %3200 = vperm.xlu0 %3199, %v459
      %v3201 = vpop.permute.xlu0 %3200
      %3203 = vset.pattern.permute.xlu0 7
      %3204 = vperm.xlu0 %3203, %v460
      %v3205 = vpop.permute.xlu0 %3204
      %3207 = vset.pattern.permute.xlu0 7
      %3208 = vperm.xlu0 %3207, %v461
      %v3209 = vpop.permute.xlu0 %3208
      %3211 = vset.pattern.permute.xlu0 7
      %3212 = vperm.xlu0 %3211, %v462
      %v3213 = vpop.permute.xlu0 %3212
      %3215 = vset.pattern.permute.xlu0 7
      %3216 = vperm.xlu0 %3215, %v463
      %v3217 = vpop.permute.xlu0 %3216
      %3219 = vset.pattern.permute.xlu0 7
      %3220 = vperm.xlu0 %3219, %v464
      %v3221 = vpop.permute.xlu0 %3220
      %3223 = vset.pattern.permute.xlu0 7
      %3224 = vperm.xlu0 %3223, %v465
      %v3225 = vpop.permute.xlu0 %3224
      %v3227 = vmul.f32 %v404, %v3101
      %v3228 = vmul.f32 %v405, %v3105
      %v3229 = vmul.f32 %v406, %v3109
      %v3230 = vmul.f32 %v407, %v3113
      %v3231 = vmul.f32 %v408, %v3117
      %v3232 = vmul.f32 %v409, %v3121
      %v3233 = vmul.f32 %v410, %v3125
      %v3234 = vmul.f32 %v411, %v3129
      %v3235 = vmul.f32 %v412, %v3133
      %v3236 = vmul.f32 %v413, %v3137
      %v3237 = vmul.f32 %v414, %v3141
      %v3238 = vmul.f32 %v415, %v3145
      %v3239 = vmul.f32 %v416, %v3149
      %v3240 = vmul.f32 %v417, %v3153
      %v3241 = vmul.f32 %v418, %v3157
      %v3242 = vmul.f32 %v419, %v3161
      %v3243 = vmul.f32 %v420, %v3165
      %v3244 = vmul.f32 %v421, %v3169
      %v3245 = vmul.f32 %v422, %v3173
      %v3246 = vmul.f32 %v423, %v3177
      %v3247 = vmul.f32 %v424, %v3181
      %v3248 = vmul.f32 %v425, %v3185
      %v3249 = vmul.f32 %v426, %v3189
      %v3250 = vmul.f32 %v427, %v3193
      %v3251 = vmul.f32 %v428, %v3197
      %v3252 = vmul.f32 %v429, %v3201
      %v3253 = vmul.f32 %v430, %v3205
      %v3254 = vmul.f32 %v431, %v3209
      %v3255 = vmul.f32 %v432, %v3213
      %v3256 = vmul.f32 %v433, %v3217
      %v3257 = vmul.f32 %v402, %v3221
      %v3258 = vmul.f32 %v403, %v3225
      %v3259 = vpack.c.bf16 %v3228, %v3227
      %v3260 = vpack.c.bf16 %v3230, %v3229
      %v3261 = vpack.c.bf16 %v3232, %v3231
      %v3262 = vpack.c.bf16 %v3234, %v3233
      %v3263 = vpack.c.bf16 %v3236, %v3235
      %v3264 = vpack.c.bf16 %v3238, %v3237
      %v3265 = vpack.c.bf16 %v3240, %v3239
      %v3266 = vpack.c.bf16 %v3242, %v3241
      %v3267 = vpack.c.bf16 %v3244, %v3243
      %v3268 = vpack.c.bf16 %v3246, %v3245
      %v3269 = vpack.c.bf16 %v3248, %v3247
      %v3270 = vpack.c.bf16 %v3250, %v3249
      %v3271 = vpack.c.bf16 %v3252, %v3251
      %v3272 = vpack.c.bf16 %v3254, %v3253
      %v3273 = vpack.c.bf16 %v3256, %v3255
      %v3274 = vpack.c.bf16 %v3258, %v3257
      %s3275 = scalar_lea.vmem %s4, 448
      %v3276 = vld [vmem:[%s3275] sm:$0xf]
      %v3277 = vld [vmem:[%s3275 + $0x4] sm:$0xf]
      %v3278 = vld [vmem:[%s3275 + $0x8] sm:$0xf]
      %v3279 = vld [vmem:[%s3275 + $0xc] sm:$0xf]
      %v3280 = vld [vmem:[%s3275 + $0x10] sm:$0xf]
      %v3281 = vld [vmem:[%s3275 + $0x14] sm:$0xf]
      %v3282 = vld [vmem:[%s3275 + $0x18] sm:$0xf]
      %v3283 = vld [vmem:[%s3275 + $0x1c] sm:$0xf]
      %v3284 = vld [vmem:[%s3275 + $0x20] sm:$0xf]
      %v3285 = vld [vmem:[%s3275 + $0x24] sm:$0xf]
      %v3286 = vld [vmem:[%s3275 + $0x28] sm:$0xf]
      %v3287 = vld [vmem:[%s3275 + $0x2c] sm:$0xf]
      %v3288 = vld [vmem:[%s3275 + $0x30] sm:$0xf]
      %v3289 = vld [vmem:[%s3275 + $0x34] sm:$0xf]
      %v3290 = vld [vmem:[%s3275 + $0x38] sm:$0xf]
      %v3291 = vld [vmem:[%s3275 + $0x3c] sm:$0xf]
      %v3308 = vunpack.c.l.b16 %v3276
      %v3309 = vunpack.c.l.b16 %v3277
      %v3310 = vunpack.c.l.b16 %v3278
      %v3311 = vunpack.c.l.b16 %v3279
      %v3312 = vunpack.c.l.b16 %v3280
      %v3313 = vunpack.c.l.b16 %v3281
      %v3314 = vunpack.c.l.b16 %v3282
      %v3315 = vunpack.c.l.b16 %v3283
      %v3316 = vunpack.c.l.b16 %v3284
      %v3317 = vunpack.c.l.b16 %v3285
      %v3318 = vunpack.c.l.b16 %v3286
      %v3319 = vunpack.c.l.b16 %v3287
      %v3320 = vunpack.c.l.b16 %v3288
      %v3321 = vunpack.c.l.b16 %v3289
      %v3322 = vunpack.c.l.b16 %v3290
      %v3323 = vunpack.c.l.b16 %v3291
      %v3324 = vpack.c.b16 %v3309, %v3308
      %v3325 = vpack.c.b16 %v3311, %v3310
      %v3326 = vpack.c.b16 %v3313, %v3312
      %v3327 = vpack.c.b16 %v3315, %v3314
      %v3328 = vpack.c.b16 %v3317, %v3316
      %v3329 = vpack.c.b16 %v3319, %v3318
      %v3330 = vpack.c.b16 %v3321, %v3320
      %v3331 = vpack.c.b16 %v3323, %v3322
      %3340 = vmatpush.bf16.msra.mxu0 %v3331
      %3341 = vmatpush.bf16.msra.mxu0 %v3330
      %3342 = vmatpush.bf16.msra.mxu0 %v3329
      %3343 = vmatpush.bf16.msra.mxu0 %v3328
      %3344 = vmatpush.bf16.msra.mxu0 %v3327
      %3345 = vmatpush.bf16.msra.mxu0 %v3326
      %3346 = vmatpush.bf16.msra.mxu0 %v3325
      %3347 = vmatpush.bf16.msra.mxu0 %v3324
      %3348 = vmatmul.bf16.gmra.mxu0 %v3259
      %v3349 = vpop.f32.mrf.mxu0
      %v3350 = vadd.f32 0.0, %v3349
      %v3351 = vpop.f32.mrf.mxu0
      %v3352 = vadd.f32 0.0, %v3351
      %3353 = vmatmul.bf16.gmra.mxu0 %v3260
      %v3354 = vpop.f32.mrf.mxu0
      %v3355 = vadd.f32 0.0, %v3354
      %v3356 = vpop.f32.mrf.mxu0
      %v3357 = vadd.f32 0.0, %v3356
      %3358 = vmatmul.bf16.gmra.mxu0 %v3261
      %v3359 = vpop.f32.mrf.mxu0
      %v3360 = vadd.f32 0.0, %v3359
      %v3361 = vpop.f32.mrf.mxu0
      %v3362 = vadd.f32 0.0, %v3361
      %3363 = vmatmul.bf16.gmra.mxu0 %v3262
      %v3364 = vpop.f32.mrf.mxu0
      %v3365 = vadd.f32 0.0, %v3364
      %v3366 = vpop.f32.mrf.mxu0
      %v3367 = vadd.f32 0.0, %v3366
      %3368 = vmatmul.bf16.gmra.mxu0 %v3263
      %v3369 = vpop.f32.mrf.mxu0
      %v3370 = vadd.f32 0.0, %v3369
      %v3371 = vpop.f32.mrf.mxu0
      %v3372 = vadd.f32 0.0, %v3371
      %3373 = vmatmul.bf16.gmra.mxu0 %v3264
      %v3374 = vpop.f32.mrf.mxu0
      %v3375 = vadd.f32 0.0, %v3374
      %v3376 = vpop.f32.mrf.mxu0
      %v3377 = vadd.f32 0.0, %v3376
      %3378 = vmatmul.bf16.gmra.mxu0 %v3265
      %v3379 = vpop.f32.mrf.mxu0
      %v3380 = vadd.f32 0.0, %v3379
      %v3381 = vpop.f32.mrf.mxu0
      %v3382 = vadd.f32 0.0, %v3381
      %3383 = vmatmul.bf16.gmra.mxu0 %v3266
      %v3384 = vpop.f32.mrf.mxu0
      %v3385 = vadd.f32 0.0, %v3384
      %v3386 = vpop.f32.mrf.mxu0
      %v3387 = vadd.f32 0.0, %v3386
      %3388 = vmatmul.bf16.gmra.mxu0 %v3267
      %v3389 = vpop.f32.mrf.mxu0
      %v3390 = vadd.f32 0.0, %v3389
      %v3391 = vpop.f32.mrf.mxu0
      %v3392 = vadd.f32 0.0, %v3391
      %3393 = vmatmul.bf16.gmra.mxu0 %v3268
      %v3394 = vpop.f32.mrf.mxu0
      %v3395 = vadd.f32 0.0, %v3394
      %v3396 = vpop.f32.mrf.mxu0
      %v3397 = vadd.f32 0.0, %v3396
      %3398 = vmatmul.bf16.gmra.mxu0 %v3269
      %v3399 = vpop.f32.mrf.mxu0
      %v3400 = vadd.f32 0.0, %v3399
      %v3401 = vpop.f32.mrf.mxu0
      %v3402 = vadd.f32 0.0, %v3401
      %3403 = vmatmul.bf16.gmra.mxu0 %v3270
      %v3404 = vpop.f32.mrf.mxu0
      %v3405 = vadd.f32 0.0, %v3404
      %v3406 = vpop.f32.mrf.mxu0
      %v3407 = vadd.f32 0.0, %v3406
      %3408 = vmatmul.bf16.gmra.mxu0 %v3271
      %v3409 = vpop.f32.mrf.mxu0
      %v3410 = vadd.f32 0.0, %v3409
      %v3411 = vpop.f32.mrf.mxu0
      %v3412 = vadd.f32 0.0, %v3411
      %3413 = vmatmul.bf16.gmra.mxu0 %v3272
      %v3414 = vpop.f32.mrf.mxu0
      %v3415 = vadd.f32 0.0, %v3414
      %v3416 = vpop.f32.mrf.mxu0
      %v3417 = vadd.f32 0.0, %v3416
      %3418 = vmatmul.bf16.gmra.mxu0 %v3273
      %v3419 = vpop.f32.mrf.mxu0
      %v3420 = vadd.f32 0.0, %v3419
      %v3421 = vpop.f32.mrf.mxu0
      %v3422 = vadd.f32 0.0, %v3421
      %3423 = vmatmul.bf16.gmra.mxu0 %v3274
      %v3424 = vpop.f32.mrf.mxu0
      %v3425 = vadd.f32 0.0, %v3424
      %v3426 = vpop.f32.mrf.mxu0
      %v3427 = vadd.f32 0.0, %v3426
      %3428 = vdwg.mxu0
      %v3429 = vadd.f32 %v3067, %v3350
      %v3430 = vadd.f32 %v3068, %v3352
      %v3431 = vadd.f32 %v3069, %v3355
      %v3432 = vadd.f32 %v3070, %v3357
      %v3433 = vadd.f32 %v3071, %v3360
      %v3434 = vadd.f32 %v3072, %v3362
      %v3435 = vadd.f32 %v3073, %v3365
      %v3436 = vadd.f32 %v3074, %v3367
      %v3437 = vadd.f32 %v3075, %v3370
      %v3438 = vadd.f32 %v3076, %v3372
      %v3439 = vadd.f32 %v3077, %v3375
      %v3440 = vadd.f32 %v3078, %v3377
      %v3441 = vadd.f32 %v3079, %v3380
      %v3442 = vadd.f32 %v3080, %v3382
      %v3443 = vadd.f32 %v3081, %v3385
      %v3444 = vadd.f32 %v3082, %v3387
      %v3445 = vadd.f32 %v3083, %v3390
      %v3446 = vadd.f32 %v3084, %v3392
      %v3447 = vadd.f32 %v3085, %v3395
      %v3448 = vadd.f32 %v3086, %v3397
      %v3449 = vadd.f32 %v3087, %v3400
      %v3450 = vadd.f32 %v3088, %v3402
      %v3451 = vadd.f32 %v3089, %v3405
      %v3452 = vadd.f32 %v3090, %v3407
      %v3453 = vadd.f32 %v3091, %v3410
      %v3454 = vadd.f32 %v3092, %v3412
      %v3455 = vadd.f32 %v3093, %v3415
      %v3456 = vadd.f32 %v3094, %v3417
      %v3457 = vadd.f32 %v3095, %v3420
      %v3458 = vadd.f32 %v3096, %v3422
      %v3459 = vadd.f32 %v3097, %v3425
      %v3460 = vadd.f32 %v3098, %v3427
      %3461 = vset.pattern.permute.xlu0 8
      %3462 = vperm.xlu0 %3461, %v434
      %v3463 = vpop.permute.xlu0 %3462
      %3465 = vset.pattern.permute.xlu0 8
      %3466 = vperm.xlu0 %3465, %v435
      %v3467 = vpop.permute.xlu0 %3466
      %3469 = vset.pattern.permute.xlu0 8
      %3470 = vperm.xlu0 %3469, %v436
      %v3471 = vpop.permute.xlu0 %3470
      %3473 = vset.pattern.permute.xlu0 8
      %3474 = vperm.xlu0 %3473, %v437
      %v3475 = vpop.permute.xlu0 %3474
      %3477 = vset.pattern.permute.xlu0 8
      %3478 = vperm.xlu0 %3477, %v438
      %v3479 = vpop.permute.xlu0 %3478
      %3481 = vset.pattern.permute.xlu0 8
      %3482 = vperm.xlu0 %3481, %v439
      %v3483 = vpop.permute.xlu0 %3482
      %3485 = vset.pattern.permute.xlu0 8
      %3486 = vperm.xlu0 %3485, %v440
      %v3487 = vpop.permute.xlu0 %3486
      %3489 = vset.pattern.permute.xlu0 8
      %3490 = vperm.xlu0 %3489, %v441
      %v3491 = vpop.permute.xlu0 %3490
      %3493 = vset.pattern.permute.xlu0 8
      %3494 = vperm.xlu0 %3493, %v442
      %v3495 = vpop.permute.xlu0 %3494
      %3497 = vset.pattern.permute.xlu0 8
      %3498 = vperm.xlu0 %3497, %v443
      %v3499 = vpop.permute.xlu0 %3498
      %3501 = vset.pattern.permute.xlu0 8
      %3502 = vperm.xlu0 %3501, %v444
      %v3503 = vpop.permute.xlu0 %3502
      %3505 = vset.pattern.permute.xlu0 8
      %3506 = vperm.xlu0 %3505, %v445
      %v3507 = vpop.permute.xlu0 %3506
      %3509 = vset.pattern.permute.xlu0 8
      %3510 = vperm.xlu0 %3509, %v446
      %v3511 = vpop.permute.xlu0 %3510
      %3513 = vset.pattern.permute.xlu0 8
      %3514 = vperm.xlu0 %3513, %v447
      %v3515 = vpop.permute.xlu0 %3514
      %3517 = vset.pattern.permute.xlu0 8
      %3518 = vperm.xlu0 %3517, %v448
      %v3519 = vpop.permute.xlu0 %3518
      %3521 = vset.pattern.permute.xlu0 8
      %3522 = vperm.xlu0 %3521, %v449
      %v3523 = vpop.permute.xlu0 %3522
      %3525 = vset.pattern.permute.xlu0 8
      %3526 = vperm.xlu0 %3525, %v450
      %v3527 = vpop.permute.xlu0 %3526
      %3529 = vset.pattern.permute.xlu0 8
      %3530 = vperm.xlu0 %3529, %v451
      %v3531 = vpop.permute.xlu0 %3530
      %3533 = vset.pattern.permute.xlu0 8
      %3534 = vperm.xlu0 %3533, %v452
      %v3535 = vpop.permute.xlu0 %3534
      %3537 = vset.pattern.permute.xlu0 8
      %3538 = vperm.xlu0 %3537, %v453
      %v3539 = vpop.permute.xlu0 %3538
      %3541 = vset.pattern.permute.xlu0 8
      %3542 = vperm.xlu0 %3541, %v454
      %v3543 = vpop.permute.xlu0 %3542
      %3545 = vset.pattern.permute.xlu0 8
      %3546 = vperm.xlu0 %3545, %v455
      %v3547 = vpop.permute.xlu0 %3546
      %3549 = vset.pattern.permute.xlu0 8
      %3550 = vperm.xlu0 %3549, %v456
      %v3551 = vpop.permute.xlu0 %3550
      %3553 = vset.pattern.permute.xlu0 8
      %3554 = vperm.xlu0 %3553, %v457
      %v3555 = vpop.permute.xlu0 %3554
      %3557 = vset.pattern.permute.xlu0 8
      %3558 = vperm.xlu0 %3557, %v458
      %v3559 = vpop.permute.xlu0 %3558
      %3561 = vset.pattern.permute.xlu0 8
      %3562 = vperm.xlu0 %3561, %v459
      %v3563 = vpop.permute.xlu0 %3562
      %3565 = vset.pattern.permute.xlu0 8
      %3566 = vperm.xlu0 %3565, %v460
      %v3567 = vpop.permute.xlu0 %3566
      %3569 = vset.pattern.permute.xlu0 8
      %3570 = vperm.xlu0 %3569, %v461
      %v3571 = vpop.permute.xlu0 %3570
      %3573 = vset.pattern.permute.xlu0 8
      %3574 = vperm.xlu0 %3573, %v462
      %v3575 = vpop.permute.xlu0 %3574
      %3577 = vset.pattern.permute.xlu0 8
      %3578 = vperm.xlu0 %3577, %v463
      %v3579 = vpop.permute.xlu0 %3578
      %3581 = vset.pattern.permute.xlu0 8
      %3582 = vperm.xlu0 %3581, %v464
      %v3583 = vpop.permute.xlu0 %3582
      %3585 = vset.pattern.permute.xlu0 8
      %3586 = vperm.xlu0 %3585, %v465
      %v3587 = vpop.permute.xlu0 %3586
      %v3589 = vmul.f32 %v1285, %v3463
      %v3590 = vmul.f32 %v1284, %v3467
      %v3591 = vmul.f32 %v1283, %v3471
      %v3592 = vmul.f32 %v1282, %v3475
      %v3593 = vmul.f32 %v1281, %v3479
      %v3594 = vmul.f32 %v1280, %v3483
      %v3595 = vmul.f32 %v1279, %v3487
      %v3596 = vmul.f32 %v1278, %v3491
      %v3597 = vmul.f32 %v1277, %v3495
      %v3598 = vmul.f32 %v1276, %v3499
      %v3599 = vmul.f32 %v1275, %v3503
      %v3600 = vmul.f32 %v1274, %v3507
      %v3601 = vmul.f32 %v1273, %v3511
      %v3602 = vmul.f32 %v1272, %v3515
      %v3603 = vmul.f32 %v1271, %v3519
      %v3604 = vmul.f32 %v1270, %v3523
      %v3605 = vmul.f32 %v1269, %v3527
      %v3606 = vmul.f32 %v1268, %v3531
      %v3607 = vmul.f32 %v1267, %v3535
      %v3608 = vmul.f32 %v1266, %v3539
      %v3609 = vmul.f32 %v1265, %v3543
      %v3610 = vmul.f32 %v1264, %v3547
      %v3611 = vmul.f32 %v1263, %v3551
      %v3612 = vmul.f32 %v1262, %v3555
      %v3613 = vmul.f32 %v1261, %v3559
      %v3614 = vmul.f32 %v1260, %v3563
      %v3615 = vmul.f32 %v1259, %v3567
      %v3616 = vmul.f32 %v1258, %v3571
      %v3617 = vmul.f32 %v1257, %v3575
      %v3618 = vmul.f32 %v1288, %v3579
      %v3619 = vmul.f32 %v1287, %v3583
      %v3620 = vmul.f32 %v1286, %v3587
      %v3621 = vpack.c.bf16 %v3590, %v3589
      %v3622 = vpack.c.bf16 %v3592, %v3591
      %v3623 = vpack.c.bf16 %v3594, %v3593
      %v3624 = vpack.c.bf16 %v3596, %v3595
      %v3625 = vpack.c.bf16 %v3598, %v3597
      %v3626 = vpack.c.bf16 %v3600, %v3599
      %v3627 = vpack.c.bf16 %v3602, %v3601
      %v3628 = vpack.c.bf16 %v3604, %v3603
      %v3629 = vpack.c.bf16 %v3606, %v3605
      %v3630 = vpack.c.bf16 %v3608, %v3607
      %v3631 = vpack.c.bf16 %v3610, %v3609
      %v3632 = vpack.c.bf16 %v3612, %v3611
      %v3633 = vpack.c.bf16 %v3614, %v3613
      %v3634 = vpack.c.bf16 %v3616, %v3615
      %v3635 = vpack.c.bf16 %v3618, %v3617
      %v3636 = vpack.c.bf16 %v3620, %v3619
      %s3637 = scalar_lea.vmem %s4, 512
      %v3638 = vld [vmem:[%s3637] sm:$0xf]
      %v3639 = vld [vmem:[%s3637 + $0x4] sm:$0xf]
      %v3640 = vld [vmem:[%s3637 + $0x8] sm:$0xf]
      %v3641 = vld [vmem:[%s3637 + $0xc] sm:$0xf]
      %v3642 = vld [vmem:[%s3637 + $0x10] sm:$0xf]
      %v3643 = vld [vmem:[%s3637 + $0x14] sm:$0xf]
      %v3644 = vld [vmem:[%s3637 + $0x18] sm:$0xf]
      %v3645 = vld [vmem:[%s3637 + $0x1c] sm:$0xf]
      %v3646 = vld [vmem:[%s3637 + $0x20] sm:$0xf]
      %v3647 = vld [vmem:[%s3637 + $0x24] sm:$0xf]
      %v3648 = vld [vmem:[%s3637 + $0x28] sm:$0xf]
      %v3649 = vld [vmem:[%s3637 + $0x2c] sm:$0xf]
      %v3650 = vld [vmem:[%s3637 + $0x30] sm:$0xf]
      %v3651 = vld [vmem:[%s3637 + $0x34] sm:$0xf]
      %v3652 = vld [vmem:[%s3637 + $0x38] sm:$0xf]
      %v3653 = vld [vmem:[%s3637 + $0x3c] sm:$0xf]
      %v3670 = vunpack.c.l.b16 %v3638
      %v3671 = vunpack.c.l.b16 %v3639
      %v3672 = vunpack.c.l.b16 %v3640
      %v3673 = vunpack.c.l.b16 %v3641
      %v3674 = vunpack.c.l.b16 %v3642
      %v3675 = vunpack.c.l.b16 %v3643
      %v3676 = vunpack.c.l.b16 %v3644
      %v3677 = vunpack.c.l.b16 %v3645
      %v3678 = vunpack.c.l.b16 %v3646
      %v3679 = vunpack.c.l.b16 %v3647
      %v3680 = vunpack.c.l.b16 %v3648
      %v3681 = vunpack.c.l.b16 %v3649
      %v3682 = vunpack.c.l.b16 %v3650
      %v3683 = vunpack.c.l.b16 %v3651
      %v3684 = vunpack.c.l.b16 %v3652
      %v3685 = vunpack.c.l.b16 %v3653
      %v3686 = vpack.c.b16 %v3671, %v3670
      %v3687 = vpack.c.b16 %v3673, %v3672
      %v3688 = vpack.c.b16 %v3675, %v3674
      %v3689 = vpack.c.b16 %v3677, %v3676
      %v3690 = vpack.c.b16 %v3679, %v3678
      %v3691 = vpack.c.b16 %v3681, %v3680
      %v3692 = vpack.c.b16 %v3683, %v3682
      %v3693 = vpack.c.b16 %v3685, %v3684
      %3702 = vmatpush.bf16.msra.mxu0 %v3693
      %3703 = vmatpush.bf16.msra.mxu0 %v3692
      %3704 = vmatpush.bf16.msra.mxu0 %v3691
      %3705 = vmatpush.bf16.msra.mxu0 %v3690
      %3706 = vmatpush.bf16.msra.mxu0 %v3689
      %3707 = vmatpush.bf16.msra.mxu0 %v3688
      %3708 = vmatpush.bf16.msra.mxu0 %v3687
      %3709 = vmatpush.bf16.msra.mxu0 %v3686
      %3710 = vmatmul.bf16.gmra.mxu0 %v3621
      %v3711 = vpop.f32.mrf.mxu0
      %v3712 = vadd.f32 0.0, %v3711
      %v3713 = vpop.f32.mrf.mxu0
      %v3714 = vadd.f32 0.0, %v3713
      %3715 = vmatmul.bf16.gmra.mxu0 %v3622
      %v3716 = vpop.f32.mrf.mxu0
      %v3717 = vadd.f32 0.0, %v3716
      %v3718 = vpop.f32.mrf.mxu0
      %v3719 = vadd.f32 0.0, %v3718
      %3720 = vmatmul.bf16.gmra.mxu0 %v3623
      %v3721 = vpop.f32.mrf.mxu0
      %v3722 = vadd.f32 0.0, %v3721
      %v3723 = vpop.f32.mrf.mxu0
      %v3724 = vadd.f32 0.0, %v3723
      %3725 = vmatmul.bf16.gmra.mxu0 %v3624
      %v3726 = vpop.f32.mrf.mxu0
      %v3727 = vadd.f32 0.0, %v3726
      %v3728 = vpop.f32.mrf.mxu0
      %v3729 = vadd.f32 0.0, %v3728
      %3730 = vmatmul.bf16.gmra.mxu0 %v3625
      %v3731 = vpop.f32.mrf.mxu0
      %v3732 = vadd.f32 0.0, %v3731
      %v3733 = vpop.f32.mrf.mxu0
      %v3734 = vadd.f32 0.0, %v3733
      %3735 = vmatmul.bf16.gmra.mxu0 %v3626
      %v3736 = vpop.f32.mrf.mxu0
      %v3737 = vadd.f32 0.0, %v3736
      %v3738 = vpop.f32.mrf.mxu0
      %v3739 = vadd.f32 0.0, %v3738
      %3740 = vmatmul.bf16.gmra.mxu0 %v3627
      %v3741 = vpop.f32.mrf.mxu0
      %v3742 = vadd.f32 0.0, %v3741
      %v3743 = vpop.f32.mrf.mxu0
      %v3744 = vadd.f32 0.0, %v3743
      %3745 = vmatmul.bf16.gmra.mxu0 %v3628
      %v3746 = vpop.f32.mrf.mxu0
      %v3747 = vadd.f32 0.0, %v3746
      %v3748 = vpop.f32.mrf.mxu0
      %v3749 = vadd.f32 0.0, %v3748
      %3750 = vmatmul.bf16.gmra.mxu0 %v3629
      %v3751 = vpop.f32.mrf.mxu0
      %v3752 = vadd.f32 0.0, %v3751
      %v3753 = vpop.f32.mrf.mxu0
      %v3754 = vadd.f32 0.0, %v3753
      %3755 = vmatmul.bf16.gmra.mxu0 %v3630
      %v3756 = vpop.f32.mrf.mxu0
      %v3757 = vadd.f32 0.0, %v3756
      %v3758 = vpop.f32.mrf.mxu0
      %v3759 = vadd.f32 0.0, %v3758
      %3760 = vmatmul.bf16.gmra.mxu0 %v3631
      %v3761 = vpop.f32.mrf.mxu0
      %v3762 = vadd.f32 0.0, %v3761
      %v3763 = vpop.f32.mrf.mxu0
      %v3764 = vadd.f32 0.0, %v3763
      %3765 = vmatmul.bf16.gmra.mxu0 %v3632
      %v3766 = vpop.f32.mrf.mxu0
      %v3767 = vadd.f32 0.0, %v3766
      %v3768 = vpop.f32.mrf.mxu0
      %v3769 = vadd.f32 0.0, %v3768
      %3770 = vmatmul.bf16.gmra.mxu0 %v3633
      %v3771 = vpop.f32.mrf.mxu0
      %v3772 = vadd.f32 0.0, %v3771
      %v3773 = vpop.f32.mrf.mxu0
      %v3774 = vadd.f32 0.0, %v3773
      %3775 = vmatmul.bf16.gmra.mxu0 %v3634
      %v3776 = vpop.f32.mrf.mxu0
      %v3777 = vadd.f32 0.0, %v3776
      %v3778 = vpop.f32.mrf.mxu0
      %v3779 = vadd.f32 0.0, %v3778
      %3780 = vmatmul.bf16.gmra.mxu0 %v3635
      %v3781 = vpop.f32.mrf.mxu0
      %v3782 = vadd.f32 0.0, %v3781
      %v3783 = vpop.f32.mrf.mxu0
      %v3784 = vadd.f32 0.0, %v3783
      %3785 = vmatmul.bf16.gmra.mxu0 %v3636
      %v3786 = vpop.f32.mrf.mxu0
      %v3787 = vadd.f32 0.0, %v3786
      %v3788 = vpop.f32.mrf.mxu0
      %v3789 = vadd.f32 0.0, %v3788
      %3790 = vdwg.mxu0
      %v3791 = vadd.f32 %v3429, %v3712
      %v3792 = vadd.f32 %v3430, %v3714
      %v3793 = vadd.f32 %v3431, %v3717
      %v3794 = vadd.f32 %v3432, %v3719
      %v3795 = vadd.f32 %v3433, %v3722
      %v3796 = vadd.f32 %v3434, %v3724
      %v3797 = vadd.f32 %v3435, %v3727
      %v3798 = vadd.f32 %v3436, %v3729
      %v3799 = vadd.f32 %v3437, %v3732
      %v3800 = vadd.f32 %v3438, %v3734
      %v3801 = vadd.f32 %v3439, %v3737
      %v3802 = vadd.f32 %v3440, %v3739
      %v3803 = vadd.f32 %v3441, %v3742
      %v3804 = vadd.f32 %v3442, %v3744
      %v3805 = vadd.f32 %v3443, %v3747
      %v3806 = vadd.f32 %v3444, %v3749
      %v3807 = vadd.f32 %v3445, %v3752
      %v3808 = vadd.f32 %v3446, %v3754
      %v3809 = vadd.f32 %v3447, %v3757
      %v3810 = vadd.f32 %v3448, %v3759
      %v3811 = vadd.f32 %v3449, %v3762
      %v3812 = vadd.f32 %v3450, %v3764
      %v3813 = vadd.f32 %v3451, %v3767
      %v3814 = vadd.f32 %v3452, %v3769
      %v3815 = vadd.f32 %v3453, %v3772
      %v3816 = vadd.f32 %v3454, %v3774
      %v3817 = vadd.f32 %v3455, %v3777
      %v3818 = vadd.f32 %v3456, %v3779
      %v3819 = vadd.f32 %v3457, %v3782
      %v3820 = vadd.f32 %v3458, %v3784
      %v3821 = vadd.f32 %v3459, %v3787
      %v3822 = vadd.f32 %v3460, %v3789
      %v3823 = vpack.c.bf16 %v3791, %v3791
      %v3824 = vpack.c.bf16 %v3792, %v3792
      %v3825 = vpack.c.bf16 %v3793, %v3793
      %v3826 = vpack.c.bf16 %v3794, %v3794
      %v3827 = vpack.c.bf16 %v3795, %v3795
      %v3828 = vpack.c.bf16 %v3796, %v3796
      %v3829 = vpack.c.bf16 %v3797, %v3797
      %v3830 = vpack.c.bf16 %v3798, %v3798
      %v3831 = vpack.c.bf16 %v3799, %v3799
      %v3832 = vpack.c.bf16 %v3800, %v3800
      %v3833 = vpack.c.bf16 %v3801, %v3801
      %v3834 = vpack.c.bf16 %v3802, %v3802
      %v3835 = vpack.c.bf16 %v3803, %v3803
      %v3836 = vpack.c.bf16 %v3804, %v3804
      %v3837 = vpack.c.bf16 %v3805, %v3805
      %v3838 = vpack.c.bf16 %v3806, %v3806
      %v3839 = vpack.c.bf16 %v3807, %v3807
      %v3840 = vpack.c.bf16 %v3808, %v3808
      %v3841 = vpack.c.bf16 %v3809, %v3809
      %v3842 = vpack.c.bf16 %v3810, %v3810
      %v3843 = vpack.c.bf16 %v3811, %v3811
      %v3844 = vpack.c.bf16 %v3812, %v3812
      %v3845 = vpack.c.bf16 %v3813, %v3813
      %v3846 = vpack.c.bf16 %v3814, %v3814
      %v3847 = vpack.c.bf16 %v3815, %v3815
      %v3848 = vpack.c.bf16 %v3816, %v3816
      %v3849 = vpack.c.bf16 %v3817, %v3817
      %v3850 = vpack.c.bf16 %v3818, %v3818
      %v3851 = vpack.c.bf16 %v3819, %v3819
      %v3852 = vpack.c.bf16 %v3820, %v3820
      %v3853 = vpack.c.bf16 %v3821, %v3821
      %v3854 = vpack.c.bf16 %v3822, %v3822
      %3855 = vst [vmem:[%s260] sm:$0xf] %v3823
      %3856 = vst [vmem:[%s260 + $0x4] sm:$0xf] %v3824
      %3857 = vst [vmem:[%s260 + $0x8] sm:$0xf] %v3825
      %3858 = vst [vmem:[%s260 + $0xc] sm:$0xf] %v3826
      %3859 = vst [vmem:[%s260 + $0x10] sm:$0xf] %v3827
      %3860 = vst [vmem:[%s260 + $0x14] sm:$0xf] %v3828
      %3861 = vst [vmem:[%s260 + $0x18] sm:$0xf] %v3829
      %3862 = vst [vmem:[%s260 + $0x1c] sm:$0xf] %v3830
      %3863 = vst [vmem:[%s260 + $0x20] sm:$0xf] %v3831
      %3864 = vst [vmem:[%s260 + $0x24] sm:$0xf] %v3832
      %3865 = vst [vmem:[%s260 + $0x28] sm:$0xf] %v3833
      %3866 = vst [vmem:[%s260 + $0x2c] sm:$0xf] %v3834
      %3867 = vst [vmem:[%s260 + $0x30] sm:$0xf] %v3835
      %3868 = vst [vmem:[%s260 + $0x34] sm:$0xf] %v3836
      %3869 = vst [vmem:[%s260 + $0x38] sm:$0xf] %v3837
      %3870 = vst [vmem:[%s260 + $0x3c] sm:$0xf] %v3838
      %3871 = vst [vmem:[%s260 + $0x40] sm:$0xf] %v3839
      %3872 = vst [vmem:[%s260 + $0x44] sm:$0xf] %v3840
      %3873 = vst [vmem:[%s260 + $0x48] sm:$0xf] %v3841
      %3874 = vst [vmem:[%s260 + $0x4c] sm:$0xf] %v3842
      %3875 = vst [vmem:[%s260 + $0x50] sm:$0xf] %v3843
      %3876 = vst [vmem:[%s260 + $0x54] sm:$0xf] %v3844
      %3877 = vst [vmem:[%s260 + $0x58] sm:$0xf] %v3845
      %3878 = vst [vmem:[%s260 + $0x5c] sm:$0xf] %v3846
      %3879 = vst [vmem:[%s260 + $0x60] sm:$0xf] %v3847
      %3880 = vst [vmem:[%s260 + $0x64] sm:$0xf] %v3848
      %3881 = vst [vmem:[%s260 + $0x68] sm:$0xf] %v3849
      %3882 = vst [vmem:[%s260 + $0x6c] sm:$0xf] %v3850
      %3883 = vst [vmem:[%s260 + $0x70] sm:$0xf] %v3851
      %3884 = vst [vmem:[%s260 + $0x74] sm:$0xf] %v3852
      %3885 = vst [vmem:[%s260 + $0x78] sm:$0xf] %v3853
      %3886 = vst [vmem:[%s260 + $0x7c] sm:$0xf] %v3854
      %v3887 = vadd.f32 %v3791, %v3792
      %v3888 = vadd.f32 %v3887, %v3793
      %v3889 = vadd.f32 %v3888, %v3794
      %v3890 = vadd.f32 %v3889, %v3795
      %v3891 = vadd.f32 %v3890, %v3796
      %v3892 = vadd.f32 %v3891, %v3797
      %v3893 = vadd.f32 %v3892, %v3798
      %v3894 = vadd.f32 %v3893, %v3799
      %v3895 = vadd.f32 %v3894, %v3800
      %v3896 = vadd.f32 %v3895, %v3801
      %v3897 = vadd.f32 %v3896, %v3802
      %v3898 = vadd.f32 %v3897, %v3803
      %v3899 = vadd.f32 %v3898, %v3804
      %v3900 = vadd.f32 %v3899, %v3805
      %v3901 = vadd.f32 %v3900, %v3806
      %v3902 = vadd.f32 %v3901, %v3807
      %v3903 = vadd.f32 %v3902, %v3808
      %v3904 = vadd.f32 %v3903, %v3809
      %v3905 = vadd.f32 %v3904, %v3810
      %v3906 = vadd.f32 %v3905, %v3811
      %v3907 = vadd.f32 %v3906, %v3812
      %v3908 = vadd.f32 %v3907, %v3813
      %v3909 = vadd.f32 %v3908, %v3814
      %v3910 = vadd.f32 %v3909, %v3815
      %v3911 = vadd.f32 %v3910, %v3816
      %v3912 = vadd.f32 %v3911, %v3817
      %v3913 = vadd.f32 %v3912, %v3818
      %v3914 = vadd.f32 %v3913, %v3819
      %v3915 = vadd.f32 %v3914, %v3820
      %v3916 = vadd.f32 %v3915, %v3821
      %v3917 = vadd.f32 %v3916, %v3822
      %v3918 = vrot.slane %v3917, 4
      %v3919 = vadd.f32 %v3917, %v3918
      %v3920 = vrot.slane %v3919, 2
      %v3921 = vadd.f32 %v3919, %v3920
      %v3922 = vrot.slane %v3921, 1
      %v3923 = vadd.f32 %v3921, %v3922
      %3924 = vst [vmem:[%s265] sm:$0x1] %v3923
      %v3925 = vmul.f32 %v3791, %v3791
      %v3926 = vmul.f32 %v3792, %v3792
      %v3927 = vmul.f32 %v3793, %v3793
      %v3928 = vmul.f32 %v3794, %v3794
      %v3929 = vmul.f32 %v3795, %v3795
      %v3930 = vmul.f32 %v3796, %v3796
      %v3931 = vmul.f32 %v3797, %v3797
      %v3932 = vmul.f32 %v3798, %v3798
      %v3933 = vmul.f32 %v3799, %v3799
      %v3934 = vmul.f32 %v3800, %v3800
      %v3935 = vmul.f32 %v3801, %v3801
      %v3936 = vmul.f32 %v3802, %v3802
      %v3937 = vmul.f32 %v3803, %v3803
      %v3938 = vmul.f32 %v3804, %v3804
      %v3939 = vmul.f32 %v3805, %v3805
      %v3940 = vmul.f32 %v3806, %v3806
      %v3941 = vmul.f32 %v3807, %v3807
      %v3942 = vmul.f32 %v3808, %v3808
      %v3943 = vmul.f32 %v3809, %v3809
      %v3944 = vmul.f32 %v3810, %v3810
      %v3945 = vmul.f32 %v3811, %v3811
      %v3946 = vmul.f32 %v3812, %v3812
      %v3947 = vmul.f32 %v3813, %v3813
      %v3948 = vmul.f32 %v3814, %v3814
      %v3949 = vmul.f32 %v3815, %v3815
      %v3950 = vmul.f32 %v3816, %v3816
      %v3951 = vmul.f32 %v3817, %v3817
      %v3952 = vmul.f32 %v3818, %v3818
      %v3953 = vmul.f32 %v3819, %v3819
      %v3954 = vmul.f32 %v3820, %v3820
      %v3955 = vmul.f32 %v3821, %v3821
      %v3956 = vmul.f32 %v3822, %v3822
      %v3957 = vadd.f32 %v3925, %v3926
      %v3958 = vadd.f32 %v3957, %v3927
      %v3959 = vadd.f32 %v3958, %v3928
      %v3960 = vadd.f32 %v3959, %v3929
      %v3961 = vadd.f32 %v3960, %v3930
      %v3962 = vadd.f32 %v3961, %v3931
      %v3963 = vadd.f32 %v3962, %v3932
      %v3964 = vadd.f32 %v3963, %v3933
      %v3965 = vadd.f32 %v3964, %v3934
      %v3966 = vadd.f32 %v3965, %v3935
      %v3967 = vadd.f32 %v3966, %v3936
      %v3968 = vadd.f32 %v3967, %v3937
      %v3969 = vadd.f32 %v3968, %v3938
      %v3970 = vadd.f32 %v3969, %v3939
      %v3971 = vadd.f32 %v3970, %v3940
      %v3972 = vadd.f32 %v3971, %v3941
      %v3973 = vadd.f32 %v3972, %v3942
      %v3974 = vadd.f32 %v3973, %v3943
      %v3975 = vadd.f32 %v3974, %v3944
      %v3976 = vadd.f32 %v3975, %v3945
      %v3977 = vadd.f32 %v3976, %v3946
      %v3978 = vadd.f32 %v3977, %v3947
      %v3979 = vadd.f32 %v3978, %v3948
      %v3980 = vadd.f32 %v3979, %v3949
      %v3981 = vadd.f32 %v3980, %v3950
      %v3982 = vadd.f32 %v3981, %v3951
      %v3983 = vadd.f32 %v3982, %v3952
      %v3984 = vadd.f32 %v3983, %v3953
      %v3985 = vadd.f32 %v3984, %v3954
      %v3986 = vadd.f32 %v3985, %v3955
      %v3987 = vadd.f32 %v3986, %v3956
      %v3988 = vrot.slane %v3987, 4
      %v3989 = vadd.f32 %v3987, %v3988
      %v3990 = vrot.slane %v3989, 2
      %v3991 = vadd.f32 %v3989, %v3990
      %v3992 = vrot.slane %v3991, 1
      %v3993 = vadd.f32 %v3991, %v3992
      %3994 = vst [vmem:[%s265 + $0x1] sm:$0x1] %v3993
      %s3995 = smul.u32 32, %s18
      %p3996 = scmp.lt.s32.totalorder %s3995, 63
      %s3997 = scalar_select %p3996, %s3995, 63
      %s3998 = smul.addr %s3997, 4
      %s3999 = scalar_lea.vmem %s5, %s3998
      %p4000 = scmp.lt.s32.totalorder %s18, 1
      %s4001 = scalar_select %p4000, %s18, 1
      %s4002 = smul.addr %s4001, 2
      %s4003 = scalar_lea.vmem %s6, %s4002
      // Predicated region
      $region41: #{residual_block_forward.5} parent=39 // pred_check
        %p4004 = pneg %p146
      $region42: #{residual_block_forward.5} parent=39 // pred_check_branch
        %4006 = sbr.rel (%p4004) target = $region44
      $region43: #{residual_block_forward.5} parent=39 // pred_region
        %s4007 = smul.u32 32, %s18
      $region44: #{residual_block_forward.5} parent=39 // pred_fallthru
        _
      // Predicated region
      $region45: #{residual_block_forward.5} parent=39 // pred_check
        %p4008 = pneg %p172
      $region46: #{residual_block_forward.5} parent=39 // pred_check_branch
        %4010 = sbr.rel (%p4008) target = $region48
      $region47: #{residual_block_forward.5} parent=39 // pred_region
        _
      $region48: #{residual_block_forward.5} parent=39 // pred_fallthru
        _
    $region40: #{residual_block_forward.5} parent=5 // pred_fallthru
      _
    %p4011 = scmp.le.s32.totalorder 2, %s13
    // Predicated region
    $region49: #{residual_block_forward.5} parent=5 // pred_check
      %p4012 = pneg %p4011
    $region50: #{residual_block_forward.5} parent=5 // pred_check_branch
      %4014 = sbr.rel (%p4012) target = $region52
    $region51: #{residual_block_forward.5} parent=5 // pred_region
      %s4015 = ssub.s32 %s13, 2
      // Predicated region
      $region53: #{residual_block_forward.5} parent=51 // pred_check
        %p4016 = pneg %p152
      $region54: #{residual_block_forward.5} parent=51 // pred_check_branch
        %4018 = sbr.rel (%p4016) target = $region56
      $region55: #{residual_block_forward.5} parent=51 // pred_region
        %s4019 = smul.u32 32, %s19
        %p4020 = scmp.lt.s32.totalorder %s4019, 63
        %s4021 = scalar_select %p4020, %s4019, 63
        %s4022 = smul.addr %s4021, 4
        %s4023 = scalar_lea.vmem %s5, %s4022
      $region56: #{residual_block_forward.5} parent=51 // pred_fallthru
        _
      // Predicated region
      $region57: #{residual_block_forward.5} parent=51 // pred_check
        %p4024 = pneg %p178
      $region58: #{residual_block_forward.5} parent=51 // pred_check_branch
        %4026 = sbr.rel (%p4024) target = $region60
      $region59: #{residual_block_forward.5} parent=51 // pred_region
        %p4027 = scmp.lt.s32.totalorder %s19, 1
        %s4028 = scalar_select %p4027, %s19, 1
        %s4029 = smul.addr %s4028, 2
        %s4030 = scalar_lea.vmem %s6, %s4029
      $region60: #{residual_block_forward.5} parent=51 // pred_fallthru
        _
    $region52: #{residual_block_forward.5} parent=5 // pred_fallthru
      _
  $region6: #{residual_block_forward.5} parent=0 // loop_footer
    %s17 = sadd.s32 1, %s13
  $region7: #{residual_block_forward.5} parent=0 // loop_footer_branch
    %12 = sbr.rel target = $region3
  $region8: #{residual_block_forward.5} parent=0 // loop_exit
    _

</llo_original>
